<compile_context>
chip_gen: v5e
topology: v5e:2x2
jax: 0.10.0
libtpu: 0.0.40
codegen_flags: <defaults>
</compile_context>

<pallas_src>
import functools

import jax
import jax.numpy as jnp
from jax import lax
from jax.experimental import pallas as pl
from jax.experimental.pallas import tpu as pltpu

# ----------------------------------------------------------------- config ---
# Width-scaled (x1/8) ResNet-18 so the example runs fast at small shapes; the
# topology (stem 7x7/s2, maxpool, 4 stages x 2 BasicBlocks, strides 1/2/2/2)
# matches torchvision resnet18 with avgpool+fc stripped (as in the module).
STEM_CH = 8
LAYER_PLANES = (8, 16, 32, 64)
LAYER_BLOCKS = (2, 2, 2, 2)
LAYER_STRIDES = (1, 2, 2, 2)
EMBED = LAYER_PLANES[-1]          # backbone channels (stands in for 512)
MAX_OCR_LEN = 5
T_SEQ = 2 * MAX_OCR_LEN           # projection output channels == sequence length
LSTM_HIDDEN = 64                  # stands in for 384
N_CLASSES = 40
IMG = 64                          # input size (stands in for 224)
LATENT_W = IMG // 32              # backbone output width (the PyTorch dry-run value)
BN_EPS = 1e-5
BF16 = jnp.bfloat16


# --------------------------------------------------------------- kernels ----
def _mm_kernel(a_ref, b_ref, bias_ref, o_ref, *, activation):
    r = jnp.dot(a_ref[...], b_ref[...], preferred_element_type=jnp.float32)
    r = r + bias_ref[...]
    if activation == "relu":
        r = jnp.maximum(r, 0.0)
    elif activation == "log_softmax":
        r = r - jnp.max(r, axis=-1, keepdims=True)
        r = r - jnp.log(jnp.sum(jnp.exp(r), axis=-1, keepdims=True))
    o_ref[...] = r.astype(o_ref.dtype)


def _mm_res_kernel(a_ref, b_ref, bias_ref, res_ref, o_ref, *, activation):
    # conv + bias + residual + ReLU fused (ResNet BasicBlock epilogue), f32 math.
    r = jnp.dot(a_ref[...], b_ref[...], preferred_element_type=jnp.float32)
    r = r + bias_ref[...] + res_ref[...].astype(jnp.float32)
    if activation == "relu":
        r = jnp.maximum(r, 0.0)
    o_ref[...] = r.astype(o_ref.dtype)


def _mean_axis1_kernel(x_ref, o_ref):
    o_ref[...] = jnp.mean(x_ref[...].astype(jnp.float32), axis=1)


def _bilstm_kernel(xp_ref, whh_ref, hs_ref, h_sc, c_sc, *, hidden):
    # One grid step = one (direction, timestep); h/c live in VMEM scratch.
    t = pl.program_id(1)

    @pl.when(t == 0)
    def _():
        h_sc[...] = jnp.zeros_like(h_sc)
        c_sc[...] = jnp.zeros_like(c_sc)

    gates = xp_ref[0, 0] + jnp.dot(h_sc[...], whh_ref[0],
                                   preferred_element_type=jnp.float32)
    H = hidden
    i = jax.nn.sigmoid(gates[:, 0 * H:1 * H])     # PyTorch gate order (i, f, g, o)
    f = jax.nn.sigmoid(gates[:, 1 * H:2 * H])
    g = jnp.tanh(gates[:, 2 * H:3 * H])
    o = jax.nn.sigmoid(gates[:, 3 * H:4 * H])
    c_new = f * c_sc[...] + i * g
    h_new = o * jnp.tanh(c_new)
    h_sc[...] = h_new
    c_sc[...] = c_new
    hs_ref[0, 0] = h_new


# --------------------------------------------------------------- wrappers ---
def _round_up(x, m):
    return (x + m - 1) // m * m


def pallas_matmul(a, b, bias, residual=None, activation=None,
                  out_dtype=jnp.float32, tm_cap=256):
    """act(a @ b + bias [+ residual]).  Full-K/N blocks (no 128-padding copies),
    grid only over M with a shape-adaptive tile, f32 accumulation & epilogue."""
    M, K = a.shape
    K2, N = b.shape
    assert K == K2
    bias2d = bias.reshape(1, N).astype(jnp.float32)

    if M > tm_cap:                       # tile M (>=2 parallel points for megacore)
        tm = tm_cap
        Mp = _round_up(M, tm)
    else:                                # single full-array block (exempt from 8/128)
        tm, Mp = M, M
    pad = Mp - M
    if pad:
        a = jnp.pad(a, ((0, pad), (0, 0)))
        if residual is not None:
            residual = jnp.pad(residual, ((0, pad), (0, 0)))

    in_specs = [
        pl.BlockSpec((tm, K), lambda i: (i, 0)),
        pl.BlockSpec((K, N), lambda i: (0, 0)),      # weights stay resident
        pl.BlockSpec((1, N), lambda i: (0, 0)),
    ]
    args = [a, b, bias2d]
    if residual is None:
        kernel = functools.partial(_mm_kernel, activation=activation)
    else:
        kernel = functools.partial(_mm_res_kernel, activation=activation)
        in_specs.append(pl.BlockSpec((tm, N), lambda i: (i, 0)))
        args.append(residual)

    out = pl.pallas_call(
        kernel,
        out_shape=jax.ShapeDtypeStruct((Mp, N), out_dtype),
        grid_spec=pltpu.PrefetchScalarGridSpec(
            num_scalar_prefetch=0,
            grid=(Mp // tm,),
            in_specs=in_specs,
            out_specs=pl.BlockSpec((tm, N), lambda i: (i, 0)),
        ),
        compiler_params=pltpu.CompilerParams(
            dimension_semantics=("parallel",)),
    )(*args)
    return out[:M] if pad else out


def conv2d(x, cw, *, kh, kw, stride=1, padding=0, relu=True,
           residual=None, out_dtype=BF16):
    """NHWC conv as im2col + fused Pallas matmul.  cw = {'w': (kh*kw*Cin, Cout) bf16,
    'b': (Cout,) f32} already BN-folded / transposed by prepare_params()."""
    B, H, W, Cin = x.shape
    Cout = cw['w'].shape[1]
    assert cw['w'].shape[0] == kh * kw * Cin
    Ho = (H + 2 * padding - kh) // stride + 1
    Wo = (W + 2 * padding - kw) // stride + 1
    if padding:
        x = jnp.pad(x, ((0, 0), (padding, padding), (padding, padding), (0, 0)))
    if kh == 1 and kw == 1:
        patches = x[:, ::stride, ::stride, :] if stride > 1 else x
    else:
        # TODO(synk): im2col is still materialized by XLA before the matmul; at
        # realistic widths the (dy,dx) taps should move into an in-kernel K loop.
        cols = []
        for dy in range(kh):
            for dx in range(kw):
                cols.append(x[:, dy:dy + stride * (Ho - 1) + 1:stride,
                              dx:dx + stride * (Wo - 1) + 1:stride, :])
        patches = jnp.concatenate(cols, axis=-1)
    a = patches.reshape(B * Ho * Wo, kh * kw * Cin).astype(BF16)
    res = None if residual is None else residual.reshape(B * Ho * Wo, Cout)
    out = pallas_matmul(a, cw['w'], cw['b'], residual=res,
                        activation="relu" if relu else None, out_dtype=out_dtype)
    return out.reshape(B, Ho, Wo, Cout)


def max_pool_3x3_s2_p1(x):
    # TODO(synk): maxpool kept as one fused XLA reduce_window; a dedicated Pallas
    # kernel would add a launch with no HBM saving at these sizes.
    return lax.reduce_window(x, jnp.array(-jnp.inf, x.dtype), lax.max,
                             window_dimensions=(1, 3, 3, 1),
                             window_strides=(1, 2, 2, 1),
                             padding=((0, 0), (1, 1), (1, 1), (0, 0)))


def adaptive_pool_h(x):
    # AdaptiveAvgPool2d((1, W)) with W already == latent width: mean over H only.
    B, H, W, C = x.shape
    out = pl.pallas_call(
        _mean_axis1_kernel,
        out_shape=jax.ShapeDtypeStruct((B, W * C), jnp.float32),
    )(x.reshape(B, H, W * C))
    return out.reshape(B, W, C)


def lstm_bidir_layer(x_tbc, lp, hidden):
    """One bidirectional LSTM layer: 1 fused input-projection matmul (both
    directions) + 1 pallas_call scanning all timesteps with grid=(2, T)."""
    T, B, In = x_tbc.shape
    H4 = 4 * hidden
    xp = pallas_matmul(x_tbc.reshape(T * B, In), lp['w_ih'], lp['b'])    # (T*B, 8H)
    xp = xp.reshape(T, B, 2, H4).transpose(2, 0, 1, 3)                   # (2, T, B, 4H)

    def t_map(d, t):                       # forward: t; backward: T-1-t
        return (1 - d) * t + d * (T - 1 - t)

    hs = pl.pallas_call(
        functools.partial(_bilstm_kernel, hidden=hidden),
        out_shape=jax.ShapeDtypeStruct((2, T, B, hidden), jnp.float32),
        grid_spec=pltpu.PrefetchScalarGridSpec(
            num_scalar_prefetch=0,
            grid=(2, T),
            in_specs=[
                pl.BlockSpec((1, 1, B, H4), lambda d, t: (d, t_map(d, t), 0, 0)),
                pl.BlockSpec((1, hidden, H4), lambda d, t: (d, 0, 0)),
            ],
            out_specs=pl.BlockSpec((1, 1, B, hidden),
                                   lambda d, t: (d, t_map(d, t), 0, 0)),
            scratch_shapes=[pltpu.VMEM((B, hidden), jnp.float32),
                            pltpu.VMEM((B, hidden), jnp.float32)],
        ),
        compiler_params=pltpu.CompilerParams(
            dimension_semantics=("arbitrary", "arbitrary")),
    )(xp, lp['w_hh'])
    return jnp.concatenate([hs[0], hs[1]], axis=-1)                      # (T, B, 2H)


# ---------------------------------------------------------------- modules ---
def basic_block(x, blk, stride):
    if 'down' in blk:
        identity = conv2d(x, blk['down'], kh=1, kw=1, stride=stride,
                          padding=0, relu=False)
    else:
        identity = x
    out = conv2d(x, blk['conv1'], kh=3, kw=3, stride=stride, padding=1, relu=True)
    # residual add + ReLU fused into the conv2 matmul epilogue.
    out = conv2d(out, blk['conv2'], kh=3, kw=3, stride=1, padding=1,
                 relu=True, residual=identity)
    return out


def forward(x_nchw, P):
    x = jnp.transpose(x_nchw, (0, 2, 3, 1)).astype(BF16)             # NCHW -> NHWC
    x = conv2d(x, P['stem'], kh=7, kw=7, stride=2, padding=3, relu=True)
    x = max_pool_3x3_s2_p1(x)
    for blocks, stride in zip(P['layers'], LAYER_STRIDES):
        for bi, blk in enumerate(blocks):
            x = basic_block(x, blk, stride if bi == 0 else 1)
    # x: (B, Hb, Wb, EMBED) -> AdaptiveAvgPool2d((1, Wb)) -> (B, Wb, EMBED)
    pooled = adaptive_pool_h(x)
    # _apply_projection: permute(0,3,2,1): conv channels = latent width,
    # spatial = (1, EMBED); 4-layer ConvBlock (3x3, padding='same', ReLU).
    h = jnp.transpose(pooled, (0, 2, 1))[:, None, :, :].astype(BF16)  # (B,1,EMBED,Wlat)
    for cw in P['proj']:
        h = conv2d(h, cw, kh=3, kw=3, stride=1, padding=1, relu=True)
    # squeeze(2).permute(1,0,2) -> (T, B, EMBED)
    seq = jnp.transpose(h[:, 0].astype(jnp.float32), (2, 0, 1))
    out = seq
    for lp in P['lstm']:
        out = lstm_bidir_layer(out, lp, LSTM_HIDDEN)                  # (T, B, 2H)
    T, B, F = out.shape
    y = pallas_matmul(out.reshape(T * B, F), P['fc_w'], P['fc_b'],
                      activation="log_softmax")                       # fused log_softmax
    return y.reshape(T, B, N_CLASSES)


# ----------------------------------------------------------- param building --
def _normal(key, shape, scale=0.05):
    return scale * jax.random.normal(key, shape, dtype=jnp.float32)


def _make_bn(key, c):
    k1, k2, k3, k4 = jax.random.split(key, 4)
    gamma = 1.0 + 0.1 * jax.random.normal(k1, (c,), jnp.float32)
    beta = 0.1 * jax.random.normal(k2, (c,), jnp.float32)
    mean = 0.1 * jax.random.normal(k3, (c,), jnp.float32)
    var = jax.random.uniform(k4, (c,), jnp.float32, 0.5, 1.5)
    return (gamma, beta, mean, var)


def build_raw_params(key):
    keys = iter(jax.random.split(key, 512))
    nk = lambda: next(keys)
    raw = {'stem': {'w': _normal(nk(), (STEM_CH, 3, 7, 7)),
                    'bn': _make_bn(nk(), STEM_CH)}}
    layers, in_c = [], STEM_CH
    for planes, nblocks, stride in zip(LAYER_PLANES, LAYER_BLOCKS, LAYER_STRIDES):
        blocks = []
        for bi in range(nblocks):
            blk = {'conv1': {'w': _normal(nk(), (planes, in_c, 3, 3)),
                             'bn': _make_bn(nk(), planes)},
                   'conv2': {'w': _normal(nk(), (planes, planes, 3, 3)),
                             'bn': _make_bn(nk(), planes)}}
            if bi == 0 and (stride != 1 or in_c != planes):
                blk['down'] = {'w': _normal(nk(), (planes, in_c, 1, 1)),
                               'bn': _make_bn(nk(), planes)}
            blocks.append(blk)
            in_c = planes
        layers.append(blocks)
    raw['layers'] = layers
    # ConvBlock(3, LATENT_W, 2*MAX_OCR_LEN, 3): 1 + 3 Conv2d(+ReLU), padding='same'.
    proj = [{'w': _normal(nk(), (T_SEQ, LATENT_W, 3, 3)), 'b': _normal(nk(), (T_SEQ,))}]
    for _ in range(3):
        proj.append({'w': _normal(nk(), (T_SEQ, T_SEQ, 3, 3)),
                     'b': _normal(nk(), (T_SEQ,))})
    raw['proj'] = proj
    # 2-layer bidirectional LSTM + Linear(2H, n_classes).
    lstm, in_sz = [], EMBED
    for _ in range(2):
        layer = {}
        for d in ('fwd', 'bwd'):
            layer[d] = {'w_ih': _normal(nk(), (4 * LSTM_HIDDEN, in_sz)),
                        'w_hh': _normal(nk(), (4 * LSTM_HIDDEN, LSTM_HIDDEN)),
                        'b_ih': _normal(nk(), (4 * LSTM_HIDDEN,)),
                        'b_hh': _normal(nk(), (4 * LSTM_HIDDEN,))}
        lstm.append(layer)
        in_sz = 2 * LSTM_HIDDEN
    raw['lstm'] = lstm
    raw['fc'] = {'w': _normal(nk(), (N_CLASSES, 2 * LSTM_HIDDEN)),
                 'b': _normal(nk(), (N_CLASSES,))}
    return raw


def _prep_conv(w, bn=None, bias=None, dtype=BF16):
    # Fold inference BatchNorm and lay the weight out as (KH*KW*Cin, Cout) ONCE.
    cout, cin, kh, kw = w.shape
    if bn is not None:
        gamma, beta, mean, var = bn
        scale = gamma / jnp.sqrt(var + BN_EPS)
        w = w * scale[:, None, None, None]
        b = beta - mean * scale
    else:
        b = bias if bias is not None else jnp.zeros((cout,), jnp.float32)
    w_mat = jnp.transpose(w, (2, 3, 1, 0)).reshape(kh * kw * cin, cout)
    return {'w': w_mat.astype(dtype), 'b': b.astype(jnp.float32)}


def prepare_params(raw):
    """One-time weight re-layout (BN folding, transposes, dtype casts)."""
    P = {'stem': _prep_conv(raw['stem']['w'], bn=raw['stem']['bn'])}
    P['layers'] = [[{name: _prep_conv(c['w'], bn=c['bn']) for name, c in blk.items()}
                    for blk in blocks] for blocks in raw['layers']]
    P['proj'] = [_prep_conv(c['w'], bias=c['b']) for c in raw['proj']]
    lstm = []
    for layer in raw['lstm']:
        f, b = layer['fwd'], layer['bwd']
        lstm.append({
            'w_ih': jnp.concatenate([f['w_ih'].T, b['w_ih'].T], axis=1),   # (In, 8H)
            'b': jnp.concatenate([f['b_ih'] + f['b_hh'], b['b_ih'] + b['b_hh']]),
            'w_hh': jnp.stack([f['w_hh'].T, b['w_hh'].T]),                 # (2, H, 4H)
        })
    P['lstm'] = lstm
    P['fc_w'] = raw['fc']['w'].T
    P['fc_b'] = raw['fc']['b']
    return P


# -------------------------------------------------------------------- main ---
if __name__ == "__main__":
    key = jax.random.PRNGKey(0)
    pkey, xkey = jax.random.split(key)
    params = prepare_params(build_raw_params(pkey))     # one-time weight prep
    # NCHW input (PyTorch convention): batch=2, 3 channels, 64x64 image.
    x = jax.random.normal(xkey, (2, 3, IMG, IMG), dtype=jnp.float32)

    fwd = jax.jit(forward)
    out = jax.block_until_ready(fwd(x, params))

    assert out.shape == (T_SEQ, 2, N_CLASSES), out.shape
    assert bool(jnp.all(jnp.isfinite(out)))
    print("KERNEL_OK")
</pallas_src>

<mosaic_0001>
module attributes {stable_mosaic.version = 11 : i64} {
  func.func @_mm_kernel(%arg0: i32, %arg1: memref<256x147xbf16, #tpu.memory_space<vmem>>, %arg2: memref<147x8xbf16, #tpu.memory_space<vmem>>, %arg3: memref<1x8xf32, #tpu.memory_space<vmem>>, %arg4: memref<256x8xbf16, #tpu.memory_space<vmem>>) attributes {dimension_semantics = [#tpu.dimension_semantics<parallel>], iteration_bounds = array<i64: 8>, scalar_prefetch = 0 : i64, scratch_operands = 0 : i64, tpu.core_type = #tpu.core_type<tc>, window_params = [{transform_indices = @transform_0, window_bounds = array<i64: 256, 147>}, {pipeline_mode = #tpu.pipeline_mode<synchronous>, transform_indices = @transform_1, window_bounds = array<i64: 147, 8>}, {pipeline_mode = #tpu.pipeline_mode<synchronous>, transform_indices = @transform_2, window_bounds = array<i64: 1, 8>}, {transform_indices = @transform_3, window_bounds = array<i64: 256, 8>}]} {
    %c0 = arith.constant 0 : index
    %c0_0 = arith.constant 0 : index
    %0 = vector.load %arg1[%c0, %c0_0] : memref<256x147xbf16, #tpu.memory_space<vmem>>, vector<256x147xbf16>
    %c0_1 = arith.constant 0 : index
    %c0_2 = arith.constant 0 : index
    %1 = vector.load %arg2[%c0_1, %c0_2] : memref<147x8xbf16, #tpu.memory_space<vmem>>, vector<147x8xbf16>
    %cst = arith.constant dense<0.000000e+00> : vector<256x8xf32>
    %2 = tpu.matmul %0, %1, %cst {dimension_numbers = #tpu.dot_dimension_numbers<[1], [0], [0], [1], [0, 0, 1, 1], [], []>} : vector<256x147xbf16>, vector<147x8xbf16>, vector<256x8xf32> -> vector<256x8xf32>
    %c0_3 = arith.constant 0 : index
    %c0_4 = arith.constant 0 : index
    %3 = vector.load %arg3[%c0_3, %c0_4] : memref<1x8xf32, #tpu.memory_space<vmem>>, vector<1x8xf32>
    %4 = vector.broadcast %3 : vector<1x8xf32> to vector<256x8xf32>
    %5 = arith.addf %2, %4 : vector<256x8xf32>
    %cst_5 = arith.constant 0.000000e+00 : f32
    %6 = vector.broadcast %cst_5 : f32 to vector<256x8xf32>
    %7 = arith.maximumf %5, %6 : vector<256x8xf32>
    %8 = arith.truncf %7 : vector<256x8xf32> to vector<256x8xbf16>
    %c0_6 = arith.constant 0 : index
    %c0_7 = arith.constant 0 : index
    %9 = vector.load %arg4[%c0_6, %c0_7] : memref<256x8xbf16, #tpu.memory_space<vmem>>, vector<256x8xbf16>
    tpu.vector_store %arg4[%c0_6, %c0_7], %8 {strides = array<i32>} : memref<256x8xbf16, #tpu.memory_space<vmem>>, vector<256x8xbf16>,
    return
  }
  func.func @transform_0(%arg0: i32) -> (i32, i32) {
    %c0_i32 = arith.constant 0 : i32
    %c0_i32_0 = arith.constant 0 : i32
    return %arg0, %c0_i32 : i32, i32
  }
  func.func @transform_1(%arg0: i32) -> (i32, i32) {
    %c0_i32 = arith.constant 0 : i32
    %c0_i32_0 = arith.constant 0 : i32
    %c0_i32_1 = arith.constant 0 : i32
    return %c0_i32, %c0_i32_0 : i32, i32
  }
  func.func @transform_2(%arg0: i32) -> (i32, i32) {
    %c0_i32 = arith.constant 0 : i32
    %c0_i32_0 = arith.constant 0 : i32
    %c0_i32_1 = arith.constant 0 : i32
    return %c0_i32, %c0_i32_0 : i32, i32
  }
  func.func @transform_3(%arg0: i32) -> (i32, i32) {
    %c0_i32 = arith.constant 0 : i32
    %c0_i32_0 = arith.constant 0 : i32
    return %arg0, %c0_i32 : i32, i32
  }
}

module attributes {stable_mosaic.version = 11 : i64} {
  func.func @_mm_kernel(%arg0: i32, %arg1: memref<256x72xbf16, #tpu.memory_space<vmem>>, %arg2: memref<72x8xbf16, #tpu.memory_space<vmem>>, %arg3: memref<1x8xf32, #tpu.memory_space<vmem>>, %arg4: memref<256x8xbf16, #tpu.memory_space<vmem>>) attributes {dimension_semantics = [#tpu.dimension_semantics<parallel>], iteration_bounds = array<i64: 2>, scalar_prefetch = 0 : i64, scratch_operands = 0 : i64, tpu.core_type = #tpu.core_type<tc>, window_params = [{transform_indices = @transform_0, window_bounds = array<i64: 256, 72>}, {pipeline_mode = #tpu.pipeline_mode<synchronous>, transform_indices = @transform_1, window_bounds = array<i64: 72, 8>}, {pipeline_mode = #tpu.pipeline_mode<synchronous>, transform_indices = @transform_2, window_bounds = array<i64: 1, 8>}, {transform_indices = @transform_3, window_bounds = array<i64: 256, 8>}]} {
    %c0 = arith.constant 0 : index
    %c0_0 = arith.constant 0 : index
    %0 = vector.load %arg1[%c0, %c0_0] : memref<256x72xbf16, #tpu.memory_space<vmem>>, vector<256x72xbf16>
    %c0_1 = arith.constant 0 : index
    %c0_2 = arith.constant 0 : index
    %1 = vector.load %arg2[%c0_1, %c0_2] : memref<72x8xbf16, #tpu.memory_space<vmem>>, vector<72x8xbf16>
    %cst = arith.constant dense<0.000000e+00> : vector<256x8xf32>
    %2 = tpu.matmul %0, %1, %cst {dimension_numbers = #tpu.dot_dimension_numbers<[1], [0], [0], [1], [0, 0, 1, 1], [], []>} : vector<256x72xbf16>, vector<72x8xbf16>, vector<256x8xf32> -> vector<256x8xf32>
    %c0_3 = arith.constant 0 : index
    %c0_4 = arith.constant 0 : index
    %3 = vector.load %arg3[%c0_3, %c0_4] : memref<1x8xf32, #tpu.memory_space<vmem>>, vector<1x8xf32>
    %4 = vector.broadcast %3 : vector<1x8xf32> to vector<256x8xf32>
    %5 = arith.addf %2, %4 : vector<256x8xf32>
    %cst_5 = arith.constant 0.000000e+00 : f32
    %6 = vector.broadcast %cst_5 : f32 to vector<256x8xf32>
    %7 = arith.maximumf %5, %6 : vector<256x8xf32>
    %8 = arith.truncf %7 : vector<256x8xf32> to vector<256x8xbf16>
    %c0_6 = arith.constant 0 : index
    %c0_7 = arith.constant 0 : index
    %9 = vector.load %arg4[%c0_6, %c0_7] : memref<256x8xbf16, #tpu.memory_space<vmem>>, vector<256x8xbf16>
    tpu.vector_store %arg4[%c0_6, %c0_7], %8 {strides = array<i32>} : memref<256x8xbf16, #tpu.memory_space<vmem>>, vector<256x8xbf16>,
    return
  }
  func.func @transform_0(%arg0: i32) -> (i32, i32) {
    %c0_i32 = arith.constant 0 : i32
    %c0_i32_0 = arith.constant 0 : i32
    return %arg0, %c0_i32 : i32, i32
  }
  func.func @transform_1(%arg0: i32) -> (i32, i32) {
    %c0_i32 = arith.constant 0 : i32
    %c0_i32_0 = arith.constant 0 : i32
    %c0_i32_1 = arith.constant 0 : i32
    return %c0_i32, %c0_i32_0 : i32, i32
  }
  func.func @transform_2(%arg0: i32) -> (i32, i32) {
    %c0_i32 = arith.constant 0 : i32
    %c0_i32_0 = arith.constant 0 : i32
    %c0_i32_1 = arith.constant 0 : i32
    return %c0_i32, %c0_i32_0 : i32, i32
  }
  func.func @transform_3(%arg0: i32) -> (i32, i32) {
    %c0_i32 = arith.constant 0 : i32
    %c0_i32_0 = arith.constant 0 : i32
    return %arg0, %c0_i32 : i32, i32
  }
}

module attributes {stable_mosaic.version = 11 : i64} {
  func.func @_mm_res_kernel(%arg0: i32, %arg1: memref<256x72xbf16, #tpu.memory_space<vmem>>, %arg2: memref<72x8xbf16, #tpu.memory_space<vmem>>, %arg3: memref<1x8xf32, #tpu.memory_space<vmem>>, %arg4: memref<256x8xbf16, #tpu.memory_space<vmem>>, %arg5: memref<256x8xbf16, #tpu.memory_space<vmem>>) attributes {dimension_semantics = [#tpu.dimension_semantics<parallel>], iteration_bounds = array<i64: 2>, scalar_prefetch = 0 : i64, scratch_operands = 0 : i64, tpu.core_type = #tpu.core_type<tc>, window_params = [{transform_indices = @transform_0, window_bounds = array<i64: 256, 72>}, {pipeline_mode = #tpu.pipeline_mode<synchronous>, transform_indices = @transform_1, window_bounds = array<i64: 72, 8>}, {pipeline_mode = #tpu.pipeline_mode<synchronous>, transform_indices = @transform_2, window_bounds = array<i64: 1, 8>}, {transform_indices = @transform_3, window_bounds = array<i64: 256, 8>}, {transform_indices = @transform_4, window_bounds = array<i64: 256, 8>}]} {
    %c0 = arith.constant 0 : index
    %c0_0 = arith.constant 0 : index
    %0 = vector.load %arg1[%c0, %c0_0] : memref<256x72xbf16, #tpu.memory_space<vmem>>, vector<256x72xbf16>
    %c0_1 = arith.constant 0 : index
    %c0_2 = arith.constant 0 : index
    %1 = vector.load %arg2[%c0_1, %c0_2] : memref<72x8xbf16, #tpu.memory_space<vmem>>, vector<72x8xbf16>
    %cst = arith.constant dense<0.000000e+00> : vector<256x8xf32>
    %2 = tpu.matmul %0, %1, %cst {dimension_numbers = #tpu.dot_dimension_numbers<[1], [0], [0], [1], [0, 0, 1, 1], [], []>} : vector<256x72xbf16>, vector<72x8xbf16>, vector<256x8xf32> -> vector<256x8xf32>
    %c0_3 = arith.constant 0 : index
    %c0_4 = arith.constant 0 : index
    %3 = vector.load %arg3[%c0_3, %c0_4] : memref<1x8xf32, #tpu.memory_space<vmem>>, vector<1x8xf32>
    %4 = vector.broadcast %3 : vector<1x8xf32> to vector<256x8xf32>
    %5 = arith.addf %2, %4 : vector<256x8xf32>
    %c0_5 = arith.constant 0 : index
    %c0_6 = arith.constant 0 : index
    %6 = vector.load %arg4[%c0_5, %c0_6] : memref<256x8xbf16, #tpu.memory_space<vmem>>, vector<256x8xbf16>
    %7 = arith.extf %6 : vector<256x8xbf16> to vector<256x8xf32>
    %8 = arith.addf %5, %7 : vector<256x8xf32>
    %cst_7 = arith.constant 0.000000e+00 : f32
    %9 = vector.broadcast %cst_7 : f32 to vector<256x8xf32>
    %10 = arith.maximumf %8, %9 : vector<256x8xf32>
    %11 = arith.truncf %10 : vector<256x8xf32> to vector<256x8xbf16>
    %c0_8 = arith.constant 0 : index
    %c0_9 = arith.constant 0 : index
    %12 = vector.load %arg5[%c0_8, %c0_9] : memref<256x8xbf16, #tpu.memory_space<vmem>>, vector<256x8xbf16>
    tpu.vector_store %arg5[%c0_8, %c0_9], %11 {strides = array<i32>} : memref<256x8xbf16, #tpu.memory_space<vmem>>, vector<256x8xbf16>,
    return
  }
  func.func @transform_0(%arg0: i32) -> (i32, i32) {
    %c0_i32 = arith.constant 0 : i32
    %c0_i32_0 = arith.constant 0 : i32
    return %arg0, %c0_i32 : i32, i32
  }
  func.func @transform_1(%arg0: i32) -> (i32, i32) {
    %c0_i32 = arith.constant 0 : i32
    %c0_i32_0 = arith.constant 0 : i32
    %c0_i32_1 = arith.constant 0 : i32
    return %c0_i32, %c0_i32_0 : i32, i32
  }
  func.func @transform_2(%arg0: i32) -> (i32, i32) {
    %c0_i32 = arith.constant 0 : i32
    %c0_i32_0 = arith.constant 0 : i32
    %c0_i32_1 = arith.constant 0 : i32
    return %c0_i32, %c0_i32_0 : i32, i32
  }
  func.func @transform_3(%arg0: i32) -> (i32, i32) {
    %c0_i32 = arith.constant 0 : i32
    %c0_i32_0 = arith.constant 0 : i32
    return %arg0, %c0_i32 : i32, i32
  }
  func.func @transform_4(%arg0: i32) -> (i32, i32) {
    %c0_i32 = arith.constant 0 : i32
    %c0_i32_0 = arith.constant 0 : i32
    return %arg0, %c0_i32 : i32, i32
  }
}

module attributes {stable_mosaic.version = 11 : i64} {
  func.func @_mm_kernel(%arg0: i32, %arg1: memref<128x72xbf16, #tpu.memory_space<vmem>>, %arg2: memref<72x16xbf16, #tpu.memory_space<vmem>>, %arg3: memref<1x16xf32, #tpu.memory_space<vmem>>, %arg4: memref<128x16xbf16, #tpu.memory_space<vmem>>) attributes {dimension_semantics = [#tpu.dimension_semantics<parallel>], iteration_bounds = array<i64: 1>, scalar_prefetch = 0 : i64, scratch_operands = 0 : i64, tpu.core_type = #tpu.core_type<tc>, window_params = [{transform_indices = @transform_0, window_bounds = array<i64: 128, 72>}, {pipeline_mode = #tpu.pipeline_mode<synchronous>, transform_indices = @transform_1, window_bounds = array<i64: 72, 16>}, {pipeline_mode = #tpu.pipeline_mode<synchronous>, transform_indices = @transform_2, window_bounds = array<i64: 1, 16>}, {transform_indices = @transform_3, window_bounds = array<i64: 128, 16>}]} {
    %c0 = arith.constant 0 : index
    %c0_0 = arith.constant 0 : index
    %0 = vector.load %arg1[%c0, %c0_0] : memref<128x72xbf16, #tpu.memory_space<vmem>>, vector<128x72xbf16>
    %c0_1 = arith.constant 0 : index
    %c0_2 = arith.constant 0 : index
    %1 = vector.load %arg2[%c0_1, %c0_2] : memref<72x16xbf16, #tpu.memory_space<vmem>>, vector<72x16xbf16>
    %cst = arith.constant dense<0.000000e+00> : vector<128x16xf32>
    %2 = tpu.matmul %0, %1, %cst {dimension_numbers = #tpu.dot_dimension_numbers<[1], [0], [0], [1], [0, 0, 1, 1], [], []>} : vector<128x72xbf16>, vector<72x16xbf16>, vector<128x16xf32> -> vector<128x16xf32>
    %c0_3 = arith.constant 0 : index
    %c0_4 = arith.constant 0 : index
    %3 = vector.load %arg3[%c0_3, %c0_4] : memref<1x16xf32, #tpu.memory_space<vmem>>, vector<1x16xf32>
    %4 = vector.broadcast %3 : vector<1x16xf32> to vector<128x16xf32>
    %5 = arith.addf %2, %4 : vector<128x16xf32>
    %cst_5 = arith.constant 0.000000e+00 : f32
    %6 = vector.broadcast %cst_5 : f32 to vector<128x16xf32>
    %7 = arith.maximumf %5, %6 : vector<128x16xf32>
    %8 = arith.truncf %7 : vector<128x16xf32> to vector<128x16xbf16>
    %c0_6 = arith.constant 0 : index
    %c0_7 = arith.constant 0 : index
    %9 = vector.load %arg4[%c0_6, %c0_7] : memref<128x16xbf16, #tpu.memory_space<vmem>>, vector<128x16xbf16>
    tpu.vector_store %arg4[%c0_6, %c0_7], %8 {strides = array<i32>} : memref<128x16xbf16, #tpu.memory_space<vmem>>, vector<128x16xbf16>,
    return
  }
  func.func @transform_0(%arg0: i32) -> (i32, i32) {
    %c0_i32 = arith.constant 0 : i32
    %c0_i32_0 = arith.constant 0 : i32
    return %arg0, %c0_i32 : i32, i32
  }
  func.func @transform_1(%arg0: i32) -> (i32, i32) {
    %c0_i32 = arith.constant 0 : i32
    %c0_i32_0 = arith.constant 0 : i32
    %c0_i32_1 = arith.constant 0 : i32
    return %c0_i32, %c0_i32_0 : i32, i32
  }
  func.func @transform_2(%arg0: i32) -> (i32, i32) {
    %c0_i32 = arith.constant 0 : i32
    %c0_i32_0 = arith.constant 0 : i32
    %c0_i32_1 = arith.constant 0 : i32
    return %c0_i32, %c0_i32_0 : i32, i32
  }
  func.func @transform_3(%arg0: i32) -> (i32, i32) {
    %c0_i32 = arith.constant 0 : i32
    %c0_i32_0 = arith.constant 0 : i32
    return %arg0, %c0_i32 : i32, i32
  }
}

module attributes {stable_mosaic.version = 11 : i64} {
  func.func @_mm_kernel(%arg0: i32, %arg1: memref<128x144xbf16, #tpu.memory_space<vmem>>, %arg2: memref<144x16xbf16, #tpu.memory_space<vmem>>, %arg3: memref<1x16xf32, #tpu.memory_space<vmem>>, %arg4: memref<128x16xbf16, #tpu.memory_space<vmem>>) attributes {dimension_semantics = [#tpu.dimension_semantics<parallel>], iteration_bounds = array<i64: 1>, scalar_prefetch = 0 : i64, scratch_operands = 0 : i64, tpu.core_type = #tpu.core_type<tc>, window_params = [{transform_indices = @transform_0, window_bounds = array<i64: 128, 144>}, {pipeline_mode = #tpu.pipeline_mode<synchronous>, transform_indices = @transform_1, window_bounds = array<i64: 144, 16>}, {pipeline_mode = #tpu.pipeline_mode<synchronous>, transform_indices = @transform_2, window_bounds = array<i64: 1, 16>}, {transform_indices = @transform_3, window_bounds = array<i64: 128, 16>}]} {
    %c0 = arith.constant 0 : index
    %c0_0 = arith.constant 0 : index
    %0 = vector.load %arg1[%c0, %c0_0] : memref<128x144xbf16, #tpu.memory_space<vmem>>, vector<128x144xbf16>
    %c0_1 = arith.constant 0 : index
    %c0_2 = arith.constant 0 : index
    %1 = vector.load %arg2[%c0_1, %c0_2] : memref<144x16xbf16, #tpu.memory_space<vmem>>, vector<144x16xbf16>
    %cst = arith.constant dense<0.000000e+00> : vector<128x16xf32>
    %2 = tpu.matmul %0, %1, %cst {dimension_numbers = #tpu.dot_dimension_numbers<[1], [0], [0], [1], [0, 0, 1, 1], [], []>} : vector<128x144xbf16>, vector<144x16xbf16>, vector<128x16xf32> -> vector<128x16xf32>
    %c0_3 = arith.constant 0 : index
    %c0_4 = arith.constant 0 : index
    %3 = vector.load %arg3[%c0_3, %c0_4] : memref<1x16xf32, #tpu.memory_space<vmem>>, vector<1x16xf32>
    %4 = vector.broadcast %3 : vector<1x16xf32> to vector<128x16xf32>
    %5 = arith.addf %2, %4 : vector<128x16xf32>
    %cst_5 = arith.constant 0.000000e+00 : f32
    %6 = vector.broadcast %cst_5 : f32 to vector<128x16xf32>
    %7 = arith.maximumf %5, %6 : vector<128x16xf32>
    %8 = arith.truncf %7 : vector<128x16xf32> to vector<128x16xbf16>
    %c0_6 = arith.constant 0 : index
    %c0_7 = arith.constant 0 : index
    %9 = vector.load %arg4[%c0_6, %c0_7] : memref<128x16xbf16, #tpu.memory_space<vmem>>, vector<128x16xbf16>
    tpu.vector_store %arg4[%c0_6, %c0_7], %8 {strides = array<i32>} : memref<128x16xbf16, #tpu.memory_space<vmem>>, vector<128x16xbf16>,
    return
  }
  func.func @transform_0(%arg0: i32) -> (i32, i32) {
    %c0_i32 = arith.constant 0 : i32
    %c0_i32_0 = arith.constant 0 : i32
    return %arg0, %c0_i32 : i32, i32
  }
  func.func @transform_1(%arg0: i32) -> (i32, i32) {
    %c0_i32 = arith.constant 0 : i32
    %c0_i32_0 = arith.constant 0 : i32
    %c0_i32_1 = arith.constant 0 : i32
    return %c0_i32, %c0_i32_0 : i32, i32
  }
  func.func @transform_2(%arg0: i32) -> (i32, i32) {
    %c0_i32 = arith.constant 0 : i32
    %c0_i32_0 = arith.constant 0 : i32
    %c0_i32_1 = arith.constant 0 : i32
    return %c0_i32, %c0_i32_0 : i32, i32
  }
  func.func @transform_3(%arg0: i32) -> (i32, i32) {
    %c0_i32 = arith.constant 0 : i32
    %c0_i32_0 = arith.constant 0 : i32
    return %arg0, %c0_i32 : i32, i32
  }
}

module attributes {stable_mosaic.version = 11 : i64} {
  func.func @_mm_res_kernel(%arg0: i32, %arg1: memref<128x144xbf16, #tpu.memory_space<vmem>>, %arg2: memref<144x16xbf16, #tpu.memory_space<vmem>>, %arg3: memref<1x16xf32, #tpu.memory_space<vmem>>, %arg4: memref<128x16xbf16, #tpu.memory_space<vmem>>, %arg5: memref<128x16xbf16, #tpu.memory_space<vmem>>) attributes {dimension_semantics = [#tpu.dimension_semantics<parallel>], iteration_bounds = array<i64: 1>, scalar_prefetch = 0 : i64, scratch_operands = 0 : i64, tpu.core_type = #tpu.core_type<tc>, window_params = [{transform_indices = @transform_0, window_bounds = array<i64: 128, 144>}, {pipeline_mode = #tpu.pipeline_mode<synchronous>, transform_indices = @transform_1, window_bounds = array<i64: 144, 16>}, {pipeline_mode = #tpu.pipeline_mode<synchronous>, transform_indices = @transform_2, window_bounds = array<i64: 1, 16>}, {transform_indices = @transform_3, window_bounds = array<i64: 128, 16>}, {transform_indices = @transform_4, window_bounds = array<i64: 128, 16>}]} {
    %c0 = arith.constant 0 : index
    %c0_0 = arith.constant 0 : index
    %0 = vector.load %arg1[%c0, %c0_0] : memref<128x144xbf16, #tpu.memory_space<vmem>>, vector<128x144xbf16>
    %c0_1 = arith.constant 0 : index
    %c0_2 = arith.constant 0 : index
    %1 = vector.load %arg2[%c0_1, %c0_2] : memref<144x16xbf16, #tpu.memory_space<vmem>>, vector<144x16xbf16>
    %cst = arith.constant dense<0.000000e+00> : vector<128x16xf32>
    %2 = tpu.matmul %0, %1, %cst {dimension_numbers = #tpu.dot_dimension_numbers<[1], [0], [0], [1], [0, 0, 1, 1], [], []>} : vector<128x144xbf16>, vector<144x16xbf16>, vector<128x16xf32> -> vector<128x16xf32>
    %c0_3 = arith.constant 0 : index
    %c0_4 = arith.constant 0 : index
    %3 = vector.load %arg3[%c0_3, %c0_4] : memref<1x16xf32, #tpu.memory_space<vmem>>, vector<1x16xf32>
    %4 = vector.broadcast %3 : vector<1x16xf32> to vector<128x16xf32>
    %5 = arith.addf %2, %4 : vector<128x16xf32>
    %c0_5 = arith.constant 0 : index
    %c0_6 = arith.constant 0 : index
    %6 = vector.load %arg4[%c0_5, %c0_6] : memref<128x16xbf16, #tpu.memory_space<vmem>>, vector<128x16xbf16>
    %7 = arith.extf %6 : vector<128x16xbf16> to vector<128x16xf32>
    %8 = arith.addf %5, %7 : vector<128x16xf32>
    %cst_7 = arith.constant 0.000000e+00 : f32
    %9 = vector.broadcast %cst_7 : f32 to vector<128x16xf32>
    %10 = arith.maximumf %8, %9 : vector<128x16xf32>
    %11 = arith.truncf %10 : vector<128x16xf32> to vector<128x16xbf16>
    %c0_8 = arith.constant 0 : index
    %c0_9 = arith.constant 0 : index
    %12 = vector.load %arg5[%c0_8, %c0_9] : memref<128x16xbf16, #tpu.memory_space<vmem>>, vector<128x16xbf16>
    tpu.vector_store %arg5[%c0_8, %c0_9], %11 {strides = array<i32>} : memref<128x16xbf16, #tpu.memory_space<vmem>>, vector<128x16xbf16>,
    return
  }
  func.func @transform_0(%arg0: i32) -> (i32, i32) {
    %c0_i32 = arith.constant 0 : i32
    %c0_i32_0 = arith.constant 0 : i32
    return %arg0, %c0_i32 : i32, i32
  }
  func.func @transform_1(%arg0: i32) -> (i32, i32) {
    %c0_i32 = arith.constant 0 : i32
    %c0_i32_0 = arith.constant 0 : i32
    %c0_i32_1 = arith.constant 0 : i32
    return %c0_i32, %c0_i32_0 : i32, i32
  }
  func.func @transform_2(%arg0: i32) -> (i32, i32) {
    %c0_i32 = arith.constant 0 : i32
    %c0_i32_0 = arith.constant 0 : i32
    %c0_i32_1 = arith.constant 0 : i32
    return %c0_i32, %c0_i32_0 : i32, i32
  }
  func.func @transform_3(%arg0: i32) -> (i32, i32) {
    %c0_i32 = arith.constant 0 : i32
    %c0_i32_0 = arith.constant 0 : i32
    return %arg0, %c0_i32 : i32, i32
  }
  func.func @transform_4(%arg0: i32) -> (i32, i32) {
    %c0_i32 = arith.constant 0 : i32
    %c0_i32_0 = arith.constant 0 : i32
    return %arg0, %c0_i32 : i32, i32
  }
}

module attributes {stable_mosaic.version = 11 : i64} {
  func.func @_mm_kernel(%arg0: i32, %arg1: memref<128x8xbf16, #tpu.memory_space<vmem>>, %arg2: memref<8x16xbf16, #tpu.memory_space<vmem>>, %arg3: memref<1x16xf32, #tpu.memory_space<vmem>>, %arg4: memref<128x16xbf16, #tpu.memory_space<vmem>>) attributes {dimension_semantics = [#tpu.dimension_semantics<parallel>], iteration_bounds = array<i64: 1>, scalar_prefetch = 0 : i64, scratch_operands = 0 : i64, tpu.core_type = #tpu.core_type<tc>, window_params = [{transform_indices = @transform_0, window_bounds = array<i64: 128, 8>}, {pipeline_mode = #tpu.pipeline_mode<synchronous>, transform_indices = @transform_1, window_bounds = array<i64: 8, 16>}, {pipeline_mode = #tpu.pipeline_mode<synchronous>, transform_indices = @transform_2, window_bounds = array<i64: 1, 16>}, {transform_indices = @transform_3, window_bounds = array<i64: 128, 16>}]} {
    %c0 = arith.constant 0 : index
    %c0_0 = arith.constant 0 : index
    %0 = vector.load %arg1[%c0, %c0_0] : memref<128x8xbf16, #tpu.memory_space<vmem>>, vector<128x8xbf16>
    %c0_1 = arith.constant 0 : index
    %c0_2 = arith.constant 0 : index
    %1 = vector.load %arg2[%c0_1, %c0_2] : memref<8x16xbf16, #tpu.memory_space<vmem>>, vector<8x16xbf16>
    %cst = arith.constant dense<0.000000e+00> : vector<128x16xf32>
    %2 = tpu.matmul %0, %1, %cst {dimension_numbers = #tpu.dot_dimension_numbers<[1], [0], [0], [1], [0, 0, 1, 1], [], []>} : vector<128x8xbf16>, vector<8x16xbf16>, vector<128x16xf32> -> vector<128x16xf32>
    %c0_3 = arith.constant 0 : index
    %c0_4 = arith.constant 0 : index
    %3 = vector.load %arg3[%c0_3, %c0_4] : memref<1x16xf32, #tpu.memory_space<vmem>>, vector<1x16xf32>
    %4 = vector.broadcast %3 : vector<1x16xf32> to vector<128x16xf32>
    %5 = arith.addf %2, %4 : vector<128x16xf32>
    %6 = arith.truncf %5 : vector<128x16xf32> to vector<128x16xbf16>
    %c0_5 = arith.constant 0 : index
    %c0_6 = arith.constant 0 : index
    %7 = vector.load %arg4[%c0_5, %c0_6] : memref<128x16xbf16, #tpu.memory_space<vmem>>, vector<128x16xbf16>
    tpu.vector_store %arg4[%c0_5, %c0_6], %6 {strides = array<i32>} : memref<128x16xbf16, #tpu.memory_space<vmem>>, vector<128x16xbf16>,
    return
  }
  func.func @transform_0(%arg0: i32) -> (i32, i32) {
    %c0_i32 = arith.constant 0 : i32
    %c0_i32_0 = arith.constant 0 : i32
    return %arg0, %c0_i32 : i32, i32
  }
  func.func @transform_1(%arg0: i32) -> (i32, i32) {
    %c0_i32 = arith.constant 0 : i32
    %c0_i32_0 = arith.constant 0 : i32
    %c0_i32_1 = arith.constant 0 : i32
    return %c0_i32, %c0_i32_0 : i32, i32
  }
  func.func @transform_2(%arg0: i32) -> (i32, i32) {
    %c0_i32 = arith.constant 0 : i32
    %c0_i32_0 = arith.constant 0 : i32
    %c0_i32_1 = arith.constant 0 : i32
    return %c0_i32, %c0_i32_0 : i32, i32
  }
  func.func @transform_3(%arg0: i32) -> (i32, i32) {
    %c0_i32 = arith.constant 0 : i32
    %c0_i32_0 = arith.constant 0 : i32
    return %arg0, %c0_i32 : i32, i32
  }
}

module attributes {stable_mosaic.version = 11 : i64} {
  func.func @_mm_kernel(%arg0: i32, %arg1: memref<32x144xbf16, #tpu.memory_space<vmem>>, %arg2: memref<144x32xbf16, #tpu.memory_space<vmem>>, %arg3: memref<1x32xf32, #tpu.memory_space<vmem>>, %arg4: memref<32x32xbf16, #tpu.memory_space<vmem>>) attributes {dimension_semantics = [#tpu.dimension_semantics<parallel>], iteration_bounds = array<i64: 1>, scalar_prefetch = 0 : i64, scratch_operands = 0 : i64, tpu.core_type = #tpu.core_type<tc>, window_params = [{transform_indices = @transform_0, window_bounds = array<i64: 32, 144>}, {pipeline_mode = #tpu.pipeline_mode<synchronous>, transform_indices = @transform_1, window_bounds = array<i64: 144, 32>}, {pipeline_mode = #tpu.pipeline_mode<synchronous>, transform_indices = @transform_2, window_bounds = array<i64: 1, 32>}, {transform_indices = @transform_3, window_bounds = array<i64: 32, 32>}]} {
    %c0 = arith.constant 0 : index
    %c0_0 = arith.constant 0 : index
    %0 = vector.load %arg1[%c0, %c0_0] : memref<32x144xbf16, #tpu.memory_space<vmem>>, vector<32x144xbf16>
    %c0_1 = arith.constant 0 : index
    %c0_2 = arith.constant 0 : index
    %1 = vector.load %arg2[%c0_1, %c0_2] : memref<144x32xbf16, #tpu.memory_space<vmem>>, vector<144x32xbf16>
    %cst = arith.constant dense<0.000000e+00> : vector<32x32xf32>
    %2 = tpu.matmul %0, %1, %cst {dimension_numbers = #tpu.dot_dimension_numbers<[1], [0], [0], [1], [0, 0, 1, 1], [], []>} : vector<32x144xbf16>, vector<144x32xbf16>, vector<32x32xf32> -> vector<32x32xf32>
    %c0_3 = arith.constant 0 : index
    %c0_4 = arith.constant 0 : index
    %3 = vector.load %arg3[%c0_3, %c0_4] : memref<1x32xf32, #tpu.memory_space<vmem>>, vector<1x32xf32>
    %4 = vector.broadcast %3 : vector<1x32xf32> to vector<32x32xf32>
    %5 = arith.addf %2, %4 : vector<32x32xf32>
    %cst_5 = arith.constant 0.000000e+00 : f32
    %6 = vector.broadcast %cst_5 : f32 to vector<32x32xf32>
    %7 = arith.maximumf %5, %6 : vector<32x32xf32>
    %8 = arith.truncf %7 : vector<32x32xf32> to vector<32x32xbf16>
    %c0_6 = arith.constant 0 : index
    %c0_7 = arith.constant 0 : index
    %9 = vector.load %arg4[%c0_6, %c0_7] : memref<32x32xbf16, #tpu.memory_space<vmem>>, vector<32x32xbf16>
    tpu.vector_store %arg4[%c0_6, %c0_7], %8 {strides = array<i32>} : memref<32x32xbf16, #tpu.memory_space<vmem>>, vector<32x32xbf16>,
    return
  }
  func.func @transform_0(%arg0: i32) -> (i32, i32) {
    %c0_i32 = arith.constant 0 : i32
    %c0_i32_0 = arith.constant 0 : i32
    return %arg0, %c0_i32 : i32, i32
  }
  func.func @transform_1(%arg0: i32) -> (i32, i32) {
    %c0_i32 = arith.constant 0 : i32
    %c0_i32_0 = arith.constant 0 : i32
    %c0_i32_1 = arith.constant 0 : i32
    return %c0_i32, %c0_i32_0 : i32, i32
  }
  func.func @transform_2(%arg0: i32) -> (i32, i32) {
    %c0_i32 = arith.constant 0 : i32
    %c0_i32_0 = arith.constant 0 : i32
    %c0_i32_1 = arith.constant 0 : i32
    return %c0_i32, %c0_i32_0 : i32, i32
  }
  func.func @transform_3(%arg0: i32) -> (i32, i32) {
    %c0_i32 = arith.constant 0 : i32
    %c0_i32_0 = arith.constant 0 : i32
    return %arg0, %c0_i32 : i32, i32
  }
}

module attributes {stable_mosaic.version = 11 : i64} {
  func.func @_mm_res_kernel(%arg0: i32, %arg1: memref<32x288xbf16, #tpu.memory_space<vmem>>, %arg2: memref<288x32xbf16, #tpu.memory_space<vmem>>, %arg3: memref<1x32xf32, #tpu.memory_space<vmem>>, %arg4: memref<32x32xbf16, #tpu.memory_space<vmem>>, %arg5: memref<32x32xbf16, #tpu.memory_space<vmem>>) attributes {dimension_semantics = [#tpu.dimension_semantics<parallel>], iteration_bounds = array<i64: 1>, scalar_prefetch = 0 : i64, scratch_operands = 0 : i64, tpu.core_type = #tpu.core_type<tc>, window_params = [{transform_indices = @transform_0, window_bounds = array<i64: 32, 288>}, {pipeline_mode = #tpu.pipeline_mode<synchronous>, transform_indices = @transform_1, window_bounds = array<i64: 288, 32>}, {pipeline_mode = #tpu.pipeline_mode<synchronous>, transform_indices = @transform_2, window_bounds = array<i64: 1, 32>}, {transform_indices = @transform_3, window_bounds = array<i64: 32, 32>}, {transform_indices = @transform_4, window_bounds = array<i64: 32, 32>}]} {
    %c0 = arith.constant 0 : index
    %c0_0 = arith.constant 0 : index
    %0 = vector.load %arg1[%c0, %c0_0] : memref<32x288xbf16, #tpu.memory_space<vmem>>, vector<32x288xbf16>
    %c0_1 = arith.constant 0 : index
    %c0_2 = arith.constant 0 : index
    %1 = vector.load %arg2[%c0_1, %c0_2] : memref<288x32xbf16, #tpu.memory_space<vmem>>, vector<288x32xbf16>
    %cst = arith.constant dense<0.000000e+00> : vector<32x32xf32>
    %2 = tpu.matmul %0, %1, %cst {dimension_numbers = #tpu.dot_dimension_numbers<[1], [0], [0], [1], [0, 0, 1, 1], [], []>} : vector<32x288xbf16>, vector<288x32xbf16>, vector<32x32xf32> -> vector<32x32xf32>
    %c0_3 = arith.constant 0 : index
    %c0_4 = arith.constant 0 : index
    %3 = vector.load %arg3[%c0_3, %c0_4] : memref<1x32xf32, #tpu.memory_space<vmem>>, vector<1x32xf32>
    %4 = vector.broadcast %3 : vector<1x32xf32> to vector<32x32xf32>
    %5 = arith.addf %2, %4 : vector<32x32xf32>
    %c0_5 = arith.constant 0 : index
    %c0_6 = arith.constant 0 : index
    %6 = vector.load %arg4[%c0_5, %c0_6] : memref<32x32xbf16, #tpu.memory_space<vmem>>, vector<32x32xbf16>
    %7 = arith.extf %6 : vector<32x32xbf16> to vector<32x32xf32>
    %8 = arith.addf %5, %7 : vector<32x32xf32>
    %cst_7 = arith.constant 0.000000e+00 : f32
    %9 = vector.broadcast %cst_7 : f32 to vector<32x32xf32>
    %10 = arith.maximumf %8, %9 : vector<32x32xf32>
    %11 = arith.truncf %10 : vector<32x32xf32> to vector<32x32xbf16>
    %c0_8 = arith.constant 0 : index
    %c0_9 = arith.constant 0 : index
    %12 = vector.load %arg5[%c0_8, %c0_9] : memref<32x32xbf16, #tpu.memory_space<vmem>>, vector<32x32xbf16>
    tpu.vector_store %arg5[%c0_8, %c0_9], %11 {strides = array<i32>} : memref<32x32xbf16, #tpu.memory_space<vmem>>, vector<32x32xbf16>,
    return
  }
  func.func @transform_0(%arg0: i32) -> (i32, i32) {
    %c0_i32 = arith.constant 0 : i32
    %c0_i32_0 = arith.constant 0 : i32
    return %arg0, %c0_i32 : i32, i32
  }
  func.func @transform_1(%arg0: i32) -> (i32, i32) {
    %c0_i32 = arith.constant 0 : i32
    %c0_i32_0 = arith.constant 0 : i32
    %c0_i32_1 = arith.constant 0 : i32
    return %c0_i32, %c0_i32_0 : i32, i32
  }
  func.func @transform_2(%arg0: i32) -> (i32, i32) {
    %c0_i32 = arith.constant 0 : i32
    %c0_i32_0 = arith.constant 0 : i32
    %c0_i32_1 = arith.constant 0 : i32
    return %c0_i32, %c0_i32_0 : i32, i32
  }
  func.func @transform_3(%arg0: i32) -> (i32, i32) {
    %c0_i32 = arith.constant 0 : i32
    %c0_i32_0 = arith.constant 0 : i32
    return %arg0, %c0_i32 : i32, i32
  }
  func.func @transform_4(%arg0: i32) -> (i32, i32) {
    %c0_i32 = arith.constant 0 : i32
    %c0_i32_0 = arith.constant 0 : i32
    return %arg0, %c0_i32 : i32, i32
  }
}

module attributes {stable_mosaic.version = 11 : i64} {
  func.func @_mm_kernel(%arg0: i32, %arg1: memref<32x16xbf16, #tpu.memory_space<vmem>>, %arg2: memref<16x32xbf16, #tpu.memory_space<vmem>>, %arg3: memref<1x32xf32, #tpu.memory_space<vmem>>, %arg4: memref<32x32xbf16, #tpu.memory_space<vmem>>) attributes {dimension_semantics = [#tpu.dimension_semantics<parallel>], iteration_bounds = array<i64: 1>, scalar_prefetch = 0 : i64, scratch_operands = 0 : i64, tpu.core_type = #tpu.core_type<tc>, window_params = [{transform_indices = @transform_0, window_bounds = array<i64: 32, 16>}, {pipeline_mode = #tpu.pipeline_mode<synchronous>, transform_indices = @transform_1, window_bounds = array<i64: 16, 32>}, {pipeline_mode = #tpu.pipeline_mode<synchronous>, transform_indices = @transform_2, window_bounds = array<i64: 1, 32>}, {transform_indices = @transform_3, window_bounds = array<i64: 32, 32>}]} {
    %c0 = arith.constant 0 : index
    %c0_0 = arith.constant 0 : index
    %0 = vector.load %arg1[%c0, %c0_0] : memref<32x16xbf16, #tpu.memory_space<vmem>>, vector<32x16xbf16>
    %c0_1 = arith.constant 0 : index
    %c0_2 = arith.constant 0 : index
    %1 = vector.load %arg2[%c0_1, %c0_2] : memref<16x32xbf16, #tpu.memory_space<vmem>>, vector<16x32xbf16>
    %cst = arith.constant dense<0.000000e+00> : vector<32x32xf32>
    %2 = tpu.matmul %0, %1, %cst {dimension_numbers = #tpu.dot_dimension_numbers<[1], [0], [0], [1], [0, 0, 1, 1], [], []>} : vector<32x16xbf16>, vector<16x32xbf16>, vector<32x32xf32> -> vector<32x32xf32>
    %c0_3 = arith.constant 0 : index
    %c0_4 = arith.constant 0 : index
    %3 = vector.load %arg3[%c0_3, %c0_4] : memref<1x32xf32, #tpu.memory_space<vmem>>, vector<1x32xf32>
    %4 = vector.broadcast %3 : vector<1x32xf32> to vector<32x32xf32>
    %5 = arith.addf %2, %4 : vector<32x32xf32>
    %6 = arith.truncf %5 : vector<32x32xf32> to vector<32x32xbf16>
    %c0_5 = arith.constant 0 : index
    %c0_6 = arith.constant 0 : index
    %7 = vector.load %arg4[%c0_5, %c0_6] : memref<32x32xbf16, #tpu.memory_space<vmem>>, vector<32x32xbf16>
    tpu.vector_store %arg4[%c0_5, %c0_6], %6 {strides = array<i32>} : memref<32x32xbf16, #tpu.memory_space<vmem>>, vector<32x32xbf16>,
    return
  }
  func.func @transform_0(%arg0: i32) -> (i32, i32) {
    %c0_i32 = arith.constant 0 : i32
    %c0_i32_0 = arith.constant 0 : i32
    return %arg0, %c0_i32 : i32, i32
  }
  func.func @transform_1(%arg0: i32) -> (i32, i32) {
    %c0_i32 = arith.constant 0 : i32
    %c0_i32_0 = arith.constant 0 : i32
    %c0_i32_1 = arith.constant 0 : i32
    return %c0_i32, %c0_i32_0 : i32, i32
  }
  func.func @transform_2(%arg0: i32) -> (i32, i32) {
    %c0_i32 = arith.constant 0 : i32
    %c0_i32_0 = arith.constant 0 : i32
    %c0_i32_1 = arith.constant 0 : i32
    return %c0_i32, %c0_i32_0 : i32, i32
  }
  func.func @transform_3(%arg0: i32) -> (i32, i32) {
    %c0_i32 = arith.constant 0 : i32
    %c0_i32_0 = arith.constant 0 : i32
    return %arg0, %c0_i32 : i32, i32
  }
}

module attributes {stable_mosaic.version = 11 : i64} {
  func.func @_mm_kernel(%arg0: i32, %arg1: memref<32x288xbf16, #tpu.memory_space<vmem>>, %arg2: memref<288x32xbf16, #tpu.memory_space<vmem>>, %arg3: memref<1x32xf32, #tpu.memory_space<vmem>>, %arg4: memref<32x32xbf16, #tpu.memory_space<vmem>>) attributes {dimension_semantics = [#tpu.dimension_semantics<parallel>], iteration_bounds = array<i64: 1>, scalar_prefetch = 0 : i64, scratch_operands = 0 : i64, tpu.core_type = #tpu.core_type<tc>, window_params = [{transform_indices = @transform_0, window_bounds = array<i64: 32, 288>}, {pipeline_mode = #tpu.pipeline_mode<synchronous>, transform_indices = @transform_1, window_bounds = array<i64: 288, 32>}, {pipeline_mode = #tpu.pipeline_mode<synchronous>, transform_indices = @transform_2, window_bounds = array<i64: 1, 32>}, {transform_indices = @transform_3, window_bounds = array<i64: 32, 32>}]} {
    %c0 = arith.constant 0 : index
    %c0_0 = arith.constant 0 : index
    %0 = vector.load %arg1[%c0, %c0_0] : memref<32x288xbf16, #tpu.memory_space<vmem>>, vector<32x288xbf16>
    %c0_1 = arith.constant 0 : index
    %c0_2 = arith.constant 0 : index
    %1 = vector.load %arg2[%c0_1, %c0_2] : memref<288x32xbf16, #tpu.memory_space<vmem>>, vector<288x32xbf16>
    %cst = arith.constant dense<0.000000e+00> : vector<32x32xf32>
    %2 = tpu.matmul %0, %1, %cst {dimension_numbers = #tpu.dot_dimension_numbers<[1], [0], [0], [1], [0, 0, 1, 1], [], []>} : vector<32x288xbf16>, vector<288x32xbf16>, vector<32x32xf32> -> vector<32x32xf32>
    %c0_3 = arith.constant 0 : index
    %c0_4 = arith.constant 0 : index
    %3 = vector.load %arg3[%c0_3, %c0_4] : memref<1x32xf32, #tpu.memory_space<vmem>>, vector<1x32xf32>
    %4 = vector.broadcast %3 : vector<1x32xf32> to vector<32x32xf32>
    %5 = arith.addf %2, %4 : vector<32x32xf32>
    %cst_5 = arith.constant 0.000000e+00 : f32
    %6 = vector.broadcast %cst_5 : f32 to vector<32x32xf32>
    %7 = arith.maximumf %5, %6 : vector<32x32xf32>
    %8 = arith.truncf %7 : vector<32x32xf32> to vector<32x32xbf16>
    %c0_6 = arith.constant 0 : index
    %c0_7 = arith.constant 0 : index
    %9 = vector.load %arg4[%c0_6, %c0_7] : memref<32x32xbf16, #tpu.memory_space<vmem>>, vector<32x32xbf16>
    tpu.vector_store %arg4[%c0_6, %c0_7], %8 {strides = array<i32>} : memref<32x32xbf16, #tpu.memory_space<vmem>>, vector<32x32xbf16>,
    return
  }
  func.func @transform_0(%arg0: i32) -> (i32, i32) {
    %c0_i32 = arith.constant 0 : i32
    %c0_i32_0 = arith.constant 0 : i32
    return %arg0, %c0_i32 : i32, i32
  }
  func.func @transform_1(%arg0: i32) -> (i32, i32) {
    %c0_i32 = arith.constant 0 : i32
    %c0_i32_0 = arith.constant 0 : i32
    %c0_i32_1 = arith.constant 0 : i32
    return %c0_i32, %c0_i32_0 : i32, i32
  }
  func.func @transform_2(%arg0: i32) -> (i32, i32) {
    %c0_i32 = arith.constant 0 : i32
    %c0_i32_0 = arith.constant 0 : i32
    %c0_i32_1 = arith.constant 0 : i32
    return %c0_i32, %c0_i32_0 : i32, i32
  }
  func.func @transform_3(%arg0: i32) -> (i32, i32) {
    %c0_i32 = arith.constant 0 : i32
    %c0_i32_0 = arith.constant 0 : i32
    return %arg0, %c0_i32 : i32, i32
  }
}

module attributes {stable_mosaic.version = 11 : i64} {
  func.func @_mm_kernel(%arg0: i32, %arg1: memref<8x288xbf16, #tpu.memory_space<vmem>>, %arg2: memref<288x64xbf16, #tpu.memory_space<vmem>>, %arg3: memref<1x64xf32, #tpu.memory_space<vmem>>, %arg4: memref<8x64xbf16, #tpu.memory_space<vmem>>) attributes {dimension_semantics = [#tpu.dimension_semantics<parallel>], iteration_bounds = array<i64: 1>, scalar_prefetch = 0 : i64, scratch_operands = 0 : i64, tpu.core_type = #tpu.core_type<tc>, window_params = [{transform_indices = @transform_0, window_bounds = array<i64: 8, 288>}, {pipeline_mode = #tpu.pipeline_mode<synchronous>, transform_indices = @transform_1, window_bounds = array<i64: 288, 64>}, {pipeline_mode = #tpu.pipeline_mode<synchronous>, transform_indices = @transform_2, window_bounds = array<i64: 1, 64>}, {transform_indices = @transform_3, window_bounds = array<i64: 8, 64>}]} {
    %c0 = arith.constant 0 : index
    %c0_0 = arith.constant 0 : index
    %0 = vector.load %arg1[%c0, %c0_0] : memref<8x288xbf16, #tpu.memory_space<vmem>>, vector<8x288xbf16>
    %c0_1 = arith.constant 0 : index
    %c0_2 = arith.constant 0 : index
    %1 = vector.load %arg2[%c0_1, %c0_2] : memref<288x64xbf16, #tpu.memory_space<vmem>>, vector<288x64xbf16>
    %cst = arith.constant dense<0.000000e+00> : vector<8x64xf32>
    %2 = tpu.matmul %0, %1, %cst {dimension_numbers = #tpu.dot_dimension_numbers<[1], [0], [0], [1], [0, 0, 1, 1], [], []>} : vector<8x288xbf16>, vector<288x64xbf16>, vector<8x64xf32> -> vector<8x64xf32>
    %c0_3 = arith.constant 0 : index
    %c0_4 = arith.constant 0 : index
    %3 = vector.load %arg3[%c0_3, %c0_4] : memref<1x64xf32, #tpu.memory_space<vmem>>, vector<1x64xf32>
    %4 = vector.broadcast %3 : vector<1x64xf32> to vector<8x64xf32>
    %5 = arith.addf %2, %4 : vector<8x64xf32>
    %cst_5 = arith.constant 0.000000e+00 : f32
    %6 = vector.broadcast %cst_5 : f32 to vector<8x64xf32>
    %7 = arith.maximumf %5, %6 : vector<8x64xf32>
    %8 = arith.truncf %7 : vector<8x64xf32> to vector<8x64xbf16>
    %c0_6 = arith.constant 0 : index
    %c0_7 = arith.constant 0 : index
    %9 = vector.load %arg4[%c0_6, %c0_7] : memref<8x64xbf16, #tpu.memory_space<vmem>>, vector<8x64xbf16>
    tpu.vector_store %arg4[%c0_6, %c0_7], %8 {strides = array<i32>} : memref<8x64xbf16, #tpu.memory_space<vmem>>, vector<8x64xbf16>,
    return
  }
  func.func @transform_0(%arg0: i32) -> (i32, i32) {
    %c0_i32 = arith.constant 0 : i32
    %c0_i32_0 = arith.constant 0 : i32
    return %arg0, %c0_i32 : i32, i32
  }
  func.func @transform_1(%arg0: i32) -> (i32, i32) {
    %c0_i32 = arith.constant 0 : i32
    %c0_i32_0 = arith.constant 0 : i32
    %c0_i32_1 = arith.constant 0 : i32
    return %c0_i32, %c0_i32_0 : i32, i32
  }
  func.func @transform_2(%arg0: i32) -> (i32, i32) {
    %c0_i32 = arith.constant 0 : i32
    %c0_i32_0 = arith.constant 0 : i32
    %c0_i32_1 = arith.constant 0 : i32
    return %c0_i32, %c0_i32_0 : i32, i32
  }
  func.func @transform_3(%arg0: i32) -> (i32, i32) {
    %c0_i32 = arith.constant 0 : i32
    %c0_i32_0 = arith.constant 0 : i32
    return %arg0, %c0_i32 : i32, i32
  }
}

module attributes {stable_mosaic.version = 11 : i64} {
  func.func @_mm_kernel(%arg0: i32, %arg1: memref<8x32xbf16, #tpu.memory_space<vmem>>, %arg2: memref<32x64xbf16, #tpu.memory_space<vmem>>, %arg3: memref<1x64xf32, #tpu.memory_space<vmem>>, %arg4: memref<8x64xbf16, #tpu.memory_space<vmem>>) attributes {dimension_semantics = [#tpu.dimension_semantics<parallel>], iteration_bounds = array<i64: 1>, scalar_prefetch = 0 : i64, scratch_operands = 0 : i64, tpu.core_type = #tpu.core_type<tc>, window_params = [{transform_indices = @transform_0, window_bounds = array<i64: 8, 32>}, {pipeline_mode = #tpu.pipeline_mode<synchronous>, transform_indices = @transform_1, window_bounds = array<i64: 32, 64>}, {pipeline_mode = #tpu.pipeline_mode<synchronous>, transform_indices = @transform_2, window_bounds = array<i64: 1, 64>}, {transform_indices = @transform_3, window_bounds = array<i64: 8, 64>}]} {
    %c0 = arith.constant 0 : index
    %c0_0 = arith.constant 0 : index
    %0 = vector.load %arg1[%c0, %c0_0] : memref<8x32xbf16, #tpu.memory_space<vmem>>, vector<8x32xbf16>
    %c0_1 = arith.constant 0 : index
    %c0_2 = arith.constant 0 : index
    %1 = vector.load %arg2[%c0_1, %c0_2] : memref<32x64xbf16, #tpu.memory_space<vmem>>, vector<32x64xbf16>
    %cst = arith.constant dense<0.000000e+00> : vector<8x64xf32>
    %2 = tpu.matmul %0, %1, %cst {dimension_numbers = #tpu.dot_dimension_numbers<[1], [0], [0], [1], [0, 0, 1, 1], [], []>} : vector<8x32xbf16>, vector<32x64xbf16>, vector<8x64xf32> -> vector<8x64xf32>
    %c0_3 = arith.constant 0 : index
    %c0_4 = arith.constant 0 : index
    %3 = vector.load %arg3[%c0_3, %c0_4] : memref<1x64xf32, #tpu.memory_space<vmem>>, vector<1x64xf32>
    %4 = vector.broadcast %3 : vector<1x64xf32> to vector<8x64xf32>
    %5 = arith.addf %2, %4 : vector<8x64xf32>
    %6 = arith.truncf %5 : vector<8x64xf32> to vector<8x64xbf16>
    %c0_5 = arith.constant 0 : index
    %c0_6 = arith.constant 0 : index
    %7 = vector.load %arg4[%c0_5, %c0_6] : memref<8x64xbf16, #tpu.memory_space<vmem>>, vector<8x64xbf16>
    tpu.vector_store %arg4[%c0_5, %c0_6], %6 {strides = array<i32>} : memref<8x64xbf16, #tpu.memory_space<vmem>>, vector<8x64xbf16>,
    return
  }
  func.func @transform_0(%arg0: i32) -> (i32, i32) {
    %c0_i32 = arith.constant 0 : i32
    %c0_i32_0 = arith.constant 0 : i32
    return %arg0, %c0_i32 : i32, i32
  }
  func.func @transform_1(%arg0: i32) -> (i32, i32) {
    %c0_i32 = arith.constant 0 : i32
    %c0_i32_0 = arith.constant 0 : i32
    %c0_i32_1 = arith.constant 0 : i32
    return %c0_i32, %c0_i32_0 : i32, i32
  }
  func.func @transform_2(%arg0: i32) -> (i32, i32) {
    %c0_i32 = arith.constant 0 : i32
    %c0_i32_0 = arith.constant 0 : i32
    %c0_i32_1 = arith.constant 0 : i32
    return %c0_i32, %c0_i32_0 : i32, i32
  }
  func.func @transform_3(%arg0: i32) -> (i32, i32) {
    %c0_i32 = arith.constant 0 : i32
    %c0_i32_0 = arith.constant 0 : i32
    return %arg0, %c0_i32 : i32, i32
  }
}

module attributes {stable_mosaic.version = 11 : i64} {
  func.func @_mm_res_kernel(%arg0: i32, %arg1: memref<8x576xbf16, #tpu.memory_space<vmem>>, %arg2: memref<576x64xbf16, #tpu.memory_space<vmem>>, %arg3: memref<1x64xf32, #tpu.memory_space<vmem>>, %arg4: memref<8x64xbf16, #tpu.memory_space<vmem>>, %arg5: memref<8x64xbf16, #tpu.memory_space<vmem>>) attributes {dimension_semantics = [#tpu.dimension_semantics<parallel>], iteration_bounds = array<i64: 1>, scalar_prefetch = 0 : i64, scratch_operands = 0 : i64, tpu.core_type = #tpu.core_type<tc>, window_params = [{transform_indices = @transform_0, window_bounds = array<i64: 8, 576>}, {pipeline_mode = #tpu.pipeline_mode<synchronous>, transform_indices = @transform_1, window_bounds = array<i64: 576, 64>}, {pipeline_mode = #tpu.pipeline_mode<synchronous>, transform_indices = @transform_2, window_bounds = array<i64: 1, 64>}, {transform_indices = @transform_3, window_bounds = array<i64: 8, 64>}, {transform_indices = @transform_4, window_bounds = array<i64: 8, 64>}]} {
    %c0 = arith.constant 0 : index
    %c0_0 = arith.constant 0 : index
    %0 = vector.load %arg1[%c0, %c0_0] : memref<8x576xbf16, #tpu.memory_space<vmem>>, vector<8x576xbf16>
    %c0_1 = arith.constant 0 : index
    %c0_2 = arith.constant 0 : index
    %1 = vector.load %arg2[%c0_1, %c0_2] : memref<576x64xbf16, #tpu.memory_space<vmem>>, vector<576x64xbf16>
    %cst = arith.constant dense<0.000000e+00> : vector<8x64xf32>
    %2 = tpu.matmul %0, %1, %cst {dimension_numbers = #tpu.dot_dimension_numbers<[1], [0], [0], [1], [0, 0, 1, 1], [], []>} : vector<8x576xbf16>, vector<576x64xbf16>, vector<8x64xf32> -> vector<8x64xf32>
    %c0_3 = arith.constant 0 : index
    %c0_4 = arith.constant 0 : index
    %3 = vector.load %arg3[%c0_3, %c0_4] : memref<1x64xf32, #tpu.memory_space<vmem>>, vector<1x64xf32>
    %4 = vector.broadcast %3 : vector<1x64xf32> to vector<8x64xf32>
    %5 = arith.addf %2, %4 : vector<8x64xf32>
    %c0_5 = arith.constant 0 : index
    %c0_6 = arith.constant 0 : index
    %6 = vector.load %arg4[%c0_5, %c0_6] : memref<8x64xbf16, #tpu.memory_space<vmem>>, vector<8x64xbf16>
    %7 = arith.extf %6 : vector<8x64xbf16> to vector<8x64xf32>
    %8 = arith.addf %5, %7 : vector<8x64xf32>
    %cst_7 = arith.constant 0.000000e+00 : f32
    %9 = vector.broadcast %cst_7 : f32 to vector<8x64xf32>
    %10 = arith.maximumf %8, %9 : vector<8x64xf32>
    %11 = arith.truncf %10 : vector<8x64xf32> to vector<8x64xbf16>
    %c0_8 = arith.constant 0 : index
    %c0_9 = arith.constant 0 : index
    %12 = vector.load %arg5[%c0_8, %c0_9] : memref<8x64xbf16, #tpu.memory_space<vmem>>, vector<8x64xbf16>
    tpu.vector_store %arg5[%c0_8, %c0_9], %11 {strides = array<i32>} : memref<8x64xbf16, #tpu.memory_space<vmem>>, vector<8x64xbf16>,
    return
  }
  func.func @transform_0(%arg0: i32) -> (i32, i32) {
    %c0_i32 = arith.constant 0 : i32
    %c0_i32_0 = arith.constant 0 : i32
    return %arg0, %c0_i32 : i32, i32
  }
  func.func @transform_1(%arg0: i32) -> (i32, i32) {
    %c0_i32 = arith.constant 0 : i32
    %c0_i32_0 = arith.constant 0 : i32
    %c0_i32_1 = arith.constant 0 : i32
    return %c0_i32, %c0_i32_0 : i32, i32
  }
  func.func @transform_2(%arg0: i32) -> (i32, i32) {
    %c0_i32 = arith.constant 0 : i32
    %c0_i32_0 = arith.constant 0 : i32
    %c0_i32_1 = arith.constant 0 : i32
    return %c0_i32, %c0_i32_0 : i32, i32
  }
  func.func @transform_3(%arg0: i32) -> (i32, i32) {
    %c0_i32 = arith.constant 0 : i32
    %c0_i32_0 = arith.constant 0 : i32
    return %arg0, %c0_i32 : i32, i32
  }
  func.func @transform_4(%arg0: i32) -> (i32, i32) {
    %c0_i32 = arith.constant 0 : i32
    %c0_i32_0 = arith.constant 0 : i32
    return %arg0, %c0_i32 : i32, i32
  }
}

module attributes {stable_mosaic.version = 11 : i64} {
  func.func @_mm_kernel(%arg0: i32, %arg1: memref<8x576xbf16, #tpu.memory_space<vmem>>, %arg2: memref<576x64xbf16, #tpu.memory_space<vmem>>, %arg3: memref<1x64xf32, #tpu.memory_space<vmem>>, %arg4: memref<8x64xbf16, #tpu.memory_space<vmem>>) attributes {dimension_semantics = [#tpu.dimension_semantics<parallel>], iteration_bounds = array<i64: 1>, scalar_prefetch = 0 : i64, scratch_operands = 0 : i64, tpu.core_type = #tpu.core_type<tc>, window_params = [{transform_indices = @transform_0, window_bounds = array<i64: 8, 576>}, {pipeline_mode = #tpu.pipeline_mode<synchronous>, transform_indices = @transform_1, window_bounds = array<i64: 576, 64>}, {pipeline_mode = #tpu.pipeline_mode<synchronous>, transform_indices = @transform_2, window_bounds = array<i64: 1, 64>}, {transform_indices = @transform_3, window_bounds = array<i64: 8, 64>}]} {
    %c0 = arith.constant 0 : index
    %c0_0 = arith.constant 0 : index
    %0 = vector.load %arg1[%c0, %c0_0] : memref<8x576xbf16, #tpu.memory_space<vmem>>, vector<8x576xbf16>
    %c0_1 = arith.constant 0 : index
    %c0_2 = arith.constant 0 : index
    %1 = vector.load %arg2[%c0_1, %c0_2] : memref<576x64xbf16, #tpu.memory_space<vmem>>, vector<576x64xbf16>
    %cst = arith.constant dense<0.000000e+00> : vector<8x64xf32>
    %2 = tpu.matmul %0, %1, %cst {dimension_numbers = #tpu.dot_dimension_numbers<[1], [0], [0], [1], [0, 0, 1, 1], [], []>} : vector<8x576xbf16>, vector<576x64xbf16>, vector<8x64xf32> -> vector<8x64xf32>
    %c0_3 = arith.constant 0 : index
    %c0_4 = arith.constant 0 : index
    %3 = vector.load %arg3[%c0_3, %c0_4] : memref<1x64xf32, #tpu.memory_space<vmem>>, vector<1x64xf32>
    %4 = vector.broadcast %3 : vector<1x64xf32> to vector<8x64xf32>
    %5 = arith.addf %2, %4 : vector<8x64xf32>
    %cst_5 = arith.constant 0.000000e+00 : f32
    %6 = vector.broadcast %cst_5 : f32 to vector<8x64xf32>
    %7 = arith.maximumf %5, %6 : vector<8x64xf32>
    %8 = arith.truncf %7 : vector<8x64xf32> to vector<8x64xbf16>
    %c0_6 = arith.constant 0 : index
    %c0_7 = arith.constant 0 : index
    %9 = vector.load %arg4[%c0_6, %c0_7] : memref<8x64xbf16, #tpu.memory_space<vmem>>, vector<8x64xbf16>
    tpu.vector_store %arg4[%c0_6, %c0_7], %8 {strides = array<i32>} : memref<8x64xbf16, #tpu.memory_space<vmem>>, vector<8x64xbf16>,
    return
  }
  func.func @transform_0(%arg0: i32) -> (i32, i32) {
    %c0_i32 = arith.constant 0 : i32
    %c0_i32_0 = arith.constant 0 : i32
    return %arg0, %c0_i32 : i32, i32
  }
  func.func @transform_1(%arg0: i32) -> (i32, i32) {
    %c0_i32 = arith.constant 0 : i32
    %c0_i32_0 = arith.constant 0 : i32
    %c0_i32_1 = arith.constant 0 : i32
    return %c0_i32, %c0_i32_0 : i32, i32
  }
  func.func @transform_2(%arg0: i32) -> (i32, i32) {
    %c0_i32 = arith.constant 0 : i32
    %c0_i32_0 = arith.constant 0 : i32
    %c0_i32_1 = arith.constant 0 : i32
    return %c0_i32, %c0_i32_0 : i32, i32
  }
  func.func @transform_3(%arg0: i32) -> (i32, i32) {
    %c0_i32 = arith.constant 0 : i32
    %c0_i32_0 = arith.constant 0 : i32
    return %arg0, %c0_i32 : i32, i32
  }
}

module attributes {stable_mosaic.version = 11 : i64} {
  func.func @_mean_axis1_kernel(%arg0: memref<2x2x128xbf16, #tpu.memory_space<vmem>>, %arg1: memref<2x128xf32, #tpu.memory_space<vmem>>) attributes {dimension_semantics = [], scalar_prefetch = 0 : i64, scratch_operands = 0 : i64, tpu.core_type = #tpu.core_type<tc>} {
    %c0 = arith.constant 0 : index
    %c0_0 = arith.constant 0 : index
    %c0_1 = arith.constant 0 : index
    %0 = vector.load %arg0[%c0, %c0_0, %c0_1] : memref<2x2x128xbf16, #tpu.memory_space<vmem>>, vector<2x2x128xbf16>
    %1 = arith.extf %0 : vector<2x2x128xbf16> to vector<2x2x128xf32>
    %cst = arith.constant dense<0.000000e+00> : vector<2x128xf32>
    %2 = vector.multi_reduction <add>, %1, %cst [1] : vector<2x2x128xf32> to vector<2x128xf32>
    %cst_2 = arith.constant 2.000000e+00 : f32
    %3 = vector.broadcast %cst_2 : f32 to vector<2x128xf32>
    %4 = arith.divf %2, %3 : vector<2x128xf32>
    %c0_3 = arith.constant 0 : index
    %c0_4 = arith.constant 0 : index
    %5 = vector.load %arg1[%c0_3, %c0_4] : memref<2x128xf32, #tpu.memory_space<vmem>>, vector<2x128xf32>
    tpu.vector_store %arg1[%c0_3, %c0_4], %4 {strides = array<i32>} : memref<2x128xf32, #tpu.memory_space<vmem>>, vector<2x128xf32>,
    return
  }
}

module attributes {stable_mosaic.version = 11 : i64} {
  func.func @_mm_kernel(%arg0: i32, %arg1: memref<128x18xbf16, #tpu.memory_space<vmem>>, %arg2: memref<18x10xbf16, #tpu.memory_space<vmem>>, %arg3: memref<1x10xf32, #tpu.memory_space<vmem>>, %arg4: memref<128x10xbf16, #tpu.memory_space<vmem>>) attributes {dimension_semantics = [#tpu.dimension_semantics<parallel>], iteration_bounds = array<i64: 1>, scalar_prefetch = 0 : i64, scratch_operands = 0 : i64, tpu.core_type = #tpu.core_type<tc>, window_params = [{transform_indices = @transform_0, window_bounds = array<i64: 128, 18>}, {pipeline_mode = #tpu.pipeline_mode<synchronous>, transform_indices = @transform_1, window_bounds = array<i64: 18, 10>}, {pipeline_mode = #tpu.pipeline_mode<synchronous>, transform_indices = @transform_2, window_bounds = array<i64: 1, 10>}, {transform_indices = @transform_3, window_bounds = array<i64: 128, 10>}]} {
    %c0 = arith.constant 0 : index
    %c0_0 = arith.constant 0 : index
    %0 = vector.load %arg1[%c0, %c0_0] : memref<128x18xbf16, #tpu.memory_space<vmem>>, vector<128x18xbf16>
    %c0_1 = arith.constant 0 : index
    %c0_2 = arith.constant 0 : index
    %1 = vector.load %arg2[%c0_1, %c0_2] : memref<18x10xbf16, #tpu.memory_space<vmem>>, vector<18x10xbf16>
    %cst = arith.constant dense<0.000000e+00> : vector<128x10xf32>
    %2 = tpu.matmul %0, %1, %cst {dimension_numbers = #tpu.dot_dimension_numbers<[1], [0], [0], [1], [0, 0, 1, 1], [], []>} : vector<128x18xbf16>, vector<18x10xbf16>, vector<128x10xf32> -> vector<128x10xf32>
    %c0_3 = arith.constant 0 : index
    %c0_4 = arith.constant 0 : index
    %3 = vector.load %arg3[%c0_3, %c0_4] : memref<1x10xf32, #tpu.memory_space<vmem>>, vector<1x10xf32>
    %4 = vector.broadcast %3 : vector<1x10xf32> to vector<128x10xf32>
    %5 = arith.addf %2, %4 : vector<128x10xf32>
    %cst_5 = arith.constant 0.000000e+00 : f32
    %6 = vector.broadcast %cst_5 : f32 to vector<128x10xf32>
    %7 = arith.maximumf %5, %6 : vector<128x10xf32>
    %8 = arith.truncf %7 : vector<128x10xf32> to vector<128x10xbf16>
    %c0_6 = arith.constant 0 : index
    %c0_7 = arith.constant 0 : index
    %9 = vector.load %arg4[%c0_6, %c0_7] : memref<128x10xbf16, #tpu.memory_space<vmem>>, vector<128x10xbf16>
    tpu.vector_store %arg4[%c0_6, %c0_7], %8 {strides = array<i32>} : memref<128x10xbf16, #tpu.memory_space<vmem>>, vector<128x10xbf16>,
    return
  }
  func.func @transform_0(%arg0: i32) -> (i32, i32) {
    %c0_i32 = arith.constant 0 : i32
    %c0_i32_0 = arith.constant 0 : i32
    return %arg0, %c0_i32 : i32, i32
  }
  func.func @transform_1(%arg0: i32) -> (i32, i32) {
    %c0_i32 = arith.constant 0 : i32
    %c0_i32_0 = arith.constant 0 : i32
    %c0_i32_1 = arith.constant 0 : i32
    return %c0_i32, %c0_i32_0 : i32, i32
  }
  func.func @transform_2(%arg0: i32) -> (i32, i32) {
    %c0_i32 = arith.constant 0 : i32
    %c0_i32_0 = arith.constant 0 : i32
    %c0_i32_1 = arith.constant 0 : i32
    return %c0_i32, %c0_i32_0 : i32, i32
  }
  func.func @transform_3(%arg0: i32) -> (i32, i32) {
    %c0_i32 = arith.constant 0 : i32
    %c0_i32_0 = arith.constant 0 : i32
    return %arg0, %c0_i32 : i32, i32
  }
}

module attributes {stable_mosaic.version = 11 : i64} {
  func.func @_mm_kernel(%arg0: i32, %arg1: memref<128x90xbf16, #tpu.memory_space<vmem>>, %arg2: memref<90x10xbf16, #tpu.memory_space<vmem>>, %arg3: memref<1x10xf32, #tpu.memory_space<vmem>>, %arg4: memref<128x10xbf16, #tpu.memory_space<vmem>>) attributes {dimension_semantics = [#tpu.dimension_semantics<parallel>], iteration_bounds = array<i64: 1>, scalar_prefetch = 0 : i64, scratch_operands = 0 : i64, tpu.core_type = #tpu.core_type<tc>, window_params = [{transform_indices = @transform_0, window_bounds = array<i64: 128, 90>}, {pipeline_mode = #tpu.pipeline_mode<synchronous>, transform_indices = @transform_1, window_bounds = array<i64: 90, 10>}, {pipeline_mode = #tpu.pipeline_mode<synchronous>, transform_indices = @transform_2, window_bounds = array<i64: 1, 10>}, {transform_indices = @transform_3, window_bounds = array<i64: 128, 10>}]} {
    %c0 = arith.constant 0 : index
    %c0_0 = arith.constant 0 : index
    %0 = vector.load %arg1[%c0, %c0_0] : memref<128x90xbf16, #tpu.memory_space<vmem>>, vector<128x90xbf16>
    %c0_1 = arith.constant 0 : index
    %c0_2 = arith.constant 0 : index
    %1 = vector.load %arg2[%c0_1, %c0_2] : memref<90x10xbf16, #tpu.memory_space<vmem>>, vector<90x10xbf16>
    %cst = arith.constant dense<0.000000e+00> : vector<128x10xf32>
    %2 = tpu.matmul %0, %1, %cst {dimension_numbers = #tpu.dot_dimension_numbers<[1], [0], [0], [1], [0, 0, 1, 1], [], []>} : vector<128x90xbf16>, vector<90x10xbf16>, vector<128x10xf32> -> vector<128x10xf32>
    %c0_3 = arith.constant 0 : index
    %c0_4 = arith.constant 0 : index
    %3 = vector.load %arg3[%c0_3, %c0_4] : memref<1x10xf32, #tpu.memory_space<vmem>>, vector<1x10xf32>
    %4 = vector.broadcast %3 : vector<1x10xf32> to vector<128x10xf32>
    %5 = arith.addf %2, %4 : vector<128x10xf32>
    %cst_5 = arith.constant 0.000000e+00 : f32
    %6 = vector.broadcast %cst_5 : f32 to vector<128x10xf32>
    %7 = arith.maximumf %5, %6 : vector<128x10xf32>
    %8 = arith.truncf %7 : vector<128x10xf32> to vector<128x10xbf16>
    %c0_6 = arith.constant 0 : index
    %c0_7 = arith.constant 0 : index
    %9 = vector.load %arg4[%c0_6, %c0_7] : memref<128x10xbf16, #tpu.memory_space<vmem>>, vector<128x10xbf16>
    tpu.vector_store %arg4[%c0_6, %c0_7], %8 {strides = array<i32>} : memref<128x10xbf16, #tpu.memory_space<vmem>>, vector<128x10xbf16>,
    return
  }
  func.func @transform_0(%arg0: i32) -> (i32, i32) {
    %c0_i32 = arith.constant 0 : i32
    %c0_i32_0 = arith.constant 0 : i32
    return %arg0, %c0_i32 : i32, i32
  }
  func.func @transform_1(%arg0: i32) -> (i32, i32) {
    %c0_i32 = arith.constant 0 : i32
    %c0_i32_0 = arith.constant 0 : i32
    %c0_i32_1 = arith.constant 0 : i32
    return %c0_i32, %c0_i32_0 : i32, i32
  }
  func.func @transform_2(%arg0: i32) -> (i32, i32) {
    %c0_i32 = arith.constant 0 : i32
    %c0_i32_0 = arith.constant 0 : i32
    %c0_i32_1 = arith.constant 0 : i32
    return %c0_i32, %c0_i32_0 : i32, i32
  }
  func.func @transform_3(%arg0: i32) -> (i32, i32) {
    %c0_i32 = arith.constant 0 : i32
    %c0_i32_0 = arith.constant 0 : i32
    return %arg0, %c0_i32 : i32, i32
  }
}

module attributes {stable_mosaic.version = 11 : i64} {
  func.func @_mm_kernel(%arg0: i32, %arg1: memref<20x64xf32, #tpu.memory_space<vmem>>, %arg2: memref<64x512xf32, #tpu.memory_space<vmem>>, %arg3: memref<1x512xf32, #tpu.memory_space<vmem>>, %arg4: memref<20x512xf32, #tpu.memory_space<vmem>>) attributes {dimension_semantics = [#tpu.dimension_semantics<parallel>], iteration_bounds = array<i64: 1>, scalar_prefetch = 0 : i64, scratch_operands = 0 : i64, tpu.core_type = #tpu.core_type<tc>, window_params = [{transform_indices = @transform_0, window_bounds = array<i64: 20, 64>}, {pipeline_mode = #tpu.pipeline_mode<synchronous>, transform_indices = @transform_1, window_bounds = array<i64: 64, 512>}, {pipeline_mode = #tpu.pipeline_mode<synchronous>, transform_indices = @transform_2, window_bounds = array<i64: 1, 512>}, {transform_indices = @transform_3, window_bounds = array<i64: 20, 512>}]} {
    %c0 = arith.constant 0 : index
    %c0_0 = arith.constant 0 : index
    %0 = vector.load %arg1[%c0, %c0_0] : memref<20x64xf32, #tpu.memory_space<vmem>>, vector<20x64xf32>
    %c0_1 = arith.constant 0 : index
    %c0_2 = arith.constant 0 : index
    %1 = vector.load %arg2[%c0_1, %c0_2] : memref<64x512xf32, #tpu.memory_space<vmem>>, vector<64x512xf32>
    %cst = arith.constant dense<0.000000e+00> : vector<20x512xf32>
    %2 = tpu.matmul %0, %1, %cst {dimension_numbers = #tpu.dot_dimension_numbers<[1], [0], [0], [1], [0, 0, 1, 1], [], []>} : vector<20x64xf32>, vector<64x512xf32>, vector<20x512xf32> -> vector<20x512xf32>
    %c0_3 = arith.constant 0 : index
    %c0_4 = arith.constant 0 : index
    %3 = vector.load %arg3[%c0_3, %c0_4] : memref<1x512xf32, #tpu.memory_space<vmem>>, vector<1x512xf32>
    %4 = vector.broadcast %3 : vector<1x512xf32> to vector<20x512xf32>
    %5 = arith.addf %2, %4 : vector<20x512xf32>
    %c0_5 = arith.constant 0 : index
    %c0_6 = arith.constant 0 : index
    %6 = vector.load %arg4[%c0_5, %c0_6] : memref<20x512xf32, #tpu.memory_space<vmem>>, vector<20x512xf32>
    tpu.vector_store %arg4[%c0_5, %c0_6], %5 {strides = array<i32>} : memref<20x512xf32, #tpu.memory_space<vmem>>, vector<20x512xf32>,
    return
  }
  func.func @transform_0(%arg0: i32) -> (i32, i32) {
    %c0_i32 = arith.constant 0 : i32
    %c0_i32_0 = arith.constant 0 : i32
    return %arg0, %c0_i32 : i32, i32
  }
  func.func @transform_1(%arg0: i32) -> (i32, i32) {
    %c0_i32 = arith.constant 0 : i32
    %c0_i32_0 = arith.constant 0 : i32
    %c0_i32_1 = arith.constant 0 : i32
    return %c0_i32, %c0_i32_0 : i32, i32
  }
  func.func @transform_2(%arg0: i32) -> (i32, i32) {
    %c0_i32 = arith.constant 0 : i32
    %c0_i32_0 = arith.constant 0 : i32
    %c0_i32_1 = arith.constant 0 : i32
    return %c0_i32, %c0_i32_0 : i32, i32
  }
  func.func @transform_3(%arg0: i32) -> (i32, i32) {
    %c0_i32 = arith.constant 0 : i32
    %c0_i32_0 = arith.constant 0 : i32
    return %arg0, %c0_i32 : i32, i32
  }
}

module attributes {stable_mosaic.version = 11 : i64} {
  func.func @_bilstm_kernel(%arg0: i32, %arg1: i32, %arg2: memref<1x1x2x256xf32, #tpu.memory_space<vmem>>, %arg3: memref<1x64x256xf32, #tpu.memory_space<vmem>>, %arg4: memref<1x1x2x64xf32, #tpu.memory_space<vmem>>, %arg5: memref<2x64xf32, #tpu.memory_space<vmem>>, %arg6: memref<2x64xf32, #tpu.memory_space<vmem>>) attributes {dimension_semantics = [#tpu.dimension_semantics<arbitrary>, #tpu.dimension_semantics<arbitrary>], iteration_bounds = array<i64: 2, 10>, scalar_prefetch = 0 : i64, scratch_operands = 2 : i64, tpu.core_type = #tpu.core_type<tc>, window_params = [{transform_indices = @transform_0, window_bounds = array<i64: 1, 1, 2, 256>}, {transform_indices = @transform_1, window_bounds = array<i64: 1, 64, 256>}, {transform_indices = @transform_2, window_bounds = array<i64: 1, 1, 2, 64>}]} {
    %c0_i32 = arith.constant 0 : i32
    %0 = arith.cmpi eq, %arg1, %c0_i32 : i32
    %1 = arith.extui %0 : i1 to i32
    %c0_i32_0 = arith.constant 0 : i32
    %2 = arith.cmpi ne, %1, %c0_i32_0 : i32
    scf.if %2 {
      %cst_22 = arith.constant 0.000000e+00 : f32
      %41 = vector.broadcast %cst_22 : f32 to vector<2x64xf32>
      %c0_23 = arith.constant 0 : index
      %c0_24 = arith.constant 0 : index
      %42 = vector.load %arg5[%c0_23, %c0_24] : memref<2x64xf32, #tpu.memory_space<vmem>>, vector<2x64xf32>
      tpu.vector_store %arg5[%c0_23, %c0_24], %41 {strides = array<i32>} : memref<2x64xf32, #tpu.memory_space<vmem>>, vector<2x64xf32>,
      %cst_25 = arith.constant 0.000000e+00 : f32
      %43 = vector.broadcast %cst_25 : f32 to vector<2x64xf32>
      %c0_26 = arith.constant 0 : index
      %c0_27 = arith.constant 0 : index
      %44 = vector.load %arg6[%c0_26, %c0_27] : memref<2x64xf32, #tpu.memory_space<vmem>>, vector<2x64xf32>
      tpu.vector_store %arg6[%c0_26, %c0_27], %43 {strides = array<i32>} : memref<2x64xf32, #tpu.memory_space<vmem>>, vector<2x64xf32>,
    } else {
    }
    %c0 = arith.constant 0 : index
    %c0_1 = arith.constant 0 : index
    %c0_2 = arith.constant 0 : index
    %c0_3 = arith.constant 0 : index
    %3 = vector.load %arg2[%c0, %c0_1, %c0_2, %c0_3] : memref<1x1x2x256xf32, #tpu.memory_space<vmem>>, vector<1x1x2x256xf32>
    %4 = vector.shape_cast %3 : vector<1x1x2x256xf32> to vector<2x256xf32>
    %c0_4 = arith.constant 0 : index
    %c0_5 = arith.constant 0 : index
    %5 = vector.load %arg5[%c0_4, %c0_5] : memref<2x64xf32, #tpu.memory_space<vmem>>, vector<2x64xf32>
    %c0_6 = arith.constant 0 : index
    %c0_7 = arith.constant 0 : index
    %c0_8 = arith.constant 0 : index
    %6 = vector.load %arg3[%c0_6, %c0_7, %c0_8] : memref<1x64x256xf32, #tpu.memory_space<vmem>>, vector<1x64x256xf32>
    %7 = vector.shape_cast %6 : vector<1x64x256xf32> to vector<64x256xf32>
    %cst = arith.constant dense<0.000000e+00> : vector<2x256xf32>
    %8 = tpu.matmul %5, %7, %cst {dimension_numbers = #tpu.dot_dimension_numbers<[1], [0], [0], [1], [0, 0, 1, 1], [], []>} : vector<2x64xf32>, vector<64x256xf32>, vector<2x256xf32> -> vector<2x256xf32>
    %9 = arith.addf %4, %8 : vector<2x256xf32>
    %10 = vector.extract_strided_slice %9 {offsets = [0, 0], sizes = [2, 64], strides = [1, 1]} : vector<2x256xf32> to vector<2x64xf32>
    %11 = arith.negf %10 : vector<2x64xf32>
    %12 = math.exp %11 : vector<2x64xf32>
    %cst_9 = arith.constant 1.000000e+00 : f32
    %13 = vector.broadcast %cst_9 : f32 to vector<2x64xf32>
    %14 = arith.addf %13, %12 : vector<2x64xf32>
    %15 = arith.divf %13, %14 : vector<2x64xf32>
    %16 = vector.extract_strided_slice %9 {offsets = [0, 64], sizes = [2, 64], strides = [1, 1]} : vector<2x256xf32> to vector<2x64xf32>
    %17 = arith.negf %16 : vector<2x64xf32>
    %18 = math.exp %17 : vector<2x64xf32>
    %cst_10 = arith.constant 1.000000e+00 : f32
    %19 = vector.broadcast %cst_10 : f32 to vector<2x64xf32>
    %20 = arith.addf %19, %18 : vector<2x64xf32>
    %21 = arith.divf %19, %20 : vector<2x64xf32>
    %22 = vector.extract_strided_slice %9 {offsets = [0, 128], sizes = [2, 64], strides = [1, 1]} : vector<2x256xf32> to vector<2x64xf32>
    %23 = math.tanh %22 : vector<2x64xf32>
    %24 = vector.extract_strided_slice %9 {offsets = [0, 192], sizes = [2, 64], strides = [1, 1]} : vector<2x256xf32> to vector<2x64xf32>
    %25 = arith.negf %24 : vector<2x64xf32>
    %26 = math.exp %25 : vector<2x64xf32>
    %cst_11 = arith.constant 1.000000e+00 : f32
    %27 = vector.broadcast %cst_11 : f32 to vector<2x64xf32>
    %28 = arith.addf %27, %26 : vector<2x64xf32>
    %29 = arith.divf %27, %28 : vector<2x64xf32>
    %c0_12 = arith.constant 0 : index
    %c0_13 = arith.constant 0 : index
    %30 = vector.load %arg6[%c0_12, %c0_13] : memref<2x64xf32, #tpu.memory_space<vmem>>, vector<2x64xf32>
    %31 = arith.mulf %21, %30 : vector<2x64xf32>
    %32 = arith.mulf %15, %23 : vector<2x64xf32>
    %33 = arith.addf %31, %32 : vector<2x64xf32>
    %34 = math.tanh %33 : vector<2x64xf32>
    %35 = arith.mulf %29, %34 : vector<2x64xf32>
    %c0_14 = arith.constant 0 : index
    %c0_15 = arith.constant 0 : index
    %36 = vector.load %arg5[%c0_14, %c0_15] : memref<2x64xf32, #tpu.memory_space<vmem>>, vector<2x64xf32>
    tpu.vector_store %arg5[%c0_14, %c0_15], %35 {strides = array<i32>} : memref<2x64xf32, #tpu.memory_space<vmem>>, vector<2x64xf32>,
    %c0_16 = arith.constant 0 : index
    %c0_17 = arith.constant 0 : index
    %37 = vector.load %arg6[%c0_16, %c0_17] : memref<2x64xf32, #tpu.memory_space<vmem>>, vector<2x64xf32>
    tpu.vector_store %arg6[%c0_16, %c0_17], %33 {strides = array<i32>} : memref<2x64xf32, #tpu.memory_space<vmem>>, vector<2x64xf32>,
    %c0_18 = arith.constant 0 : index
    %c0_19 = arith.constant 0 : index
    %c0_20 = arith.constant 0 : index
    %c0_21 = arith.constant 0 : index
    %38 = vector.load %arg4[%c0_18, %c0_19, %c0_20, %c0_21] : memref<1x1x2x64xf32, #tpu.memory_space<vmem>>, vector<1x1x2x64xf32>
    %39 = vector.shape_cast %38 : vector<1x1x2x64xf32> to vector<2x64xf32>
    %40 = vector.shape_cast %35 : vector<2x64xf32> to vector<1x1x2x64xf32>
    tpu.vector_store %arg4[%c0_18, %c0_19, %c0_20, %c0_21], %40 {strides = array<i32>} : memref<1x1x2x64xf32, #tpu.memory_space<vmem>>, vector<1x1x2x64xf32>,
    return
  }
  func.func @transform_0(%arg0: i32, %arg1: i32) -> (i32, i32, i32, i32) {
    %c1_i32 = arith.constant 1 : i32
    %0 = arith.subi %c1_i32, %arg0 : i32
    %1 = arith.muli %0, %arg1 : i32
    %c9_i32 = arith.constant 9 : i32
    %2 = arith.subi %c9_i32, %arg1 : i32
    %3 = arith.muli %arg0, %2 : i32
    %4 = arith.addi %1, %3 : i32
    %c0_i32 = arith.constant 0 : i32
    %c0_i32_0 = arith.constant 0 : i32
    %c0_i32_1 = arith.constant 0 : i32
    return %arg0, %4, %c0_i32, %c0_i32_0 : i32, i32, i32, i32
  }
  func.func @transform_1(%arg0: i32, %arg1: i32) -> (i32, i32, i32) {
    %c0_i32 = arith.constant 0 : i32
    %c0_i32_0 = arith.constant 0 : i32
    %c0_i32_1 = arith.constant 0 : i32
    return %arg0, %c0_i32, %c0_i32_0 : i32, i32, i32
  }
  func.func @transform_2(%arg0: i32, %arg1: i32) -> (i32, i32, i32, i32) {
    %c1_i32 = arith.constant 1 : i32
    %0 = arith.subi %c1_i32, %arg0 : i32
    %1 = arith.muli %0, %arg1 : i32
    %c9_i32 = arith.constant 9 : i32
    %2 = arith.subi %c9_i32, %arg1 : i32
    %3 = arith.muli %arg0, %2 : i32
    %4 = arith.addi %1, %3 : i32
    %c0_i32 = arith.constant 0 : i32
    %c0_i32_0 = arith.constant 0 : i32
    %c0_i32_1 = arith.constant 0 : i32
    return %arg0, %4, %c0_i32, %c0_i32_0 : i32, i32, i32, i32
  }
}

module attributes {stable_mosaic.version = 11 : i64} {
  func.func @_mm_kernel(%arg0: i32, %arg1: memref<20x128xf32, #tpu.memory_space<vmem>>, %arg2: memref<128x512xf32, #tpu.memory_space<vmem>>, %arg3: memref<1x512xf32, #tpu.memory_space<vmem>>, %arg4: memref<20x512xf32, #tpu.memory_space<vmem>>) attributes {dimension_semantics = [#tpu.dimension_semantics<parallel>], iteration_bounds = array<i64: 1>, scalar_prefetch = 0 : i64, scratch_operands = 0 : i64, tpu.core_type = #tpu.core_type<tc>, window_params = [{transform_indices = @transform_0, window_bounds = array<i64: 20, 128>}, {pipeline_mode = #tpu.pipeline_mode<synchronous>, transform_indices = @transform_1, window_bounds = array<i64: 128, 512>}, {pipeline_mode = #tpu.pipeline_mode<synchronous>, transform_indices = @transform_2, window_bounds = array<i64: 1, 512>}, {transform_indices = @transform_3, window_bounds = array<i64: 20, 512>}]} {
    %c0 = arith.constant 0 : index
    %c0_0 = arith.constant 0 : index
    %0 = vector.load %arg1[%c0, %c0_0] : memref<20x128xf32, #tpu.memory_space<vmem>>, vector<20x128xf32>
    %c0_1 = arith.constant 0 : index
    %c0_2 = arith.constant 0 : index
    %1 = vector.load %arg2[%c0_1, %c0_2] : memref<128x512xf32, #tpu.memory_space<vmem>>, vector<128x512xf32>
    %cst = arith.constant dense<0.000000e+00> : vector<20x512xf32>
    %2 = tpu.matmul %0, %1, %cst {dimension_numbers = #tpu.dot_dimension_numbers<[1], [0], [0], [1], [0, 0, 1, 1], [], []>} : vector<20x128xf32>, vector<128x512xf32>, vector<20x512xf32> -> vector<20x512xf32>
    %c0_3 = arith.constant 0 : index
    %c0_4 = arith.constant 0 : index
    %3 = vector.load %arg3[%c0_3, %c0_4] : memref<1x512xf32, #tpu.memory_space<vmem>>, vector<1x512xf32>
    %4 = vector.broadcast %3 : vector<1x512xf32> to vector<20x512xf32>
    %5 = arith.addf %2, %4 : vector<20x512xf32>
    %c0_5 = arith.constant 0 : index
    %c0_6 = arith.constant 0 : index
    %6 = vector.load %arg4[%c0_5, %c0_6] : memref<20x512xf32, #tpu.memory_space<vmem>>, vector<20x512xf32>
    tpu.vector_store %arg4[%c0_5, %c0_6], %5 {strides = array<i32>} : memref<20x512xf32, #tpu.memory_space<vmem>>, vector<20x512xf32>,
    return
  }
  func.func @transform_0(%arg0: i32) -> (i32, i32) {
    %c0_i32 = arith.constant 0 : i32
    %c0_i32_0 = arith.constant 0 : i32
    return %arg0, %c0_i32 : i32, i32
  }
  func.func @transform_1(%arg0: i32) -> (i32, i32) {
    %c0_i32 = arith.constant 0 : i32
    %c0_i32_0 = arith.constant 0 : i32
    %c0_i32_1 = arith.constant 0 : i32
    return %c0_i32, %c0_i32_0 : i32, i32
  }
  func.func @transform_2(%arg0: i32) -> (i32, i32) {
    %c0_i32 = arith.constant 0 : i32
    %c0_i32_0 = arith.constant 0 : i32
    %c0_i32_1 = arith.constant 0 : i32
    return %c0_i32, %c0_i32_0 : i32, i32
  }
  func.func @transform_3(%arg0: i32) -> (i32, i32) {
    %c0_i32 = arith.constant 0 : i32
    %c0_i32_0 = arith.constant 0 : i32
    return %arg0, %c0_i32 : i32, i32
  }
}

module attributes {stable_mosaic.version = 11 : i64} {
  func.func @_mm_kernel(%arg0: i32, %arg1: memref<20x128xf32, #tpu.memory_space<vmem>>, %arg2: memref<128x40xf32, #tpu.memory_space<vmem>>, %arg3: memref<1x40xf32, #tpu.memory_space<vmem>>, %arg4: memref<20x40xf32, #tpu.memory_space<vmem>>) attributes {dimension_semantics = [#tpu.dimension_semantics<parallel>], iteration_bounds = array<i64: 1>, scalar_prefetch = 0 : i64, scratch_operands = 0 : i64, tpu.core_type = #tpu.core_type<tc>, window_params = [{transform_indices = @transform_0, window_bounds = array<i64: 20, 128>}, {pipeline_mode = #tpu.pipeline_mode<synchronous>, transform_indices = @transform_1, window_bounds = array<i64: 128, 40>}, {pipeline_mode = #tpu.pipeline_mode<synchronous>, transform_indices = @transform_2, window_bounds = array<i64: 1, 40>}, {transform_indices = @transform_3, window_bounds = array<i64: 20, 40>}]} {
    %c0 = arith.constant 0 : index
    %c0_0 = arith.constant 0 : index
    %0 = vector.load %arg1[%c0, %c0_0] : memref<20x128xf32, #tpu.memory_space<vmem>>, vector<20x128xf32>
    %c0_1 = arith.constant 0 : index
    %c0_2 = arith.constant 0 : index
    %1 = vector.load %arg2[%c0_1, %c0_2] : memref<128x40xf32, #tpu.memory_space<vmem>>, vector<128x40xf32>
    %cst = arith.constant dense<0.000000e+00> : vector<20x40xf32>
    %2 = tpu.matmul %0, %1, %cst {dimension_numbers = #tpu.dot_dimension_numbers<[1], [0], [0], [1], [0, 0, 1, 1], [], []>} : vector<20x128xf32>, vector<128x40xf32>, vector<20x40xf32> -> vector<20x40xf32>
    %c0_3 = arith.constant 0 : index
    %c0_4 = arith.constant 0 : index
    %3 = vector.load %arg3[%c0_3, %c0_4] : memref<1x40xf32, #tpu.memory_space<vmem>>, vector<1x40xf32>
    %4 = vector.broadcast %3 : vector<1x40xf32> to vector<20x40xf32>
    %5 = arith.addf %2, %4 : vector<20x40xf32>
    %cst_5 = arith.constant dense<0xFF800000> : vector<20xf32>
    %6 = vector.multi_reduction <maximumf>, %5, %cst_5 [1] : vector<20x40xf32> to vector<20xf32>
    %7 = vector.shape_cast %6 : vector<20xf32> to vector<20x1xf32>
    %8 = vector.broadcast %7 : vector<20x1xf32> to vector<20x40xf32>
    %9 = arith.subf %5, %8 : vector<20x40xf32>
    %10 = math.exp %9 : vector<20x40xf32>
    %cst_6 = arith.constant dense<0.000000e+00> : vector<20xf32>
    %11 = vector.multi_reduction <add>, %10, %cst_6 [1] : vector<20x40xf32> to vector<20xf32>
    %12 = vector.shape_cast %11 : vector<20xf32> to vector<20x1xf32>
    %13 = math.log %12 : vector<20x1xf32>
    %14 = vector.broadcast %13 : vector<20x1xf32> to vector<20x40xf32>
    %15 = arith.subf %9, %14 : vector<20x40xf32>
    %c0_7 = arith.constant 0 : index
    %c0_8 = arith.constant 0 : index
    %16 = vector.load %arg4[%c0_7, %c0_8] : memref<20x40xf32, #tpu.memory_space<vmem>>, vector<20x40xf32>
    tpu.vector_store %arg4[%c0_7, %c0_8], %15 {strides = array<i32>} : memref<20x40xf32, #tpu.memory_space<vmem>>, vector<20x40xf32>,
    return
  }
  func.func @transform_0(%arg0: i32) -> (i32, i32) {
    %c0_i32 = arith.constant 0 : i32
    %c0_i32_0 = arith.constant 0 : i32
    return %arg0, %c0_i32 : i32, i32
  }
  func.func @transform_1(%arg0: i32) -> (i32, i32) {
    %c0_i32 = arith.constant 0 : i32
    %c0_i32_0 = arith.constant 0 : i32
    %c0_i32_1 = arith.constant 0 : i32
    return %c0_i32, %c0_i32_0 : i32, i32
  }
  func.func @transform_2(%arg0: i32) -> (i32, i32) {
    %c0_i32 = arith.constant 0 : i32
    %c0_i32_0 = arith.constant 0 : i32
    %c0_i32_1 = arith.constant 0 : i32
    return %c0_i32, %c0_i32_0 : i32, i32
  }
  func.func @transform_3(%arg0: i32) -> (i32, i32) {
    %c0_i32 = arith.constant 0 : i32
    %c0_i32_0 = arith.constant 0 : i32
    return %arg0, %c0_i32 : i32, i32
  }
}

</mosaic_0001>

<llo_original>
// kernel: forward.30
$region0: #{forward.30}
  #allocation0 [shape = 'u32[]', space=smem, size = 0x4, offset = 0x4, fixed_abs, tag = 'smem constant byte address 0x4 - core index']
  #allocation1 [shape = 'u32[72,128]{1,0:T(1,128)}', space=vmem, size = 0x9000, scoped, tag = 'internal scratch']
  %s0 = inlined_call_operand.vmem [shape: bf16[2048,147], index: 0, kind: input, shape index: {}]
  %s1 = inlined_call_operand.vmem [shape: bf16[147,8], index: 1, kind: input, shape index: {}]
  %s2 = inlined_call_operand.vmem [shape: f32[1,8], index: 2, kind: input, shape index: {}]
  %s3 = inlined_call_operand.vmem [shape: bf16[2048,8], index: 3, kind: output, shape index: {}]
  %s4 = sld [smem:[#allocation0]]
  $region45: #{forward.30} parent=0
    _
  %s6 = ssub.s32 1, %s4
  %s7 = scalar_select 0, %s6, %s4
  loop: start=0, step=1, limit=10
  $region2: #{forward.30} parent=0 // loop_pre_header
    _
  $region3: #{forward.30} parent=0 // loop_header
    %s9 = sphi 0, %s13
    %p10 = scmp.ge.s32.totalorder %s9, 10
    %s19 = sphi 0, %s21
    %s22 = sphi 0, %s19
    %s23 = sphi 0, %s22
    %s39 = sphi 0, %s23
    %s43 = sphi 0, %s43
    %s45 = sphi 0, %s43
    %s46 = sphi 0, %s45
    %s60 = sphi 0, %s46
    %s64 = sphi 0, %s64
    %s66 = sphi 0, %s64
    %s67 = sphi 0, %s66
    %s81 = sphi 0, %s67
    %s87 = sphi 0, %s89
    %s90 = sphi 0, %s87
    %s91 = sphi 0, %s90
    %s107 = sphi 0, %s91
  $region4: #{forward.30} parent=0 // loop_header_branch
    %12 = sbr.rel (%p10) target = $region8
  $region5: #{forward.30} parent=0 // loop_body
    %s14 = ssub.s32 %s9, 1
    %s15 = ssub.s32 %s9, 2
    %s16 = sadd.s32 %s9, 1
    %s17 = ssub.s32 %s9, %s16
    %p18 = scmp.eq.s32.totalorder %s17, 0
    %s20 = sadd.s32 %s19, 1
    %s21 = scalar_select %p18, %s19, %s20
    %p24 = pneg %p18
    %p25 = scmp.eq.s32.totalorder %s9, 7
    %p26 = por %p24, %p25
    %p27 = scmp.ne.s32.totalorder %s19, %s22
    %p28 = scmp.eq.s32.totalorder %s9, 0
    %p29 = por %p27, %p28
    %p30 = scmp.ne.s32.totalorder %s19, %s22
    %p31 = scmp.eq.s32.totalorder %s14, 7
    %p32 = por %p30, %p31
    %p33 = scmp.ne.s32.totalorder %s22, %s23
    %p34 = scmp.eq.s32.totalorder %s14, 0
    %p35 = por %p33, %p34
    %p36 = scmp.ne.s32.totalorder %s22, %s23
    %p37 = scmp.eq.s32.totalorder %s15, 7
    %p38 = por %p36, %p37
    %p40 = scmp.ne.s32.totalorder %s23, %s39
    %p41 = scmp.eq.s32.totalorder %s15, 0
    %p42 = por %p40, %p41
    %s44 = sadd.s32 %s43, 1
    %p47 = scmp.eq.s32.totalorder %s9, 7
    %p48 = scmp.ne.s32.totalorder %s43, %s45
    %p49 = scmp.eq.s32.totalorder %s9, 0
    %p50 = por %p48, %p49
    %p51 = scmp.ne.s32.totalorder %s43, %s45
    %p52 = scmp.eq.s32.totalorder %s14, 7
    %p53 = por %p51, %p52
    %p54 = scmp.ne.s32.totalorder %s45, %s46
    %p55 = scmp.eq.s32.totalorder %s14, 0
    %p56 = por %p54, %p55
    %p57 = scmp.ne.s32.totalorder %s45, %s46
    %p58 = scmp.eq.s32.totalorder %s15, 7
    %p59 = por %p57, %p58
    %p61 = scmp.ne.s32.totalorder %s46, %s60
    %p62 = scmp.eq.s32.totalorder %s15, 0
    %p63 = por %p61, %p62
    %s65 = sadd.s32 %s64, 1
    %p68 = scmp.eq.s32.totalorder %s9, 7
    %p69 = scmp.ne.s32.totalorder %s64, %s66
    %p70 = scmp.eq.s32.totalorder %s9, 0
    %p71 = por %p69, %p70
    %p72 = scmp.ne.s32.totalorder %s64, %s66
    %p73 = scmp.eq.s32.totalorder %s14, 7
    %p74 = por %p72, %p73
    %p75 = scmp.ne.s32.totalorder %s66, %s67
    %p76 = scmp.eq.s32.totalorder %s14, 0
    %p77 = por %p75, %p76
    %p78 = scmp.ne.s32.totalorder %s66, %s67
    %p79 = scmp.eq.s32.totalorder %s15, 7
    %p80 = por %p78, %p79
    %p82 = scmp.ne.s32.totalorder %s67, %s81
    %p83 = scmp.eq.s32.totalorder %s15, 0
    %p84 = por %p82, %p83
    %s85 = ssub.s32 %s9, %s16
    %p86 = scmp.eq.s32.totalorder %s85, 0
    %s88 = sadd.s32 %s87, 1
    %s89 = scalar_select %p86, %s87, %s88
    %p92 = pneg %p86
    %p93 = scmp.eq.s32.totalorder %s9, 7
    %p94 = por %p92, %p93
    %p95 = scmp.ne.s32.totalorder %s87, %s90
    %p96 = scmp.eq.s32.totalorder %s9, 0
    %p97 = por %p95, %p96
    %p98 = scmp.ne.s32.totalorder %s87, %s90
    %p99 = scmp.eq.s32.totalorder %s14, 7
    %p100 = por %p98, %p99
    %p101 = scmp.ne.s32.totalorder %s90, %s91
    %p102 = scmp.eq.s32.totalorder %s14, 0
    %p103 = por %p101, %p102
    %p104 = scmp.ne.s32.totalorder %s90, %s91
    %p105 = scmp.eq.s32.totalorder %s15, 7
    %p106 = por %p104, %p105
    %p108 = scmp.ne.s32.totalorder %s91, %s107
    %p109 = scmp.eq.s32.totalorder %s15, 0
    %p110 = por %p108, %p109
    %p111 = scmp.le.s32.totalorder 1, %s9
    %p112 = scmp.lt.s32.totalorder %s9, 9
    %p113 = pnand %p111, %p112
    %p114 = pneg %p113
    // Predicated region
    $region9: #{forward.30} parent=5 // pred_check
      _
    $region10: #{forward.30} parent=5 // pred_check_branch
      %116 = sbr.rel (%p113) target = $region12
    $region11: #{forward.30} parent=5 // pred_region
      %s117 = ssub.s32 %s9, 1
      // Predicated region
      $region13: #{forward.30} parent=11 // pred_check
        %p118 = pneg %p56
      $region14: #{forward.30} parent=11 // pred_check_branch
        %120 = sbr.rel (%p118) target = $region16
      $region15: #{forward.30} parent=11 // pred_region
        _
      $region16: #{forward.30} parent=11 // pred_fallthru
        _
      // Predicated region
      $region17: #{forward.30} parent=11 // pred_check
        %p121 = pneg %p77
      $region18: #{forward.30} parent=11 // pred_check_branch
        %123 = sbr.rel (%p121) target = $region20
      $region19: #{forward.30} parent=11 // pred_region
        _
      $region20: #{forward.30} parent=11 // pred_fallthru
        _
    $region12: #{forward.30} parent=5 // pred_fallthru
      _
    %p124 = scmp.lt.s32.totalorder %s9, 8
    // Predicated region
    $region21: #{forward.30} parent=5 // pred_check
      %p125 = pneg %p124
    $region22: #{forward.30} parent=5 // pred_check_branch
      %127 = sbr.rel (%p125) target = $region24
    $region23: #{forward.30} parent=5 // pred_region
      // Predicated region
      $region25: #{forward.30} parent=23 // pred_check
        %p128 = pneg %p29
      $region26: #{forward.30} parent=23 // pred_check_branch
        %130 = sbr.rel (%p128) target = $region28
      $region27: #{forward.30} parent=23 // pred_region
        %s131 = smul.u32 32, %s9
        %p132 = scmp.lt.s32.totalorder %s131, 255
        %s133 = scalar_select %p132, %s131, 255
        %s134 = smul.addr %s133, 2
        %s135 = smul.addr %s134, 4
        %s136 = scalar_lea.vmem %s0, %s135
        %s137 = smul.u32 32, %s9
      $region28: #{forward.30} parent=23 // pred_fallthru
        _
    $region24: #{forward.30} parent=5 // pred_fallthru
      _
    %p138 = scmp.le.s32.totalorder 1, %s9
    %p139 = scmp.lt.s32.totalorder %s9, 9
    %p140 = pnand %p138, %p139
    %p141 = pneg %p140
    // Predicated region
    $region29: #{forward.30} parent=5 // pred_check
      _
    $region30: #{forward.30} parent=5 // pred_check_branch
      %143 = sbr.rel (%p140) target = $region32
    $region31: #{forward.30} parent=5 // pred_region
      %s144 = ssub.s32 %s9, 1
      %s145 = smul.u32 32, %s14
      %p146 = scmp.lt.s32.totalorder %s145, 255
      %s147 = scalar_select %p146, %s145, 255
      %s148 = smul.addr %s147, 2
      %s149 = smul.addr %s148, 4
      %s150 = scalar_lea.vmem %s0, %s149
      %p151 = pneg %p35
      %p152 = pneg %p32
      %p153 = pneg %p56
      %p154 = pneg %p53
      %p155 = pneg %p77
      %p156 = pneg %p74
      %p157 = pneg %p103
      %p158 = pneg %p100
      %s159 = smul.u32 32, %s14
      %p160 = scmp.lt.s32.totalorder %s159, 255
      %s161 = scalar_select %p160, %s159, 255
      %s162 = smul.addr %s161, 4
      %s163 = scalar_lea.vmem %s3, %s162
      %s164 = smul.u32 32, %s14
      %p165 = scmp.lt.s32.totalorder %s164, 255
      %s166 = scalar_select %p165, %s164, 255
      %s167 = smul.addr %s166, 2
      %s168 = smul.addr %s167, 4
      %s169 = scalar_lea.vmem %s0, %s168
      %s170 = smul.u32 32, %s14
      %s171 = smul.u32 32, %s14
      %p172 = scmp.lt.s32.totalorder %s171, 255
      %s173 = scalar_select %p172, %s171, 255
      %s174 = smul.addr %s173, 4
      %s175 = scalar_lea.vmem %s3, %s174
      %s176 = smul.u32 32, %s14
      %v178 = vld [vmem:[%s169] sm:$0xff]
      %v179 = vld [vmem:[%s169 + $0x8] sm:$0xff]
      %v180 = vld [vmem:[%s169 + $0x10] sm:$0xff]
      %v181 = vld [vmem:[%s169 + $0x18] sm:$0xff]
      %v182 = vld [vmem:[%s169 + $0x20] sm:$0xff]
      %v183 = vld [vmem:[%s169 + $0x28] sm:$0xff]
      %v184 = vld [vmem:[%s169 + $0x30] sm:$0xff]
      %v185 = vld [vmem:[%s169 + $0x38] sm:$0xff]
      %v186 = vld [vmem:[%s169 + $0x40] sm:$0xff]
      %v187 = vld [vmem:[%s169 + $0x48] sm:$0xff]
      %v188 = vld [vmem:[%s169 + $0x50] sm:$0xff]
      %v189 = vld [vmem:[%s169 + $0x58] sm:$0xff]
      %v190 = vld [vmem:[%s169 + $0x60] sm:$0xff]
      %v191 = vld [vmem:[%s169 + $0x68] sm:$0xff]
      %v192 = vld [vmem:[%s169 + $0x70] sm:$0xff]
      %v193 = vld [vmem:[%s169 + $0x78] sm:$0xff]
      %v194 = vld [vmem:[%s169 + $0x80] sm:$0xff]
      %v195 = vld [vmem:[%s169 + $0x88] sm:$0xff]
      %v196 = vld [vmem:[%s169 + $0x90] sm:$0xff]
      %v197 = vld [vmem:[%s169 + $0x98] sm:$0xff]
      %v198 = vld [vmem:[%s169 + $0xa0] sm:$0xff]
      %v199 = vld [vmem:[%s169 + $0xa8] sm:$0xff]
      %v200 = vld [vmem:[%s169 + $0xb0] sm:$0xff]
      %v201 = vld [vmem:[%s169 + $0xb8] sm:$0xff]
      %v202 = vld [vmem:[%s169 + $0xc0] sm:$0xff]
      %v203 = vld [vmem:[%s169 + $0xc8] sm:$0xff]
      %v204 = vld [vmem:[%s169 + $0xd0] sm:$0xff]
      %v205 = vld [vmem:[%s169 + $0xd8] sm:$0xff]
      %v206 = vld [vmem:[%s169 + $0xe0] sm:$0xff]
      %v207 = vld [vmem:[%s169 + $0xe8] sm:$0xff]
      %v208 = vld [vmem:[%s169 + $0xf0] sm:$0xff]
      %v209 = vld [vmem:[%s169 + $0xf8] sm:$0xff]
      %v210 = vld [vmem:[%s1] sm:$0xf]
      %v211 = vld [vmem:[%s1 + $0x4] sm:$0xf]
      %v212 = vld [vmem:[%s1 + $0x8] sm:$0xf]
      %v213 = vld [vmem:[%s1 + $0xc] sm:$0xf]
      %v214 = vld [vmem:[%s1 + $0x10] sm:$0xf]
      %v215 = vld [vmem:[%s1 + $0x14] sm:$0xf]
      %v216 = vld [vmem:[%s1 + $0x18] sm:$0xf]
      %v217 = vld [vmem:[%s1 + $0x1c] sm:$0xf]
      %v218 = vld [vmem:[%s1 + $0x20] sm:$0xf]
      %v219 = vld [vmem:[%s1 + $0x24] sm:$0xf]
      %v220 = vld [vmem:[%s1 + $0x28] sm:$0xf]
      %v221 = vld [vmem:[%s1 + $0x2c] sm:$0xf]
      %v222 = vld [vmem:[%s1 + $0x30] sm:$0xf]
      %v223 = vld [vmem:[%s1 + $0x34] sm:$0xf]
      %v224 = vld [vmem:[%s1 + $0x38] sm:$0xf]
      %v225 = vld [vmem:[%s1 + $0x3c] sm:$0xf]
      %v226 = vld [vmem:[%s1 + $0x40] sm:$0xf]
      %v227 = vld [vmem:[%s1 + $0x44] sm:$0xf]
      %v228 = vld [vmem:[%s1 + $0x48] sm:$0x3]
      %v229 = vld [vmem:[%s2] sm:$0x1]
      %v231 = vperm.slane %v229, 0
      %v265 = vunpack.c.l.b16 %v178
      %v266 = vunpack.c.h.b16 %v178
      %v267 = vunpack.c.l.b16 %v179
      %v268 = vunpack.c.h.b16 %v179
      %v269 = vunpack.c.l.b16 %v180
      %v270 = vunpack.c.h.b16 %v180
      %v271 = vunpack.c.l.b16 %v181
      %v272 = vunpack.c.h.b16 %v181
      %v273 = vunpack.c.l.b16 %v182
      %v274 = vunpack.c.h.b16 %v182
      %v275 = vunpack.c.l.b16 %v183
      %v276 = vunpack.c.h.b16 %v183
      %v277 = vunpack.c.l.b16 %v184
      %v278 = vunpack.c.h.b16 %v184
      %v279 = vunpack.c.l.b16 %v185
      %v280 = vunpack.c.h.b16 %v185
      %v281 = vunpack.c.l.b16 %v186
      %v282 = vunpack.c.h.b16 %v186
      %v283 = vunpack.c.l.b16 %v187
      %v284 = vunpack.c.h.b16 %v187
      %v285 = vunpack.c.l.b16 %v188
      %v286 = vunpack.c.h.b16 %v188
      %v287 = vunpack.c.l.b16 %v189
      %v288 = vunpack.c.h.b16 %v189
      %v289 = vunpack.c.l.b16 %v190
      %v290 = vunpack.c.h.b16 %v190
      %v291 = vunpack.c.l.b16 %v191
      %v292 = vunpack.c.h.b16 %v191
      %v293 = vunpack.c.l.b16 %v192
      %v294 = vunpack.c.h.b16 %v192
      %v295 = vunpack.c.l.b16 %v193
      %v296 = vunpack.c.h.b16 %v193
      %v297 = vunpack.c.l.b16 %v194
      %v298 = vunpack.c.h.b16 %v194
      %v299 = vunpack.c.l.b16 %v195
      %v300 = vunpack.c.h.b16 %v195
      %v301 = vunpack.c.l.b16 %v196
      %v302 = vunpack.c.h.b16 %v196
      %v303 = vunpack.c.l.b16 %v197
      %v304 = vunpack.c.h.b16 %v197
      %v305 = vunpack.c.l.b16 %v198
      %v306 = vunpack.c.h.b16 %v198
      %v307 = vunpack.c.l.b16 %v199
      %v308 = vunpack.c.h.b16 %v199
      %v309 = vunpack.c.l.b16 %v200
      %v310 = vunpack.c.h.b16 %v200
      %v311 = vunpack.c.l.b16 %v201
      %v312 = vunpack.c.h.b16 %v201
      %v313 = vunpack.c.l.b16 %v202
      %v314 = vunpack.c.h.b16 %v202
      %v315 = vunpack.c.l.b16 %v203
      %v316 = vunpack.c.h.b16 %v203
      %v317 = vunpack.c.l.b16 %v204
      %v318 = vunpack.c.h.b16 %v204
      %v319 = vunpack.c.l.b16 %v205
      %v320 = vunpack.c.h.b16 %v205
      %v321 = vunpack.c.l.b16 %v206
      %v322 = vunpack.c.h.b16 %v206
      %v323 = vunpack.c.l.b16 %v207
      %v324 = vunpack.c.h.b16 %v207
      %v325 = vunpack.c.l.b16 %v208
      %v326 = vunpack.c.h.b16 %v208
      %v327 = vunpack.c.l.b16 %v209
      %v328 = vunpack.c.h.b16 %v209
      %v329 = vpack.c.b16 %v267, %v265
      %v330 = vpack.c.b16 %v268, %v266
      %v331 = vpack.c.b16 %v271, %v269
      %v332 = vpack.c.b16 %v272, %v270
      %v333 = vpack.c.b16 %v275, %v273
      %v334 = vpack.c.b16 %v276, %v274
      %v335 = vpack.c.b16 %v279, %v277
      %v336 = vpack.c.b16 %v280, %v278
      %v337 = vpack.c.b16 %v283, %v281
      %v338 = vpack.c.b16 %v284, %v282
      %v339 = vpack.c.b16 %v287, %v285
      %v340 = vpack.c.b16 %v288, %v286
      %v341 = vpack.c.b16 %v291, %v289
      %v342 = vpack.c.b16 %v292, %v290
      %v343 = vpack.c.b16 %v295, %v293
      %v344 = vpack.c.b16 %v296, %v294
      %v345 = vpack.c.b16 %v299, %v297
      %v346 = vpack.c.b16 %v300, %v298
      %v347 = vpack.c.b16 %v303, %v301
      %v348 = vpack.c.b16 %v304, %v302
      %v349 = vpack.c.b16 %v307, %v305
      %v350 = vpack.c.b16 %v308, %v306
      %v351 = vpack.c.b16 %v311, %v309
      %v352 = vpack.c.b16 %v312, %v310
      %v353 = vpack.c.b16 %v315, %v313
      %v354 = vpack.c.b16 %v316, %v314
      %v355 = vpack.c.b16 %v319, %v317
      %v356 = vpack.c.b16 %v320, %v318
      %v357 = vpack.c.b16 %v323, %v321
      %v358 = vpack.c.b16 %v324, %v322
      %v359 = vpack.c.b16 %v327, %v325
      %v360 = vpack.c.b16 %v328, %v326
      %v396 = vunpack.c.l.b16 %v210
      %v397 = vunpack.c.l.b16 %v211
      %v398 = vunpack.c.l.b16 %v212
      %v399 = vunpack.c.l.b16 %v213
      %v400 = vunpack.c.l.b16 %v214
      %v401 = vunpack.c.l.b16 %v215
      %v402 = vunpack.c.l.b16 %v216
      %v403 = vunpack.c.l.b16 %v217
      %v404 = vunpack.c.l.b16 %v218
      %v405 = vunpack.c.l.b16 %v219
      %v406 = vunpack.c.l.b16 %v220
      %v407 = vunpack.c.l.b16 %v221
      %v408 = vunpack.c.l.b16 %v222
      %v409 = vunpack.c.l.b16 %v223
      %v410 = vunpack.c.l.b16 %v224
      %v411 = vunpack.c.l.b16 %v225
      %v412 = vunpack.c.l.b16 %v226
      %v413 = vunpack.c.l.b16 %v227
      %v414 = vunpack.c.l.b16 %v228
      %v415 = vpack.c.b16 %v397, %v396
      %v416 = vpack.c.b16 %v399, %v398
      %v417 = vpack.c.b16 %v401, %v400
      %v418 = vpack.c.b16 %v403, %v402
      %v419 = vpack.c.b16 %v405, %v404
      %v420 = vpack.c.b16 %v407, %v406
      %v421 = vpack.c.b16 %v409, %v408
      %v422 = vpack.c.b16 %v411, %v410
      %v423 = vpack.c.b16 %v413, %v412
      %v424 = vpack.c.b16 %v414, %v414
      %vm434 = vcmask 154624
      %v436 = vsel %vm434, %v330, 0
      %v439 = vsel %vm434, %v332, 0
      %v442 = vsel %vm434, %v334, 0
      %v445 = vsel %vm434, %v336, 0
      %v448 = vsel %vm434, %v338, 0
      %v451 = vsel %vm434, %v340, 0
      %v454 = vsel %vm434, %v342, 0
      %v457 = vsel %vm434, %v344, 0
      %v460 = vsel %vm434, %v346, 0
      %v463 = vsel %vm434, %v348, 0
      %v466 = vsel %vm434, %v350, 0
      %v469 = vsel %vm434, %v352, 0
      %v472 = vsel %vm434, %v354, 0
      %v475 = vsel %vm434, %v356, 0
      %v478 = vsel %vm434, %v358, 0
      %v481 = vsel %vm434, %v360, 0
      %vm483 = vcmask 1040384
      %vm484 = vcmask 1041408
      %v485 = vsel %vm483, 4294967295, 65535
      %v486 = vsel %vm484, %v485, 0
      %v488 = vand.u32 %v424, %v486
      %490 = vmatpush.bf16.msra.mxu0 %v422
      %491 = vmatpush.bf16.msra.mxu0 %v421
      %492 = vmatpush.bf16.msra.mxu0 %v420
      %493 = vmatpush.bf16.msra.mxu0 %v419
      %494 = vmatpush.bf16.msra.mxu0 %v418
      %495 = vmatpush.bf16.msra.mxu0 %v417
      %496 = vmatpush.bf16.msra.mxu0 %v416
      %497 = vmatpush.bf16.msra.mxu0 %v415
      %498 = vmatmul.bf16.gmra.mxu0 %v329
      %v499 = vpop.f32.mrf.mxu0
      %v500 = vadd.f32 %v231, %v499
      %v501 = vpop.f32.mrf.mxu0
      %v502 = vadd.f32 %v231, %v501
      %503 = vmatmul.bf16.gmra.mxu0 %v331
      %v504 = vpop.f32.mrf.mxu0
      %v505 = vadd.f32 %v231, %v504
      %v506 = vpop.f32.mrf.mxu0
      %v507 = vadd.f32 %v231, %v506
      %508 = vmatmul.bf16.gmra.mxu0 %v333
      %v509 = vpop.f32.mrf.mxu0
      %v510 = vadd.f32 %v231, %v509
      %v511 = vpop.f32.mrf.mxu0
      %v512 = vadd.f32 %v231, %v511
      %513 = vmatmul.bf16.gmra.mxu0 %v335
      %v514 = vpop.f32.mrf.mxu0
      %v515 = vadd.f32 %v231, %v514
      %v516 = vpop.f32.mrf.mxu0
      %v517 = vadd.f32 %v231, %v516
      %518 = vmatmul.bf16.gmra.mxu0 %v337
      %v519 = vpop.f32.mrf.mxu0
      %v520 = vadd.f32 %v231, %v519
      %v521 = vpop.f32.mrf.mxu0
      %v522 = vadd.f32 %v231, %v521
      %523 = vmatmul.bf16.gmra.mxu0 %v339
      %v524 = vpop.f32.mrf.mxu0
      %v525 = vadd.f32 %v231, %v524
      %v526 = vpop.f32.mrf.mxu0
      %v527 = vadd.f32 %v231, %v526
      %528 = vmatmul.bf16.gmra.mxu0 %v341
      %v529 = vpop.f32.mrf.mxu0
      %v530 = vadd.f32 %v231, %v529
      %v531 = vpop.f32.mrf.mxu0
      %v532 = vadd.f32 %v231, %v531
      %533 = vmatmul.bf16.gmra.mxu0 %v343
      %v534 = vpop.f32.mrf.mxu0
      %v535 = vadd.f32 %v231, %v534
      %v536 = vpop.f32.mrf.mxu0
      %v537 = vadd.f32 %v231, %v536
      %538 = vmatmul.bf16.gmra.mxu0 %v345
      %v539 = vpop.f32.mrf.mxu0
      %v540 = vadd.f32 %v231, %v539
      %v541 = vpop.f32.mrf.mxu0
      %v542 = vadd.f32 %v231, %v541
      %543 = vmatmul.bf16.gmra.mxu0 %v347
      %v544 = vpop.f32.mrf.mxu0
      %v545 = vadd.f32 %v231, %v544
      %v546 = vpop.f32.mrf.mxu0
      %v547 = vadd.f32 %v231, %v546
      %548 = vmatmul.bf16.gmra.mxu0 %v349
      %v549 = vpop.f32.mrf.mxu0
      %v550 = vadd.f32 %v231, %v549
      %v551 = vpop.f32.mrf.mxu0
      %v552 = vadd.f32 %v231, %v551
      %553 = vmatmul.bf16.gmra.mxu0 %v351
      %v554 = vpop.f32.mrf.mxu0
      %v555 = vadd.f32 %v231, %v554
      %v556 = vpop.f32.mrf.mxu0
      %v557 = vadd.f32 %v231, %v556
      %558 = vmatmul.bf16.gmra.mxu0 %v353
      %v559 = vpop.f32.mrf.mxu0
      %v560 = vadd.f32 %v231, %v559
      %v561 = vpop.f32.mrf.mxu0
      %v562 = vadd.f32 %v231, %v561
      %563 = vmatmul.bf16.gmra.mxu0 %v355
      %v564 = vpop.f32.mrf.mxu0
      %v565 = vadd.f32 %v231, %v564
      %v566 = vpop.f32.mrf.mxu0
      %v567 = vadd.f32 %v231, %v566
      %568 = vmatmul.bf16.gmra.mxu0 %v357
      %v569 = vpop.f32.mrf.mxu0
      %v570 = vadd.f32 %v231, %v569
      %v571 = vpop.f32.mrf.mxu0
      %v572 = vadd.f32 %v231, %v571
      %573 = vmatmul.bf16.gmra.mxu0 %v359
      %v574 = vpop.f32.mrf.mxu0
      %v575 = vadd.f32 %v231, %v574
      %v576 = vpop.f32.mrf.mxu0
      %v577 = vadd.f32 %v231, %v576
      %578 = vdwg.mxu0
      %579 = vmatpush.bf16.msra.mxu0 0
      %580 = vmatpush.bf16.msra.mxu0 0
      %581 = vmatpush.bf16.msra.mxu0 0
      %582 = vmatpush.bf16.msra.mxu0 0
      %583 = vmatpush.bf16.msra.mxu0 0
      %584 = vmatpush.bf16.msra.mxu0 0
      %585 = vmatpush.bf16.msra.mxu0 %v488
      %586 = vmatpush.bf16.msra.mxu0 %v423
      %587 = vmatmul.bf16.gmra.mxu0 %v436
      %v588 = vpop.f32.mrf.mxu0
      %v589 = vadd.f32 %v500, %v588
      %v590 = vpop.f32.mrf.mxu0
      %v591 = vadd.f32 %v502, %v590
      %592 = vmatmul.bf16.gmra.mxu0 %v439
      %v593 = vpop.f32.mrf.mxu0
      %v594 = vadd.f32 %v505, %v593
      %v595 = vpop.f32.mrf.mxu0
      %v596 = vadd.f32 %v507, %v595
      %597 = vmatmul.bf16.gmra.mxu0 %v442
      %v598 = vpop.f32.mrf.mxu0
      %v599 = vadd.f32 %v510, %v598
      %v600 = vpop.f32.mrf.mxu0
      %v601 = vadd.f32 %v512, %v600
      %602 = vmatmul.bf16.gmra.mxu0 %v445
      %v603 = vpop.f32.mrf.mxu0
      %v604 = vadd.f32 %v515, %v603
      %v605 = vpop.f32.mrf.mxu0
      %v606 = vadd.f32 %v517, %v605
      %607 = vmatmul.bf16.gmra.mxu0 %v448
      %v608 = vpop.f32.mrf.mxu0
      %v609 = vadd.f32 %v520, %v608
      %v610 = vpop.f32.mrf.mxu0
      %v611 = vadd.f32 %v522, %v610
      %612 = vmatmul.bf16.gmra.mxu0 %v451
      %v613 = vpop.f32.mrf.mxu0
      %v614 = vadd.f32 %v525, %v613
      %v615 = vpop.f32.mrf.mxu0
      %v616 = vadd.f32 %v527, %v615
      %617 = vmatmul.bf16.gmra.mxu0 %v454
      %v618 = vpop.f32.mrf.mxu0
      %v619 = vadd.f32 %v530, %v618
      %v620 = vpop.f32.mrf.mxu0
      %v621 = vadd.f32 %v532, %v620
      %622 = vmatmul.bf16.gmra.mxu0 %v457
      %v623 = vpop.f32.mrf.mxu0
      %v624 = vadd.f32 %v535, %v623
      %v625 = vpop.f32.mrf.mxu0
      %v626 = vadd.f32 %v537, %v625
      %627 = vmatmul.bf16.gmra.mxu0 %v460
      %v628 = vpop.f32.mrf.mxu0
      %v629 = vadd.f32 %v540, %v628
      %v630 = vpop.f32.mrf.mxu0
      %v631 = vadd.f32 %v542, %v630
      %632 = vmatmul.bf16.gmra.mxu0 %v463
      %v633 = vpop.f32.mrf.mxu0
      %v634 = vadd.f32 %v545, %v633
      %v635 = vpop.f32.mrf.mxu0
      %v636 = vadd.f32 %v547, %v635
      %637 = vmatmul.bf16.gmra.mxu0 %v466
      %v638 = vpop.f32.mrf.mxu0
      %v639 = vadd.f32 %v550, %v638
      %v640 = vpop.f32.mrf.mxu0
      %v641 = vadd.f32 %v552, %v640
      %642 = vmatmul.bf16.gmra.mxu0 %v469
      %v643 = vpop.f32.mrf.mxu0
      %v644 = vadd.f32 %v555, %v643
      %v645 = vpop.f32.mrf.mxu0
      %v646 = vadd.f32 %v557, %v645
      %647 = vmatmul.bf16.gmra.mxu0 %v472
      %v648 = vpop.f32.mrf.mxu0
      %v649 = vadd.f32 %v560, %v648
      %v650 = vpop.f32.mrf.mxu0
      %v651 = vadd.f32 %v562, %v650
      %652 = vmatmul.bf16.gmra.mxu0 %v475
      %v653 = vpop.f32.mrf.mxu0
      %v654 = vadd.f32 %v565, %v653
      %v655 = vpop.f32.mrf.mxu0
      %v656 = vadd.f32 %v567, %v655
      %657 = vmatmul.bf16.gmra.mxu0 %v478
      %v658 = vpop.f32.mrf.mxu0
      %v659 = vadd.f32 %v570, %v658
      %v660 = vpop.f32.mrf.mxu0
      %v661 = vadd.f32 %v572, %v660
      %662 = vmatmul.bf16.gmra.mxu0 %v481
      %v663 = vpop.f32.mrf.mxu0
      %v664 = vadd.f32 %v575, %v663
      %v665 = vpop.f32.mrf.mxu0
      %v666 = vadd.f32 %v577, %v665
      %667 = vdwg.mxu0
      %v668 = vmax.f32 %v589, 0.0
      %v669 = vmax.f32 %v591, 0.0
      %v670 = vmax.f32 %v594, 0.0
      %v671 = vmax.f32 %v596, 0.0
      %v672 = vmax.f32 %v599, 0.0
      %v673 = vmax.f32 %v601, 0.0
      %v674 = vmax.f32 %v604, 0.0
      %v675 = vmax.f32 %v606, 0.0
      %v676 = vmax.f32 %v609, 0.0
      %v677 = vmax.f32 %v611, 0.0
      %v678 = vmax.f32 %v614, 0.0
      %v679 = vmax.f32 %v616, 0.0
      %v680 = vmax.f32 %v619, 0.0
      %v681 = vmax.f32 %v621, 0.0
      %v682 = vmax.f32 %v624, 0.0
      %v683 = vmax.f32 %v626, 0.0
      %v684 = vmax.f32 %v629, 0.0
      %v685 = vmax.f32 %v631, 0.0
      %v686 = vmax.f32 %v634, 0.0
      %v687 = vmax.f32 %v636, 0.0
      %v688 = vmax.f32 %v639, 0.0
      %v689 = vmax.f32 %v641, 0.0
      %v690 = vmax.f32 %v644, 0.0
      %v691 = vmax.f32 %v646, 0.0
      %v692 = vmax.f32 %v649, 0.0
      %v693 = vmax.f32 %v651, 0.0
      %v694 = vmax.f32 %v654, 0.0
      %v695 = vmax.f32 %v656, 0.0
      %v696 = vmax.f32 %v659, 0.0
      %v697 = vmax.f32 %v661, 0.0
      %v698 = vmax.f32 %v664, 0.0
      %v699 = vmax.f32 %v666, 0.0
      %v700 = vpack.c.bf16 %v668, %v668
      %v701 = vpack.c.bf16 %v669, %v669
      %v702 = vpack.c.bf16 %v670, %v670
      %v703 = vpack.c.bf16 %v671, %v671
      %v704 = vpack.c.bf16 %v672, %v672
      %v705 = vpack.c.bf16 %v673, %v673
      %v706 = vpack.c.bf16 %v674, %v674
      %v707 = vpack.c.bf16 %v675, %v675
      %v708 = vpack.c.bf16 %v676, %v676
      %v709 = vpack.c.bf16 %v677, %v677
      %v710 = vpack.c.bf16 %v678, %v678
      %v711 = vpack.c.bf16 %v679, %v679
      %v712 = vpack.c.bf16 %v680, %v680
      %v713 = vpack.c.bf16 %v681, %v681
      %v714 = vpack.c.bf16 %v682, %v682
      %v715 = vpack.c.bf16 %v683, %v683
      %v716 = vpack.c.bf16 %v684, %v684
      %v717 = vpack.c.bf16 %v685, %v685
      %v718 = vpack.c.bf16 %v686, %v686
      %v719 = vpack.c.bf16 %v687, %v687
      %v720 = vpack.c.bf16 %v688, %v688
      %v721 = vpack.c.bf16 %v689, %v689
      %v722 = vpack.c.bf16 %v690, %v690
      %v723 = vpack.c.bf16 %v691, %v691
      %v724 = vpack.c.bf16 %v692, %v692
      %v725 = vpack.c.bf16 %v693, %v693
      %v726 = vpack.c.bf16 %v694, %v694
      %v727 = vpack.c.bf16 %v695, %v695
      %v728 = vpack.c.bf16 %v696, %v696
      %v729 = vpack.c.bf16 %v697, %v697
      %v730 = vpack.c.bf16 %v698, %v698
      %v731 = vpack.c.bf16 %v699, %v699
      %vm732 = vcmask 60416
      %733 = vst.msk [vmem:[%s175] sm:$0xf] %vm732, %v700
      %734 = vst.msk [vmem:[%s175 + $0x4] sm:$0xf] %vm732, %v701
      %735 = vst.msk [vmem:[%s175 + $0x8] sm:$0xf] %vm732, %v702
      %736 = vst.msk [vmem:[%s175 + $0xc] sm:$0xf] %vm732, %v703
      %737 = vst.msk [vmem:[%s175 + $0x10] sm:$0xf] %vm732, %v704
      %738 = vst.msk [vmem:[%s175 + $0x14] sm:$0xf] %vm732, %v705
      %739 = vst.msk [vmem:[%s175 + $0x18] sm:$0xf] %vm732, %v706
      %740 = vst.msk [vmem:[%s175 + $0x1c] sm:$0xf] %vm732, %v707
      %741 = vst.msk [vmem:[%s175 + $0x20] sm:$0xf] %vm732, %v708
      %742 = vst.msk [vmem:[%s175 + $0x24] sm:$0xf] %vm732, %v709
      %743 = vst.msk [vmem:[%s175 + $0x28] sm:$0xf] %vm732, %v710
      %744 = vst.msk [vmem:[%s175 + $0x2c] sm:$0xf] %vm732, %v711
      %745 = vst.msk [vmem:[%s175 + $0x30] sm:$0xf] %vm732, %v712
      %746 = vst.msk [vmem:[%s175 + $0x34] sm:$0xf] %vm732, %v713
      %747 = vst.msk [vmem:[%s175 + $0x38] sm:$0xf] %vm732, %v714
      %748 = vst.msk [vmem:[%s175 + $0x3c] sm:$0xf] %vm732, %v715
      %749 = vst.msk [vmem:[%s175 + $0x40] sm:$0xf] %vm732, %v716
      %750 = vst.msk [vmem:[%s175 + $0x44] sm:$0xf] %vm732, %v717
      %751 = vst.msk [vmem:[%s175 + $0x48] sm:$0xf] %vm732, %v718
      %752 = vst.msk [vmem:[%s175 + $0x4c] sm:$0xf] %vm732, %v719
      %753 = vst.msk [vmem:[%s175 + $0x50] sm:$0xf] %vm732, %v720
      %754 = vst.msk [vmem:[%s175 + $0x54] sm:$0xf] %vm732, %v721
      %755 = vst.msk [vmem:[%s175 + $0x58] sm:$0xf] %vm732, %v722
      %756 = vst.msk [vmem:[%s175 + $0x5c] sm:$0xf] %vm732, %v723
      %757 = vst.msk [vmem:[%s175 + $0x60] sm:$0xf] %vm732, %v724
      %758 = vst.msk [vmem:[%s175 + $0x64] sm:$0xf] %vm732, %v725
      %759 = vst.msk [vmem:[%s175 + $0x68] sm:$0xf] %vm732, %v726
      %760 = vst.msk [vmem:[%s175 + $0x6c] sm:$0xf] %vm732, %v727
      %761 = vst.msk [vmem:[%s175 + $0x70] sm:$0xf] %vm732, %v728
      %762 = vst.msk [vmem:[%s175 + $0x74] sm:$0xf] %vm732, %v729
      %763 = vst.msk [vmem:[%s175 + $0x78] sm:$0xf] %vm732, %v730
      %764 = vst.msk [vmem:[%s175 + $0x7c] sm:$0xf] %vm732, %v731
      %s765 = smul.u32 32, %s14
      %p766 = scmp.lt.s32.totalorder %s765, 255
      %s767 = scalar_select %p766, %s765, 255
      %s768 = smul.addr %s767, 4
      %s769 = scalar_lea.vmem %s3, %s768
      // Predicated region
      $region33: #{forward.30} parent=31 // pred_check
        %p770 = pneg %p100
      $region34: #{forward.30} parent=31 // pred_check_branch
        %772 = sbr.rel (%p770) target = $region36
      $region35: #{forward.30} parent=31 // pred_region
        %s773 = smul.u32 32, %s14
      $region36: #{forward.30} parent=31 // pred_fallthru
        _
    $region32: #{forward.30} parent=5 // pred_fallthru
      _
    %p774 = scmp.le.s32.totalorder 2, %s9
    // Predicated region
    $region37: #{forward.30} parent=5 // pred_check
      %p775 = pneg %p774
    $region38: #{forward.30} parent=5 // pred_check_branch
      %777 = sbr.rel (%p775) target = $region40
    $region39: #{forward.30} parent=5 // pred_region
      %s778 = ssub.s32 %s9, 2
      // Predicated region
      $region41: #{forward.30} parent=39 // pred_check
        %p779 = pneg %p106
      $region42: #{forward.30} parent=39 // pred_check_branch
        %781 = sbr.rel (%p779) target = $region44
      $region43: #{forward.30} parent=39 // pred_region
        %s782 = smul.u32 32, %s15
        %p783 = scmp.lt.s32.totalorder %s782, 255
        %s784 = scalar_select %p783, %s782, 255
        %s785 = smul.addr %s784, 4
        %s786 = scalar_lea.vmem %s3, %s785
      $region44: #{forward.30} parent=39 // pred_fallthru
        _
    $region40: #{forward.30} parent=5 // pred_fallthru
      _
  $region6: #{forward.30} parent=0 // loop_footer
    %s13 = sadd.s32 1, %s9
  $region7: #{forward.30} parent=0 // loop_footer_branch
    %8 = sbr.rel target = $region3
  $region8: #{forward.30} parent=0 // loop_exit
    _

// kernel: forward.31
$region0: #{forward.31}
  #allocation0 [shape = 'u32[]', space=smem, size = 0x4, offset = 0x4, fixed_abs, tag = 'smem constant byte address 0x4 - core index']
  #allocation1 [shape = 'u32[72,128]{1,0:T(1,128)}', space=vmem, size = 0x9000, scoped, tag = 'internal scratch']
  %s0 = inlined_call_operand.vmem [shape: bf16[512,72], index: 0, kind: input, shape index: {}]
  %s1 = inlined_call_operand.vmem [shape: bf16[72,8], index: 1, kind: input, shape index: {}]
  %s2 = inlined_call_operand.vmem [shape: f32[1,8], index: 2, kind: input, shape index: {}]
  %s3 = inlined_call_operand.vmem [shape: bf16[512,8], index: 3, kind: output, shape index: {}]
  %s4 = sld [smem:[#allocation0]]
  $region45: #{forward.31} parent=0
    _
  %s6 = ssub.s32 1, %s4
  %s7 = scalar_select 0, %s6, %s4
  loop: start=0, step=1, limit=4
  $region2: #{forward.31} parent=0 // loop_pre_header
    _
  $region3: #{forward.31} parent=0 // loop_header
    %s9 = sphi 0, %s13
    %p10 = scmp.ge.s32.totalorder %s9, 4
    %s19 = sphi 0, %s21
    %s22 = sphi 0, %s19
    %s23 = sphi 0, %s22
    %s39 = sphi 0, %s23
    %s43 = sphi 0, %s43
    %s45 = sphi 0, %s43
    %s46 = sphi 0, %s45
    %s60 = sphi 0, %s46
    %s64 = sphi 0, %s64
    %s66 = sphi 0, %s64
    %s67 = sphi 0, %s66
    %s81 = sphi 0, %s67
    %s87 = sphi 0, %s89
    %s90 = sphi 0, %s87
    %s91 = sphi 0, %s90
    %s107 = sphi 0, %s91
  $region4: #{forward.31} parent=0 // loop_header_branch
    %12 = sbr.rel (%p10) target = $region8
  $region5: #{forward.31} parent=0 // loop_body
    %s14 = ssub.s32 %s9, 1
    %s15 = ssub.s32 %s9, 2
    %s16 = sadd.s32 %s9, 1
    %s17 = ssub.s32 %s9, %s16
    %p18 = scmp.eq.s32.totalorder %s17, 0
    %s20 = sadd.s32 %s19, 1
    %s21 = scalar_select %p18, %s19, %s20
    %p24 = pneg %p18
    %p25 = scmp.eq.s32.totalorder %s9, 1
    %p26 = por %p24, %p25
    %p27 = scmp.ne.s32.totalorder %s19, %s22
    %p28 = scmp.eq.s32.totalorder %s9, 0
    %p29 = por %p27, %p28
    %p30 = scmp.ne.s32.totalorder %s19, %s22
    %p31 = scmp.eq.s32.totalorder %s14, 1
    %p32 = por %p30, %p31
    %p33 = scmp.ne.s32.totalorder %s22, %s23
    %p34 = scmp.eq.s32.totalorder %s14, 0
    %p35 = por %p33, %p34
    %p36 = scmp.ne.s32.totalorder %s22, %s23
    %p37 = scmp.eq.s32.totalorder %s15, 1
    %p38 = por %p36, %p37
    %p40 = scmp.ne.s32.totalorder %s23, %s39
    %p41 = scmp.eq.s32.totalorder %s15, 0
    %p42 = por %p40, %p41
    %s44 = sadd.s32 %s43, 1
    %p47 = scmp.eq.s32.totalorder %s9, 1
    %p48 = scmp.ne.s32.totalorder %s43, %s45
    %p49 = scmp.eq.s32.totalorder %s9, 0
    %p50 = por %p48, %p49
    %p51 = scmp.ne.s32.totalorder %s43, %s45
    %p52 = scmp.eq.s32.totalorder %s14, 1
    %p53 = por %p51, %p52
    %p54 = scmp.ne.s32.totalorder %s45, %s46
    %p55 = scmp.eq.s32.totalorder %s14, 0
    %p56 = por %p54, %p55
    %p57 = scmp.ne.s32.totalorder %s45, %s46
    %p58 = scmp.eq.s32.totalorder %s15, 1
    %p59 = por %p57, %p58
    %p61 = scmp.ne.s32.totalorder %s46, %s60
    %p62 = scmp.eq.s32.totalorder %s15, 0
    %p63 = por %p61, %p62
    %s65 = sadd.s32 %s64, 1
    %p68 = scmp.eq.s32.totalorder %s9, 1
    %p69 = scmp.ne.s32.totalorder %s64, %s66
    %p70 = scmp.eq.s32.totalorder %s9, 0
    %p71 = por %p69, %p70
    %p72 = scmp.ne.s32.totalorder %s64, %s66
    %p73 = scmp.eq.s32.totalorder %s14, 1
    %p74 = por %p72, %p73
    %p75 = scmp.ne.s32.totalorder %s66, %s67
    %p76 = scmp.eq.s32.totalorder %s14, 0
    %p77 = por %p75, %p76
    %p78 = scmp.ne.s32.totalorder %s66, %s67
    %p79 = scmp.eq.s32.totalorder %s15, 1
    %p80 = por %p78, %p79
    %p82 = scmp.ne.s32.totalorder %s67, %s81
    %p83 = scmp.eq.s32.totalorder %s15, 0
    %p84 = por %p82, %p83
    %s85 = ssub.s32 %s9, %s16
    %p86 = scmp.eq.s32.totalorder %s85, 0
    %s88 = sadd.s32 %s87, 1
    %s89 = scalar_select %p86, %s87, %s88
    %p92 = pneg %p86
    %p93 = scmp.eq.s32.totalorder %s9, 1
    %p94 = por %p92, %p93
    %p95 = scmp.ne.s32.totalorder %s87, %s90
    %p96 = scmp.eq.s32.totalorder %s9, 0
    %p97 = por %p95, %p96
    %p98 = scmp.ne.s32.totalorder %s87, %s90
    %p99 = scmp.eq.s32.totalorder %s14, 1
    %p100 = por %p98, %p99
    %p101 = scmp.ne.s32.totalorder %s90, %s91
    %p102 = scmp.eq.s32.totalorder %s14, 0
    %p103 = por %p101, %p102
    %p104 = scmp.ne.s32.totalorder %s90, %s91
    %p105 = scmp.eq.s32.totalorder %s15, 1
    %p106 = por %p104, %p105
    %p108 = scmp.ne.s32.totalorder %s91, %s107
    %p109 = scmp.eq.s32.totalorder %s15, 0
    %p110 = por %p108, %p109
    %p111 = scmp.le.s32.totalorder 1, %s9
    %p112 = scmp.lt.s32.totalorder %s9, 3
    %p113 = pnand %p111, %p112
    %p114 = pneg %p113
    // Predicated region
    $region9: #{forward.31} parent=5 // pred_check
      _
    $region10: #{forward.31} parent=5 // pred_check_branch
      %116 = sbr.rel (%p113) target = $region12
    $region11: #{forward.31} parent=5 // pred_region
      %s117 = ssub.s32 %s9, 1
      // Predicated region
      $region13: #{forward.31} parent=11 // pred_check
        %p118 = pneg %p56
      $region14: #{forward.31} parent=11 // pred_check_branch
        %120 = sbr.rel (%p118) target = $region16
      $region15: #{forward.31} parent=11 // pred_region
        _
      $region16: #{forward.31} parent=11 // pred_fallthru
        _
      // Predicated region
      $region17: #{forward.31} parent=11 // pred_check
        %p121 = pneg %p77
      $region18: #{forward.31} parent=11 // pred_check_branch
        %123 = sbr.rel (%p121) target = $region20
      $region19: #{forward.31} parent=11 // pred_region
        _
      $region20: #{forward.31} parent=11 // pred_fallthru
        _
    $region12: #{forward.31} parent=5 // pred_fallthru
      _
    %p124 = scmp.lt.s32.totalorder %s9, 2
    // Predicated region
    $region21: #{forward.31} parent=5 // pred_check
      %p125 = pneg %p124
    $region22: #{forward.31} parent=5 // pred_check_branch
      %127 = sbr.rel (%p125) target = $region24
    $region23: #{forward.31} parent=5 // pred_region
      // Predicated region
      $region25: #{forward.31} parent=23 // pred_check
        %p128 = pneg %p29
      $region26: #{forward.31} parent=23 // pred_check_branch
        %130 = sbr.rel (%p128) target = $region28
      $region27: #{forward.31} parent=23 // pred_region
        %s131 = smul.u32 32, %s9
        %p132 = scmp.lt.s32.totalorder %s131, 63
        %s133 = scalar_select %p132, %s131, 63
        %s134 = smul.addr %s133, 4
        %s135 = scalar_lea.vmem %s0, %s134
        %s136 = smul.u32 32, %s9
      $region28: #{forward.31} parent=23 // pred_fallthru
        _
    $region24: #{forward.31} parent=5 // pred_fallthru
      _
    %p137 = scmp.le.s32.totalorder 1, %s9
    %p138 = scmp.lt.s32.totalorder %s9, 3
    %p139 = pnand %p137, %p138
    %p140 = pneg %p139
    // Predicated region
    $region29: #{forward.31} parent=5 // pred_check
      _
    $region30: #{forward.31} parent=5 // pred_check_branch
      %142 = sbr.rel (%p139) target = $region32
    $region31: #{forward.31} parent=5 // pred_region
      %s143 = ssub.s32 %s9, 1
      %s144 = smul.u32 32, %s14
      %p145 = scmp.lt.s32.totalorder %s144, 63
      %s146 = scalar_select %p145, %s144, 63
      %s147 = smul.addr %s146, 4
      %s148 = scalar_lea.vmem %s0, %s147
      %p149 = pneg %p35
      %p150 = pneg %p32
      %p151 = pneg %p56
      %p152 = pneg %p53
      %p153 = pneg %p77
      %p154 = pneg %p74
      %p155 = pneg %p103
      %p156 = pneg %p100
      %s157 = smul.u32 32, %s14
      %p158 = scmp.lt.s32.totalorder %s157, 63
      %s159 = scalar_select %p158, %s157, 63
      %s160 = smul.addr %s159, 4
      %s161 = scalar_lea.vmem %s3, %s160
      %s162 = smul.u32 32, %s14
      %p163 = scmp.lt.s32.totalorder %s162, 63
      %s164 = scalar_select %p163, %s162, 63
      %s165 = smul.addr %s164, 4
      %s166 = scalar_lea.vmem %s0, %s165
      %s167 = smul.u32 32, %s14
      %s168 = smul.u32 32, %s14
      %p169 = scmp.lt.s32.totalorder %s168, 63
      %s170 = scalar_select %p169, %s168, 63
      %s171 = smul.addr %s170, 4
      %s172 = scalar_lea.vmem %s3, %s171
      %s173 = smul.u32 32, %s14
      %v175 = vld [vmem:[%s166] sm:$0xf]
      %v176 = vld [vmem:[%s166 + $0x4] sm:$0xf]
      %v177 = vld [vmem:[%s166 + $0x8] sm:$0xf]
      %v178 = vld [vmem:[%s166 + $0xc] sm:$0xf]
      %v179 = vld [vmem:[%s166 + $0x10] sm:$0xf]
      %v180 = vld [vmem:[%s166 + $0x14] sm:$0xf]
      %v181 = vld [vmem:[%s166 + $0x18] sm:$0xf]
      %v182 = vld [vmem:[%s166 + $0x1c] sm:$0xf]
      %v183 = vld [vmem:[%s166 + $0x20] sm:$0xf]
      %v184 = vld [vmem:[%s166 + $0x24] sm:$0xf]
      %v185 = vld [vmem:[%s166 + $0x28] sm:$0xf]
      %v186 = vld [vmem:[%s166 + $0x2c] sm:$0xf]
      %v187 = vld [vmem:[%s166 + $0x30] sm:$0xf]
      %v188 = vld [vmem:[%s166 + $0x34] sm:$0xf]
      %v189 = vld [vmem:[%s166 + $0x38] sm:$0xf]
      %v190 = vld [vmem:[%s166 + $0x3c] sm:$0xf]
      %v191 = vld [vmem:[%s166 + $0x40] sm:$0xf]
      %v192 = vld [vmem:[%s166 + $0x44] sm:$0xf]
      %v193 = vld [vmem:[%s166 + $0x48] sm:$0xf]
      %v194 = vld [vmem:[%s166 + $0x4c] sm:$0xf]
      %v195 = vld [vmem:[%s166 + $0x50] sm:$0xf]
      %v196 = vld [vmem:[%s166 + $0x54] sm:$0xf]
      %v197 = vld [vmem:[%s166 + $0x58] sm:$0xf]
      %v198 = vld [vmem:[%s166 + $0x5c] sm:$0xf]
      %v199 = vld [vmem:[%s166 + $0x60] sm:$0xf]
      %v200 = vld [vmem:[%s166 + $0x64] sm:$0xf]
      %v201 = vld [vmem:[%s166 + $0x68] sm:$0xf]
      %v202 = vld [vmem:[%s166 + $0x6c] sm:$0xf]
      %v203 = vld [vmem:[%s166 + $0x70] sm:$0xf]
      %v204 = vld [vmem:[%s166 + $0x74] sm:$0xf]
      %v205 = vld [vmem:[%s166 + $0x78] sm:$0xf]
      %v206 = vld [vmem:[%s166 + $0x7c] sm:$0xf]
      %v207 = vld [vmem:[%s1] sm:$0xf]
      %v208 = vld [vmem:[%s1 + $0x4] sm:$0xf]
      %v209 = vld [vmem:[%s1 + $0x8] sm:$0xf]
      %v210 = vld [vmem:[%s1 + $0xc] sm:$0xf]
      %v211 = vld [vmem:[%s1 + $0x10] sm:$0xf]
      %v212 = vld [vmem:[%s1 + $0x14] sm:$0xf]
      %v213 = vld [vmem:[%s1 + $0x18] sm:$0xf]
      %v214 = vld [vmem:[%s1 + $0x1c] sm:$0xf]
      %v215 = vld [vmem:[%s1 + $0x20] sm:$0xf]
      %v216 = vld [vmem:[%s2] sm:$0x1]
      %v218 = vperm.slane %v216, 0
      %v252 = vunpack.c.l.b16 %v175
      %v253 = vunpack.c.l.b16 %v176
      %v254 = vunpack.c.l.b16 %v177
      %v255 = vunpack.c.l.b16 %v178
      %v256 = vunpack.c.l.b16 %v179
      %v257 = vunpack.c.l.b16 %v180
      %v258 = vunpack.c.l.b16 %v181
      %v259 = vunpack.c.l.b16 %v182
      %v260 = vunpack.c.l.b16 %v183
      %v261 = vunpack.c.l.b16 %v184
      %v262 = vunpack.c.l.b16 %v185
      %v263 = vunpack.c.l.b16 %v186
      %v264 = vunpack.c.l.b16 %v187
      %v265 = vunpack.c.l.b16 %v188
      %v266 = vunpack.c.l.b16 %v189
      %v267 = vunpack.c.l.b16 %v190
      %v268 = vunpack.c.l.b16 %v191
      %v269 = vunpack.c.l.b16 %v192
      %v270 = vunpack.c.l.b16 %v193
      %v271 = vunpack.c.l.b16 %v194
      %v272 = vunpack.c.l.b16 %v195
      %v273 = vunpack.c.l.b16 %v196
      %v274 = vunpack.c.l.b16 %v197
      %v275 = vunpack.c.l.b16 %v198
      %v276 = vunpack.c.l.b16 %v199
      %v277 = vunpack.c.l.b16 %v200
      %v278 = vunpack.c.l.b16 %v201
      %v279 = vunpack.c.l.b16 %v202
      %v280 = vunpack.c.l.b16 %v203
      %v281 = vunpack.c.l.b16 %v204
      %v282 = vunpack.c.l.b16 %v205
      %v283 = vunpack.c.l.b16 %v206
      %v284 = vpack.c.b16 %v253, %v252
      %v285 = vpack.c.b16 %v255, %v254
      %v286 = vpack.c.b16 %v257, %v256
      %v287 = vpack.c.b16 %v259, %v258
      %v288 = vpack.c.b16 %v261, %v260
      %v289 = vpack.c.b16 %v263, %v262
      %v290 = vpack.c.b16 %v265, %v264
      %v291 = vpack.c.b16 %v267, %v266
      %v292 = vpack.c.b16 %v269, %v268
      %v293 = vpack.c.b16 %v271, %v270
      %v294 = vpack.c.b16 %v273, %v272
      %v295 = vpack.c.b16 %v275, %v274
      %v296 = vpack.c.b16 %v277, %v276
      %v297 = vpack.c.b16 %v279, %v278
      %v298 = vpack.c.b16 %v281, %v280
      %v299 = vpack.c.b16 %v283, %v282
      %v309 = vunpack.c.l.b16 %v207
      %v310 = vunpack.c.l.b16 %v208
      %v311 = vunpack.c.l.b16 %v209
      %v312 = vunpack.c.l.b16 %v210
      %v313 = vunpack.c.l.b16 %v211
      %v314 = vunpack.c.l.b16 %v212
      %v315 = vunpack.c.l.b16 %v213
      %v316 = vunpack.c.l.b16 %v214
      %v317 = vunpack.c.l.b16 %v215
      %v318 = vpack.c.b16 %v310, %v309
      %v319 = vpack.c.b16 %v312, %v311
      %v320 = vpack.c.b16 %v314, %v313
      %v321 = vpack.c.b16 %v316, %v315
      %v322 = vpack.c.b16 %v317, %v317
      %vm327 = vcmask 588800
      %v329 = vsel %vm327, %v284, 0
      %v332 = vsel %vm327, %v285, 0
      %v335 = vsel %vm327, %v286, 0
      %v338 = vsel %vm327, %v287, 0
      %v341 = vsel %vm327, %v288, 0
      %v344 = vsel %vm327, %v289, 0
      %v347 = vsel %vm327, %v290, 0
      %v350 = vsel %vm327, %v291, 0
      %v353 = vsel %vm327, %v292, 0
      %v356 = vsel %vm327, %v293, 0
      %v359 = vsel %vm327, %v294, 0
      %v362 = vsel %vm327, %v295, 0
      %v365 = vsel %vm327, %v296, 0
      %v368 = vsel %vm327, %v297, 0
      %v371 = vsel %vm327, %v298, 0
      %v374 = vsel %vm327, %v299, 0
      %vm376 = vcmask 1043456
      %v378 = vsel %vm376, %v322, 0
      %380 = vmatpush.bf16.msra.mxu0 0
      %381 = vmatpush.bf16.msra.mxu0 0
      %382 = vmatpush.bf16.msra.mxu0 0
      %383 = vmatpush.bf16.msra.mxu0 %v378
      %384 = vmatpush.bf16.msra.mxu0 %v321
      %385 = vmatpush.bf16.msra.mxu0 %v320
      %386 = vmatpush.bf16.msra.mxu0 %v319
      %387 = vmatpush.bf16.msra.mxu0 %v318
      %388 = vmatmul.bf16.gmra.mxu0 %v329
      %v389 = vpop.f32.mrf.mxu0
      %v390 = vadd.f32 %v218, %v389
      %v391 = vpop.f32.mrf.mxu0
      %v392 = vadd.f32 %v218, %v391
      %393 = vmatmul.bf16.gmra.mxu0 %v332
      %v394 = vpop.f32.mrf.mxu0
      %v395 = vadd.f32 %v218, %v394
      %v396 = vpop.f32.mrf.mxu0
      %v397 = vadd.f32 %v218, %v396
      %398 = vmatmul.bf16.gmra.mxu0 %v335
      %v399 = vpop.f32.mrf.mxu0
      %v400 = vadd.f32 %v218, %v399
      %v401 = vpop.f32.mrf.mxu0
      %v402 = vadd.f32 %v218, %v401
      %403 = vmatmul.bf16.gmra.mxu0 %v338
      %v404 = vpop.f32.mrf.mxu0
      %v405 = vadd.f32 %v218, %v404
      %v406 = vpop.f32.mrf.mxu0
      %v407 = vadd.f32 %v218, %v406
      %408 = vmatmul.bf16.gmra.mxu0 %v341
      %v409 = vpop.f32.mrf.mxu0
      %v410 = vadd.f32 %v218, %v409
      %v411 = vpop.f32.mrf.mxu0
      %v412 = vadd.f32 %v218, %v411
      %413 = vmatmul.bf16.gmra.mxu0 %v344
      %v414 = vpop.f32.mrf.mxu0
      %v415 = vadd.f32 %v218, %v414
      %v416 = vpop.f32.mrf.mxu0
      %v417 = vadd.f32 %v218, %v416
      %418 = vmatmul.bf16.gmra.mxu0 %v347
      %v419 = vpop.f32.mrf.mxu0
      %v420 = vadd.f32 %v218, %v419
      %v421 = vpop.f32.mrf.mxu0
      %v422 = vadd.f32 %v218, %v421
      %423 = vmatmul.bf16.gmra.mxu0 %v350
      %v424 = vpop.f32.mrf.mxu0
      %v425 = vadd.f32 %v218, %v424
      %v426 = vpop.f32.mrf.mxu0
      %v427 = vadd.f32 %v218, %v426
      %428 = vmatmul.bf16.gmra.mxu0 %v353
      %v429 = vpop.f32.mrf.mxu0
      %v430 = vadd.f32 %v218, %v429
      %v431 = vpop.f32.mrf.mxu0
      %v432 = vadd.f32 %v218, %v431
      %433 = vmatmul.bf16.gmra.mxu0 %v356
      %v434 = vpop.f32.mrf.mxu0
      %v435 = vadd.f32 %v218, %v434
      %v436 = vpop.f32.mrf.mxu0
      %v437 = vadd.f32 %v218, %v436
      %438 = vmatmul.bf16.gmra.mxu0 %v359
      %v439 = vpop.f32.mrf.mxu0
      %v440 = vadd.f32 %v218, %v439
      %v441 = vpop.f32.mrf.mxu0
      %v442 = vadd.f32 %v218, %v441
      %443 = vmatmul.bf16.gmra.mxu0 %v362
      %v444 = vpop.f32.mrf.mxu0
      %v445 = vadd.f32 %v218, %v444
      %v446 = vpop.f32.mrf.mxu0
      %v447 = vadd.f32 %v218, %v446
      %448 = vmatmul.bf16.gmra.mxu0 %v365
      %v449 = vpop.f32.mrf.mxu0
      %v450 = vadd.f32 %v218, %v449
      %v451 = vpop.f32.mrf.mxu0
      %v452 = vadd.f32 %v218, %v451
      %453 = vmatmul.bf16.gmra.mxu0 %v368
      %v454 = vpop.f32.mrf.mxu0
      %v455 = vadd.f32 %v218, %v454
      %v456 = vpop.f32.mrf.mxu0
      %v457 = vadd.f32 %v218, %v456
      %458 = vmatmul.bf16.gmra.mxu0 %v371
      %v459 = vpop.f32.mrf.mxu0
      %v460 = vadd.f32 %v218, %v459
      %v461 = vpop.f32.mrf.mxu0
      %v462 = vadd.f32 %v218, %v461
      %463 = vmatmul.bf16.gmra.mxu0 %v374
      %v464 = vpop.f32.mrf.mxu0
      %v465 = vadd.f32 %v218, %v464
      %v466 = vpop.f32.mrf.mxu0
      %v467 = vadd.f32 %v218, %v466
      %468 = vdwg.mxu0
      %v469 = vmax.f32 %v390, 0.0
      %v470 = vmax.f32 %v392, 0.0
      %v471 = vmax.f32 %v395, 0.0
      %v472 = vmax.f32 %v397, 0.0
      %v473 = vmax.f32 %v400, 0.0
      %v474 = vmax.f32 %v402, 0.0
      %v475 = vmax.f32 %v405, 0.0
      %v476 = vmax.f32 %v407, 0.0
      %v477 = vmax.f32 %v410, 0.0
      %v478 = vmax.f32 %v412, 0.0
      %v479 = vmax.f32 %v415, 0.0
      %v480 = vmax.f32 %v417, 0.0
      %v481 = vmax.f32 %v420, 0.0
      %v482 = vmax.f32 %v422, 0.0
      %v483 = vmax.f32 %v425, 0.0
      %v484 = vmax.f32 %v427, 0.0
      %v485 = vmax.f32 %v430, 0.0
      %v486 = vmax.f32 %v432, 0.0
      %v487 = vmax.f32 %v435, 0.0
      %v488 = vmax.f32 %v437, 0.0
      %v489 = vmax.f32 %v440, 0.0
      %v490 = vmax.f32 %v442, 0.0
      %v491 = vmax.f32 %v445, 0.0
      %v492 = vmax.f32 %v447, 0.0
      %v493 = vmax.f32 %v450, 0.0
      %v494 = vmax.f32 %v452, 0.0
      %v495 = vmax.f32 %v455, 0.0
      %v496 = vmax.f32 %v457, 0.0
      %v497 = vmax.f32 %v460, 0.0
      %v498 = vmax.f32 %v462, 0.0
      %v499 = vmax.f32 %v465, 0.0
      %v500 = vmax.f32 %v467, 0.0
      %v501 = vpack.c.bf16 %v469, %v469
      %v502 = vpack.c.bf16 %v470, %v470
      %v503 = vpack.c.bf16 %v471, %v471
      %v504 = vpack.c.bf16 %v472, %v472
      %v505 = vpack.c.bf16 %v473, %v473
      %v506 = vpack.c.bf16 %v474, %v474
      %v507 = vpack.c.bf16 %v475, %v475
      %v508 = vpack.c.bf16 %v476, %v476
      %v509 = vpack.c.bf16 %v477, %v477
      %v510 = vpack.c.bf16 %v478, %v478
      %v511 = vpack.c.bf16 %v479, %v479
      %v512 = vpack.c.bf16 %v480, %v480
      %v513 = vpack.c.bf16 %v481, %v481
      %v514 = vpack.c.bf16 %v482, %v482
      %v515 = vpack.c.bf16 %v483, %v483
      %v516 = vpack.c.bf16 %v484, %v484
      %v517 = vpack.c.bf16 %v485, %v485
      %v518 = vpack.c.bf16 %v486, %v486
      %v519 = vpack.c.bf16 %v487, %v487
      %v520 = vpack.c.bf16 %v488, %v488
      %v521 = vpack.c.bf16 %v489, %v489
      %v522 = vpack.c.bf16 %v490, %v490
      %v523 = vpack.c.bf16 %v491, %v491
      %v524 = vpack.c.bf16 %v492, %v492
      %v525 = vpack.c.bf16 %v493, %v493
      %v526 = vpack.c.bf16 %v494, %v494
      %v527 = vpack.c.bf16 %v495, %v495
      %v528 = vpack.c.bf16 %v496, %v496
      %v529 = vpack.c.bf16 %v497, %v497
      %v530 = vpack.c.bf16 %v498, %v498
      %v531 = vpack.c.bf16 %v499, %v499
      %v532 = vpack.c.bf16 %v500, %v500
      %vm533 = vcmask 60416
      %534 = vst.msk [vmem:[%s172] sm:$0xf] %vm533, %v501
      %535 = vst.msk [vmem:[%s172 + $0x4] sm:$0xf] %vm533, %v502
      %536 = vst.msk [vmem:[%s172 + $0x8] sm:$0xf] %vm533, %v503
      %537 = vst.msk [vmem:[%s172 + $0xc] sm:$0xf] %vm533, %v504
      %538 = vst.msk [vmem:[%s172 + $0x10] sm:$0xf] %vm533, %v505
      %539 = vst.msk [vmem:[%s172 + $0x14] sm:$0xf] %vm533, %v506
      %540 = vst.msk [vmem:[%s172 + $0x18] sm:$0xf] %vm533, %v507
      %541 = vst.msk [vmem:[%s172 + $0x1c] sm:$0xf] %vm533, %v508
      %542 = vst.msk [vmem:[%s172 + $0x20] sm:$0xf] %vm533, %v509
      %543 = vst.msk [vmem:[%s172 + $0x24] sm:$0xf] %vm533, %v510
      %544 = vst.msk [vmem:[%s172 + $0x28] sm:$0xf] %vm533, %v511
      %545 = vst.msk [vmem:[%s172 + $0x2c] sm:$0xf] %vm533, %v512
      %546 = vst.msk [vmem:[%s172 + $0x30] sm:$0xf] %vm533, %v513
      %547 = vst.msk [vmem:[%s172 + $0x34] sm:$0xf] %vm533, %v514
      %548 = vst.msk [vmem:[%s172 + $0x38] sm:$0xf] %vm533, %v515
      %549 = vst.msk [vmem:[%s172 + $0x3c] sm:$0xf] %vm533, %v516
      %550 = vst.msk [vmem:[%s172 + $0x40] sm:$0xf] %vm533, %v517
      %551 = vst.msk [vmem:[%s172 + $0x44] sm:$0xf] %vm533, %v518
      %552 = vst.msk [vmem:[%s172 + $0x48] sm:$0xf] %vm533, %v519
      %553 = vst.msk [vmem:[%s172 + $0x4c] sm:$0xf] %vm533, %v520
      %554 = vst.msk [vmem:[%s172 + $0x50] sm:$0xf] %vm533, %v521
      %555 = vst.msk [vmem:[%s172 + $0x54] sm:$0xf] %vm533, %v522
      %556 = vst.msk [vmem:[%s172 + $0x58] sm:$0xf] %vm533, %v523
      %557 = vst.msk [vmem:[%s172 + $0x5c] sm:$0xf] %vm533, %v524
      %558 = vst.msk [vmem:[%s172 + $0x60] sm:$0xf] %vm533, %v525
      %559 = vst.msk [vmem:[%s172 + $0x64] sm:$0xf] %vm533, %v526
      %560 = vst.msk [vmem:[%s172 + $0x68] sm:$0xf] %vm533, %v527
      %561 = vst.msk [vmem:[%s172 + $0x6c] sm:$0xf] %vm533, %v528
      %562 = vst.msk [vmem:[%s172 + $0x70] sm:$0xf] %vm533, %v529
      %563 = vst.msk [vmem:[%s172 + $0x74] sm:$0xf] %vm533, %v530
      %564 = vst.msk [vmem:[%s172 + $0x78] sm:$0xf] %vm533, %v531
      %565 = vst.msk [vmem:[%s172 + $0x7c] sm:$0xf] %vm533, %v532
      %s566 = smul.u32 32, %s14
      %p567 = scmp.lt.s32.totalorder %s566, 63
      %s568 = scalar_select %p567, %s566, 63
      %s569 = smul.addr %s568, 4
      %s570 = scalar_lea.vmem %s3, %s569
      // Predicated region
      $region33: #{forward.31} parent=31 // pred_check
        %p571 = pneg %p100
      $region34: #{forward.31} parent=31 // pred_check_branch
        %573 = sbr.rel (%p571) target = $region36
      $region35: #{forward.31} parent=31 // pred_region
        %s574 = smul.u32 32, %s14
      $region36: #{forward.31} parent=31 // pred_fallthru
        _
    $region32: #{forward.31} parent=5 // pred_fallthru
      _
    %p575 = scmp.le.s32.totalorder 2, %s9
    // Predicated region
    $region37: #{forward.31} parent=5 // pred_check
      %p576 = pneg %p575
    $region38: #{forward.31} parent=5 // pred_check_branch
      %578 = sbr.rel (%p576) target = $region40
    $region39: #{forward.31} parent=5 // pred_region
      %s579 = ssub.s32 %s9, 2
      // Predicated region
      $region41: #{forward.31} parent=39 // pred_check
        %p580 = pneg %p106
      $region42: #{forward.31} parent=39 // pred_check_branch
        %582 = sbr.rel (%p580) target = $region44
      $region43: #{forward.31} parent=39 // pred_region
        %s583 = smul.u32 32, %s15
        %p584 = scmp.lt.s32.totalorder %s583, 63
        %s585 = scalar_select %p584, %s583, 63
        %s586 = smul.addr %s585, 4
        %s587 = scalar_lea.vmem %s3, %s586
      $region44: #{forward.31} parent=39 // pred_fallthru
        _
    $region40: #{forward.31} parent=5 // pred_fallthru
      _
  $region6: #{forward.31} parent=0 // loop_footer
    %s13 = sadd.s32 1, %s9
  $region7: #{forward.31} parent=0 // loop_footer_branch
    %8 = sbr.rel target = $region3
  $region8: #{forward.31} parent=0 // loop_exit
    _

// kernel: forward.32
$region0: #{forward.32}
  #allocation0 [shape = 'u32[]', space=smem, size = 0x4, offset = 0x4, fixed_abs, tag = 'smem constant byte address 0x4 - core index']
  #allocation1 [shape = 'u32[72,128]{1,0:T(1,128)}', space=vmem, size = 0x9000, scoped, tag = 'internal scratch']
  %s0 = inlined_call_operand.vmem [shape: bf16[512,72], index: 0, kind: input, shape index: {}]
  %s1 = inlined_call_operand.vmem [shape: bf16[72,8], index: 1, kind: input, shape index: {}]
  %s2 = inlined_call_operand.vmem [shape: f32[1,8], index: 2, kind: input, shape index: {}]
  %s3 = inlined_call_operand.vmem [shape: bf16[512,8], index: 3, kind: input, shape index: {}]
  %s4 = inlined_call_operand.vmem [shape: bf16[512,8], index: 4, kind: output, shape index: {}]
  %s5 = sld [smem:[#allocation0]]
  $region49: #{forward.32} parent=0
    _
  %s7 = ssub.s32 1, %s5
  %s8 = scalar_select 0, %s7, %s5
  loop: start=0, step=1, limit=4
  $region2: #{forward.32} parent=0 // loop_pre_header
    _
  $region3: #{forward.32} parent=0 // loop_header
    %s10 = sphi 0, %s14
    %p11 = scmp.ge.s32.totalorder %s10, 4
    %s20 = sphi 0, %s22
    %s23 = sphi 0, %s20
    %s24 = sphi 0, %s23
    %s40 = sphi 0, %s24
    %s44 = sphi 0, %s44
    %s46 = sphi 0, %s44
    %s47 = sphi 0, %s46
    %s61 = sphi 0, %s47
    %s65 = sphi 0, %s65
    %s67 = sphi 0, %s65
    %s68 = sphi 0, %s67
    %s82 = sphi 0, %s68
    %s88 = sphi 0, %s90
    %s91 = sphi 0, %s88
    %s92 = sphi 0, %s91
    %s108 = sphi 0, %s92
    %s114 = sphi 0, %s116
    %s117 = sphi 0, %s114
    %s118 = sphi 0, %s117
    %s134 = sphi 0, %s118
  $region4: #{forward.32} parent=0 // loop_header_branch
    %13 = sbr.rel (%p11) target = $region8
  $region5: #{forward.32} parent=0 // loop_body
    %s15 = ssub.s32 %s10, 1
    %s16 = ssub.s32 %s10, 2
    %s17 = sadd.s32 %s10, 1
    %s18 = ssub.s32 %s10, %s17
    %p19 = scmp.eq.s32.totalorder %s18, 0
    %s21 = sadd.s32 %s20, 1
    %s22 = scalar_select %p19, %s20, %s21
    %p25 = pneg %p19
    %p26 = scmp.eq.s32.totalorder %s10, 1
    %p27 = por %p25, %p26
    %p28 = scmp.ne.s32.totalorder %s20, %s23
    %p29 = scmp.eq.s32.totalorder %s10, 0
    %p30 = por %p28, %p29
    %p31 = scmp.ne.s32.totalorder %s20, %s23
    %p32 = scmp.eq.s32.totalorder %s15, 1
    %p33 = por %p31, %p32
    %p34 = scmp.ne.s32.totalorder %s23, %s24
    %p35 = scmp.eq.s32.totalorder %s15, 0
    %p36 = por %p34, %p35
    %p37 = scmp.ne.s32.totalorder %s23, %s24
    %p38 = scmp.eq.s32.totalorder %s16, 1
    %p39 = por %p37, %p38
    %p41 = scmp.ne.s32.totalorder %s24, %s40
    %p42 = scmp.eq.s32.totalorder %s16, 0
    %p43 = por %p41, %p42
    %s45 = sadd.s32 %s44, 1
    %p48 = scmp.eq.s32.totalorder %s10, 1
    %p49 = scmp.ne.s32.totalorder %s44, %s46
    %p50 = scmp.eq.s32.totalorder %s10, 0
    %p51 = por %p49, %p50
    %p52 = scmp.ne.s32.totalorder %s44, %s46
    %p53 = scmp.eq.s32.totalorder %s15, 1
    %p54 = por %p52, %p53
    %p55 = scmp.ne.s32.totalorder %s46, %s47
    %p56 = scmp.eq.s32.totalorder %s15, 0
    %p57 = por %p55, %p56
    %p58 = scmp.ne.s32.totalorder %s46, %s47
    %p59 = scmp.eq.s32.totalorder %s16, 1
    %p60 = por %p58, %p59
    %p62 = scmp.ne.s32.totalorder %s47, %s61
    %p63 = scmp.eq.s32.totalorder %s16, 0
    %p64 = por %p62, %p63
    %s66 = sadd.s32 %s65, 1
    %p69 = scmp.eq.s32.totalorder %s10, 1
    %p70 = scmp.ne.s32.totalorder %s65, %s67
    %p71 = scmp.eq.s32.totalorder %s10, 0
    %p72 = por %p70, %p71
    %p73 = scmp.ne.s32.totalorder %s65, %s67
    %p74 = scmp.eq.s32.totalorder %s15, 1
    %p75 = por %p73, %p74
    %p76 = scmp.ne.s32.totalorder %s67, %s68
    %p77 = scmp.eq.s32.totalorder %s15, 0
    %p78 = por %p76, %p77
    %p79 = scmp.ne.s32.totalorder %s67, %s68
    %p80 = scmp.eq.s32.totalorder %s16, 1
    %p81 = por %p79, %p80
    %p83 = scmp.ne.s32.totalorder %s68, %s82
    %p84 = scmp.eq.s32.totalorder %s16, 0
    %p85 = por %p83, %p84
    %s86 = ssub.s32 %s10, %s17
    %p87 = scmp.eq.s32.totalorder %s86, 0
    %s89 = sadd.s32 %s88, 1
    %s90 = scalar_select %p87, %s88, %s89
    %p93 = pneg %p87
    %p94 = scmp.eq.s32.totalorder %s10, 1
    %p95 = por %p93, %p94
    %p96 = scmp.ne.s32.totalorder %s88, %s91
    %p97 = scmp.eq.s32.totalorder %s10, 0
    %p98 = por %p96, %p97
    %p99 = scmp.ne.s32.totalorder %s88, %s91
    %p100 = scmp.eq.s32.totalorder %s15, 1
    %p101 = por %p99, %p100
    %p102 = scmp.ne.s32.totalorder %s91, %s92
    %p103 = scmp.eq.s32.totalorder %s15, 0
    %p104 = por %p102, %p103
    %p105 = scmp.ne.s32.totalorder %s91, %s92
    %p106 = scmp.eq.s32.totalorder %s16, 1
    %p107 = por %p105, %p106
    %p109 = scmp.ne.s32.totalorder %s92, %s108
    %p110 = scmp.eq.s32.totalorder %s16, 0
    %p111 = por %p109, %p110
    %s112 = ssub.s32 %s10, %s17
    %p113 = scmp.eq.s32.totalorder %s112, 0
    %s115 = sadd.s32 %s114, 1
    %s116 = scalar_select %p113, %s114, %s115
    %p119 = pneg %p113
    %p120 = scmp.eq.s32.totalorder %s10, 1
    %p121 = por %p119, %p120
    %p122 = scmp.ne.s32.totalorder %s114, %s117
    %p123 = scmp.eq.s32.totalorder %s10, 0
    %p124 = por %p122, %p123
    %p125 = scmp.ne.s32.totalorder %s114, %s117
    %p126 = scmp.eq.s32.totalorder %s15, 1
    %p127 = por %p125, %p126
    %p128 = scmp.ne.s32.totalorder %s117, %s118
    %p129 = scmp.eq.s32.totalorder %s15, 0
    %p130 = por %p128, %p129
    %p131 = scmp.ne.s32.totalorder %s117, %s118
    %p132 = scmp.eq.s32.totalorder %s16, 1
    %p133 = por %p131, %p132
    %p135 = scmp.ne.s32.totalorder %s118, %s134
    %p136 = scmp.eq.s32.totalorder %s16, 0
    %p137 = por %p135, %p136
    %p138 = scmp.le.s32.totalorder 1, %s10
    %p139 = scmp.lt.s32.totalorder %s10, 3
    %p140 = pnand %p138, %p139
    %p141 = pneg %p140
    // Predicated region
    $region9: #{forward.32} parent=5 // pred_check
      _
    $region10: #{forward.32} parent=5 // pred_check_branch
      %143 = sbr.rel (%p140) target = $region12
    $region11: #{forward.32} parent=5 // pred_region
      %s144 = ssub.s32 %s10, 1
      // Predicated region
      $region13: #{forward.32} parent=11 // pred_check
        %p145 = pneg %p57
      $region14: #{forward.32} parent=11 // pred_check_branch
        %147 = sbr.rel (%p145) target = $region16
      $region15: #{forward.32} parent=11 // pred_region
        _
      $region16: #{forward.32} parent=11 // pred_fallthru
        _
      // Predicated region
      $region17: #{forward.32} parent=11 // pred_check
        %p148 = pneg %p78
      $region18: #{forward.32} parent=11 // pred_check_branch
        %150 = sbr.rel (%p148) target = $region20
      $region19: #{forward.32} parent=11 // pred_region
        _
      $region20: #{forward.32} parent=11 // pred_fallthru
        _
    $region12: #{forward.32} parent=5 // pred_fallthru
      _
    %p151 = scmp.lt.s32.totalorder %s10, 2
    // Predicated region
    $region21: #{forward.32} parent=5 // pred_check
      %p152 = pneg %p151
    $region22: #{forward.32} parent=5 // pred_check_branch
      %154 = sbr.rel (%p152) target = $region24
    $region23: #{forward.32} parent=5 // pred_region
      // Predicated region
      $region25: #{forward.32} parent=23 // pred_check
        %p155 = pneg %p30
      $region26: #{forward.32} parent=23 // pred_check_branch
        %157 = sbr.rel (%p155) target = $region28
      $region27: #{forward.32} parent=23 // pred_region
        %s158 = smul.u32 32, %s10
        %p159 = scmp.lt.s32.totalorder %s158, 63
        %s160 = scalar_select %p159, %s158, 63
        %s161 = smul.addr %s160, 4
        %s162 = scalar_lea.vmem %s0, %s161
        %s163 = smul.u32 32, %s10
      $region28: #{forward.32} parent=23 // pred_fallthru
        _
      // Predicated region
      $region29: #{forward.32} parent=23 // pred_check
        %p164 = pneg %p98
      $region30: #{forward.32} parent=23 // pred_check_branch
        %166 = sbr.rel (%p164) target = $region32
      $region31: #{forward.32} parent=23 // pred_region
        %s167 = smul.u32 32, %s10
        %p168 = scmp.lt.s32.totalorder %s167, 63
        %s169 = scalar_select %p168, %s167, 63
        %s170 = smul.addr %s169, 4
        %s171 = scalar_lea.vmem %s3, %s170
        %s172 = smul.u32 32, %s10
      $region32: #{forward.32} parent=23 // pred_fallthru
        _
    $region24: #{forward.32} parent=5 // pred_fallthru
      _
    %p173 = scmp.le.s32.totalorder 1, %s10
    %p174 = scmp.lt.s32.totalorder %s10, 3
    %p175 = pnand %p173, %p174
    %p176 = pneg %p175
    // Predicated region
    $region33: #{forward.32} parent=5 // pred_check
      _
    $region34: #{forward.32} parent=5 // pred_check_branch
      %178 = sbr.rel (%p175) target = $region36
    $region35: #{forward.32} parent=5 // pred_region
      %s179 = ssub.s32 %s10, 1
      %s180 = smul.u32 32, %s15
      %p181 = scmp.lt.s32.totalorder %s180, 63
      %s182 = scalar_select %p181, %s180, 63
      %s183 = smul.addr %s182, 4
      %s184 = scalar_lea.vmem %s0, %s183
      %p185 = pneg %p36
      %p186 = pneg %p33
      %p187 = pneg %p57
      %p188 = pneg %p54
      %p189 = pneg %p78
      %p190 = pneg %p75
      %s191 = smul.u32 32, %s15
      %p192 = scmp.lt.s32.totalorder %s191, 63
      %s193 = scalar_select %p192, %s191, 63
      %s194 = smul.addr %s193, 4
      %s195 = scalar_lea.vmem %s3, %s194
      %p196 = pneg %p104
      %p197 = pneg %p101
      %p198 = pneg %p130
      %p199 = pneg %p127
      %s200 = smul.u32 32, %s15
      %p201 = scmp.lt.s32.totalorder %s200, 63
      %s202 = scalar_select %p201, %s200, 63
      %s203 = smul.addr %s202, 4
      %s204 = scalar_lea.vmem %s4, %s203
      %s205 = smul.u32 32, %s15
      %p206 = scmp.lt.s32.totalorder %s205, 63
      %s207 = scalar_select %p206, %s205, 63
      %s208 = smul.addr %s207, 4
      %s209 = scalar_lea.vmem %s0, %s208
      %s210 = smul.u32 32, %s15
      %s211 = smul.u32 32, %s15
      %p212 = scmp.lt.s32.totalorder %s211, 63
      %s213 = scalar_select %p212, %s211, 63
      %s214 = smul.addr %s213, 4
      %s215 = scalar_lea.vmem %s3, %s214
      %s216 = smul.u32 32, %s15
      %s217 = smul.u32 32, %s15
      %p218 = scmp.lt.s32.totalorder %s217, 63
      %s219 = scalar_select %p218, %s217, 63
      %s220 = smul.addr %s219, 4
      %s221 = scalar_lea.vmem %s4, %s220
      %s222 = smul.u32 32, %s15
      %v224 = vld [vmem:[%s209] sm:$0xf]
      %v225 = vld [vmem:[%s209 + $0x4] sm:$0xf]
      %v226 = vld [vmem:[%s209 + $0x8] sm:$0xf]
      %v227 = vld [vmem:[%s209 + $0xc] sm:$0xf]
      %v228 = vld [vmem:[%s209 + $0x10] sm:$0xf]
      %v229 = vld [vmem:[%s209 + $0x14] sm:$0xf]
      %v230 = vld [vmem:[%s209 + $0x18] sm:$0xf]
      %v231 = vld [vmem:[%s209 + $0x1c] sm:$0xf]
      %v232 = vld [vmem:[%s209 + $0x20] sm:$0xf]
      %v233 = vld [vmem:[%s209 + $0x24] sm:$0xf]
      %v234 = vld [vmem:[%s209 + $0x28] sm:$0xf]
      %v235 = vld [vmem:[%s209 + $0x2c] sm:$0xf]
      %v236 = vld [vmem:[%s209 + $0x30] sm:$0xf]
      %v237 = vld [vmem:[%s209 + $0x34] sm:$0xf]
      %v238 = vld [vmem:[%s209 + $0x38] sm:$0xf]
      %v239 = vld [vmem:[%s209 + $0x3c] sm:$0xf]
      %v240 = vld [vmem:[%s209 + $0x40] sm:$0xf]
      %v241 = vld [vmem:[%s209 + $0x44] sm:$0xf]
      %v242 = vld [vmem:[%s209 + $0x48] sm:$0xf]
      %v243 = vld [vmem:[%s209 + $0x4c] sm:$0xf]
      %v244 = vld [vmem:[%s209 + $0x50] sm:$0xf]
      %v245 = vld [vmem:[%s209 + $0x54] sm:$0xf]
      %v246 = vld [vmem:[%s209 + $0x58] sm:$0xf]
      %v247 = vld [vmem:[%s209 + $0x5c] sm:$0xf]
      %v248 = vld [vmem:[%s209 + $0x60] sm:$0xf]
      %v249 = vld [vmem:[%s209 + $0x64] sm:$0xf]
      %v250 = vld [vmem:[%s209 + $0x68] sm:$0xf]
      %v251 = vld [vmem:[%s209 + $0x6c] sm:$0xf]
      %v252 = vld [vmem:[%s209 + $0x70] sm:$0xf]
      %v253 = vld [vmem:[%s209 + $0x74] sm:$0xf]
      %v254 = vld [vmem:[%s209 + $0x78] sm:$0xf]
      %v255 = vld [vmem:[%s209 + $0x7c] sm:$0xf]
      %v256 = vld [vmem:[%s1] sm:$0xf]
      %v257 = vld [vmem:[%s1 + $0x4] sm:$0xf]
      %v258 = vld [vmem:[%s1 + $0x8] sm:$0xf]
      %v259 = vld [vmem:[%s1 + $0xc] sm:$0xf]
      %v260 = vld [vmem:[%s1 + $0x10] sm:$0xf]
      %v261 = vld [vmem:[%s1 + $0x14] sm:$0xf]
      %v262 = vld [vmem:[%s1 + $0x18] sm:$0xf]
      %v263 = vld [vmem:[%s1 + $0x1c] sm:$0xf]
      %v264 = vld [vmem:[%s1 + $0x20] sm:$0xf]
      %v265 = vld [vmem:[%s2] sm:$0x1]
      %v267 = vperm.slane %v265, 0
      %v301 = vunpack.c.l.b16 %v224
      %v302 = vunpack.c.l.b16 %v225
      %v303 = vunpack.c.l.b16 %v226
      %v304 = vunpack.c.l.b16 %v227
      %v305 = vunpack.c.l.b16 %v228
      %v306 = vunpack.c.l.b16 %v229
      %v307 = vunpack.c.l.b16 %v230
      %v308 = vunpack.c.l.b16 %v231
      %v309 = vunpack.c.l.b16 %v232
      %v310 = vunpack.c.l.b16 %v233
      %v311 = vunpack.c.l.b16 %v234
      %v312 = vunpack.c.l.b16 %v235
      %v313 = vunpack.c.l.b16 %v236
      %v314 = vunpack.c.l.b16 %v237
      %v315 = vunpack.c.l.b16 %v238
      %v316 = vunpack.c.l.b16 %v239
      %v317 = vunpack.c.l.b16 %v240
      %v318 = vunpack.c.l.b16 %v241
      %v319 = vunpack.c.l.b16 %v242
      %v320 = vunpack.c.l.b16 %v243
      %v321 = vunpack.c.l.b16 %v244
      %v322 = vunpack.c.l.b16 %v245
      %v323 = vunpack.c.l.b16 %v246
      %v324 = vunpack.c.l.b16 %v247
      %v325 = vunpack.c.l.b16 %v248
      %v326 = vunpack.c.l.b16 %v249
      %v327 = vunpack.c.l.b16 %v250
      %v328 = vunpack.c.l.b16 %v251
      %v329 = vunpack.c.l.b16 %v252
      %v330 = vunpack.c.l.b16 %v253
      %v331 = vunpack.c.l.b16 %v254
      %v332 = vunpack.c.l.b16 %v255
      %v333 = vpack.c.b16 %v302, %v301
      %v334 = vpack.c.b16 %v304, %v303
      %v335 = vpack.c.b16 %v306, %v305
      %v336 = vpack.c.b16 %v308, %v307
      %v337 = vpack.c.b16 %v310, %v309
      %v338 = vpack.c.b16 %v312, %v311
      %v339 = vpack.c.b16 %v314, %v313
      %v340 = vpack.c.b16 %v316, %v315
      %v341 = vpack.c.b16 %v318, %v317
      %v342 = vpack.c.b16 %v320, %v319
      %v343 = vpack.c.b16 %v322, %v321
      %v344 = vpack.c.b16 %v324, %v323
      %v345 = vpack.c.b16 %v326, %v325
      %v346 = vpack.c.b16 %v328, %v327
      %v347 = vpack.c.b16 %v330, %v329
      %v348 = vpack.c.b16 %v332, %v331
      %v358 = vunpack.c.l.b16 %v256
      %v359 = vunpack.c.l.b16 %v257
      %v360 = vunpack.c.l.b16 %v258
      %v361 = vunpack.c.l.b16 %v259
      %v362 = vunpack.c.l.b16 %v260
      %v363 = vunpack.c.l.b16 %v261
      %v364 = vunpack.c.l.b16 %v262
      %v365 = vunpack.c.l.b16 %v263
      %v366 = vunpack.c.l.b16 %v264
      %v367 = vpack.c.b16 %v359, %v358
      %v368 = vpack.c.b16 %v361, %v360
      %v369 = vpack.c.b16 %v363, %v362
      %v370 = vpack.c.b16 %v365, %v364
      %v371 = vpack.c.b16 %v366, %v366
      %vm376 = vcmask 588800
      %v378 = vsel %vm376, %v333, 0
      %v381 = vsel %vm376, %v334, 0
      %v384 = vsel %vm376, %v335, 0
      %v387 = vsel %vm376, %v336, 0
      %v390 = vsel %vm376, %v337, 0
      %v393 = vsel %vm376, %v338, 0
      %v396 = vsel %vm376, %v339, 0
      %v399 = vsel %vm376, %v340, 0
      %v402 = vsel %vm376, %v341, 0
      %v405 = vsel %vm376, %v342, 0
      %v408 = vsel %vm376, %v343, 0
      %v411 = vsel %vm376, %v344, 0
      %v414 = vsel %vm376, %v345, 0
      %v417 = vsel %vm376, %v346, 0
      %v420 = vsel %vm376, %v347, 0
      %v423 = vsel %vm376, %v348, 0
      %vm425 = vcmask 1043456
      %v427 = vsel %vm425, %v371, 0
      %429 = vmatpush.bf16.msra.mxu0 0
      %430 = vmatpush.bf16.msra.mxu0 0
      %431 = vmatpush.bf16.msra.mxu0 0
      %432 = vmatpush.bf16.msra.mxu0 %v427
      %433 = vmatpush.bf16.msra.mxu0 %v370
      %434 = vmatpush.bf16.msra.mxu0 %v369
      %435 = vmatpush.bf16.msra.mxu0 %v368
      %436 = vmatpush.bf16.msra.mxu0 %v367
      %437 = vmatmul.bf16.gmra.mxu0 %v378
      %v438 = vpop.f32.mrf.mxu0
      %v439 = vadd.f32 %v267, %v438
      %v440 = vpop.f32.mrf.mxu0
      %v441 = vadd.f32 %v267, %v440
      %442 = vmatmul.bf16.gmra.mxu0 %v381
      %v443 = vpop.f32.mrf.mxu0
      %v444 = vadd.f32 %v267, %v443
      %v445 = vpop.f32.mrf.mxu0
      %v446 = vadd.f32 %v267, %v445
      %447 = vmatmul.bf16.gmra.mxu0 %v384
      %v448 = vpop.f32.mrf.mxu0
      %v449 = vadd.f32 %v267, %v448
      %v450 = vpop.f32.mrf.mxu0
      %v451 = vadd.f32 %v267, %v450
      %452 = vmatmul.bf16.gmra.mxu0 %v387
      %v453 = vpop.f32.mrf.mxu0
      %v454 = vadd.f32 %v267, %v453
      %v455 = vpop.f32.mrf.mxu0
      %v456 = vadd.f32 %v267, %v455
      %457 = vmatmul.bf16.gmra.mxu0 %v390
      %v458 = vpop.f32.mrf.mxu0
      %v459 = vadd.f32 %v267, %v458
      %v460 = vpop.f32.mrf.mxu0
      %v461 = vadd.f32 %v267, %v460
      %462 = vmatmul.bf16.gmra.mxu0 %v393
      %v463 = vpop.f32.mrf.mxu0
      %v464 = vadd.f32 %v267, %v463
      %v465 = vpop.f32.mrf.mxu0
      %v466 = vadd.f32 %v267, %v465
      %467 = vmatmul.bf16.gmra.mxu0 %v396
      %v468 = vpop.f32.mrf.mxu0
      %v469 = vadd.f32 %v267, %v468
      %v470 = vpop.f32.mrf.mxu0
      %v471 = vadd.f32 %v267, %v470
      %472 = vmatmul.bf16.gmra.mxu0 %v399
      %v473 = vpop.f32.mrf.mxu0
      %v474 = vadd.f32 %v267, %v473
      %v475 = vpop.f32.mrf.mxu0
      %v476 = vadd.f32 %v267, %v475
      %477 = vmatmul.bf16.gmra.mxu0 %v402
      %v478 = vpop.f32.mrf.mxu0
      %v479 = vadd.f32 %v267, %v478
      %v480 = vpop.f32.mrf.mxu0
      %v481 = vadd.f32 %v267, %v480
      %482 = vmatmul.bf16.gmra.mxu0 %v405
      %v483 = vpop.f32.mrf.mxu0
      %v484 = vadd.f32 %v267, %v483
      %v485 = vpop.f32.mrf.mxu0
      %v486 = vadd.f32 %v267, %v485
      %487 = vmatmul.bf16.gmra.mxu0 %v408
      %v488 = vpop.f32.mrf.mxu0
      %v489 = vadd.f32 %v267, %v488
      %v490 = vpop.f32.mrf.mxu0
      %v491 = vadd.f32 %v267, %v490
      %492 = vmatmul.bf16.gmra.mxu0 %v411
      %v493 = vpop.f32.mrf.mxu0
      %v494 = vadd.f32 %v267, %v493
      %v495 = vpop.f32.mrf.mxu0
      %v496 = vadd.f32 %v267, %v495
      %497 = vmatmul.bf16.gmra.mxu0 %v414
      %v498 = vpop.f32.mrf.mxu0
      %v499 = vadd.f32 %v267, %v498
      %v500 = vpop.f32.mrf.mxu0
      %v501 = vadd.f32 %v267, %v500
      %502 = vmatmul.bf16.gmra.mxu0 %v417
      %v503 = vpop.f32.mrf.mxu0
      %v504 = vadd.f32 %v267, %v503
      %v505 = vpop.f32.mrf.mxu0
      %v506 = vadd.f32 %v267, %v505
      %507 = vmatmul.bf16.gmra.mxu0 %v420
      %v508 = vpop.f32.mrf.mxu0
      %v509 = vadd.f32 %v267, %v508
      %v510 = vpop.f32.mrf.mxu0
      %v511 = vadd.f32 %v267, %v510
      %512 = vmatmul.bf16.gmra.mxu0 %v423
      %v513 = vpop.f32.mrf.mxu0
      %v514 = vadd.f32 %v267, %v513
      %v515 = vpop.f32.mrf.mxu0
      %v516 = vadd.f32 %v267, %v515
      %517 = vdwg.mxu0
      %v518 = vld [vmem:[%s215] sm:$0xf]
      %v519 = vld [vmem:[%s215 + $0x4] sm:$0xf]
      %v520 = vld [vmem:[%s215 + $0x8] sm:$0xf]
      %v521 = vld [vmem:[%s215 + $0xc] sm:$0xf]
      %v522 = vld [vmem:[%s215 + $0x10] sm:$0xf]
      %v523 = vld [vmem:[%s215 + $0x14] sm:$0xf]
      %v524 = vld [vmem:[%s215 + $0x18] sm:$0xf]
      %v525 = vld [vmem:[%s215 + $0x1c] sm:$0xf]
      %v526 = vld [vmem:[%s215 + $0x20] sm:$0xf]
      %v527 = vld [vmem:[%s215 + $0x24] sm:$0xf]
      %v528 = vld [vmem:[%s215 + $0x28] sm:$0xf]
      %v529 = vld [vmem:[%s215 + $0x2c] sm:$0xf]
      %v530 = vld [vmem:[%s215 + $0x30] sm:$0xf]
      %v531 = vld [vmem:[%s215 + $0x34] sm:$0xf]
      %v532 = vld [vmem:[%s215 + $0x38] sm:$0xf]
      %v533 = vld [vmem:[%s215 + $0x3c] sm:$0xf]
      %v534 = vld [vmem:[%s215 + $0x40] sm:$0xf]
      %v535 = vld [vmem:[%s215 + $0x44] sm:$0xf]
      %v536 = vld [vmem:[%s215 + $0x48] sm:$0xf]
      %v537 = vld [vmem:[%s215 + $0x4c] sm:$0xf]
      %v538 = vld [vmem:[%s215 + $0x50] sm:$0xf]
      %v539 = vld [vmem:[%s215 + $0x54] sm:$0xf]
      %v540 = vld [vmem:[%s215 + $0x58] sm:$0xf]
      %v541 = vld [vmem:[%s215 + $0x5c] sm:$0xf]
      %v542 = vld [vmem:[%s215 + $0x60] sm:$0xf]
      %v543 = vld [vmem:[%s215 + $0x64] sm:$0xf]
      %v544 = vld [vmem:[%s215 + $0x68] sm:$0xf]
      %v545 = vld [vmem:[%s215 + $0x6c] sm:$0xf]
      %v546 = vld [vmem:[%s215 + $0x70] sm:$0xf]
      %v547 = vld [vmem:[%s215 + $0x74] sm:$0xf]
      %v548 = vld [vmem:[%s215 + $0x78] sm:$0xf]
      %v549 = vld [vmem:[%s215 + $0x7c] sm:$0xf]
      %v550 = vunpack.c.l.bf16 %v518
      %v551 = vunpack.c.l.bf16 %v519
      %v552 = vunpack.c.l.bf16 %v520
      %v553 = vunpack.c.l.bf16 %v521
      %v554 = vunpack.c.l.bf16 %v522
      %v555 = vunpack.c.l.bf16 %v523
      %v556 = vunpack.c.l.bf16 %v524
      %v557 = vunpack.c.l.bf16 %v525
      %v558 = vunpack.c.l.bf16 %v526
      %v559 = vunpack.c.l.bf16 %v527
      %v560 = vunpack.c.l.bf16 %v528
      %v561 = vunpack.c.l.bf16 %v529
      %v562 = vunpack.c.l.bf16 %v530
      %v563 = vunpack.c.l.bf16 %v531
      %v564 = vunpack.c.l.bf16 %v532
      %v565 = vunpack.c.l.bf16 %v533
      %v566 = vunpack.c.l.bf16 %v534
      %v567 = vunpack.c.l.bf16 %v535
      %v568 = vunpack.c.l.bf16 %v536
      %v569 = vunpack.c.l.bf16 %v537
      %v570 = vunpack.c.l.bf16 %v538
      %v571 = vunpack.c.l.bf16 %v539
      %v572 = vunpack.c.l.bf16 %v540
      %v573 = vunpack.c.l.bf16 %v541
      %v574 = vunpack.c.l.bf16 %v542
      %v575 = vunpack.c.l.bf16 %v543
      %v576 = vunpack.c.l.bf16 %v544
      %v577 = vunpack.c.l.bf16 %v545
      %v578 = vunpack.c.l.bf16 %v546
      %v579 = vunpack.c.l.bf16 %v547
      %v580 = vunpack.c.l.bf16 %v548
      %v581 = vunpack.c.l.bf16 %v549
      %v582 = vadd.f32 %v439, %v550
      %v583 = vadd.f32 %v441, %v551
      %v584 = vadd.f32 %v444, %v552
      %v585 = vadd.f32 %v446, %v553
      %v586 = vadd.f32 %v449, %v554
      %v587 = vadd.f32 %v451, %v555
      %v588 = vadd.f32 %v454, %v556
      %v589 = vadd.f32 %v456, %v557
      %v590 = vadd.f32 %v459, %v558
      %v591 = vadd.f32 %v461, %v559
      %v592 = vadd.f32 %v464, %v560
      %v593 = vadd.f32 %v466, %v561
      %v594 = vadd.f32 %v469, %v562
      %v595 = vadd.f32 %v471, %v563
      %v596 = vadd.f32 %v474, %v564
      %v597 = vadd.f32 %v476, %v565
      %v598 = vadd.f32 %v479, %v566
      %v599 = vadd.f32 %v481, %v567
      %v600 = vadd.f32 %v484, %v568
      %v601 = vadd.f32 %v486, %v569
      %v602 = vadd.f32 %v489, %v570
      %v603 = vadd.f32 %v491, %v571
      %v604 = vadd.f32 %v494, %v572
      %v605 = vadd.f32 %v496, %v573
      %v606 = vadd.f32 %v499, %v574
      %v607 = vadd.f32 %v501, %v575
      %v608 = vadd.f32 %v504, %v576
      %v609 = vadd.f32 %v506, %v577
      %v610 = vadd.f32 %v509, %v578
      %v611 = vadd.f32 %v511, %v579
      %v612 = vadd.f32 %v514, %v580
      %v613 = vadd.f32 %v516, %v581
      %v614 = vmax.f32 %v582, 0.0
      %v615 = vmax.f32 %v583, 0.0
      %v616 = vmax.f32 %v584, 0.0
      %v617 = vmax.f32 %v585, 0.0
      %v618 = vmax.f32 %v586, 0.0
      %v619 = vmax.f32 %v587, 0.0
      %v620 = vmax.f32 %v588, 0.0
      %v621 = vmax.f32 %v589, 0.0
      %v622 = vmax.f32 %v590, 0.0
      %v623 = vmax.f32 %v591, 0.0
      %v624 = vmax.f32 %v592, 0.0
      %v625 = vmax.f32 %v593, 0.0
      %v626 = vmax.f32 %v594, 0.0
      %v627 = vmax.f32 %v595, 0.0
      %v628 = vmax.f32 %v596, 0.0
      %v629 = vmax.f32 %v597, 0.0
      %v630 = vmax.f32 %v598, 0.0
      %v631 = vmax.f32 %v599, 0.0
      %v632 = vmax.f32 %v600, 0.0
      %v633 = vmax.f32 %v601, 0.0
      %v634 = vmax.f32 %v602, 0.0
      %v635 = vmax.f32 %v603, 0.0
      %v636 = vmax.f32 %v604, 0.0
      %v637 = vmax.f32 %v605, 0.0
      %v638 = vmax.f32 %v606, 0.0
      %v639 = vmax.f32 %v607, 0.0
      %v640 = vmax.f32 %v608, 0.0
      %v641 = vmax.f32 %v609, 0.0
      %v642 = vmax.f32 %v610, 0.0
      %v643 = vmax.f32 %v611, 0.0
      %v644 = vmax.f32 %v612, 0.0
      %v645 = vmax.f32 %v613, 0.0
      %v646 = vpack.c.bf16 %v614, %v614
      %v647 = vpack.c.bf16 %v615, %v615
      %v648 = vpack.c.bf16 %v616, %v616
      %v649 = vpack.c.bf16 %v617, %v617
      %v650 = vpack.c.bf16 %v618, %v618
      %v651 = vpack.c.bf16 %v619, %v619
      %v652 = vpack.c.bf16 %v620, %v620
      %v653 = vpack.c.bf16 %v621, %v621
      %v654 = vpack.c.bf16 %v622, %v622
      %v655 = vpack.c.bf16 %v623, %v623
      %v656 = vpack.c.bf16 %v624, %v624
      %v657 = vpack.c.bf16 %v625, %v625
      %v658 = vpack.c.bf16 %v626, %v626
      %v659 = vpack.c.bf16 %v627, %v627
      %v660 = vpack.c.bf16 %v628, %v628
      %v661 = vpack.c.bf16 %v629, %v629
      %v662 = vpack.c.bf16 %v630, %v630
      %v663 = vpack.c.bf16 %v631, %v631
      %v664 = vpack.c.bf16 %v632, %v632
      %v665 = vpack.c.bf16 %v633, %v633
      %v666 = vpack.c.bf16 %v634, %v634
      %v667 = vpack.c.bf16 %v635, %v635
      %v668 = vpack.c.bf16 %v636, %v636
      %v669 = vpack.c.bf16 %v637, %v637
      %v670 = vpack.c.bf16 %v638, %v638
      %v671 = vpack.c.bf16 %v639, %v639
      %v672 = vpack.c.bf16 %v640, %v640
      %v673 = vpack.c.bf16 %v641, %v641
      %v674 = vpack.c.bf16 %v642, %v642
      %v675 = vpack.c.bf16 %v643, %v643
      %v676 = vpack.c.bf16 %v644, %v644
      %v677 = vpack.c.bf16 %v645, %v645
      %vm678 = vcmask 60416
      %679 = vst.msk [vmem:[%s221] sm:$0xf] %vm678, %v646
      %680 = vst.msk [vmem:[%s221 + $0x4] sm:$0xf] %vm678, %v647
      %681 = vst.msk [vmem:[%s221 + $0x8] sm:$0xf] %vm678, %v648
      %682 = vst.msk [vmem:[%s221 + $0xc] sm:$0xf] %vm678, %v649
      %683 = vst.msk [vmem:[%s221 + $0x10] sm:$0xf] %vm678, %v650
      %684 = vst.msk [vmem:[%s221 + $0x14] sm:$0xf] %vm678, %v651
      %685 = vst.msk [vmem:[%s221 + $0x18] sm:$0xf] %vm678, %v652
      %686 = vst.msk [vmem:[%s221 + $0x1c] sm:$0xf] %vm678, %v653
      %687 = vst.msk [vmem:[%s221 + $0x20] sm:$0xf] %vm678, %v654
      %688 = vst.msk [vmem:[%s221 + $0x24] sm:$0xf] %vm678, %v655
      %689 = vst.msk [vmem:[%s221 + $0x28] sm:$0xf] %vm678, %v656
      %690 = vst.msk [vmem:[%s221 + $0x2c] sm:$0xf] %vm678, %v657
      %691 = vst.msk [vmem:[%s221 + $0x30] sm:$0xf] %vm678, %v658
      %692 = vst.msk [vmem:[%s221 + $0x34] sm:$0xf] %vm678, %v659
      %693 = vst.msk [vmem:[%s221 + $0x38] sm:$0xf] %vm678, %v660
      %694 = vst.msk [vmem:[%s221 + $0x3c] sm:$0xf] %vm678, %v661
      %695 = vst.msk [vmem:[%s221 + $0x40] sm:$0xf] %vm678, %v662
      %696 = vst.msk [vmem:[%s221 + $0x44] sm:$0xf] %vm678, %v663
      %697 = vst.msk [vmem:[%s221 + $0x48] sm:$0xf] %vm678, %v664
      %698 = vst.msk [vmem:[%s221 + $0x4c] sm:$0xf] %vm678, %v665
      %699 = vst.msk [vmem:[%s221 + $0x50] sm:$0xf] %vm678, %v666
      %700 = vst.msk [vmem:[%s221 + $0x54] sm:$0xf] %vm678, %v667
      %701 = vst.msk [vmem:[%s221 + $0x58] sm:$0xf] %vm678, %v668
      %702 = vst.msk [vmem:[%s221 + $0x5c] sm:$0xf] %vm678, %v669
      %703 = vst.msk [vmem:[%s221 + $0x60] sm:$0xf] %vm678, %v670
      %704 = vst.msk [vmem:[%s221 + $0x64] sm:$0xf] %vm678, %v671
      %705 = vst.msk [vmem:[%s221 + $0x68] sm:$0xf] %vm678, %v672
      %706 = vst.msk [vmem:[%s221 + $0x6c] sm:$0xf] %vm678, %v673
      %707 = vst.msk [vmem:[%s221 + $0x70] sm:$0xf] %vm678, %v674
      %708 = vst.msk [vmem:[%s221 + $0x74] sm:$0xf] %vm678, %v675
      %709 = vst.msk [vmem:[%s221 + $0x78] sm:$0xf] %vm678, %v676
      %710 = vst.msk [vmem:[%s221 + $0x7c] sm:$0xf] %vm678, %v677
      %s711 = smul.u32 32, %s15
      %p712 = scmp.lt.s32.totalorder %s711, 63
      %s713 = scalar_select %p712, %s711, 63
      %s714 = smul.addr %s713, 4
      %s715 = scalar_lea.vmem %s4, %s714
      // Predicated region
      $region37: #{forward.32} parent=35 // pred_check
        %p716 = pneg %p127
      $region38: #{forward.32} parent=35 // pred_check_branch
        %718 = sbr.rel (%p716) target = $region40
      $region39: #{forward.32} parent=35 // pred_region
        %s719 = smul.u32 32, %s15
      $region40: #{forward.32} parent=35 // pred_fallthru
        _
    $region36: #{forward.32} parent=5 // pred_fallthru
      _
    %p720 = scmp.le.s32.totalorder 2, %s10
    // Predicated region
    $region41: #{forward.32} parent=5 // pred_check
      %p721 = pneg %p720
    $region42: #{forward.32} parent=5 // pred_check_branch
      %723 = sbr.rel (%p721) target = $region44
    $region43: #{forward.32} parent=5 // pred_region
      %s724 = ssub.s32 %s10, 2
      // Predicated region
      $region45: #{forward.32} parent=43 // pred_check
        %p725 = pneg %p133
      $region46: #{forward.32} parent=43 // pred_check_branch
        %727 = sbr.rel (%p725) target = $region48
      $region47: #{forward.32} parent=43 // pred_region
        %s728 = smul.u32 32, %s16
        %p729 = scmp.lt.s32.totalorder %s728, 63
        %s730 = scalar_select %p729, %s728, 63
        %s731 = smul.addr %s730, 4
        %s732 = scalar_lea.vmem %s4, %s731
      $region48: #{forward.32} parent=43 // pred_fallthru
        _
    $region44: #{forward.32} parent=5 // pred_fallthru
      _
  $region6: #{forward.32} parent=0 // loop_footer
    %s14 = sadd.s32 1, %s10
  $region7: #{forward.32} parent=0 // loop_footer_branch
    %9 = sbr.rel target = $region3
  $region8: #{forward.32} parent=0 // loop_exit
    _

// kernel: forward.36
$region0: #{forward.36}
  #allocation0 [shape = 'u32[]', space=smem, size = 0x4, offset = 0x4, fixed_abs, tag = 'smem constant byte address 0x4 - core index']
  #allocation1 [shape = 'u32[72,128]{1,0:T(1,128)}', space=vmem, size = 0x9000, scoped, tag = 'internal scratch']
  %s0 = inlined_call_operand.vmem [shape: bf16[128,72], index: 0, kind: input, shape index: {}]
  %s1 = inlined_call_operand.vmem [shape: bf16[72,16], index: 1, kind: input, shape index: {}]
  %s2 = inlined_call_operand.vmem [shape: f32[1,16], index: 2, kind: input, shape index: {}]
  %s3 = inlined_call_operand.vmem [shape: bf16[128,16], index: 3, kind: output, shape index: {}]
  %s4 = sld [smem:[#allocation0]]
  $region22: #{forward.36} parent=0
    _
  %s6 = ssub.s32 1, %s4
  %s7 = scalar_select 0, %s6, %s4
  // Predicated region
  $region2: #{forward.36} parent=0 // pred_check
    _
  $region3: #{forward.36} parent=0 // pred_check_branch
    %9 = sbr.rel (0) target = $region5
  $region4: #{forward.36} parent=0 // pred_region
    _
  $region5: #{forward.36} parent=0 // pred_fallthru
    _
  // Predicated region
  $region6: #{forward.36} parent=0 // pred_check
    _
  $region7: #{forward.36} parent=0 // pred_check_branch
    %11 = sbr.rel (0) target = $region9
  $region8: #{forward.36} parent=0 // pred_region
    _
  $region9: #{forward.36} parent=0 // pred_fallthru
    _
  // Predicated region
  $region10: #{forward.36} parent=0 // pred_check
    _
  $region11: #{forward.36} parent=0 // pred_check_branch
    %13 = sbr.rel (0) target = $region13
  $region12: #{forward.36} parent=0 // pred_region
    _
  $region13: #{forward.36} parent=0 // pred_fallthru
    _
  %v15 = vld [vmem:[%s0] sm:$0xf]
  %v16 = vld [vmem:[%s0 + $0x4] sm:$0xf]
  %v17 = vld [vmem:[%s0 + $0x8] sm:$0xf]
  %v18 = vld [vmem:[%s0 + $0xc] sm:$0xf]
  %v19 = vld [vmem:[%s0 + $0x10] sm:$0xf]
  %v20 = vld [vmem:[%s0 + $0x14] sm:$0xf]
  %v21 = vld [vmem:[%s0 + $0x18] sm:$0xf]
  %v22 = vld [vmem:[%s0 + $0x1c] sm:$0xf]
  %v23 = vld [vmem:[%s0 + $0x20] sm:$0xf]
  %v24 = vld [vmem:[%s0 + $0x24] sm:$0xf]
  %v25 = vld [vmem:[%s0 + $0x28] sm:$0xf]
  %v26 = vld [vmem:[%s0 + $0x2c] sm:$0xf]
  %v27 = vld [vmem:[%s0 + $0x30] sm:$0xf]
  %v28 = vld [vmem:[%s0 + $0x34] sm:$0xf]
  %v29 = vld [vmem:[%s0 + $0x38] sm:$0xf]
  %v30 = vld [vmem:[%s0 + $0x3c] sm:$0xf]
  %v31 = vld [vmem:[%s1] sm:$0xf]
  %v32 = vld [vmem:[%s1 + $0x4] sm:$0xf]
  %v33 = vld [vmem:[%s1 + $0x8] sm:$0xf]
  %v34 = vld [vmem:[%s1 + $0xc] sm:$0xf]
  %v35 = vld [vmem:[%s1 + $0x10] sm:$0xf]
  %v36 = vld [vmem:[%s1 + $0x14] sm:$0xf]
  %v37 = vld [vmem:[%s1 + $0x18] sm:$0xf]
  %v38 = vld [vmem:[%s1 + $0x1c] sm:$0xf]
  %v39 = vld [vmem:[%s1 + $0x20] sm:$0xf]
  %v40 = vld [vmem:[%s2] sm:$0x1]
  %v42 = vperm.slane %v40, 0
  %v60 = vunpack.c.l.b16 %v15
  %v61 = vunpack.c.l.b16 %v16
  %v62 = vunpack.c.l.b16 %v17
  %v63 = vunpack.c.l.b16 %v18
  %v64 = vunpack.c.l.b16 %v19
  %v65 = vunpack.c.l.b16 %v20
  %v66 = vunpack.c.l.b16 %v21
  %v67 = vunpack.c.l.b16 %v22
  %v68 = vunpack.c.l.b16 %v23
  %v69 = vunpack.c.l.b16 %v24
  %v70 = vunpack.c.l.b16 %v25
  %v71 = vunpack.c.l.b16 %v26
  %v72 = vunpack.c.l.b16 %v27
  %v73 = vunpack.c.l.b16 %v28
  %v74 = vunpack.c.l.b16 %v29
  %v75 = vunpack.c.l.b16 %v30
  %v76 = vpack.c.b16 %v61, %v60
  %v77 = vpack.c.b16 %v63, %v62
  %v78 = vpack.c.b16 %v65, %v64
  %v79 = vpack.c.b16 %v67, %v66
  %v80 = vpack.c.b16 %v69, %v68
  %v81 = vpack.c.b16 %v71, %v70
  %v82 = vpack.c.b16 %v73, %v72
  %v83 = vpack.c.b16 %v75, %v74
  %v93 = vunpack.c.l.b16 %v31
  %v94 = vunpack.c.l.b16 %v32
  %v95 = vunpack.c.l.b16 %v33
  %v96 = vunpack.c.l.b16 %v34
  %v97 = vunpack.c.l.b16 %v35
  %v98 = vunpack.c.l.b16 %v36
  %v99 = vunpack.c.l.b16 %v37
  %v100 = vunpack.c.l.b16 %v38
  %v101 = vunpack.c.l.b16 %v39
  %v102 = vpack.c.b16 %v94, %v93
  %v103 = vpack.c.b16 %v96, %v95
  %v104 = vpack.c.b16 %v98, %v97
  %v105 = vpack.c.b16 %v100, %v99
  %v106 = vpack.c.b16 %v101, %v101
  %vm111 = vcmask 588800
  %v113 = vsel %vm111, %v76, 0
  %v116 = vsel %vm111, %v77, 0
  %v119 = vsel %vm111, %v78, 0
  %v122 = vsel %vm111, %v79, 0
  %v125 = vsel %vm111, %v80, 0
  %v128 = vsel %vm111, %v81, 0
  %v131 = vsel %vm111, %v82, 0
  %v134 = vsel %vm111, %v83, 0
  %vm136 = vcmask 1043456
  %v138 = vsel %vm136, %v106, 0
  %140 = vmatpush.bf16.msra.mxu0 0
  %141 = vmatpush.bf16.msra.mxu0 0
  %142 = vmatpush.bf16.msra.mxu0 0
  %143 = vmatpush.bf16.msra.mxu0 %v138
  %144 = vmatpush.bf16.msra.mxu0 %v105
  %145 = vmatpush.bf16.msra.mxu0 %v104
  %146 = vmatpush.bf16.msra.mxu0 %v103
  %147 = vmatpush.bf16.msra.mxu0 %v102
  %148 = vmatmul.bf16.gmra.mxu0 %v113
  %v149 = vpop.f32.mrf.mxu0
  %v150 = vadd.f32 %v42, %v149
  %v151 = vpop.f32.mrf.mxu0
  %v152 = vadd.f32 %v42, %v151
  %153 = vmatmul.bf16.gmra.mxu0 %v116
  %v154 = vpop.f32.mrf.mxu0
  %v155 = vadd.f32 %v42, %v154
  %v156 = vpop.f32.mrf.mxu0
  %v157 = vadd.f32 %v42, %v156
  %158 = vmatmul.bf16.gmra.mxu0 %v119
  %v159 = vpop.f32.mrf.mxu0
  %v160 = vadd.f32 %v42, %v159
  %v161 = vpop.f32.mrf.mxu0
  %v162 = vadd.f32 %v42, %v161
  %163 = vmatmul.bf16.gmra.mxu0 %v122
  %v164 = vpop.f32.mrf.mxu0
  %v165 = vadd.f32 %v42, %v164
  %v166 = vpop.f32.mrf.mxu0
  %v167 = vadd.f32 %v42, %v166
  %168 = vmatmul.bf16.gmra.mxu0 %v125
  %v169 = vpop.f32.mrf.mxu0
  %v170 = vadd.f32 %v42, %v169
  %v171 = vpop.f32.mrf.mxu0
  %v172 = vadd.f32 %v42, %v171
  %173 = vmatmul.bf16.gmra.mxu0 %v128
  %v174 = vpop.f32.mrf.mxu0
  %v175 = vadd.f32 %v42, %v174
  %v176 = vpop.f32.mrf.mxu0
  %v177 = vadd.f32 %v42, %v176
  %178 = vmatmul.bf16.gmra.mxu0 %v131
  %v179 = vpop.f32.mrf.mxu0
  %v180 = vadd.f32 %v42, %v179
  %v181 = vpop.f32.mrf.mxu0
  %v182 = vadd.f32 %v42, %v181
  %183 = vmatmul.bf16.gmra.mxu0 %v134
  %v184 = vpop.f32.mrf.mxu0
  %v185 = vadd.f32 %v42, %v184
  %v186 = vpop.f32.mrf.mxu0
  %v187 = vadd.f32 %v42, %v186
  %188 = vdwg.mxu0
  %v189 = vmax.f32 %v150, 0.0
  %v190 = vmax.f32 %v152, 0.0
  %v191 = vmax.f32 %v155, 0.0
  %v192 = vmax.f32 %v157, 0.0
  %v193 = vmax.f32 %v160, 0.0
  %v194 = vmax.f32 %v162, 0.0
  %v195 = vmax.f32 %v165, 0.0
  %v196 = vmax.f32 %v167, 0.0
  %v197 = vmax.f32 %v170, 0.0
  %v198 = vmax.f32 %v172, 0.0
  %v199 = vmax.f32 %v175, 0.0
  %v200 = vmax.f32 %v177, 0.0
  %v201 = vmax.f32 %v180, 0.0
  %v202 = vmax.f32 %v182, 0.0
  %v203 = vmax.f32 %v185, 0.0
  %v204 = vmax.f32 %v187, 0.0
  %v205 = vpack.c.bf16 %v189, %v189
  %v206 = vpack.c.bf16 %v190, %v190
  %v207 = vpack.c.bf16 %v191, %v191
  %v208 = vpack.c.bf16 %v192, %v192
  %v209 = vpack.c.bf16 %v193, %v193
  %v210 = vpack.c.bf16 %v194, %v194
  %v211 = vpack.c.bf16 %v195, %v195
  %v212 = vpack.c.bf16 %v196, %v196
  %v213 = vpack.c.bf16 %v197, %v197
  %v214 = vpack.c.bf16 %v198, %v198
  %v215 = vpack.c.bf16 %v199, %v199
  %v216 = vpack.c.bf16 %v200, %v200
  %v217 = vpack.c.bf16 %v201, %v201
  %v218 = vpack.c.bf16 %v202, %v202
  %v219 = vpack.c.bf16 %v203, %v203
  %v220 = vpack.c.bf16 %v204, %v204
  %vm221 = vcmask 125952
  %222 = vst.msk [vmem:[%s3] sm:$0xf] %vm221, %v205
  %223 = vst.msk [vmem:[%s3 + $0x4] sm:$0xf] %vm221, %v206
  %224 = vst.msk [vmem:[%s3 + $0x8] sm:$0xf] %vm221, %v207
  %225 = vst.msk [vmem:[%s3 + $0xc] sm:$0xf] %vm221, %v208
  %226 = vst.msk [vmem:[%s3 + $0x10] sm:$0xf] %vm221, %v209
  %227 = vst.msk [vmem:[%s3 + $0x14] sm:$0xf] %vm221, %v210
  %228 = vst.msk [vmem:[%s3 + $0x18] sm:$0xf] %vm221, %v211
  %229 = vst.msk [vmem:[%s3 + $0x1c] sm:$0xf] %vm221, %v212
  %230 = vst.msk [vmem:[%s3 + $0x20] sm:$0xf] %vm221, %v213
  %231 = vst.msk [vmem:[%s3 + $0x24] sm:$0xf] %vm221, %v214
  %232 = vst.msk [vmem:[%s3 + $0x28] sm:$0xf] %vm221, %v215
  %233 = vst.msk [vmem:[%s3 + $0x2c] sm:$0xf] %vm221, %v216
  %234 = vst.msk [vmem:[%s3 + $0x30] sm:$0xf] %vm221, %v217
  %235 = vst.msk [vmem:[%s3 + $0x34] sm:$0xf] %vm221, %v218
  %236 = vst.msk [vmem:[%s3 + $0x38] sm:$0xf] %vm221, %v219
  %237 = vst.msk [vmem:[%s3 + $0x3c] sm:$0xf] %vm221, %v220
  // Predicated region
  $region14: #{forward.36} parent=0 // pred_check
    _
  $region15: #{forward.36} parent=0 // pred_check_branch
    %239 = sbr.rel (0) target = $region17
  $region16: #{forward.36} parent=0 // pred_region
    _
  $region17: #{forward.36} parent=0 // pred_fallthru
    _
  // Predicated region
  $region18: #{forward.36} parent=0 // pred_check
    _
  $region19: #{forward.36} parent=0 // pred_check_branch
    %241 = sbr.rel (0) target = $region21
  $region20: #{forward.36} parent=0 // pred_region
    _
  $region21: #{forward.36} parent=0 // pred_fallthru
    _

// kernel: forward.35
$region0: #{forward.35}
  #allocation0 [shape = 'u32[]', space=smem, size = 0x4, offset = 0x4, fixed_abs, tag = 'smem constant byte address 0x4 - core index']
  #allocation1 [shape = 'u32[72,128]{1,0:T(1,128)}', space=vmem, size = 0x9000, scoped, tag = 'internal scratch']
  %s0 = inlined_call_operand.vmem [shape: bf16[128,8], index: 0, kind: input, shape index: {}]
  %s1 = inlined_call_operand.vmem [shape: bf16[8,16], index: 1, kind: input, shape index: {}]
  %s2 = inlined_call_operand.vmem [shape: f32[1,16], index: 2, kind: input, shape index: {}]
  %s3 = inlined_call_operand.vmem [shape: bf16[128,16], index: 3, kind: output, shape index: {}]
  %s4 = sld [smem:[#allocation0]]
  $region22: #{forward.35} parent=0
    _
  %s6 = ssub.s32 1, %s4
  %s7 = scalar_select 0, %s6, %s4
  // Predicated region
  $region2: #{forward.35} parent=0 // pred_check
    _
  $region3: #{forward.35} parent=0 // pred_check_branch
    %9 = sbr.rel (0) target = $region5
  $region4: #{forward.35} parent=0 // pred_region
    _
  $region5: #{forward.35} parent=0 // pred_fallthru
    _
  // Predicated region
  $region6: #{forward.35} parent=0 // pred_check
    _
  $region7: #{forward.35} parent=0 // pred_check_branch
    %11 = sbr.rel (0) target = $region9
  $region8: #{forward.35} parent=0 // pred_region
    _
  $region9: #{forward.35} parent=0 // pred_fallthru
    _
  // Predicated region
  $region10: #{forward.35} parent=0 // pred_check
    _
  $region11: #{forward.35} parent=0 // pred_check_branch
    %13 = sbr.rel (0) target = $region13
  $region12: #{forward.35} parent=0 // pred_region
    _
  $region13: #{forward.35} parent=0 // pred_fallthru
    _
  %v15 = vld [vmem:[%s0] sm:$0xf]
  %v16 = vld [vmem:[%s0 + $0x4] sm:$0xf]
  %v17 = vld [vmem:[%s0 + $0x8] sm:$0xf]
  %v18 = vld [vmem:[%s0 + $0xc] sm:$0xf]
  %v19 = vld [vmem:[%s0 + $0x10] sm:$0xf]
  %v20 = vld [vmem:[%s0 + $0x14] sm:$0xf]
  %v21 = vld [vmem:[%s0 + $0x18] sm:$0xf]
  %v22 = vld [vmem:[%s0 + $0x1c] sm:$0xf]
  %v23 = vld [vmem:[%s0 + $0x20] sm:$0xf]
  %v24 = vld [vmem:[%s0 + $0x24] sm:$0xf]
  %v25 = vld [vmem:[%s0 + $0x28] sm:$0xf]
  %v26 = vld [vmem:[%s0 + $0x2c] sm:$0xf]
  %v27 = vld [vmem:[%s0 + $0x30] sm:$0xf]
  %v28 = vld [vmem:[%s0 + $0x34] sm:$0xf]
  %v29 = vld [vmem:[%s0 + $0x38] sm:$0xf]
  %v30 = vld [vmem:[%s0 + $0x3c] sm:$0xf]
  %v31 = vld [vmem:[%s1] sm:$0xf]
  %v32 = vld [vmem:[%s2] sm:$0x1]
  %v34 = vperm.slane %v32, 0
  %v52 = vunpack.c.l.b16 %v15
  %v53 = vunpack.c.l.b16 %v16
  %v54 = vunpack.c.l.b16 %v17
  %v55 = vunpack.c.l.b16 %v18
  %v56 = vunpack.c.l.b16 %v19
  %v57 = vunpack.c.l.b16 %v20
  %v58 = vunpack.c.l.b16 %v21
  %v59 = vunpack.c.l.b16 %v22
  %v60 = vunpack.c.l.b16 %v23
  %v61 = vunpack.c.l.b16 %v24
  %v62 = vunpack.c.l.b16 %v25
  %v63 = vunpack.c.l.b16 %v26
  %v64 = vunpack.c.l.b16 %v27
  %v65 = vunpack.c.l.b16 %v28
  %v66 = vunpack.c.l.b16 %v29
  %v67 = vunpack.c.l.b16 %v30
  %v68 = vpack.c.b16 %v53, %v52
  %v69 = vpack.c.b16 %v55, %v54
  %v70 = vpack.c.b16 %v57, %v56
  %v71 = vpack.c.b16 %v59, %v58
  %v72 = vpack.c.b16 %v61, %v60
  %v73 = vpack.c.b16 %v63, %v62
  %v74 = vpack.c.b16 %v65, %v64
  %v75 = vpack.c.b16 %v67, %v66
  %vm76 = vcmask 64512
  %v78 = vsel %vm76, %v68, 0
  %v81 = vsel %vm76, %v69, 0
  %v84 = vsel %vm76, %v70, 0
  %v87 = vsel %vm76, %v71, 0
  %v90 = vsel %vm76, %v72, 0
  %v93 = vsel %vm76, %v73, 0
  %v96 = vsel %vm76, %v74, 0
  %v99 = vsel %vm76, %v75, 0
  %vm101 = vcmask 1043456
  %v103 = vsel %vm101, %v31, 0
  %105 = vmatpush.bf16.msra.mxu0 0
  %106 = vmatpush.bf16.msra.mxu0 0
  %107 = vmatpush.bf16.msra.mxu0 0
  %108 = vmatpush.bf16.msra.mxu0 0
  %109 = vmatpush.bf16.msra.mxu0 0
  %110 = vmatpush.bf16.msra.mxu0 0
  %111 = vmatpush.bf16.msra.mxu0 0
  %112 = vmatpush.bf16.msra.mxu0 %v103
  %113 = vmatmul.bf16.gmra.mxu0 %v78
  %v114 = vpop.f32.mrf.mxu0
  %v115 = vadd.f32 %v34, %v114
  %v116 = vpop.f32.mrf.mxu0
  %v117 = vadd.f32 %v34, %v116
  %118 = vmatmul.bf16.gmra.mxu0 %v81
  %v119 = vpop.f32.mrf.mxu0
  %v120 = vadd.f32 %v34, %v119
  %v121 = vpop.f32.mrf.mxu0
  %v122 = vadd.f32 %v34, %v121
  %123 = vmatmul.bf16.gmra.mxu0 %v84
  %v124 = vpop.f32.mrf.mxu0
  %v125 = vadd.f32 %v34, %v124
  %v126 = vpop.f32.mrf.mxu0
  %v127 = vadd.f32 %v34, %v126
  %128 = vmatmul.bf16.gmra.mxu0 %v87
  %v129 = vpop.f32.mrf.mxu0
  %v130 = vadd.f32 %v34, %v129
  %v131 = vpop.f32.mrf.mxu0
  %v132 = vadd.f32 %v34, %v131
  %133 = vmatmul.bf16.gmra.mxu0 %v90
  %v134 = vpop.f32.mrf.mxu0
  %v135 = vadd.f32 %v34, %v134
  %v136 = vpop.f32.mrf.mxu0
  %v137 = vadd.f32 %v34, %v136
  %138 = vmatmul.bf16.gmra.mxu0 %v93
  %v139 = vpop.f32.mrf.mxu0
  %v140 = vadd.f32 %v34, %v139
  %v141 = vpop.f32.mrf.mxu0
  %v142 = vadd.f32 %v34, %v141
  %143 = vmatmul.bf16.gmra.mxu0 %v96
  %v144 = vpop.f32.mrf.mxu0
  %v145 = vadd.f32 %v34, %v144
  %v146 = vpop.f32.mrf.mxu0
  %v147 = vadd.f32 %v34, %v146
  %148 = vmatmul.bf16.gmra.mxu0 %v99
  %v149 = vpop.f32.mrf.mxu0
  %v150 = vadd.f32 %v34, %v149
  %v151 = vpop.f32.mrf.mxu0
  %v152 = vadd.f32 %v34, %v151
  %153 = vdwg.mxu0
  %v154 = vpack.c.bf16 %v115, %v115
  %v155 = vpack.c.bf16 %v117, %v117
  %v156 = vpack.c.bf16 %v120, %v120
  %v157 = vpack.c.bf16 %v122, %v122
  %v158 = vpack.c.bf16 %v125, %v125
  %v159 = vpack.c.bf16 %v127, %v127
  %v160 = vpack.c.bf16 %v130, %v130
  %v161 = vpack.c.bf16 %v132, %v132
  %v162 = vpack.c.bf16 %v135, %v135
  %v163 = vpack.c.bf16 %v137, %v137
  %v164 = vpack.c.bf16 %v140, %v140
  %v165 = vpack.c.bf16 %v142, %v142
  %v166 = vpack.c.bf16 %v145, %v145
  %v167 = vpack.c.bf16 %v147, %v147
  %v168 = vpack.c.bf16 %v150, %v150
  %v169 = vpack.c.bf16 %v152, %v152
  %vm170 = vcmask 125952
  %171 = vst.msk [vmem:[%s3] sm:$0xf] %vm170, %v154
  %172 = vst.msk [vmem:[%s3 + $0x4] sm:$0xf] %vm170, %v155
  %173 = vst.msk [vmem:[%s3 + $0x8] sm:$0xf] %vm170, %v156
  %174 = vst.msk [vmem:[%s3 + $0xc] sm:$0xf] %vm170, %v157
  %175 = vst.msk [vmem:[%s3 + $0x10] sm:$0xf] %vm170, %v158
  %176 = vst.msk [vmem:[%s3 + $0x14] sm:$0xf] %vm170, %v159
  %177 = vst.msk [vmem:[%s3 + $0x18] sm:$0xf] %vm170, %v160
  %178 = vst.msk [vmem:[%s3 + $0x1c] sm:$0xf] %vm170, %v161
  %179 = vst.msk [vmem:[%s3 + $0x20] sm:$0xf] %vm170, %v162
  %180 = vst.msk [vmem:[%s3 + $0x24] sm:$0xf] %vm170, %v163
  %181 = vst.msk [vmem:[%s3 + $0x28] sm:$0xf] %vm170, %v164
  %182 = vst.msk [vmem:[%s3 + $0x2c] sm:$0xf] %vm170, %v165
  %183 = vst.msk [vmem:[%s3 + $0x30] sm:$0xf] %vm170, %v166
  %184 = vst.msk [vmem:[%s3 + $0x34] sm:$0xf] %vm170, %v167
  %185 = vst.msk [vmem:[%s3 + $0x38] sm:$0xf] %vm170, %v168
  %186 = vst.msk [vmem:[%s3 + $0x3c] sm:$0xf] %vm170, %v169
  // Predicated region
  $region14: #{forward.35} parent=0 // pred_check
    _
  $region15: #{forward.35} parent=0 // pred_check_branch
    %188 = sbr.rel (0) target = $region17
  $region16: #{forward.35} parent=0 // pred_region
    _
  $region17: #{forward.35} parent=0 // pred_fallthru
    _
  // Predicated region
  $region18: #{forward.35} parent=0 // pred_check
    _
  $region19: #{forward.35} parent=0 // pred_check_branch
    %190 = sbr.rel (0) target = $region21
  $region20: #{forward.35} parent=0 // pred_region
    _
  $region21: #{forward.35} parent=0 // pred_fallthru
    _

// kernel: forward.38
$region0: #{forward.38}
  #allocation0 [shape = 'u32[]', space=smem, size = 0x4, offset = 0x4, fixed_abs, tag = 'smem constant byte address 0x4 - core index']
  #allocation1 [shape = 'u32[72,128]{1,0:T(1,128)}', space=vmem, size = 0x9000, scoped, tag = 'internal scratch']
  %s0 = inlined_call_operand.vmem [shape: bf16[128,144], index: 0, kind: input, shape index: {}]
  %s1 = inlined_call_operand.vmem [shape: bf16[144,16], index: 1, kind: input, shape index: {}]
  %s2 = inlined_call_operand.vmem [shape: f32[1,16], index: 2, kind: input, shape index: {}]
  %s3 = inlined_call_operand.vmem [shape: bf16[128,16], index: 3, kind: output, shape index: {}]
  %s4 = sld [smem:[#allocation0]]
  $region22: #{forward.38} parent=0
    _
  %s6 = ssub.s32 1, %s4
  %s7 = scalar_select 0, %s6, %s4
  // Predicated region
  $region2: #{forward.38} parent=0 // pred_check
    _
  $region3: #{forward.38} parent=0 // pred_check_branch
    %9 = sbr.rel (0) target = $region5
  $region4: #{forward.38} parent=0 // pred_region
    _
  $region5: #{forward.38} parent=0 // pred_fallthru
    _
  // Predicated region
  $region6: #{forward.38} parent=0 // pred_check
    _
  $region7: #{forward.38} parent=0 // pred_check_branch
    %11 = sbr.rel (0) target = $region9
  $region8: #{forward.38} parent=0 // pred_region
    _
  $region9: #{forward.38} parent=0 // pred_fallthru
    _
  // Predicated region
  $region10: #{forward.38} parent=0 // pred_check
    _
  $region11: #{forward.38} parent=0 // pred_check_branch
    %13 = sbr.rel (0) target = $region13
  $region12: #{forward.38} parent=0 // pred_region
    _
  $region13: #{forward.38} parent=0 // pred_fallthru
    _
  %v15 = vld [vmem:[%s0] sm:$0xff]
  %v16 = vld [vmem:[%s0 + $0x8] sm:$0xff]
  %v17 = vld [vmem:[%s0 + $0x10] sm:$0xff]
  %v18 = vld [vmem:[%s0 + $0x18] sm:$0xff]
  %v19 = vld [vmem:[%s0 + $0x20] sm:$0xff]
  %v20 = vld [vmem:[%s0 + $0x28] sm:$0xff]
  %v21 = vld [vmem:[%s0 + $0x30] sm:$0xff]
  %v22 = vld [vmem:[%s0 + $0x38] sm:$0xff]
  %v23 = vld [vmem:[%s0 + $0x40] sm:$0xff]
  %v24 = vld [vmem:[%s0 + $0x48] sm:$0xff]
  %v25 = vld [vmem:[%s0 + $0x50] sm:$0xff]
  %v26 = vld [vmem:[%s0 + $0x58] sm:$0xff]
  %v27 = vld [vmem:[%s0 + $0x60] sm:$0xff]
  %v28 = vld [vmem:[%s0 + $0x68] sm:$0xff]
  %v29 = vld [vmem:[%s0 + $0x70] sm:$0xff]
  %v30 = vld [vmem:[%s0 + $0x78] sm:$0xff]
  %v31 = vld [vmem:[%s1] sm:$0xf]
  %v32 = vld [vmem:[%s1 + $0x4] sm:$0xf]
  %v33 = vld [vmem:[%s1 + $0x8] sm:$0xf]
  %v34 = vld [vmem:[%s1 + $0xc] sm:$0xf]
  %v35 = vld [vmem:[%s1 + $0x10] sm:$0xf]
  %v36 = vld [vmem:[%s1 + $0x14] sm:$0xf]
  %v37 = vld [vmem:[%s1 + $0x18] sm:$0xf]
  %v38 = vld [vmem:[%s1 + $0x1c] sm:$0xf]
  %v39 = vld [vmem:[%s1 + $0x20] sm:$0xf]
  %v40 = vld [vmem:[%s1 + $0x24] sm:$0xf]
  %v41 = vld [vmem:[%s1 + $0x28] sm:$0xf]
  %v42 = vld [vmem:[%s1 + $0x2c] sm:$0xf]
  %v43 = vld [vmem:[%s1 + $0x30] sm:$0xf]
  %v44 = vld [vmem:[%s1 + $0x34] sm:$0xf]
  %v45 = vld [vmem:[%s1 + $0x38] sm:$0xf]
  %v46 = vld [vmem:[%s1 + $0x3c] sm:$0xf]
  %v47 = vld [vmem:[%s1 + $0x40] sm:$0xf]
  %v48 = vld [vmem:[%s1 + $0x44] sm:$0xf]
  %v49 = vld [vmem:[%s2] sm:$0x1]
  %v51 = vperm.slane %v49, 0
  %v69 = vunpack.c.l.b16 %v15
  %v70 = vunpack.c.h.b16 %v15
  %v71 = vunpack.c.l.b16 %v16
  %v72 = vunpack.c.h.b16 %v16
  %v73 = vunpack.c.l.b16 %v17
  %v74 = vunpack.c.h.b16 %v17
  %v75 = vunpack.c.l.b16 %v18
  %v76 = vunpack.c.h.b16 %v18
  %v77 = vunpack.c.l.b16 %v19
  %v78 = vunpack.c.h.b16 %v19
  %v79 = vunpack.c.l.b16 %v20
  %v80 = vunpack.c.h.b16 %v20
  %v81 = vunpack.c.l.b16 %v21
  %v82 = vunpack.c.h.b16 %v21
  %v83 = vunpack.c.l.b16 %v22
  %v84 = vunpack.c.h.b16 %v22
  %v85 = vunpack.c.l.b16 %v23
  %v86 = vunpack.c.h.b16 %v23
  %v87 = vunpack.c.l.b16 %v24
  %v88 = vunpack.c.h.b16 %v24
  %v89 = vunpack.c.l.b16 %v25
  %v90 = vunpack.c.h.b16 %v25
  %v91 = vunpack.c.l.b16 %v26
  %v92 = vunpack.c.h.b16 %v26
  %v93 = vunpack.c.l.b16 %v27
  %v94 = vunpack.c.h.b16 %v27
  %v95 = vunpack.c.l.b16 %v28
  %v96 = vunpack.c.h.b16 %v28
  %v97 = vunpack.c.l.b16 %v29
  %v98 = vunpack.c.h.b16 %v29
  %v99 = vunpack.c.l.b16 %v30
  %v100 = vunpack.c.h.b16 %v30
  %v101 = vpack.c.b16 %v71, %v69
  %v102 = vpack.c.b16 %v72, %v70
  %v103 = vpack.c.b16 %v75, %v73
  %v104 = vpack.c.b16 %v76, %v74
  %v105 = vpack.c.b16 %v79, %v77
  %v106 = vpack.c.b16 %v80, %v78
  %v107 = vpack.c.b16 %v83, %v81
  %v108 = vpack.c.b16 %v84, %v82
  %v109 = vpack.c.b16 %v87, %v85
  %v110 = vpack.c.b16 %v88, %v86
  %v111 = vpack.c.b16 %v91, %v89
  %v112 = vpack.c.b16 %v92, %v90
  %v113 = vpack.c.b16 %v95, %v93
  %v114 = vpack.c.b16 %v96, %v94
  %v115 = vpack.c.b16 %v99, %v97
  %v116 = vpack.c.b16 %v100, %v98
  %v143 = vunpack.c.l.b16 %v31
  %v144 = vunpack.c.l.b16 %v32
  %v145 = vunpack.c.l.b16 %v33
  %v146 = vunpack.c.l.b16 %v34
  %v147 = vunpack.c.l.b16 %v35
  %v148 = vunpack.c.l.b16 %v36
  %v149 = vunpack.c.l.b16 %v37
  %v150 = vunpack.c.l.b16 %v38
  %v151 = vunpack.c.l.b16 %v39
  %v152 = vunpack.c.l.b16 %v40
  %v153 = vunpack.c.l.b16 %v41
  %v154 = vunpack.c.l.b16 %v42
  %v155 = vunpack.c.l.b16 %v43
  %v156 = vunpack.c.l.b16 %v44
  %v157 = vunpack.c.l.b16 %v45
  %v158 = vunpack.c.l.b16 %v46
  %v159 = vunpack.c.l.b16 %v47
  %v160 = vunpack.c.l.b16 %v48
  %v161 = vpack.c.b16 %v144, %v143
  %v162 = vpack.c.b16 %v146, %v145
  %v163 = vpack.c.b16 %v148, %v147
  %v164 = vpack.c.b16 %v150, %v149
  %v165 = vpack.c.b16 %v152, %v151
  %v166 = vpack.c.b16 %v154, %v153
  %v167 = vpack.c.b16 %v156, %v155
  %v168 = vpack.c.b16 %v158, %v157
  %v169 = vpack.c.b16 %v160, %v159
  %vm179 = vcmask 130048
  %v181 = vsel %vm179, %v102, 0
  %v184 = vsel %vm179, %v104, 0
  %v187 = vsel %vm179, %v106, 0
  %v190 = vsel %vm179, %v108, 0
  %v193 = vsel %vm179, %v110, 0
  %v196 = vsel %vm179, %v112, 0
  %v199 = vsel %vm179, %v114, 0
  %v202 = vsel %vm179, %v116, 0
  %204 = vmatpush.bf16.msra.mxu0 %v168
  %205 = vmatpush.bf16.msra.mxu0 %v167
  %206 = vmatpush.bf16.msra.mxu0 %v166
  %207 = vmatpush.bf16.msra.mxu0 %v165
  %208 = vmatpush.bf16.msra.mxu0 %v164
  %209 = vmatpush.bf16.msra.mxu0 %v163
  %210 = vmatpush.bf16.msra.mxu0 %v162
  %211 = vmatpush.bf16.msra.mxu0 %v161
  %212 = vmatmul.bf16.gmra.mxu0 %v101
  %v213 = vpop.f32.mrf.mxu0
  %v214 = vadd.f32 %v51, %v213
  %v215 = vpop.f32.mrf.mxu0
  %v216 = vadd.f32 %v51, %v215
  %217 = vmatmul.bf16.gmra.mxu0 %v103
  %v218 = vpop.f32.mrf.mxu0
  %v219 = vadd.f32 %v51, %v218
  %v220 = vpop.f32.mrf.mxu0
  %v221 = vadd.f32 %v51, %v220
  %222 = vmatmul.bf16.gmra.mxu0 %v105
  %v223 = vpop.f32.mrf.mxu0
  %v224 = vadd.f32 %v51, %v223
  %v225 = vpop.f32.mrf.mxu0
  %v226 = vadd.f32 %v51, %v225
  %227 = vmatmul.bf16.gmra.mxu0 %v107
  %v228 = vpop.f32.mrf.mxu0
  %v229 = vadd.f32 %v51, %v228
  %v230 = vpop.f32.mrf.mxu0
  %v231 = vadd.f32 %v51, %v230
  %232 = vmatmul.bf16.gmra.mxu0 %v109
  %v233 = vpop.f32.mrf.mxu0
  %v234 = vadd.f32 %v51, %v233
  %v235 = vpop.f32.mrf.mxu0
  %v236 = vadd.f32 %v51, %v235
  %237 = vmatmul.bf16.gmra.mxu0 %v111
  %v238 = vpop.f32.mrf.mxu0
  %v239 = vadd.f32 %v51, %v238
  %v240 = vpop.f32.mrf.mxu0
  %v241 = vadd.f32 %v51, %v240
  %242 = vmatmul.bf16.gmra.mxu0 %v113
  %v243 = vpop.f32.mrf.mxu0
  %v244 = vadd.f32 %v51, %v243
  %v245 = vpop.f32.mrf.mxu0
  %v246 = vadd.f32 %v51, %v245
  %247 = vmatmul.bf16.gmra.mxu0 %v115
  %v248 = vpop.f32.mrf.mxu0
  %v249 = vadd.f32 %v51, %v248
  %v250 = vpop.f32.mrf.mxu0
  %v251 = vadd.f32 %v51, %v250
  %252 = vdwg.mxu0
  %253 = vmatpush.bf16.msra.mxu0 0
  %254 = vmatpush.bf16.msra.mxu0 0
  %255 = vmatpush.bf16.msra.mxu0 0
  %256 = vmatpush.bf16.msra.mxu0 0
  %257 = vmatpush.bf16.msra.mxu0 0
  %258 = vmatpush.bf16.msra.mxu0 0
  %259 = vmatpush.bf16.msra.mxu0 0
  %260 = vmatpush.bf16.msra.mxu0 %v169
  %261 = vmatmul.bf16.gmra.mxu0 %v181
  %v262 = vpop.f32.mrf.mxu0
  %v263 = vadd.f32 %v214, %v262
  %v264 = vpop.f32.mrf.mxu0
  %v265 = vadd.f32 %v216, %v264
  %266 = vmatmul.bf16.gmra.mxu0 %v184
  %v267 = vpop.f32.mrf.mxu0
  %v268 = vadd.f32 %v219, %v267
  %v269 = vpop.f32.mrf.mxu0
  %v270 = vadd.f32 %v221, %v269
  %271 = vmatmul.bf16.gmra.mxu0 %v187
  %v272 = vpop.f32.mrf.mxu0
  %v273 = vadd.f32 %v224, %v272
  %v274 = vpop.f32.mrf.mxu0
  %v275 = vadd.f32 %v226, %v274
  %276 = vmatmul.bf16.gmra.mxu0 %v190
  %v277 = vpop.f32.mrf.mxu0
  %v278 = vadd.f32 %v229, %v277
  %v279 = vpop.f32.mrf.mxu0
  %v280 = vadd.f32 %v231, %v279
  %281 = vmatmul.bf16.gmra.mxu0 %v193
  %v282 = vpop.f32.mrf.mxu0
  %v283 = vadd.f32 %v234, %v282
  %v284 = vpop.f32.mrf.mxu0
  %v285 = vadd.f32 %v236, %v284
  %286 = vmatmul.bf16.gmra.mxu0 %v196
  %v287 = vpop.f32.mrf.mxu0
  %v288 = vadd.f32 %v239, %v287
  %v289 = vpop.f32.mrf.mxu0
  %v290 = vadd.f32 %v241, %v289
  %291 = vmatmul.bf16.gmra.mxu0 %v199
  %v292 = vpop.f32.mrf.mxu0
  %v293 = vadd.f32 %v244, %v292
  %v294 = vpop.f32.mrf.mxu0
  %v295 = vadd.f32 %v246, %v294
  %296 = vmatmul.bf16.gmra.mxu0 %v202
  %v297 = vpop.f32.mrf.mxu0
  %v298 = vadd.f32 %v249, %v297
  %v299 = vpop.f32.mrf.mxu0
  %v300 = vadd.f32 %v251, %v299
  %301 = vdwg.mxu0
  %v302 = vmax.f32 %v263, 0.0
  %v303 = vmax.f32 %v265, 0.0
  %v304 = vmax.f32 %v268, 0.0
  %v305 = vmax.f32 %v270, 0.0
  %v306 = vmax.f32 %v273, 0.0
  %v307 = vmax.f32 %v275, 0.0
  %v308 = vmax.f32 %v278, 0.0
  %v309 = vmax.f32 %v280, 0.0
  %v310 = vmax.f32 %v283, 0.0
  %v311 = vmax.f32 %v285, 0.0
  %v312 = vmax.f32 %v288, 0.0
  %v313 = vmax.f32 %v290, 0.0
  %v314 = vmax.f32 %v293, 0.0
  %v315 = vmax.f32 %v295, 0.0
  %v316 = vmax.f32 %v298, 0.0
  %v317 = vmax.f32 %v300, 0.0
  %v318 = vpack.c.bf16 %v302, %v302
  %v319 = vpack.c.bf16 %v303, %v303
  %v320 = vpack.c.bf16 %v304, %v304
  %v321 = vpack.c.bf16 %v305, %v305
  %v322 = vpack.c.bf16 %v306, %v306
  %v323 = vpack.c.bf16 %v307, %v307
  %v324 = vpack.c.bf16 %v308, %v308
  %v325 = vpack.c.bf16 %v309, %v309
  %v326 = vpack.c.bf16 %v310, %v310
  %v327 = vpack.c.bf16 %v311, %v311
  %v328 = vpack.c.bf16 %v312, %v312
  %v329 = vpack.c.bf16 %v313, %v313
  %v330 = vpack.c.bf16 %v314, %v314
  %v331 = vpack.c.bf16 %v315, %v315
  %v332 = vpack.c.bf16 %v316, %v316
  %v333 = vpack.c.bf16 %v317, %v317
  %vm334 = vcmask 125952
  %335 = vst.msk [vmem:[%s3] sm:$0xf] %vm334, %v318
  %336 = vst.msk [vmem:[%s3 + $0x4] sm:$0xf] %vm334, %v319
  %337 = vst.msk [vmem:[%s3 + $0x8] sm:$0xf] %vm334, %v320
  %338 = vst.msk [vmem:[%s3 + $0xc] sm:$0xf] %vm334, %v321
  %339 = vst.msk [vmem:[%s3 + $0x10] sm:$0xf] %vm334, %v322
  %340 = vst.msk [vmem:[%s3 + $0x14] sm:$0xf] %vm334, %v323
  %341 = vst.msk [vmem:[%s3 + $0x18] sm:$0xf] %vm334, %v324
  %342 = vst.msk [vmem:[%s3 + $0x1c] sm:$0xf] %vm334, %v325
  %343 = vst.msk [vmem:[%s3 + $0x20] sm:$0xf] %vm334, %v326
  %344 = vst.msk [vmem:[%s3 + $0x24] sm:$0xf] %vm334, %v327
  %345 = vst.msk [vmem:[%s3 + $0x28] sm:$0xf] %vm334, %v328
  %346 = vst.msk [vmem:[%s3 + $0x2c] sm:$0xf] %vm334, %v329
  %347 = vst.msk [vmem:[%s3 + $0x30] sm:$0xf] %vm334, %v330
  %348 = vst.msk [vmem:[%s3 + $0x34] sm:$0xf] %vm334, %v331
  %349 = vst.msk [vmem:[%s3 + $0x38] sm:$0xf] %vm334, %v332
  %350 = vst.msk [vmem:[%s3 + $0x3c] sm:$0xf] %vm334, %v333
  // Predicated region
  $region14: #{forward.38} parent=0 // pred_check
    _
  $region15: #{forward.38} parent=0 // pred_check_branch
    %352 = sbr.rel (0) target = $region17
  $region16: #{forward.38} parent=0 // pred_region
    _
  $region17: #{forward.38} parent=0 // pred_fallthru
    _
  // Predicated region
  $region18: #{forward.38} parent=0 // pred_check
    _
  $region19: #{forward.38} parent=0 // pred_check_branch
    %354 = sbr.rel (0) target = $region21
  $region20: #{forward.38} parent=0 // pred_region
    _
  $region21: #{forward.38} parent=0 // pred_fallthru
    _

// kernel: forward.37
$region0: #{forward.37}
  #allocation0 [shape = 'u32[]', space=smem, size = 0x4, offset = 0x4, fixed_abs, tag = 'smem constant byte address 0x4 - core index']
  #allocation1 [shape = 'u32[72,128]{1,0:T(1,128)}', space=vmem, size = 0x9000, scoped, tag = 'internal scratch']
  %s0 = inlined_call_operand.vmem [shape: bf16[128,144], index: 0, kind: input, shape index: {}]
  %s1 = inlined_call_operand.vmem [shape: bf16[144,16], index: 1, kind: input, shape index: {}]
  %s2 = inlined_call_operand.vmem [shape: f32[1,16], index: 2, kind: input, shape index: {}]
  %s3 = inlined_call_operand.vmem [shape: bf16[128,16], index: 3, kind: input, shape index: {}]
  %s4 = inlined_call_operand.vmem [shape: bf16[128,16], index: 4, kind: output, shape index: {}]
  %s5 = sld [smem:[#allocation0]]
  $region26: #{forward.37} parent=0
    _
  %s7 = ssub.s32 1, %s5
  %s8 = scalar_select 0, %s7, %s5
  // Predicated region
  $region2: #{forward.37} parent=0 // pred_check
    _
  $region3: #{forward.37} parent=0 // pred_check_branch
    %10 = sbr.rel (0) target = $region5
  $region4: #{forward.37} parent=0 // pred_region
    _
  $region5: #{forward.37} parent=0 // pred_fallthru
    _
  // Predicated region
  $region6: #{forward.37} parent=0 // pred_check
    _
  $region7: #{forward.37} parent=0 // pred_check_branch
    %12 = sbr.rel (0) target = $region9
  $region8: #{forward.37} parent=0 // pred_region
    _
  $region9: #{forward.37} parent=0 // pred_fallthru
    _
  // Predicated region
  $region10: #{forward.37} parent=0 // pred_check
    _
  $region11: #{forward.37} parent=0 // pred_check_branch
    %14 = sbr.rel (0) target = $region13
  $region12: #{forward.37} parent=0 // pred_region
    _
  $region13: #{forward.37} parent=0 // pred_fallthru
    _
  // Predicated region
  $region14: #{forward.37} parent=0 // pred_check
    _
  $region15: #{forward.37} parent=0 // pred_check_branch
    %16 = sbr.rel (0) target = $region17
  $region16: #{forward.37} parent=0 // pred_region
    _
  $region17: #{forward.37} parent=0 // pred_fallthru
    _
  %v18 = vld [vmem:[%s0] sm:$0xff]
  %v19 = vld [vmem:[%s0 + $0x8] sm:$0xff]
  %v20 = vld [vmem:[%s0 + $0x10] sm:$0xff]
  %v21 = vld [vmem:[%s0 + $0x18] sm:$0xff]
  %v22 = vld [vmem:[%s0 + $0x20] sm:$0xff]
  %v23 = vld [vmem:[%s0 + $0x28] sm:$0xff]
  %v24 = vld [vmem:[%s0 + $0x30] sm:$0xff]
  %v25 = vld [vmem:[%s0 + $0x38] sm:$0xff]
  %v26 = vld [vmem:[%s0 + $0x40] sm:$0xff]
  %v27 = vld [vmem:[%s0 + $0x48] sm:$0xff]
  %v28 = vld [vmem:[%s0 + $0x50] sm:$0xff]
  %v29 = vld [vmem:[%s0 + $0x58] sm:$0xff]
  %v30 = vld [vmem:[%s0 + $0x60] sm:$0xff]
  %v31 = vld [vmem:[%s0 + $0x68] sm:$0xff]
  %v32 = vld [vmem:[%s0 + $0x70] sm:$0xff]
  %v33 = vld [vmem:[%s0 + $0x78] sm:$0xff]
  %v34 = vld [vmem:[%s1] sm:$0xf]
  %v35 = vld [vmem:[%s1 + $0x4] sm:$0xf]
  %v36 = vld [vmem:[%s1 + $0x8] sm:$0xf]
  %v37 = vld [vmem:[%s1 + $0xc] sm:$0xf]
  %v38 = vld [vmem:[%s1 + $0x10] sm:$0xf]
  %v39 = vld [vmem:[%s1 + $0x14] sm:$0xf]
  %v40 = vld [vmem:[%s1 + $0x18] sm:$0xf]
  %v41 = vld [vmem:[%s1 + $0x1c] sm:$0xf]
  %v42 = vld [vmem:[%s1 + $0x20] sm:$0xf]
  %v43 = vld [vmem:[%s1 + $0x24] sm:$0xf]
  %v44 = vld [vmem:[%s1 + $0x28] sm:$0xf]
  %v45 = vld [vmem:[%s1 + $0x2c] sm:$0xf]
  %v46 = vld [vmem:[%s1 + $0x30] sm:$0xf]
  %v47 = vld [vmem:[%s1 + $0x34] sm:$0xf]
  %v48 = vld [vmem:[%s1 + $0x38] sm:$0xf]
  %v49 = vld [vmem:[%s1 + $0x3c] sm:$0xf]
  %v50 = vld [vmem:[%s1 + $0x40] sm:$0xf]
  %v51 = vld [vmem:[%s1 + $0x44] sm:$0xf]
  %v52 = vld [vmem:[%s2] sm:$0x1]
  %v54 = vperm.slane %v52, 0
  %v72 = vunpack.c.l.b16 %v18
  %v73 = vunpack.c.h.b16 %v18
  %v74 = vunpack.c.l.b16 %v19
  %v75 = vunpack.c.h.b16 %v19
  %v76 = vunpack.c.l.b16 %v20
  %v77 = vunpack.c.h.b16 %v20
  %v78 = vunpack.c.l.b16 %v21
  %v79 = vunpack.c.h.b16 %v21
  %v80 = vunpack.c.l.b16 %v22
  %v81 = vunpack.c.h.b16 %v22
  %v82 = vunpack.c.l.b16 %v23
  %v83 = vunpack.c.h.b16 %v23
  %v84 = vunpack.c.l.b16 %v24
  %v85 = vunpack.c.h.b16 %v24
  %v86 = vunpack.c.l.b16 %v25
  %v87 = vunpack.c.h.b16 %v25
  %v88 = vunpack.c.l.b16 %v26
  %v89 = vunpack.c.h.b16 %v26
  %v90 = vunpack.c.l.b16 %v27
  %v91 = vunpack.c.h.b16 %v27
  %v92 = vunpack.c.l.b16 %v28
  %v93 = vunpack.c.h.b16 %v28
  %v94 = vunpack.c.l.b16 %v29
  %v95 = vunpack.c.h.b16 %v29
  %v96 = vunpack.c.l.b16 %v30
  %v97 = vunpack.c.h.b16 %v30
  %v98 = vunpack.c.l.b16 %v31
  %v99 = vunpack.c.h.b16 %v31
  %v100 = vunpack.c.l.b16 %v32
  %v101 = vunpack.c.h.b16 %v32
  %v102 = vunpack.c.l.b16 %v33
  %v103 = vunpack.c.h.b16 %v33
  %v104 = vpack.c.b16 %v74, %v72
  %v105 = vpack.c.b16 %v75, %v73
  %v106 = vpack.c.b16 %v78, %v76
  %v107 = vpack.c.b16 %v79, %v77
  %v108 = vpack.c.b16 %v82, %v80
  %v109 = vpack.c.b16 %v83, %v81
  %v110 = vpack.c.b16 %v86, %v84
  %v111 = vpack.c.b16 %v87, %v85
  %v112 = vpack.c.b16 %v90, %v88
  %v113 = vpack.c.b16 %v91, %v89
  %v114 = vpack.c.b16 %v94, %v92
  %v115 = vpack.c.b16 %v95, %v93
  %v116 = vpack.c.b16 %v98, %v96
  %v117 = vpack.c.b16 %v99, %v97
  %v118 = vpack.c.b16 %v102, %v100
  %v119 = vpack.c.b16 %v103, %v101
  %v146 = vunpack.c.l.b16 %v34
  %v147 = vunpack.c.l.b16 %v35
  %v148 = vunpack.c.l.b16 %v36
  %v149 = vunpack.c.l.b16 %v37
  %v150 = vunpack.c.l.b16 %v38
  %v151 = vunpack.c.l.b16 %v39
  %v152 = vunpack.c.l.b16 %v40
  %v153 = vunpack.c.l.b16 %v41
  %v154 = vunpack.c.l.b16 %v42
  %v155 = vunpack.c.l.b16 %v43
  %v156 = vunpack.c.l.b16 %v44
  %v157 = vunpack.c.l.b16 %v45
  %v158 = vunpack.c.l.b16 %v46
  %v159 = vunpack.c.l.b16 %v47
  %v160 = vunpack.c.l.b16 %v48
  %v161 = vunpack.c.l.b16 %v49
  %v162 = vunpack.c.l.b16 %v50
  %v163 = vunpack.c.l.b16 %v51
  %v164 = vpack.c.b16 %v147, %v146
  %v165 = vpack.c.b16 %v149, %v148
  %v166 = vpack.c.b16 %v151, %v150
  %v167 = vpack.c.b16 %v153, %v152
  %v168 = vpack.c.b16 %v155, %v154
  %v169 = vpack.c.b16 %v157, %v156
  %v170 = vpack.c.b16 %v159, %v158
  %v171 = vpack.c.b16 %v161, %v160
  %v172 = vpack.c.b16 %v163, %v162
  %vm182 = vcmask 130048
  %v184 = vsel %vm182, %v105, 0
  %v187 = vsel %vm182, %v107, 0
  %v190 = vsel %vm182, %v109, 0
  %v193 = vsel %vm182, %v111, 0
  %v196 = vsel %vm182, %v113, 0
  %v199 = vsel %vm182, %v115, 0
  %v202 = vsel %vm182, %v117, 0
  %v205 = vsel %vm182, %v119, 0
  %207 = vmatpush.bf16.msra.mxu0 %v171
  %208 = vmatpush.bf16.msra.mxu0 %v170
  %209 = vmatpush.bf16.msra.mxu0 %v169
  %210 = vmatpush.bf16.msra.mxu0 %v168
  %211 = vmatpush.bf16.msra.mxu0 %v167
  %212 = vmatpush.bf16.msra.mxu0 %v166
  %213 = vmatpush.bf16.msra.mxu0 %v165
  %214 = vmatpush.bf16.msra.mxu0 %v164
  %215 = vmatmul.bf16.gmra.mxu0 %v104
  %v216 = vpop.f32.mrf.mxu0
  %v217 = vadd.f32 %v54, %v216
  %v218 = vpop.f32.mrf.mxu0
  %v219 = vadd.f32 %v54, %v218
  %220 = vmatmul.bf16.gmra.mxu0 %v106
  %v221 = vpop.f32.mrf.mxu0
  %v222 = vadd.f32 %v54, %v221
  %v223 = vpop.f32.mrf.mxu0
  %v224 = vadd.f32 %v54, %v223
  %225 = vmatmul.bf16.gmra.mxu0 %v108
  %v226 = vpop.f32.mrf.mxu0
  %v227 = vadd.f32 %v54, %v226
  %v228 = vpop.f32.mrf.mxu0
  %v229 = vadd.f32 %v54, %v228
  %230 = vmatmul.bf16.gmra.mxu0 %v110
  %v231 = vpop.f32.mrf.mxu0
  %v232 = vadd.f32 %v54, %v231
  %v233 = vpop.f32.mrf.mxu0
  %v234 = vadd.f32 %v54, %v233
  %235 = vmatmul.bf16.gmra.mxu0 %v112
  %v236 = vpop.f32.mrf.mxu0
  %v237 = vadd.f32 %v54, %v236
  %v238 = vpop.f32.mrf.mxu0
  %v239 = vadd.f32 %v54, %v238
  %240 = vmatmul.bf16.gmra.mxu0 %v114
  %v241 = vpop.f32.mrf.mxu0
  %v242 = vadd.f32 %v54, %v241
  %v243 = vpop.f32.mrf.mxu0
  %v244 = vadd.f32 %v54, %v243
  %245 = vmatmul.bf16.gmra.mxu0 %v116
  %v246 = vpop.f32.mrf.mxu0
  %v247 = vadd.f32 %v54, %v246
  %v248 = vpop.f32.mrf.mxu0
  %v249 = vadd.f32 %v54, %v248
  %250 = vmatmul.bf16.gmra.mxu0 %v118
  %v251 = vpop.f32.mrf.mxu0
  %v252 = vadd.f32 %v54, %v251
  %v253 = vpop.f32.mrf.mxu0
  %v254 = vadd.f32 %v54, %v253
  %255 = vdwg.mxu0
  %256 = vmatpush.bf16.msra.mxu0 0
  %257 = vmatpush.bf16.msra.mxu0 0
  %258 = vmatpush.bf16.msra.mxu0 0
  %259 = vmatpush.bf16.msra.mxu0 0
  %260 = vmatpush.bf16.msra.mxu0 0
  %261 = vmatpush.bf16.msra.mxu0 0
  %262 = vmatpush.bf16.msra.mxu0 0
  %263 = vmatpush.bf16.msra.mxu0 %v172
  %264 = vmatmul.bf16.gmra.mxu0 %v184
  %v265 = vpop.f32.mrf.mxu0
  %v266 = vadd.f32 %v217, %v265
  %v267 = vpop.f32.mrf.mxu0
  %v268 = vadd.f32 %v219, %v267
  %269 = vmatmul.bf16.gmra.mxu0 %v187
  %v270 = vpop.f32.mrf.mxu0
  %v271 = vadd.f32 %v222, %v270
  %v272 = vpop.f32.mrf.mxu0
  %v273 = vadd.f32 %v224, %v272
  %274 = vmatmul.bf16.gmra.mxu0 %v190
  %v275 = vpop.f32.mrf.mxu0
  %v276 = vadd.f32 %v227, %v275
  %v277 = vpop.f32.mrf.mxu0
  %v278 = vadd.f32 %v229, %v277
  %279 = vmatmul.bf16.gmra.mxu0 %v193
  %v280 = vpop.f32.mrf.mxu0
  %v281 = vadd.f32 %v232, %v280
  %v282 = vpop.f32.mrf.mxu0
  %v283 = vadd.f32 %v234, %v282
  %284 = vmatmul.bf16.gmra.mxu0 %v196
  %v285 = vpop.f32.mrf.mxu0
  %v286 = vadd.f32 %v237, %v285
  %v287 = vpop.f32.mrf.mxu0
  %v288 = vadd.f32 %v239, %v287
  %289 = vmatmul.bf16.gmra.mxu0 %v199
  %v290 = vpop.f32.mrf.mxu0
  %v291 = vadd.f32 %v242, %v290
  %v292 = vpop.f32.mrf.mxu0
  %v293 = vadd.f32 %v244, %v292
  %294 = vmatmul.bf16.gmra.mxu0 %v202
  %v295 = vpop.f32.mrf.mxu0
  %v296 = vadd.f32 %v247, %v295
  %v297 = vpop.f32.mrf.mxu0
  %v298 = vadd.f32 %v249, %v297
  %299 = vmatmul.bf16.gmra.mxu0 %v205
  %v300 = vpop.f32.mrf.mxu0
  %v301 = vadd.f32 %v252, %v300
  %v302 = vpop.f32.mrf.mxu0
  %v303 = vadd.f32 %v254, %v302
  %304 = vdwg.mxu0
  %v305 = vld [vmem:[%s3] sm:$0xf]
  %v306 = vld [vmem:[%s3 + $0x4] sm:$0xf]
  %v307 = vld [vmem:[%s3 + $0x8] sm:$0xf]
  %v308 = vld [vmem:[%s3 + $0xc] sm:$0xf]
  %v309 = vld [vmem:[%s3 + $0x10] sm:$0xf]
  %v310 = vld [vmem:[%s3 + $0x14] sm:$0xf]
  %v311 = vld [vmem:[%s3 + $0x18] sm:$0xf]
  %v312 = vld [vmem:[%s3 + $0x1c] sm:$0xf]
  %v313 = vld [vmem:[%s3 + $0x20] sm:$0xf]
  %v314 = vld [vmem:[%s3 + $0x24] sm:$0xf]
  %v315 = vld [vmem:[%s3 + $0x28] sm:$0xf]
  %v316 = vld [vmem:[%s3 + $0x2c] sm:$0xf]
  %v317 = vld [vmem:[%s3 + $0x30] sm:$0xf]
  %v318 = vld [vmem:[%s3 + $0x34] sm:$0xf]
  %v319 = vld [vmem:[%s3 + $0x38] sm:$0xf]
  %v320 = vld [vmem:[%s3 + $0x3c] sm:$0xf]
  %v321 = vunpack.c.l.bf16 %v305
  %v322 = vunpack.c.l.bf16 %v306
  %v323 = vunpack.c.l.bf16 %v307
  %v324 = vunpack.c.l.bf16 %v308
  %v325 = vunpack.c.l.bf16 %v309
  %v326 = vunpack.c.l.bf16 %v310
  %v327 = vunpack.c.l.bf16 %v311
  %v328 = vunpack.c.l.bf16 %v312
  %v329 = vunpack.c.l.bf16 %v313
  %v330 = vunpack.c.l.bf16 %v314
  %v331 = vunpack.c.l.bf16 %v315
  %v332 = vunpack.c.l.bf16 %v316
  %v333 = vunpack.c.l.bf16 %v317
  %v334 = vunpack.c.l.bf16 %v318
  %v335 = vunpack.c.l.bf16 %v319
  %v336 = vunpack.c.l.bf16 %v320
  %v337 = vadd.f32 %v266, %v321
  %v338 = vadd.f32 %v268, %v322
  %v339 = vadd.f32 %v271, %v323
  %v340 = vadd.f32 %v273, %v324
  %v341 = vadd.f32 %v276, %v325
  %v342 = vadd.f32 %v278, %v326
  %v343 = vadd.f32 %v281, %v327
  %v344 = vadd.f32 %v283, %v328
  %v345 = vadd.f32 %v286, %v329
  %v346 = vadd.f32 %v288, %v330
  %v347 = vadd.f32 %v291, %v331
  %v348 = vadd.f32 %v293, %v332
  %v349 = vadd.f32 %v296, %v333
  %v350 = vadd.f32 %v298, %v334
  %v351 = vadd.f32 %v301, %v335
  %v352 = vadd.f32 %v303, %v336
  %v353 = vmax.f32 %v337, 0.0
  %v354 = vmax.f32 %v338, 0.0
  %v355 = vmax.f32 %v339, 0.0
  %v356 = vmax.f32 %v340, 0.0
  %v357 = vmax.f32 %v341, 0.0
  %v358 = vmax.f32 %v342, 0.0
  %v359 = vmax.f32 %v343, 0.0
  %v360 = vmax.f32 %v344, 0.0
  %v361 = vmax.f32 %v345, 0.0
  %v362 = vmax.f32 %v346, 0.0
  %v363 = vmax.f32 %v347, 0.0
  %v364 = vmax.f32 %v348, 0.0
  %v365 = vmax.f32 %v349, 0.0
  %v366 = vmax.f32 %v350, 0.0
  %v367 = vmax.f32 %v351, 0.0
  %v368 = vmax.f32 %v352, 0.0
  %v369 = vpack.c.bf16 %v353, %v353
  %v370 = vpack.c.bf16 %v354, %v354
  %v371 = vpack.c.bf16 %v355, %v355
  %v372 = vpack.c.bf16 %v356, %v356
  %v373 = vpack.c.bf16 %v357, %v357
  %v374 = vpack.c.bf16 %v358, %v358
  %v375 = vpack.c.bf16 %v359, %v359
  %v376 = vpack.c.bf16 %v360, %v360
  %v377 = vpack.c.bf16 %v361, %v361
  %v378 = vpack.c.bf16 %v362, %v362
  %v379 = vpack.c.bf16 %v363, %v363
  %v380 = vpack.c.bf16 %v364, %v364
  %v381 = vpack.c.bf16 %v365, %v365
  %v382 = vpack.c.bf16 %v366, %v366
  %v383 = vpack.c.bf16 %v367, %v367
  %v384 = vpack.c.bf16 %v368, %v368
  %vm385 = vcmask 125952
  %386 = vst.msk [vmem:[%s4] sm:$0xf] %vm385, %v369
  %387 = vst.msk [vmem:[%s4 + $0x4] sm:$0xf] %vm385, %v370
  %388 = vst.msk [vmem:[%s4 + $0x8] sm:$0xf] %vm385, %v371
  %389 = vst.msk [vmem:[%s4 + $0xc] sm:$0xf] %vm385, %v372
  %390 = vst.msk [vmem:[%s4 + $0x10] sm:$0xf] %vm385, %v373
  %391 = vst.msk [vmem:[%s4 + $0x14] sm:$0xf] %vm385, %v374
  %392 = vst.msk [vmem:[%s4 + $0x18] sm:$0xf] %vm385, %v375
  %393 = vst.msk [vmem:[%s4 + $0x1c] sm:$0xf] %vm385, %v376
  %394 = vst.msk [vmem:[%s4 + $0x20] sm:$0xf] %vm385, %v377
  %395 = vst.msk [vmem:[%s4 + $0x24] sm:$0xf] %vm385, %v378
  %396 = vst.msk [vmem:[%s4 + $0x28] sm:$0xf] %vm385, %v379
  %397 = vst.msk [vmem:[%s4 + $0x2c] sm:$0xf] %vm385, %v380
  %398 = vst.msk [vmem:[%s4 + $0x30] sm:$0xf] %vm385, %v381
  %399 = vst.msk [vmem:[%s4 + $0x34] sm:$0xf] %vm385, %v382
  %400 = vst.msk [vmem:[%s4 + $0x38] sm:$0xf] %vm385, %v383
  %401 = vst.msk [vmem:[%s4 + $0x3c] sm:$0xf] %vm385, %v384
  // Predicated region
  $region18: #{forward.37} parent=0 // pred_check
    _
  $region19: #{forward.37} parent=0 // pred_check_branch
    %403 = sbr.rel (0) target = $region21
  $region20: #{forward.37} parent=0 // pred_region
    _
  $region21: #{forward.37} parent=0 // pred_fallthru
    _
  // Predicated region
  $region22: #{forward.37} parent=0 // pred_check
    _
  $region23: #{forward.37} parent=0 // pred_check_branch
    %405 = sbr.rel (0) target = $region25
  $region24: #{forward.37} parent=0 // pred_region
    _
  $region25: #{forward.37} parent=0 // pred_fallthru
    _

// kernel: forward.41
$region0: #{forward.41}
  #allocation0 [shape = 'u32[]', space=smem, size = 0x4, offset = 0x4, fixed_abs, tag = 'smem constant byte address 0x4 - core index']
  #allocation1 [shape = 'u32[72,128]{1,0:T(1,128)}', space=vmem, size = 0x9000, scoped, tag = 'internal scratch']
  %s0 = inlined_call_operand.vmem [shape: bf16[32,144], index: 0, kind: input, shape index: {}]
  %s1 = inlined_call_operand.vmem [shape: bf16[144,32], index: 1, kind: input, shape index: {}]
  %s2 = inlined_call_operand.vmem [shape: f32[1,32], index: 2, kind: input, shape index: {}]
  %s3 = inlined_call_operand.vmem [shape: bf16[32,32], index: 3, kind: output, shape index: {}]
  %s4 = sld [smem:[#allocation0]]
  $region22: #{forward.41} parent=0
    _
  %s6 = ssub.s32 1, %s4
  %s7 = scalar_select 0, %s6, %s4
  // Predicated region
  $region2: #{forward.41} parent=0 // pred_check
    _
  $region3: #{forward.41} parent=0 // pred_check_branch
    %9 = sbr.rel (0) target = $region5
  $region4: #{forward.41} parent=0 // pred_region
    _
  $region5: #{forward.41} parent=0 // pred_fallthru
    _
  // Predicated region
  $region6: #{forward.41} parent=0 // pred_check
    _
  $region7: #{forward.41} parent=0 // pred_check_branch
    %11 = sbr.rel (0) target = $region9
  $region8: #{forward.41} parent=0 // pred_region
    _
  $region9: #{forward.41} parent=0 // pred_fallthru
    _
  // Predicated region
  $region10: #{forward.41} parent=0 // pred_check
    _
  $region11: #{forward.41} parent=0 // pred_check_branch
    %13 = sbr.rel (0) target = $region13
  $region12: #{forward.41} parent=0 // pred_region
    _
  $region13: #{forward.41} parent=0 // pred_fallthru
    _
  %v15 = vld [vmem:[%s0] sm:$0xff]
  %v16 = vld [vmem:[%s0 + $0x8] sm:$0xff]
  %v17 = vld [vmem:[%s0 + $0x10] sm:$0xff]
  %v18 = vld [vmem:[%s0 + $0x18] sm:$0xff]
  %v19 = vld [vmem:[%s1] sm:$0xf]
  %v20 = vld [vmem:[%s1 + $0x4] sm:$0xf]
  %v21 = vld [vmem:[%s1 + $0x8] sm:$0xf]
  %v22 = vld [vmem:[%s1 + $0xc] sm:$0xf]
  %v23 = vld [vmem:[%s1 + $0x10] sm:$0xf]
  %v24 = vld [vmem:[%s1 + $0x14] sm:$0xf]
  %v25 = vld [vmem:[%s1 + $0x18] sm:$0xf]
  %v26 = vld [vmem:[%s1 + $0x1c] sm:$0xf]
  %v27 = vld [vmem:[%s1 + $0x20] sm:$0xf]
  %v28 = vld [vmem:[%s1 + $0x24] sm:$0xf]
  %v29 = vld [vmem:[%s1 + $0x28] sm:$0xf]
  %v30 = vld [vmem:[%s1 + $0x2c] sm:$0xf]
  %v31 = vld [vmem:[%s1 + $0x30] sm:$0xf]
  %v32 = vld [vmem:[%s1 + $0x34] sm:$0xf]
  %v33 = vld [vmem:[%s1 + $0x38] sm:$0xf]
  %v34 = vld [vmem:[%s1 + $0x3c] sm:$0xf]
  %v35 = vld [vmem:[%s1 + $0x40] sm:$0xf]
  %v36 = vld [vmem:[%s1 + $0x44] sm:$0xf]
  %v37 = vld [vmem:[%s2] sm:$0x1]
  %v39 = vperm.slane %v37, 0
  %v45 = vunpack.c.l.b16 %v15
  %v46 = vunpack.c.h.b16 %v15
  %v47 = vunpack.c.l.b16 %v16
  %v48 = vunpack.c.h.b16 %v16
  %v49 = vunpack.c.l.b16 %v17
  %v50 = vunpack.c.h.b16 %v17
  %v51 = vunpack.c.l.b16 %v18
  %v52 = vunpack.c.h.b16 %v18
  %v53 = vpack.c.b16 %v47, %v45
  %v54 = vpack.c.b16 %v48, %v46
  %v55 = vpack.c.b16 %v51, %v49
  %v56 = vpack.c.b16 %v52, %v50
  %v77 = vunpack.c.l.b16 %v19
  %v78 = vunpack.c.l.b16 %v20
  %v79 = vunpack.c.l.b16 %v21
  %v80 = vunpack.c.l.b16 %v22
  %v81 = vunpack.c.l.b16 %v23
  %v82 = vunpack.c.l.b16 %v24
  %v83 = vunpack.c.l.b16 %v25
  %v84 = vunpack.c.l.b16 %v26
  %v85 = vunpack.c.l.b16 %v27
  %v86 = vunpack.c.l.b16 %v28
  %v87 = vunpack.c.l.b16 %v29
  %v88 = vunpack.c.l.b16 %v30
  %v89 = vunpack.c.l.b16 %v31
  %v90 = vunpack.c.l.b16 %v32
  %v91 = vunpack.c.l.b16 %v33
  %v92 = vunpack.c.l.b16 %v34
  %v93 = vunpack.c.l.b16 %v35
  %v94 = vunpack.c.l.b16 %v36
  %v95 = vpack.c.b16 %v78, %v77
  %v96 = vpack.c.b16 %v80, %v79
  %v97 = vpack.c.b16 %v82, %v81
  %v98 = vpack.c.b16 %v84, %v83
  %v99 = vpack.c.b16 %v86, %v85
  %v100 = vpack.c.b16 %v88, %v87
  %v101 = vpack.c.b16 %v90, %v89
  %v102 = vpack.c.b16 %v92, %v91
  %v103 = vpack.c.b16 %v94, %v93
  %vm113 = vcmask 130048
  %v115 = vsel %vm113, %v54, 0
  %v118 = vsel %vm113, %v56, 0
  %120 = vmatpush.bf16.msra.mxu0 %v102
  %121 = vmatpush.bf16.msra.mxu0 %v101
  %122 = vmatpush.bf16.msra.mxu0 %v100
  %123 = vmatpush.bf16.msra.mxu0 %v99
  %124 = vmatpush.bf16.msra.mxu0 %v98
  %125 = vmatpush.bf16.msra.mxu0 %v97
  %126 = vmatpush.bf16.msra.mxu0 %v96
  %127 = vmatpush.bf16.msra.mxu0 %v95
  %128 = vmatmul.bf16.gmra.mxu0 %v53
  %v129 = vpop.f32.mrf.mxu0
  %v130 = vadd.f32 %v39, %v129
  %v131 = vpop.f32.mrf.mxu0
  %v132 = vadd.f32 %v39, %v131
  %133 = vmatmul.bf16.gmra.mxu0 %v55
  %v134 = vpop.f32.mrf.mxu0
  %v135 = vadd.f32 %v39, %v134
  %v136 = vpop.f32.mrf.mxu0
  %v137 = vadd.f32 %v39, %v136
  %138 = vdwg.mxu0
  %139 = vmatpush.bf16.msra.mxu0 0
  %140 = vmatpush.bf16.msra.mxu0 0
  %141 = vmatpush.bf16.msra.mxu0 0
  %142 = vmatpush.bf16.msra.mxu0 0
  %143 = vmatpush.bf16.msra.mxu0 0
  %144 = vmatpush.bf16.msra.mxu0 0
  %145 = vmatpush.bf16.msra.mxu0 0
  %146 = vmatpush.bf16.msra.mxu0 %v103
  %147 = vmatmul.bf16.gmra.mxu0 %v115
  %v148 = vpop.f32.mrf.mxu0
  %v149 = vadd.f32 %v130, %v148
  %v150 = vpop.f32.mrf.mxu0
  %v151 = vadd.f32 %v132, %v150
  %152 = vmatmul.bf16.gmra.mxu0 %v118
  %v153 = vpop.f32.mrf.mxu0
  %v154 = vadd.f32 %v135, %v153
  %v155 = vpop.f32.mrf.mxu0
  %v156 = vadd.f32 %v137, %v155
  %157 = vdwg.mxu0
  %v158 = vmax.f32 %v149, 0.0
  %v159 = vmax.f32 %v151, 0.0
  %v160 = vmax.f32 %v154, 0.0
  %v161 = vmax.f32 %v156, 0.0
  %v162 = vpack.c.bf16 %v158, %v158
  %v163 = vpack.c.bf16 %v159, %v159
  %v164 = vpack.c.bf16 %v160, %v160
  %v165 = vpack.c.bf16 %v161, %v161
  %vm166 = vcmask 257024
  %167 = vst.msk [vmem:[%s3] sm:$0xf] %vm166, %v162
  %168 = vst.msk [vmem:[%s3 + $0x4] sm:$0xf] %vm166, %v163
  %169 = vst.msk [vmem:[%s3 + $0x8] sm:$0xf] %vm166, %v164
  %170 = vst.msk [vmem:[%s3 + $0xc] sm:$0xf] %vm166, %v165
  // Predicated region
  $region14: #{forward.41} parent=0 // pred_check
    _
  $region15: #{forward.41} parent=0 // pred_check_branch
    %172 = sbr.rel (0) target = $region17
  $region16: #{forward.41} parent=0 // pred_region
    _
  $region17: #{forward.41} parent=0 // pred_fallthru
    _
  // Predicated region
  $region18: #{forward.41} parent=0 // pred_check
    _
  $region19: #{forward.41} parent=0 // pred_check_branch
    %174 = sbr.rel (0) target = $region21
  $region20: #{forward.41} parent=0 // pred_region
    _
  $region21: #{forward.41} parent=0 // pred_fallthru
    _

// kernel: forward.42
$region0: #{forward.42}
  #allocation0 [shape = 'u32[]', space=smem, size = 0x4, offset = 0x4, fixed_abs, tag = 'smem constant byte address 0x4 - core index']
  #allocation1 [shape = 'u32[72,128]{1,0:T(1,128)}', space=vmem, size = 0x9000, scoped, tag = 'internal scratch']
  %s0 = inlined_call_operand.vmem [shape: bf16[32,288], index: 0, kind: input, shape index: {}]
  %s1 = inlined_call_operand.vmem [shape: bf16[288,32], index: 1, kind: input, shape index: {}]
  %s2 = inlined_call_operand.vmem [shape: f32[1,32], index: 2, kind: input, shape index: {}]
  %s3 = inlined_call_operand.vmem [shape: bf16[32,32], index: 3, kind: input, shape index: {}]
  %s4 = inlined_call_operand.vmem [shape: bf16[32,32], index: 4, kind: output, shape index: {}]
  %s5 = sld [smem:[#allocation0]]
  $region26: #{forward.42} parent=0
    _
  %s7 = ssub.s32 1, %s5
  %s8 = scalar_select 0, %s7, %s5
  // Predicated region
  $region2: #{forward.42} parent=0 // pred_check
    _
  $region3: #{forward.42} parent=0 // pred_check_branch
    %10 = sbr.rel (0) target = $region5
  $region4: #{forward.42} parent=0 // pred_region
    _
  $region5: #{forward.42} parent=0 // pred_fallthru
    _
  // Predicated region
  $region6: #{forward.42} parent=0 // pred_check
    _
  $region7: #{forward.42} parent=0 // pred_check_branch
    %12 = sbr.rel (0) target = $region9
  $region8: #{forward.42} parent=0 // pred_region
    _
  $region9: #{forward.42} parent=0 // pred_fallthru
    _
  // Predicated region
  $region10: #{forward.42} parent=0 // pred_check
    _
  $region11: #{forward.42} parent=0 // pred_check_branch
    %14 = sbr.rel (0) target = $region13
  $region12: #{forward.42} parent=0 // pred_region
    _
  $region13: #{forward.42} parent=0 // pred_fallthru
    _
  // Predicated region
  $region14: #{forward.42} parent=0 // pred_check
    _
  $region15: #{forward.42} parent=0 // pred_check_branch
    %16 = sbr.rel (0) target = $region17
  $region16: #{forward.42} parent=0 // pred_region
    _
  $region17: #{forward.42} parent=0 // pred_fallthru
    _
  %v18 = vld [vmem:[%s0] sm:$0xff]
  %v19 = vld [vmem:[%s0 + $0x8] sm:$0xf]
  %v20 = vld [vmem:[%s0 + $0xc] sm:$0xff]
  %v21 = vld [vmem:[%s0 + $0x14] sm:$0xf]
  %v22 = vld [vmem:[%s0 + $0x18] sm:$0xff]
  %v23 = vld [vmem:[%s0 + $0x20] sm:$0xf]
  %v24 = vld [vmem:[%s0 + $0x24] sm:$0xff]
  %v25 = vld [vmem:[%s0 + $0x2c] sm:$0xf]
  %v26 = vld [vmem:[%s1] sm:$0xf]
  %v27 = vld [vmem:[%s1 + $0x4] sm:$0xf]
  %v28 = vld [vmem:[%s1 + $0x8] sm:$0xf]
  %v29 = vld [vmem:[%s1 + $0xc] sm:$0xf]
  %v30 = vld [vmem:[%s1 + $0x10] sm:$0xf]
  %v31 = vld [vmem:[%s1 + $0x14] sm:$0xf]
  %v32 = vld [vmem:[%s1 + $0x18] sm:$0xf]
  %v33 = vld [vmem:[%s1 + $0x1c] sm:$0xf]
  %v34 = vld [vmem:[%s1 + $0x20] sm:$0xf]
  %v35 = vld [vmem:[%s1 + $0x24] sm:$0xf]
  %v36 = vld [vmem:[%s1 + $0x28] sm:$0xf]
  %v37 = vld [vmem:[%s1 + $0x2c] sm:$0xf]
  %v38 = vld [vmem:[%s1 + $0x30] sm:$0xf]
  %v39 = vld [vmem:[%s1 + $0x34] sm:$0xf]
  %v40 = vld [vmem:[%s1 + $0x38] sm:$0xf]
  %v41 = vld [vmem:[%s1 + $0x3c] sm:$0xf]
  %v42 = vld [vmem:[%s1 + $0x40] sm:$0xf]
  %v43 = vld [vmem:[%s1 + $0x44] sm:$0xf]
  %v44 = vld [vmem:[%s1 + $0x48] sm:$0xf]
  %v45 = vld [vmem:[%s1 + $0x4c] sm:$0xf]
  %v46 = vld [vmem:[%s1 + $0x50] sm:$0xf]
  %v47 = vld [vmem:[%s1 + $0x54] sm:$0xf]
  %v48 = vld [vmem:[%s1 + $0x58] sm:$0xf]
  %v49 = vld [vmem:[%s1 + $0x5c] sm:$0xf]
  %v50 = vld [vmem:[%s1 + $0x60] sm:$0xf]
  %v51 = vld [vmem:[%s1 + $0x64] sm:$0xf]
  %v52 = vld [vmem:[%s1 + $0x68] sm:$0xf]
  %v53 = vld [vmem:[%s1 + $0x6c] sm:$0xf]
  %v54 = vld [vmem:[%s1 + $0x70] sm:$0xf]
  %v55 = vld [vmem:[%s1 + $0x74] sm:$0xf]
  %v56 = vld [vmem:[%s1 + $0x78] sm:$0xf]
  %v57 = vld [vmem:[%s1 + $0x7c] sm:$0xf]
  %v58 = vld [vmem:[%s1 + $0x80] sm:$0xf]
  %v59 = vld [vmem:[%s1 + $0x84] sm:$0xf]
  %v60 = vld [vmem:[%s1 + $0x88] sm:$0xf]
  %v61 = vld [vmem:[%s1 + $0x8c] sm:$0xf]
  %v62 = vld [vmem:[%s2] sm:$0x1]
  %v64 = vperm.slane %v62, 0
  %v74 = vunpack.c.l.b16 %v18
  %v75 = vunpack.c.h.b16 %v18
  %v76 = vunpack.c.l.b16 %v19
  %v77 = vunpack.c.l.b16 %v20
  %v78 = vunpack.c.h.b16 %v20
  %v79 = vunpack.c.l.b16 %v21
  %v80 = vunpack.c.l.b16 %v22
  %v81 = vunpack.c.h.b16 %v22
  %v82 = vunpack.c.l.b16 %v23
  %v83 = vunpack.c.l.b16 %v24
  %v84 = vunpack.c.h.b16 %v24
  %v85 = vunpack.c.l.b16 %v25
  %v86 = vpack.c.b16 %v77, %v74
  %v87 = vpack.c.b16 %v78, %v75
  %v88 = vpack.c.b16 %v79, %v76
  %v89 = vpack.c.b16 %v83, %v80
  %v90 = vpack.c.b16 %v84, %v81
  %v91 = vpack.c.b16 %v85, %v82
  %v132 = vunpack.c.l.b16 %v26
  %v133 = vunpack.c.l.b16 %v27
  %v134 = vunpack.c.l.b16 %v28
  %v135 = vunpack.c.l.b16 %v29
  %v136 = vunpack.c.l.b16 %v30
  %v137 = vunpack.c.l.b16 %v31
  %v138 = vunpack.c.l.b16 %v32
  %v139 = vunpack.c.l.b16 %v33
  %v140 = vunpack.c.l.b16 %v34
  %v141 = vunpack.c.l.b16 %v35
  %v142 = vunpack.c.l.b16 %v36
  %v143 = vunpack.c.l.b16 %v37
  %v144 = vunpack.c.l.b16 %v38
  %v145 = vunpack.c.l.b16 %v39
  %v146 = vunpack.c.l.b16 %v40
  %v147 = vunpack.c.l.b16 %v41
  %v148 = vunpack.c.l.b16 %v42
  %v149 = vunpack.c.l.b16 %v43
  %v150 = vunpack.c.l.b16 %v44
  %v151 = vunpack.c.l.b16 %v45
  %v152 = vunpack.c.l.b16 %v46
  %v153 = vunpack.c.l.b16 %v47
  %v154 = vunpack.c.l.b16 %v48
  %v155 = vunpack.c.l.b16 %v49
  %v156 = vunpack.c.l.b16 %v50
  %v157 = vunpack.c.l.b16 %v51
  %v158 = vunpack.c.l.b16 %v52
  %v159 = vunpack.c.l.b16 %v53
  %v160 = vunpack.c.l.b16 %v54
  %v161 = vunpack.c.l.b16 %v55
  %v162 = vunpack.c.l.b16 %v56
  %v163 = vunpack.c.l.b16 %v57
  %v164 = vunpack.c.l.b16 %v58
  %v165 = vunpack.c.l.b16 %v59
  %v166 = vunpack.c.l.b16 %v60
  %v167 = vunpack.c.l.b16 %v61
  %v168 = vpack.c.b16 %v133, %v132
  %v169 = vpack.c.b16 %v135, %v134
  %v170 = vpack.c.b16 %v137, %v136
  %v171 = vpack.c.b16 %v139, %v138
  %v172 = vpack.c.b16 %v141, %v140
  %v173 = vpack.c.b16 %v143, %v142
  %v174 = vpack.c.b16 %v145, %v144
  %v175 = vpack.c.b16 %v147, %v146
  %v176 = vpack.c.b16 %v149, %v148
  %v177 = vpack.c.b16 %v151, %v150
  %v178 = vpack.c.b16 %v153, %v152
  %v179 = vpack.c.b16 %v155, %v154
  %v180 = vpack.c.b16 %v157, %v156
  %v181 = vpack.c.b16 %v159, %v158
  %v182 = vpack.c.b16 %v161, %v160
  %v183 = vpack.c.b16 %v163, %v162
  %v184 = vpack.c.b16 %v165, %v164
  %v185 = vpack.c.b16 %v167, %v166
  %vm204 = vcmask 261120
  %v206 = vsel %vm204, %v88, 0
  %v209 = vsel %vm204, %v91, 0
  %211 = vmatpush.bf16.msra.mxu0 %v175
  %212 = vmatpush.bf16.msra.mxu0 %v174
  %213 = vmatpush.bf16.msra.mxu0 %v173
  %214 = vmatpush.bf16.msra.mxu0 %v172
  %215 = vmatpush.bf16.msra.mxu0 %v171
  %216 = vmatpush.bf16.msra.mxu0 %v170
  %217 = vmatpush.bf16.msra.mxu0 %v169
  %218 = vmatpush.bf16.msra.mxu0 %v168
  %219 = vmatmul.bf16.gmra.mxu0 %v86
  %v220 = vpop.f32.mrf.mxu0
  %v221 = vadd.f32 %v64, %v220
  %v222 = vpop.f32.mrf.mxu0
  %v223 = vadd.f32 %v64, %v222
  %224 = vmatmul.bf16.gmra.mxu0 %v89
  %v225 = vpop.f32.mrf.mxu0
  %v226 = vadd.f32 %v64, %v225
  %v227 = vpop.f32.mrf.mxu0
  %v228 = vadd.f32 %v64, %v227
  %229 = vdwg.mxu0
  %230 = vmatpush.bf16.msra.mxu0 %v183
  %231 = vmatpush.bf16.msra.mxu0 %v182
  %232 = vmatpush.bf16.msra.mxu0 %v181
  %233 = vmatpush.bf16.msra.mxu0 %v180
  %234 = vmatpush.bf16.msra.mxu0 %v179
  %235 = vmatpush.bf16.msra.mxu0 %v178
  %236 = vmatpush.bf16.msra.mxu0 %v177
  %237 = vmatpush.bf16.msra.mxu0 %v176
  %238 = vmatmul.bf16.gmra.mxu0 %v87
  %v239 = vpop.f32.mrf.mxu0
  %v240 = vadd.f32 %v221, %v239
  %v241 = vpop.f32.mrf.mxu0
  %v242 = vadd.f32 %v223, %v241
  %243 = vmatmul.bf16.gmra.mxu0 %v90
  %v244 = vpop.f32.mrf.mxu0
  %v245 = vadd.f32 %v226, %v244
  %v246 = vpop.f32.mrf.mxu0
  %v247 = vadd.f32 %v228, %v246
  %248 = vdwg.mxu0
  %249 = vmatpush.bf16.msra.mxu0 0
  %250 = vmatpush.bf16.msra.mxu0 0
  %251 = vmatpush.bf16.msra.mxu0 0
  %252 = vmatpush.bf16.msra.mxu0 0
  %253 = vmatpush.bf16.msra.mxu0 0
  %254 = vmatpush.bf16.msra.mxu0 0
  %255 = vmatpush.bf16.msra.mxu0 %v185
  %256 = vmatpush.bf16.msra.mxu0 %v184
  %257 = vmatmul.bf16.gmra.mxu0 %v206
  %v258 = vpop.f32.mrf.mxu0
  %v259 = vadd.f32 %v240, %v258
  %v260 = vpop.f32.mrf.mxu0
  %v261 = vadd.f32 %v242, %v260
  %262 = vmatmul.bf16.gmra.mxu0 %v209
  %v263 = vpop.f32.mrf.mxu0
  %v264 = vadd.f32 %v245, %v263
  %v265 = vpop.f32.mrf.mxu0
  %v266 = vadd.f32 %v247, %v265
  %267 = vdwg.mxu0
  %v268 = vld [vmem:[%s3] sm:$0xf]
  %v269 = vld [vmem:[%s3 + $0x4] sm:$0xf]
  %v270 = vld [vmem:[%s3 + $0x8] sm:$0xf]
  %v271 = vld [vmem:[%s3 + $0xc] sm:$0xf]
  %v272 = vunpack.c.l.bf16 %v268
  %v273 = vunpack.c.l.bf16 %v269
  %v274 = vunpack.c.l.bf16 %v270
  %v275 = vunpack.c.l.bf16 %v271
  %v276 = vadd.f32 %v259, %v272
  %v277 = vadd.f32 %v261, %v273
  %v278 = vadd.f32 %v264, %v274
  %v279 = vadd.f32 %v266, %v275
  %v280 = vmax.f32 %v276, 0.0
  %v281 = vmax.f32 %v277, 0.0
  %v282 = vmax.f32 %v278, 0.0
  %v283 = vmax.f32 %v279, 0.0
  %v284 = vpack.c.bf16 %v280, %v280
  %v285 = vpack.c.bf16 %v281, %v281
  %v286 = vpack.c.bf16 %v282, %v282
  %v287 = vpack.c.bf16 %v283, %v283
  %vm288 = vcmask 257024
  %289 = vst.msk [vmem:[%s4] sm:$0xf] %vm288, %v284
  %290 = vst.msk [vmem:[%s4 + $0x4] sm:$0xf] %vm288, %v285
  %291 = vst.msk [vmem:[%s4 + $0x8] sm:$0xf] %vm288, %v286
  %292 = vst.msk [vmem:[%s4 + $0xc] sm:$0xf] %vm288, %v287
  // Predicated region
  $region18: #{forward.42} parent=0 // pred_check
    _
  $region19: #{forward.42} parent=0 // pred_check_branch
    %294 = sbr.rel (0) target = $region21
  $region20: #{forward.42} parent=0 // pred_region
    _
  $region21: #{forward.42} parent=0 // pred_fallthru
    _
  // Predicated region
  $region22: #{forward.42} parent=0 // pred_check
    _
  $region23: #{forward.42} parent=0 // pred_check_branch
    %296 = sbr.rel (0) target = $region25
  $region24: #{forward.42} parent=0 // pred_region
    _
  $region25: #{forward.42} parent=0 // pred_fallthru
    _

// kernel: forward.40
$region0: #{forward.40}
  #allocation0 [shape = 'u32[]', space=smem, size = 0x4, offset = 0x4, fixed_abs, tag = 'smem constant byte address 0x4 - core index']
  #allocation1 [shape = 'u32[72,128]{1,0:T(1,128)}', space=vmem, size = 0x9000, scoped, tag = 'internal scratch']
  %s0 = inlined_call_operand.vmem [shape: bf16[32,16], index: 0, kind: input, shape index: {}]
  %s1 = inlined_call_operand.vmem [shape: bf16[16,32], index: 1, kind: input, shape index: {}]
  %s2 = inlined_call_operand.vmem [shape: f32[1,32], index: 2, kind: input, shape index: {}]
  %s3 = inlined_call_operand.vmem [shape: bf16[32,32], index: 3, kind: output, shape index: {}]
  %s4 = sld [smem:[#allocation0]]
  $region22: #{forward.40} parent=0
    _
  %s6 = ssub.s32 1, %s4
  %s7 = scalar_select 0, %s6, %s4
  // Predicated region
  $region2: #{forward.40} parent=0 // pred_check
    _
  $region3: #{forward.40} parent=0 // pred_check_branch
    %9 = sbr.rel (0) target = $region5
  $region4: #{forward.40} parent=0 // pred_region
    _
  $region5: #{forward.40} parent=0 // pred_fallthru
    _
  // Predicated region
  $region6: #{forward.40} parent=0 // pred_check
    _
  $region7: #{forward.40} parent=0 // pred_check_branch
    %11 = sbr.rel (0) target = $region9
  $region8: #{forward.40} parent=0 // pred_region
    _
  $region9: #{forward.40} parent=0 // pred_fallthru
    _
  // Predicated region
  $region10: #{forward.40} parent=0 // pred_check
    _
  $region11: #{forward.40} parent=0 // pred_check_branch
    %13 = sbr.rel (0) target = $region13
  $region12: #{forward.40} parent=0 // pred_region
    _
  $region13: #{forward.40} parent=0 // pred_fallthru
    _
  %v15 = vld [vmem:[%s0] sm:$0xf]
  %v16 = vld [vmem:[%s0 + $0x4] sm:$0xf]
  %v17 = vld [vmem:[%s0 + $0x8] sm:$0xf]
  %v18 = vld [vmem:[%s0 + $0xc] sm:$0xf]
  %v19 = vld [vmem:[%s1] sm:$0xf]
  %v20 = vld [vmem:[%s1 + $0x4] sm:$0xf]
  %v21 = vld [vmem:[%s2] sm:$0x1]
  %v23 = vperm.slane %v21, 0
  %v29 = vunpack.c.l.b16 %v15
  %v30 = vunpack.c.l.b16 %v16
  %v31 = vunpack.c.l.b16 %v17
  %v32 = vunpack.c.l.b16 %v18
  %v33 = vpack.c.b16 %v30, %v29
  %v34 = vpack.c.b16 %v32, %v31
  %v37 = vunpack.c.l.b16 %v19
  %v38 = vunpack.c.l.b16 %v20
  %v39 = vpack.c.b16 %v38, %v37
  %vm41 = vcmask 130048
  %v43 = vsel %vm41, %v33, 0
  %v46 = vsel %vm41, %v34, 0
  %48 = vmatpush.bf16.msra.mxu0 0
  %49 = vmatpush.bf16.msra.mxu0 0
  %50 = vmatpush.bf16.msra.mxu0 0
  %51 = vmatpush.bf16.msra.mxu0 0
  %52 = vmatpush.bf16.msra.mxu0 0
  %53 = vmatpush.bf16.msra.mxu0 0
  %54 = vmatpush.bf16.msra.mxu0 0
  %55 = vmatpush.bf16.msra.mxu0 %v39
  %56 = vmatmul.bf16.gmra.mxu0 %v43
  %v57 = vpop.f32.mrf.mxu0
  %v58 = vadd.f32 %v23, %v57
  %v59 = vpop.f32.mrf.mxu0
  %v60 = vadd.f32 %v23, %v59
  %61 = vmatmul.bf16.gmra.mxu0 %v46
  %v62 = vpop.f32.mrf.mxu0
  %v63 = vadd.f32 %v23, %v62
  %v64 = vpop.f32.mrf.mxu0
  %v65 = vadd.f32 %v23, %v64
  %66 = vdwg.mxu0
  %v67 = vpack.c.bf16 %v58, %v58
  %v68 = vpack.c.bf16 %v60, %v60
  %v69 = vpack.c.bf16 %v63, %v63
  %v70 = vpack.c.bf16 %v65, %v65
  %vm71 = vcmask 257024
  %72 = vst.msk [vmem:[%s3] sm:$0xf] %vm71, %v67
  %73 = vst.msk [vmem:[%s3 + $0x4] sm:$0xf] %vm71, %v68
  %74 = vst.msk [vmem:[%s3 + $0x8] sm:$0xf] %vm71, %v69
  %75 = vst.msk [vmem:[%s3 + $0xc] sm:$0xf] %vm71, %v70
  // Predicated region
  $region14: #{forward.40} parent=0 // pred_check
    _
  $region15: #{forward.40} parent=0 // pred_check_branch
    %77 = sbr.rel (0) target = $region17
  $region16: #{forward.40} parent=0 // pred_region
    _
  $region17: #{forward.40} parent=0 // pred_fallthru
    _
  // Predicated region
  $region18: #{forward.40} parent=0 // pred_check
    _
  $region19: #{forward.40} parent=0 // pred_check_branch
    %79 = sbr.rel (0) target = $region21
  $region20: #{forward.40} parent=0 // pred_region
    _
  $region21: #{forward.40} parent=0 // pred_fallthru
    _

// kernel: forward.43
$region0: #{forward.43}
  #allocation0 [shape = 'u32[]', space=smem, size = 0x4, offset = 0x4, fixed_abs, tag = 'smem constant byte address 0x4 - core index']
  #allocation1 [shape = 'u32[72,128]{1,0:T(1,128)}', space=vmem, size = 0x9000, scoped, tag = 'internal scratch']
  %s0 = inlined_call_operand.vmem [shape: bf16[32,288], index: 0, kind: input, shape index: {}]
  %s1 = inlined_call_operand.vmem [shape: bf16[288,32], index: 1, kind: input, shape index: {}]
  %s2 = inlined_call_operand.vmem [shape: f32[1,32], index: 2, kind: input, shape index: {}]
  %s3 = inlined_call_operand.vmem [shape: bf16[32,32], index: 3, kind: output, shape index: {}]
  %s4 = sld [smem:[#allocation0]]
  $region22: #{forward.43} parent=0
    _
  %s6 = ssub.s32 1, %s4
  %s7 = scalar_select 0, %s6, %s4
  // Predicated region
  $region2: #{forward.43} parent=0 // pred_check
    _
  $region3: #{forward.43} parent=0 // pred_check_branch
    %9 = sbr.rel (0) target = $region5
  $region4: #{forward.43} parent=0 // pred_region
    _
  $region5: #{forward.43} parent=0 // pred_fallthru
    _
  // Predicated region
  $region6: #{forward.43} parent=0 // pred_check
    _
  $region7: #{forward.43} parent=0 // pred_check_branch
    %11 = sbr.rel (0) target = $region9
  $region8: #{forward.43} parent=0 // pred_region
    _
  $region9: #{forward.43} parent=0 // pred_fallthru
    _
  // Predicated region
  $region10: #{forward.43} parent=0 // pred_check
    _
  $region11: #{forward.43} parent=0 // pred_check_branch
    %13 = sbr.rel (0) target = $region13
  $region12: #{forward.43} parent=0 // pred_region
    _
  $region13: #{forward.43} parent=0 // pred_fallthru
    _
  %v15 = vld [vmem:[%s0] sm:$0xff]
  %v16 = vld [vmem:[%s0 + $0x8] sm:$0xf]
  %v17 = vld [vmem:[%s0 + $0xc] sm:$0xff]
  %v18 = vld [vmem:[%s0 + $0x14] sm:$0xf]
  %v19 = vld [vmem:[%s0 + $0x18] sm:$0xff]
  %v20 = vld [vmem:[%s0 + $0x20] sm:$0xf]
  %v21 = vld [vmem:[%s0 + $0x24] sm:$0xff]
  %v22 = vld [vmem:[%s0 + $0x2c] sm:$0xf]
  %v23 = vld [vmem:[%s1] sm:$0xf]
  %v24 = vld [vmem:[%s1 + $0x4] sm:$0xf]
  %v25 = vld [vmem:[%s1 + $0x8] sm:$0xf]
  %v26 = vld [vmem:[%s1 + $0xc] sm:$0xf]
  %v27 = vld [vmem:[%s1 + $0x10] sm:$0xf]
  %v28 = vld [vmem:[%s1 + $0x14] sm:$0xf]
  %v29 = vld [vmem:[%s1 + $0x18] sm:$0xf]
  %v30 = vld [vmem:[%s1 + $0x1c] sm:$0xf]
  %v31 = vld [vmem:[%s1 + $0x20] sm:$0xf]
  %v32 = vld [vmem:[%s1 + $0x24] sm:$0xf]
  %v33 = vld [vmem:[%s1 + $0x28] sm:$0xf]
  %v34 = vld [vmem:[%s1 + $0x2c] sm:$0xf]
  %v35 = vld [vmem:[%s1 + $0x30] sm:$0xf]
  %v36 = vld [vmem:[%s1 + $0x34] sm:$0xf]
  %v37 = vld [vmem:[%s1 + $0x38] sm:$0xf]
  %v38 = vld [vmem:[%s1 + $0x3c] sm:$0xf]
  %v39 = vld [vmem:[%s1 + $0x40] sm:$0xf]
  %v40 = vld [vmem:[%s1 + $0x44] sm:$0xf]
  %v41 = vld [vmem:[%s1 + $0x48] sm:$0xf]
  %v42 = vld [vmem:[%s1 + $0x4c] sm:$0xf]
  %v43 = vld [vmem:[%s1 + $0x50] sm:$0xf]
  %v44 = vld [vmem:[%s1 + $0x54] sm:$0xf]
  %v45 = vld [vmem:[%s1 + $0x58] sm:$0xf]
  %v46 = vld [vmem:[%s1 + $0x5c] sm:$0xf]
  %v47 = vld [vmem:[%s1 + $0x60] sm:$0xf]
  %v48 = vld [vmem:[%s1 + $0x64] sm:$0xf]
  %v49 = vld [vmem:[%s1 + $0x68] sm:$0xf]
  %v50 = vld [vmem:[%s1 + $0x6c] sm:$0xf]
  %v51 = vld [vmem:[%s1 + $0x70] sm:$0xf]
  %v52 = vld [vmem:[%s1 + $0x74] sm:$0xf]
  %v53 = vld [vmem:[%s1 + $0x78] sm:$0xf]
  %v54 = vld [vmem:[%s1 + $0x7c] sm:$0xf]
  %v55 = vld [vmem:[%s1 + $0x80] sm:$0xf]
  %v56 = vld [vmem:[%s1 + $0x84] sm:$0xf]
  %v57 = vld [vmem:[%s1 + $0x88] sm:$0xf]
  %v58 = vld [vmem:[%s1 + $0x8c] sm:$0xf]
  %v59 = vld [vmem:[%s2] sm:$0x1]
  %v61 = vperm.slane %v59, 0
  %v71 = vunpack.c.l.b16 %v15
  %v72 = vunpack.c.h.b16 %v15
  %v73 = vunpack.c.l.b16 %v16
  %v74 = vunpack.c.l.b16 %v17
  %v75 = vunpack.c.h.b16 %v17
  %v76 = vunpack.c.l.b16 %v18
  %v77 = vunpack.c.l.b16 %v19
  %v78 = vunpack.c.h.b16 %v19
  %v79 = vunpack.c.l.b16 %v20
  %v80 = vunpack.c.l.b16 %v21
  %v81 = vunpack.c.h.b16 %v21
  %v82 = vunpack.c.l.b16 %v22
  %v83 = vpack.c.b16 %v74, %v71
  %v84 = vpack.c.b16 %v75, %v72
  %v85 = vpack.c.b16 %v76, %v73
  %v86 = vpack.c.b16 %v80, %v77
  %v87 = vpack.c.b16 %v81, %v78
  %v88 = vpack.c.b16 %v82, %v79
  %v129 = vunpack.c.l.b16 %v23
  %v130 = vunpack.c.l.b16 %v24
  %v131 = vunpack.c.l.b16 %v25
  %v132 = vunpack.c.l.b16 %v26
  %v133 = vunpack.c.l.b16 %v27
  %v134 = vunpack.c.l.b16 %v28
  %v135 = vunpack.c.l.b16 %v29
  %v136 = vunpack.c.l.b16 %v30
  %v137 = vunpack.c.l.b16 %v31
  %v138 = vunpack.c.l.b16 %v32
  %v139 = vunpack.c.l.b16 %v33
  %v140 = vunpack.c.l.b16 %v34
  %v141 = vunpack.c.l.b16 %v35
  %v142 = vunpack.c.l.b16 %v36
  %v143 = vunpack.c.l.b16 %v37
  %v144 = vunpack.c.l.b16 %v38
  %v145 = vunpack.c.l.b16 %v39
  %v146 = vunpack.c.l.b16 %v40
  %v147 = vunpack.c.l.b16 %v41
  %v148 = vunpack.c.l.b16 %v42
  %v149 = vunpack.c.l.b16 %v43
  %v150 = vunpack.c.l.b16 %v44
  %v151 = vunpack.c.l.b16 %v45
  %v152 = vunpack.c.l.b16 %v46
  %v153 = vunpack.c.l.b16 %v47
  %v154 = vunpack.c.l.b16 %v48
  %v155 = vunpack.c.l.b16 %v49
  %v156 = vunpack.c.l.b16 %v50
  %v157 = vunpack.c.l.b16 %v51
  %v158 = vunpack.c.l.b16 %v52
  %v159 = vunpack.c.l.b16 %v53
  %v160 = vunpack.c.l.b16 %v54
  %v161 = vunpack.c.l.b16 %v55
  %v162 = vunpack.c.l.b16 %v56
  %v163 = vunpack.c.l.b16 %v57
  %v164 = vunpack.c.l.b16 %v58
  %v165 = vpack.c.b16 %v130, %v129
  %v166 = vpack.c.b16 %v132, %v131
  %v167 = vpack.c.b16 %v134, %v133
  %v168 = vpack.c.b16 %v136, %v135
  %v169 = vpack.c.b16 %v138, %v137
  %v170 = vpack.c.b16 %v140, %v139
  %v171 = vpack.c.b16 %v142, %v141
  %v172 = vpack.c.b16 %v144, %v143
  %v173 = vpack.c.b16 %v146, %v145
  %v174 = vpack.c.b16 %v148, %v147
  %v175 = vpack.c.b16 %v150, %v149
  %v176 = vpack.c.b16 %v152, %v151
  %v177 = vpack.c.b16 %v154, %v153
  %v178 = vpack.c.b16 %v156, %v155
  %v179 = vpack.c.b16 %v158, %v157
  %v180 = vpack.c.b16 %v160, %v159
  %v181 = vpack.c.b16 %v162, %v161
  %v182 = vpack.c.b16 %v164, %v163
  %vm201 = vcmask 261120
  %v203 = vsel %vm201, %v85, 0
  %v206 = vsel %vm201, %v88, 0
  %208 = vmatpush.bf16.msra.mxu0 %v172
  %209 = vmatpush.bf16.msra.mxu0 %v171
  %210 = vmatpush.bf16.msra.mxu0 %v170
  %211 = vmatpush.bf16.msra.mxu0 %v169
  %212 = vmatpush.bf16.msra.mxu0 %v168
  %213 = vmatpush.bf16.msra.mxu0 %v167
  %214 = vmatpush.bf16.msra.mxu0 %v166
  %215 = vmatpush.bf16.msra.mxu0 %v165
  %216 = vmatmul.bf16.gmra.mxu0 %v83
  %v217 = vpop.f32.mrf.mxu0
  %v218 = vadd.f32 %v61, %v217
  %v219 = vpop.f32.mrf.mxu0
  %v220 = vadd.f32 %v61, %v219
  %221 = vmatmul.bf16.gmra.mxu0 %v86
  %v222 = vpop.f32.mrf.mxu0
  %v223 = vadd.f32 %v61, %v222
  %v224 = vpop.f32.mrf.mxu0
  %v225 = vadd.f32 %v61, %v224
  %226 = vdwg.mxu0
  %227 = vmatpush.bf16.msra.mxu0 %v180
  %228 = vmatpush.bf16.msra.mxu0 %v179
  %229 = vmatpush.bf16.msra.mxu0 %v178
  %230 = vmatpush.bf16.msra.mxu0 %v177
  %231 = vmatpush.bf16.msra.mxu0 %v176
  %232 = vmatpush.bf16.msra.mxu0 %v175
  %233 = vmatpush.bf16.msra.mxu0 %v174
  %234 = vmatpush.bf16.msra.mxu0 %v173
  %235 = vmatmul.bf16.gmra.mxu0 %v84
  %v236 = vpop.f32.mrf.mxu0
  %v237 = vadd.f32 %v218, %v236
  %v238 = vpop.f32.mrf.mxu0
  %v239 = vadd.f32 %v220, %v238
  %240 = vmatmul.bf16.gmra.mxu0 %v87
  %v241 = vpop.f32.mrf.mxu0
  %v242 = vadd.f32 %v223, %v241
  %v243 = vpop.f32.mrf.mxu0
  %v244 = vadd.f32 %v225, %v243
  %245 = vdwg.mxu0
  %246 = vmatpush.bf16.msra.mxu0 0
  %247 = vmatpush.bf16.msra.mxu0 0
  %248 = vmatpush.bf16.msra.mxu0 0
  %249 = vmatpush.bf16.msra.mxu0 0
  %250 = vmatpush.bf16.msra.mxu0 0
  %251 = vmatpush.bf16.msra.mxu0 0
  %252 = vmatpush.bf16.msra.mxu0 %v182
  %253 = vmatpush.bf16.msra.mxu0 %v181
  %254 = vmatmul.bf16.gmra.mxu0 %v203
  %v255 = vpop.f32.mrf.mxu0
  %v256 = vadd.f32 %v237, %v255
  %v257 = vpop.f32.mrf.mxu0
  %v258 = vadd.f32 %v239, %v257
  %259 = vmatmul.bf16.gmra.mxu0 %v206
  %v260 = vpop.f32.mrf.mxu0
  %v261 = vadd.f32 %v242, %v260
  %v262 = vpop.f32.mrf.mxu0
  %v263 = vadd.f32 %v244, %v262
  %264 = vdwg.mxu0
  %v265 = vmax.f32 %v256, 0.0
  %v266 = vmax.f32 %v258, 0.0
  %v267 = vmax.f32 %v261, 0.0
  %v268 = vmax.f32 %v263, 0.0
  %v269 = vpack.c.bf16 %v265, %v265
  %v270 = vpack.c.bf16 %v266, %v266
  %v271 = vpack.c.bf16 %v267, %v267
  %v272 = vpack.c.bf16 %v268, %v268
  %vm273 = vcmask 257024
  %274 = vst.msk [vmem:[%s3] sm:$0xf] %vm273, %v269
  %275 = vst.msk [vmem:[%s3 + $0x4] sm:$0xf] %vm273, %v270
  %276 = vst.msk [vmem:[%s3 + $0x8] sm:$0xf] %vm273, %v271
  %277 = vst.msk [vmem:[%s3 + $0xc] sm:$0xf] %vm273, %v272
  // Predicated region
  $region14: #{forward.43} parent=0 // pred_check
    _
  $region15: #{forward.43} parent=0 // pred_check_branch
    %279 = sbr.rel (0) target = $region17
  $region16: #{forward.43} parent=0 // pred_region
    _
  $region17: #{forward.43} parent=0 // pred_fallthru
    _
  // Predicated region
  $region18: #{forward.43} parent=0 // pred_check
    _
  $region19: #{forward.43} parent=0 // pred_check_branch
    %281 = sbr.rel (0) target = $region21
  $region20: #{forward.43} parent=0 // pred_region
    _
  $region21: #{forward.43} parent=0 // pred_fallthru
    _

// kernel: forward.46
$region0: #{forward.46}
  #allocation0 [shape = 'u32[]', space=smem, size = 0x4, offset = 0x4, fixed_abs, tag = 'smem constant byte address 0x4 - core index']
  #allocation1 [shape = 'u32[72,128]{1,0:T(1,128)}', space=vmem, size = 0x9000, scoped, tag = 'internal scratch']
  %s0 = inlined_call_operand.vmem [shape: bf16[8,288], index: 0, kind: input, shape index: {}]
  %s1 = inlined_call_operand.vmem [shape: bf16[288,64], index: 1, kind: input, shape index: {}]
  %s2 = inlined_call_operand.vmem [shape: f32[1,64], index: 2, kind: input, shape index: {}]
  %s3 = inlined_call_operand.vmem [shape: bf16[8,64], index: 3, kind: output, shape index: {}]
  %s4 = sld [smem:[#allocation0]]
  $region22: #{forward.46} parent=0
    _
  %s6 = ssub.s32 1, %s4
  %s7 = scalar_select 0, %s6, %s4
  // Predicated region
  $region2: #{forward.46} parent=0 // pred_check
    _
  $region3: #{forward.46} parent=0 // pred_check_branch
    %9 = sbr.rel (0) target = $region5
  $region4: #{forward.46} parent=0 // pred_region
    _
  $region5: #{forward.46} parent=0 // pred_fallthru
    _
  // Predicated region
  $region6: #{forward.46} parent=0 // pred_check
    _
  $region7: #{forward.46} parent=0 // pred_check_branch
    %11 = sbr.rel (0) target = $region9
  $region8: #{forward.46} parent=0 // pred_region
    _
  $region9: #{forward.46} parent=0 // pred_fallthru
    _
  // Predicated region
  $region10: #{forward.46} parent=0 // pred_check
    _
  $region11: #{forward.46} parent=0 // pred_check_branch
    %13 = sbr.rel (0) target = $region13
  $region12: #{forward.46} parent=0 // pred_region
    _
  $region13: #{forward.46} parent=0 // pred_fallthru
    _
  %v15 = vld [vmem:[%s0] sm:$0xff]
  %v16 = vld [vmem:[%s0 + $0x8] sm:$0xf]
  %v17 = vld [vmem:[%s1] sm:$0xf]
  %v18 = vld [vmem:[%s1 + $0x4] sm:$0xf]
  %v19 = vld [vmem:[%s1 + $0x8] sm:$0xf]
  %v20 = vld [vmem:[%s1 + $0xc] sm:$0xf]
  %v21 = vld [vmem:[%s1 + $0x10] sm:$0xf]
  %v22 = vld [vmem:[%s1 + $0x14] sm:$0xf]
  %v23 = vld [vmem:[%s1 + $0x18] sm:$0xf]
  %v24 = vld [vmem:[%s1 + $0x1c] sm:$0xf]
  %v25 = vld [vmem:[%s1 + $0x20] sm:$0xf]
  %v26 = vld [vmem:[%s1 + $0x24] sm:$0xf]
  %v27 = vld [vmem:[%s1 + $0x28] sm:$0xf]
  %v28 = vld [vmem:[%s1 + $0x2c] sm:$0xf]
  %v29 = vld [vmem:[%s1 + $0x30] sm:$0xf]
  %v30 = vld [vmem:[%s1 + $0x34] sm:$0xf]
  %v31 = vld [vmem:[%s1 + $0x38] sm:$0xf]
  %v32 = vld [vmem:[%s1 + $0x3c] sm:$0xf]
  %v33 = vld [vmem:[%s1 + $0x40] sm:$0xf]
  %v34 = vld [vmem:[%s1 + $0x44] sm:$0xf]
  %v35 = vld [vmem:[%s1 + $0x48] sm:$0xf]
  %v36 = vld [vmem:[%s1 + $0x4c] sm:$0xf]
  %v37 = vld [vmem:[%s1 + $0x50] sm:$0xf]
  %v38 = vld [vmem:[%s1 + $0x54] sm:$0xf]
  %v39 = vld [vmem:[%s1 + $0x58] sm:$0xf]
  %v40 = vld [vmem:[%s1 + $0x5c] sm:$0xf]
  %v41 = vld [vmem:[%s1 + $0x60] sm:$0xf]
  %v42 = vld [vmem:[%s1 + $0x64] sm:$0xf]
  %v43 = vld [vmem:[%s1 + $0x68] sm:$0xf]
  %v44 = vld [vmem:[%s1 + $0x6c] sm:$0xf]
  %v45 = vld [vmem:[%s1 + $0x70] sm:$0xf]
  %v46 = vld [vmem:[%s1 + $0x74] sm:$0xf]
  %v47 = vld [vmem:[%s1 + $0x78] sm:$0xf]
  %v48 = vld [vmem:[%s1 + $0x7c] sm:$0xf]
  %v49 = vld [vmem:[%s1 + $0x80] sm:$0xf]
  %v50 = vld [vmem:[%s1 + $0x84] sm:$0xf]
  %v51 = vld [vmem:[%s1 + $0x88] sm:$0xf]
  %v52 = vld [vmem:[%s1 + $0x8c] sm:$0xf]
  %v53 = vld [vmem:[%s2] sm:$0x1]
  %v55 = vperm.slane %v53, 0
  %v59 = vunpack.c.l.b16 %v15
  %v60 = vunpack.c.h.b16 %v15
  %v61 = vunpack.c.l.b16 %v16
  %v62 = vpack.c.b16 %v59, %v59
  %v63 = vpack.c.b16 %v60, %v60
  %v64 = vpack.c.b16 %v61, %v61
  %v103 = vunpack.c.l.b16 %v17
  %v104 = vunpack.c.l.b16 %v18
  %v105 = vunpack.c.l.b16 %v19
  %v106 = vunpack.c.l.b16 %v20
  %v107 = vunpack.c.l.b16 %v21
  %v108 = vunpack.c.l.b16 %v22
  %v109 = vunpack.c.l.b16 %v23
  %v110 = vunpack.c.l.b16 %v24
  %v111 = vunpack.c.l.b16 %v25
  %v112 = vunpack.c.l.b16 %v26
  %v113 = vunpack.c.l.b16 %v27
  %v114 = vunpack.c.l.b16 %v28
  %v115 = vunpack.c.l.b16 %v29
  %v116 = vunpack.c.l.b16 %v30
  %v117 = vunpack.c.l.b16 %v31
  %v118 = vunpack.c.l.b16 %v32
  %v119 = vunpack.c.l.b16 %v33
  %v120 = vunpack.c.l.b16 %v34
  %v121 = vunpack.c.l.b16 %v35
  %v122 = vunpack.c.l.b16 %v36
  %v123 = vunpack.c.l.b16 %v37
  %v124 = vunpack.c.l.b16 %v38
  %v125 = vunpack.c.l.b16 %v39
  %v126 = vunpack.c.l.b16 %v40
  %v127 = vunpack.c.l.b16 %v41
  %v128 = vunpack.c.l.b16 %v42
  %v129 = vunpack.c.l.b16 %v43
  %v130 = vunpack.c.l.b16 %v44
  %v131 = vunpack.c.l.b16 %v45
  %v132 = vunpack.c.l.b16 %v46
  %v133 = vunpack.c.l.b16 %v47
  %v134 = vunpack.c.l.b16 %v48
  %v135 = vunpack.c.l.b16 %v49
  %v136 = vunpack.c.l.b16 %v50
  %v137 = vunpack.c.l.b16 %v51
  %v138 = vunpack.c.l.b16 %v52
  %v139 = vpack.c.b16 %v104, %v103
  %v140 = vpack.c.b16 %v106, %v105
  %v141 = vpack.c.b16 %v108, %v107
  %v142 = vpack.c.b16 %v110, %v109
  %v143 = vpack.c.b16 %v112, %v111
  %v144 = vpack.c.b16 %v114, %v113
  %v145 = vpack.c.b16 %v116, %v115
  %v146 = vpack.c.b16 %v118, %v117
  %v147 = vpack.c.b16 %v120, %v119
  %v148 = vpack.c.b16 %v122, %v121
  %v149 = vpack.c.b16 %v124, %v123
  %v150 = vpack.c.b16 %v126, %v125
  %v151 = vpack.c.b16 %v128, %v127
  %v152 = vpack.c.b16 %v130, %v129
  %v153 = vpack.c.b16 %v132, %v131
  %v154 = vpack.c.b16 %v134, %v133
  %v155 = vpack.c.b16 %v136, %v135
  %v156 = vpack.c.b16 %v138, %v137
  %vm175 = vcmask 261120
  %v177 = vsel %vm175, %v64, 0
  %179 = vmatpush.bf16.msra.mxu0 %v146
  %180 = vmatpush.bf16.msra.mxu0 %v145
  %181 = vmatpush.bf16.msra.mxu0 %v144
  %182 = vmatpush.bf16.msra.mxu0 %v143
  %183 = vmatpush.bf16.msra.mxu0 %v142
  %184 = vmatpush.bf16.msra.mxu0 %v141
  %185 = vmatpush.bf16.msra.mxu0 %v140
  %186 = vmatpush.bf16.msra.mxu0 %v139
  %187 = vmatmul.bf16.gmra.mxu0 %v62
  %v188 = vpop.f32.mrf.mxu0
  %v189 = vadd.f32 %v55, %v188
  %v190 = vpop.f32.mrf.mxu0
  %191 = vdwg.mxu0
  %192 = vmatpush.bf16.msra.mxu0 %v154
  %193 = vmatpush.bf16.msra.mxu0 %v153
  %194 = vmatpush.bf16.msra.mxu0 %v152
  %195 = vmatpush.bf16.msra.mxu0 %v151
  %196 = vmatpush.bf16.msra.mxu0 %v150
  %197 = vmatpush.bf16.msra.mxu0 %v149
  %198 = vmatpush.bf16.msra.mxu0 %v148
  %199 = vmatpush.bf16.msra.mxu0 %v147
  %200 = vmatmul.bf16.gmra.mxu0 %v63
  %v201 = vpop.f32.mrf.mxu0
  %v202 = vadd.f32 %v189, %v201
  %v203 = vpop.f32.mrf.mxu0
  %204 = vdwg.mxu0
  %205 = vmatpush.bf16.msra.mxu0 0
  %206 = vmatpush.bf16.msra.mxu0 0
  %207 = vmatpush.bf16.msra.mxu0 0
  %208 = vmatpush.bf16.msra.mxu0 0
  %209 = vmatpush.bf16.msra.mxu0 0
  %210 = vmatpush.bf16.msra.mxu0 0
  %211 = vmatpush.bf16.msra.mxu0 %v156
  %212 = vmatpush.bf16.msra.mxu0 %v155
  %213 = vmatmul.bf16.gmra.mxu0 %v177
  %v214 = vpop.f32.mrf.mxu0
  %v215 = vadd.f32 %v202, %v214
  %v216 = vpop.f32.mrf.mxu0
  %217 = vdwg.mxu0
  %v218 = vmax.f32 %v215, 0.0
  %v219 = vpack.c.bf16 %v218, %v218
  %vm220 = vcmask 519168
  %221 = vst.msk [vmem:[%s3] sm:$0xf] %vm220, %v219
  // Predicated region
  $region14: #{forward.46} parent=0 // pred_check
    _
  $region15: #{forward.46} parent=0 // pred_check_branch
    %223 = sbr.rel (0) target = $region17
  $region16: #{forward.46} parent=0 // pred_region
    _
  $region17: #{forward.46} parent=0 // pred_fallthru
    _
  // Predicated region
  $region18: #{forward.46} parent=0 // pred_check
    _
  $region19: #{forward.46} parent=0 // pred_check_branch
    %225 = sbr.rel (0) target = $region21
  $region20: #{forward.46} parent=0 // pred_region
    _
  $region21: #{forward.46} parent=0 // pred_fallthru
    _

// kernel: forward.45
$region0: #{forward.45}
  #allocation0 [shape = 'u32[]', space=smem, size = 0x4, offset = 0x4, fixed_abs, tag = 'smem constant byte address 0x4 - core index']
  #allocation1 [shape = 'u32[72,128]{1,0:T(1,128)}', space=vmem, size = 0x9000, scoped, tag = 'internal scratch']
  %s0 = inlined_call_operand.vmem [shape: bf16[8,32], index: 0, kind: input, shape index: {}]
  %s1 = inlined_call_operand.vmem [shape: bf16[32,64], index: 1, kind: input, shape index: {}]
  %s2 = inlined_call_operand.vmem [shape: f32[1,64], index: 2, kind: input, shape index: {}]
  %s3 = inlined_call_operand.vmem [shape: bf16[8,64], index: 3, kind: output, shape index: {}]
  %s4 = sld [smem:[#allocation0]]
  $region22: #{forward.45} parent=0
    _
  %s6 = ssub.s32 1, %s4
  %s7 = scalar_select 0, %s6, %s4
  // Predicated region
  $region2: #{forward.45} parent=0 // pred_check
    _
  $region3: #{forward.45} parent=0 // pred_check_branch
    %9 = sbr.rel (0) target = $region5
  $region4: #{forward.45} parent=0 // pred_region
    _
  $region5: #{forward.45} parent=0 // pred_fallthru
    _
  // Predicated region
  $region6: #{forward.45} parent=0 // pred_check
    _
  $region7: #{forward.45} parent=0 // pred_check_branch
    %11 = sbr.rel (0) target = $region9
  $region8: #{forward.45} parent=0 // pred_region
    _
  $region9: #{forward.45} parent=0 // pred_fallthru
    _
  // Predicated region
  $region10: #{forward.45} parent=0 // pred_check
    _
  $region11: #{forward.45} parent=0 // pred_check_branch
    %13 = sbr.rel (0) target = $region13
  $region12: #{forward.45} parent=0 // pred_region
    _
  $region13: #{forward.45} parent=0 // pred_fallthru
    _
  %v15 = vld [vmem:[%s0] sm:$0xf]
  %v16 = vld [vmem:[%s1] sm:$0xf]
  %v17 = vld [vmem:[%s1 + $0x4] sm:$0xf]
  %v18 = vld [vmem:[%s1 + $0x8] sm:$0xf]
  %v19 = vld [vmem:[%s1 + $0xc] sm:$0xf]
  %v20 = vld [vmem:[%s2] sm:$0x1]
  %v22 = vperm.slane %v20, 0
  %v28 = vunpack.c.l.b16 %v16
  %v29 = vunpack.c.l.b16 %v17
  %v30 = vunpack.c.l.b16 %v18
  %v31 = vunpack.c.l.b16 %v19
  %v32 = vpack.c.b16 %v29, %v28
  %v33 = vpack.c.b16 %v31, %v30
  %vm36 = vcmask 261120
  %v38 = vsel %vm36, %v15, 0
  %40 = vmatpush.bf16.msra.mxu0 0
  %41 = vmatpush.bf16.msra.mxu0 0
  %42 = vmatpush.bf16.msra.mxu0 0
  %43 = vmatpush.bf16.msra.mxu0 0
  %44 = vmatpush.bf16.msra.mxu0 0
  %45 = vmatpush.bf16.msra.mxu0 0
  %46 = vmatpush.bf16.msra.mxu0 %v33
  %47 = vmatpush.bf16.msra.mxu0 %v32
  %48 = vmatmul.bf16.gmra.mxu0 %v38
  %v49 = vpop.f32.mrf.mxu0
  %v50 = vadd.f32 %v22, %v49
  %v51 = vpop.f32.mrf.mxu0
  %52 = vdwg.mxu0
  %v53 = vpack.c.bf16 %v50, %v50
  %vm54 = vcmask 519168
  %55 = vst.msk [vmem:[%s3] sm:$0xf] %vm54, %v53
  // Predicated region
  $region14: #{forward.45} parent=0 // pred_check
    _
  $region15: #{forward.45} parent=0 // pred_check_branch
    %57 = sbr.rel (0) target = $region17
  $region16: #{forward.45} parent=0 // pred_region
    _
  $region17: #{forward.45} parent=0 // pred_fallthru
    _
  // Predicated region
  $region18: #{forward.45} parent=0 // pred_check
    _
  $region19: #{forward.45} parent=0 // pred_check_branch
    %59 = sbr.rel (0) target = $region21
  $region20: #{forward.45} parent=0 // pred_region
    _
  $region21: #{forward.45} parent=0 // pred_fallthru
    _

// kernel: forward.47
$region0: #{forward.47}
  #allocation0 [shape = 'u32[]', space=smem, size = 0x4, offset = 0x4, fixed_abs, tag = 'smem constant byte address 0x4 - core index']
  #allocation1 [shape = 'u32[72,128]{1,0:T(1,128)}', space=vmem, size = 0x9000, scoped, tag = 'internal scratch']
  %s0 = inlined_call_operand.vmem [shape: bf16[8,576], index: 0, kind: input, shape index: {}]
  %s1 = inlined_call_operand.vmem [shape: bf16[576,64], index: 1, kind: input, shape index: {}]
  %s2 = inlined_call_operand.vmem [shape: f32[1,64], index: 2, kind: input, shape index: {}]
  %s3 = inlined_call_operand.vmem [shape: bf16[8,64], index: 3, kind: input, shape index: {}]
  %s4 = inlined_call_operand.vmem [shape: bf16[8,64], index: 4, kind: output, shape index: {}]
  %s5 = sld [smem:[#allocation0]]
  $region26: #{forward.47} parent=0
    _
  %s7 = ssub.s32 1, %s5
  %s8 = scalar_select 0, %s7, %s5
  // Predicated region
  $region2: #{forward.47} parent=0 // pred_check
    _
  $region3: #{forward.47} parent=0 // pred_check_branch
    %10 = sbr.rel (0) target = $region5
  $region4: #{forward.47} parent=0 // pred_region
    _
  $region5: #{forward.47} parent=0 // pred_fallthru
    _
  // Predicated region
  $region6: #{forward.47} parent=0 // pred_check
    _
  $region7: #{forward.47} parent=0 // pred_check_branch
    %12 = sbr.rel (0) target = $region9
  $region8: #{forward.47} parent=0 // pred_region
    _
  $region9: #{forward.47} parent=0 // pred_fallthru
    _
  // Predicated region
  $region10: #{forward.47} parent=0 // pred_check
    _
  $region11: #{forward.47} parent=0 // pred_check_branch
    %14 = sbr.rel (0) target = $region13
  $region12: #{forward.47} parent=0 // pred_region
    _
  $region13: #{forward.47} parent=0 // pred_fallthru
    _
  // Predicated region
  $region14: #{forward.47} parent=0 // pred_check
    _
  $region15: #{forward.47} parent=0 // pred_check_branch
    %16 = sbr.rel (0) target = $region17
  $region16: #{forward.47} parent=0 // pred_region
    _
  $region17: #{forward.47} parent=0 // pred_fallthru
    _
  %v18 = vld [vmem:[%s0] sm:$0xff]
  %v19 = vld [vmem:[%s0 + $0x8] sm:$0xff]
  %v20 = vld [vmem:[%s0 + $0x10] sm:$0xf]
  %v21 = vld [vmem:[%s1] sm:$0xf]
  %v22 = vld [vmem:[%s1 + $0x4] sm:$0xf]
  %v23 = vld [vmem:[%s1 + $0x8] sm:$0xf]
  %v24 = vld [vmem:[%s1 + $0xc] sm:$0xf]
  %v25 = vld [vmem:[%s1 + $0x10] sm:$0xf]
  %v26 = vld [vmem:[%s1 + $0x14] sm:$0xf]
  %v27 = vld [vmem:[%s1 + $0x18] sm:$0xf]
  %v28 = vld [vmem:[%s1 + $0x1c] sm:$0xf]
  %v29 = vld [vmem:[%s1 + $0x20] sm:$0xf]
  %v30 = vld [vmem:[%s1 + $0x24] sm:$0xf]
  %v31 = vld [vmem:[%s1 + $0x28] sm:$0xf]
  %v32 = vld [vmem:[%s1 + $0x2c] sm:$0xf]
  %v33 = vld [vmem:[%s1 + $0x30] sm:$0xf]
  %v34 = vld [vmem:[%s1 + $0x34] sm:$0xf]
  %v35 = vld [vmem:[%s1 + $0x38] sm:$0xf]
  %v36 = vld [vmem:[%s1 + $0x3c] sm:$0xf]
  %v37 = vld [vmem:[%s1 + $0x40] sm:$0xf]
  %v38 = vld [vmem:[%s1 + $0x44] sm:$0xf]
  %v39 = vld [vmem:[%s1 + $0x48] sm:$0xf]
  %v40 = vld [vmem:[%s1 + $0x4c] sm:$0xf]
  %v41 = vld [vmem:[%s1 + $0x50] sm:$0xf]
  %v42 = vld [vmem:[%s1 + $0x54] sm:$0xf]
  %v43 = vld [vmem:[%s1 + $0x58] sm:$0xf]
  %v44 = vld [vmem:[%s1 + $0x5c] sm:$0xf]
  %v45 = vld [vmem:[%s1 + $0x60] sm:$0xf]
  %v46 = vld [vmem:[%s1 + $0x64] sm:$0xf]
  %v47 = vld [vmem:[%s1 + $0x68] sm:$0xf]
  %v48 = vld [vmem:[%s1 + $0x6c] sm:$0xf]
  %v49 = vld [vmem:[%s1 + $0x70] sm:$0xf]
  %v50 = vld [vmem:[%s1 + $0x74] sm:$0xf]
  %v51 = vld [vmem:[%s1 + $0x78] sm:$0xf]
  %v52 = vld [vmem:[%s1 + $0x7c] sm:$0xf]
  %v53 = vld [vmem:[%s1 + $0x80] sm:$0xf]
  %v54 = vld [vmem:[%s1 + $0x84] sm:$0xf]
  %v55 = vld [vmem:[%s1 + $0x88] sm:$0xf]
  %v56 = vld [vmem:[%s1 + $0x8c] sm:$0xf]
  %v57 = vld [vmem:[%s1 + $0x90] sm:$0xf]
  %v58 = vld [vmem:[%s1 + $0x94] sm:$0xf]
  %v59 = vld [vmem:[%s1 + $0x98] sm:$0xf]
  %v60 = vld [vmem:[%s1 + $0x9c] sm:$0xf]
  %v61 = vld [vmem:[%s1 + $0xa0] sm:$0xf]
  %v62 = vld [vmem:[%s1 + $0xa4] sm:$0xf]
  %v63 = vld [vmem:[%s1 + $0xa8] sm:$0xf]
  %v64 = vld [vmem:[%s1 + $0xac] sm:$0xf]
  %v65 = vld [vmem:[%s1 + $0xb0] sm:$0xf]
  %v66 = vld [vmem:[%s1 + $0xb4] sm:$0xf]
  %v67 = vld [vmem:[%s1 + $0xb8] sm:$0xf]
  %v68 = vld [vmem:[%s1 + $0xbc] sm:$0xf]
  %v69 = vld [vmem:[%s1 + $0xc0] sm:$0xf]
  %v70 = vld [vmem:[%s1 + $0xc4] sm:$0xf]
  %v71 = vld [vmem:[%s1 + $0xc8] sm:$0xf]
  %v72 = vld [vmem:[%s1 + $0xcc] sm:$0xf]
  %v73 = vld [vmem:[%s1 + $0xd0] sm:$0xf]
  %v74 = vld [vmem:[%s1 + $0xd4] sm:$0xf]
  %v75 = vld [vmem:[%s1 + $0xd8] sm:$0xf]
  %v76 = vld [vmem:[%s1 + $0xdc] sm:$0xf]
  %v77 = vld [vmem:[%s1 + $0xe0] sm:$0xf]
  %v78 = vld [vmem:[%s1 + $0xe4] sm:$0xf]
  %v79 = vld [vmem:[%s1 + $0xe8] sm:$0xf]
  %v80 = vld [vmem:[%s1 + $0xec] sm:$0xf]
  %v81 = vld [vmem:[%s1 + $0xf0] sm:$0xf]
  %v82 = vld [vmem:[%s1 + $0xf4] sm:$0xf]
  %v83 = vld [vmem:[%s1 + $0xf8] sm:$0xf]
  %v84 = vld [vmem:[%s1 + $0xfc] sm:$0xf]
  %v85 = vld [vmem:[%s1 + $0x100] sm:$0xf]
  %v86 = vld [vmem:[%s1 + $0x104] sm:$0xf]
  %v87 = vld [vmem:[%s1 + $0x108] sm:$0xf]
  %v88 = vld [vmem:[%s1 + $0x10c] sm:$0xf]
  %v89 = vld [vmem:[%s1 + $0x110] sm:$0xf]
  %v90 = vld [vmem:[%s1 + $0x114] sm:$0xf]
  %v91 = vld [vmem:[%s1 + $0x118] sm:$0xf]
  %v92 = vld [vmem:[%s1 + $0x11c] sm:$0xf]
  %v93 = vld [vmem:[%s2] sm:$0x1]
  %v95 = vperm.slane %v93, 0
  %v100 = vunpack.c.l.b16 %v18
  %v101 = vunpack.c.h.b16 %v18
  %v102 = vunpack.c.l.b16 %v19
  %v103 = vunpack.c.h.b16 %v19
  %v104 = vunpack.c.l.b16 %v20
  %v105 = vpack.c.b16 %v100, %v100
  %v106 = vpack.c.b16 %v101, %v101
  %v107 = vpack.c.b16 %v102, %v102
  %v108 = vpack.c.b16 %v103, %v103
  %v109 = vpack.c.b16 %v104, %v104
  %v186 = vunpack.c.l.b16 %v21
  %v187 = vunpack.c.l.b16 %v22
  %v188 = vunpack.c.l.b16 %v23
  %v189 = vunpack.c.l.b16 %v24
  %v190 = vunpack.c.l.b16 %v25
  %v191 = vunpack.c.l.b16 %v26
  %v192 = vunpack.c.l.b16 %v27
  %v193 = vunpack.c.l.b16 %v28
  %v194 = vunpack.c.l.b16 %v29
  %v195 = vunpack.c.l.b16 %v30
  %v196 = vunpack.c.l.b16 %v31
  %v197 = vunpack.c.l.b16 %v32
  %v198 = vunpack.c.l.b16 %v33
  %v199 = vunpack.c.l.b16 %v34
  %v200 = vunpack.c.l.b16 %v35
  %v201 = vunpack.c.l.b16 %v36
  %v202 = vunpack.c.l.b16 %v37
  %v203 = vunpack.c.l.b16 %v38
  %v204 = vunpack.c.l.b16 %v39
  %v205 = vunpack.c.l.b16 %v40
  %v206 = vunpack.c.l.b16 %v41
  %v207 = vunpack.c.l.b16 %v42
  %v208 = vunpack.c.l.b16 %v43
  %v209 = vunpack.c.l.b16 %v44
  %v210 = vunpack.c.l.b16 %v45
  %v211 = vunpack.c.l.b16 %v46
  %v212 = vunpack.c.l.b16 %v47
  %v213 = vunpack.c.l.b16 %v48
  %v214 = vunpack.c.l.b16 %v49
  %v215 = vunpack.c.l.b16 %v50
  %v216 = vunpack.c.l.b16 %v51
  %v217 = vunpack.c.l.b16 %v52
  %v218 = vunpack.c.l.b16 %v53
  %v219 = vunpack.c.l.b16 %v54
  %v220 = vunpack.c.l.b16 %v55
  %v221 = vunpack.c.l.b16 %v56
  %v222 = vunpack.c.l.b16 %v57
  %v223 = vunpack.c.l.b16 %v58
  %v224 = vunpack.c.l.b16 %v59
  %v225 = vunpack.c.l.b16 %v60
  %v226 = vunpack.c.l.b16 %v61
  %v227 = vunpack.c.l.b16 %v62
  %v228 = vunpack.c.l.b16 %v63
  %v229 = vunpack.c.l.b16 %v64
  %v230 = vunpack.c.l.b16 %v65
  %v231 = vunpack.c.l.b16 %v66
  %v232 = vunpack.c.l.b16 %v67
  %v233 = vunpack.c.l.b16 %v68
  %v234 = vunpack.c.l.b16 %v69
  %v235 = vunpack.c.l.b16 %v70
  %v236 = vunpack.c.l.b16 %v71
  %v237 = vunpack.c.l.b16 %v72
  %v238 = vunpack.c.l.b16 %v73
  %v239 = vunpack.c.l.b16 %v74
  %v240 = vunpack.c.l.b16 %v75
  %v241 = vunpack.c.l.b16 %v76
  %v242 = vunpack.c.l.b16 %v77
  %v243 = vunpack.c.l.b16 %v78
  %v244 = vunpack.c.l.b16 %v79
  %v245 = vunpack.c.l.b16 %v80
  %v246 = vunpack.c.l.b16 %v81
  %v247 = vunpack.c.l.b16 %v82
  %v248 = vunpack.c.l.b16 %v83
  %v249 = vunpack.c.l.b16 %v84
  %v250 = vunpack.c.l.b16 %v85
  %v251 = vunpack.c.l.b16 %v86
  %v252 = vunpack.c.l.b16 %v87
  %v253 = vunpack.c.l.b16 %v88
  %v254 = vunpack.c.l.b16 %v89
  %v255 = vunpack.c.l.b16 %v90
  %v256 = vunpack.c.l.b16 %v91
  %v257 = vunpack.c.l.b16 %v92
  %v258 = vpack.c.b16 %v187, %v186
  %v259 = vpack.c.b16 %v189, %v188
  %v260 = vpack.c.b16 %v191, %v190
  %v261 = vpack.c.b16 %v193, %v192
  %v262 = vpack.c.b16 %v195, %v194
  %v263 = vpack.c.b16 %v197, %v196
  %v264 = vpack.c.b16 %v199, %v198
  %v265 = vpack.c.b16 %v201, %v200
  %v266 = vpack.c.b16 %v203, %v202
  %v267 = vpack.c.b16 %v205, %v204
  %v268 = vpack.c.b16 %v207, %v206
  %v269 = vpack.c.b16 %v209, %v208
  %v270 = vpack.c.b16 %v211, %v210
  %v271 = vpack.c.b16 %v213, %v212
  %v272 = vpack.c.b16 %v215, %v214
  %v273 = vpack.c.b16 %v217, %v216
  %v274 = vpack.c.b16 %v219, %v218
  %v275 = vpack.c.b16 %v221, %v220
  %v276 = vpack.c.b16 %v223, %v222
  %v277 = vpack.c.b16 %v225, %v224
  %v278 = vpack.c.b16 %v227, %v226
  %v279 = vpack.c.b16 %v229, %v228
  %v280 = vpack.c.b16 %v231, %v230
  %v281 = vpack.c.b16 %v233, %v232
  %v282 = vpack.c.b16 %v235, %v234
  %v283 = vpack.c.b16 %v237, %v236
  %v284 = vpack.c.b16 %v239, %v238
  %v285 = vpack.c.b16 %v241, %v240
  %v286 = vpack.c.b16 %v243, %v242
  %v287 = vpack.c.b16 %v245, %v244
  %v288 = vpack.c.b16 %v247, %v246
  %v289 = vpack.c.b16 %v249, %v248
  %v290 = vpack.c.b16 %v251, %v250
  %v291 = vpack.c.b16 %v253, %v252
  %v292 = vpack.c.b16 %v255, %v254
  %v293 = vpack.c.b16 %v257, %v256
  %vm330 = vcmask 523264
  %v332 = vsel %vm330, %v109, 0
  %334 = vmatpush.bf16.msra.mxu0 %v265
  %335 = vmatpush.bf16.msra.mxu0 %v264
  %336 = vmatpush.bf16.msra.mxu0 %v263
  %337 = vmatpush.bf16.msra.mxu0 %v262
  %338 = vmatpush.bf16.msra.mxu0 %v261
  %339 = vmatpush.bf16.msra.mxu0 %v260
  %340 = vmatpush.bf16.msra.mxu0 %v259
  %341 = vmatpush.bf16.msra.mxu0 %v258
  %342 = vmatmul.bf16.gmra.mxu0 %v105
  %v343 = vpop.f32.mrf.mxu0
  %v344 = vadd.f32 %v95, %v343
  %v345 = vpop.f32.mrf.mxu0
  %346 = vdwg.mxu0
  %347 = vmatpush.bf16.msra.mxu0 %v273
  %348 = vmatpush.bf16.msra.mxu0 %v272
  %349 = vmatpush.bf16.msra.mxu0 %v271
  %350 = vmatpush.bf16.msra.mxu0 %v270
  %351 = vmatpush.bf16.msra.mxu0 %v269
  %352 = vmatpush.bf16.msra.mxu0 %v268
  %353 = vmatpush.bf16.msra.mxu0 %v267
  %354 = vmatpush.bf16.msra.mxu0 %v266
  %355 = vmatmul.bf16.gmra.mxu0 %v106
  %v356 = vpop.f32.mrf.mxu0
  %v357 = vadd.f32 %v344, %v356
  %v358 = vpop.f32.mrf.mxu0
  %359 = vdwg.mxu0
  %360 = vmatpush.bf16.msra.mxu0 %v281
  %361 = vmatpush.bf16.msra.mxu0 %v280
  %362 = vmatpush.bf16.msra.mxu0 %v279
  %363 = vmatpush.bf16.msra.mxu0 %v278
  %364 = vmatpush.bf16.msra.mxu0 %v277
  %365 = vmatpush.bf16.msra.mxu0 %v276
  %366 = vmatpush.bf16.msra.mxu0 %v275
  %367 = vmatpush.bf16.msra.mxu0 %v274
  %368 = vmatmul.bf16.gmra.mxu0 %v107
  %v369 = vpop.f32.mrf.mxu0
  %v370 = vadd.f32 %v357, %v369
  %v371 = vpop.f32.mrf.mxu0
  %372 = vdwg.mxu0
  %373 = vmatpush.bf16.msra.mxu0 %v289
  %374 = vmatpush.bf16.msra.mxu0 %v288
  %375 = vmatpush.bf16.msra.mxu0 %v287
  %376 = vmatpush.bf16.msra.mxu0 %v286
  %377 = vmatpush.bf16.msra.mxu0 %v285
  %378 = vmatpush.bf16.msra.mxu0 %v284
  %379 = vmatpush.bf16.msra.mxu0 %v283
  %380 = vmatpush.bf16.msra.mxu0 %v282
  %381 = vmatmul.bf16.gmra.mxu0 %v108
  %v382 = vpop.f32.mrf.mxu0
  %v383 = vadd.f32 %v370, %v382
  %v384 = vpop.f32.mrf.mxu0
  %385 = vdwg.mxu0
  %386 = vmatpush.bf16.msra.mxu0 0
  %387 = vmatpush.bf16.msra.mxu0 0
  %388 = vmatpush.bf16.msra.mxu0 0
  %389 = vmatpush.bf16.msra.mxu0 0
  %390 = vmatpush.bf16.msra.mxu0 %v293
  %391 = vmatpush.bf16.msra.mxu0 %v292
  %392 = vmatpush.bf16.msra.mxu0 %v291
  %393 = vmatpush.bf16.msra.mxu0 %v290
  %394 = vmatmul.bf16.gmra.mxu0 %v332
  %v395 = vpop.f32.mrf.mxu0
  %v396 = vadd.f32 %v383, %v395
  %v397 = vpop.f32.mrf.mxu0
  %398 = vdwg.mxu0
  %v399 = vld [vmem:[%s3] sm:$0xf]
  %v400 = vunpack.c.l.bf16 %v399
  %v401 = vadd.f32 %v396, %v400
  %v402 = vmax.f32 %v401, 0.0
  %v403 = vpack.c.bf16 %v402, %v402
  %vm404 = vcmask 519168
  %405 = vst.msk [vmem:[%s4] sm:$0xf] %vm404, %v403
  // Predicated region
  $region18: #{forward.47} parent=0 // pred_check
    _
  $region19: #{forward.47} parent=0 // pred_check_branch
    %407 = sbr.rel (0) target = $region21
  $region20: #{forward.47} parent=0 // pred_region
    _
  $region21: #{forward.47} parent=0 // pred_fallthru
    _
  // Predicated region
  $region22: #{forward.47} parent=0 // pred_check
    _
  $region23: #{forward.47} parent=0 // pred_check_branch
    %409 = sbr.rel (0) target = $region25
  $region24: #{forward.47} parent=0 // pred_region
    _
  $region25: #{forward.47} parent=0 // pred_fallthru
    _

// kernel: forward.50
$region0: #{forward.50}
  #allocation0 [shape = 'u32[]', space=smem, size = 0x4, offset = 0x4, fixed_abs, tag = 'smem constant byte address 0x4 - core index']
  #allocation1 [shape = 'u32[72,128]{1,0:T(1,128)}', space=vmem, size = 0x9000, scoped, tag = 'internal scratch']
  %s0 = inlined_call_operand.vmem [shape: bf16[2,2,128], index: 0, kind: input, shape index: {}]
  %s1 = inlined_call_operand.vmem [shape: f32[2,128], index: 1, kind: output, shape index: {}]
  %s2 = sld [smem:[#allocation0]]
  $region14: #{forward.50} parent=0
    _
  %s4 = ssub.s32 1, %s2
  %s5 = scalar_select 0, %s4, %s2
  // Predicated region
  $region2: #{forward.50} parent=0 // pred_check
    _
  $region3: #{forward.50} parent=0 // pred_check_branch
    %7 = sbr.rel (0) target = $region5
  $region4: #{forward.50} parent=0 // pred_region
    _
  $region5: #{forward.50} parent=0 // pred_fallthru
    _
  %v8 = vld [vmem:[%s0] sm:$0x1]
  %v9 = vld [vmem:[%s0 + $0x1] sm:$0x1]
  %v10 = vunpack.c.l.bf16 %v8
  %v11 = vunpack.c.l.bf16 %v9
  %vm12 = vcmask 1041408
  %v13 = vsel %vm12, %v10, 0.0
  %v14 = vrot.slane %v13, 4
  %v15 = vadd.f32 %v13, %v14
  %v16 = vrot.slane %v15, 2
  %v17 = vadd.f32 %v15, %v16
  %v18 = vrot.slane %v17, 1
  %v19 = vadd.f32 %v17, %v18
  %v20 = vsel %vm12, %v11, 0.0
  %v21 = vrot.slane %v20, 4
  %v22 = vadd.f32 %v20, %v21
  %v23 = vrot.slane %v22, 2
  %v24 = vadd.f32 %v22, %v23
  %v25 = vrot.slane %v24, 1
  %v26 = vadd.f32 %v24, %v25
  %v27 = vrcp.pop 2.0
  %v28 = vmul.f32 2.0, %v27
  %v29 = vsub.f32 1.0, %v28
  %v30 = vmul.f32 %v27, %v29
  %v31 = vadd.f32 %v27, %v30
  %vm32 = vweird.f32 %v27
  %v33 = vsel %vm32, %v27, %v31
  %v34 = vmul.f32 %v19, %v33
  %v35 = vmul.f32 %v26, %v33
  %vm38 = vcmask 1041409
  %v39 = vsel %vm38, %v35, %v34
  %41 = vst [vmem:[%s1] sm:$0x3] %v39
  // Predicated region
  $region6: #{forward.50} parent=0 // pred_check
    _
  $region7: #{forward.50} parent=0 // pred_check_branch
    %43 = sbr.rel (0) target = $region9
  $region8: #{forward.50} parent=0 // pred_region
    _
  $region9: #{forward.50} parent=0 // pred_fallthru
    _
  // Predicated region
  $region10: #{forward.50} parent=0 // pred_check
    _
  $region11: #{forward.50} parent=0 // pred_check_branch
    %45 = sbr.rel (0) target = $region13
  $region12: #{forward.50} parent=0 // pred_region
    _
  $region13: #{forward.50} parent=0 // pred_fallthru
    _

// kernel: forward.48
$region0: #{forward.48}
  #allocation0 [shape = 'u32[]', space=smem, size = 0x4, offset = 0x4, fixed_abs, tag = 'smem constant byte address 0x4 - core index']
  #allocation1 [shape = 'u32[72,128]{1,0:T(1,128)}', space=vmem, size = 0x9000, scoped, tag = 'internal scratch']
  %s0 = inlined_call_operand.vmem [shape: bf16[8,576], index: 0, kind: input, shape index: {}]
  %s1 = inlined_call_operand.vmem [shape: bf16[576,64], index: 1, kind: input, shape index: {}]
  %s2 = inlined_call_operand.vmem [shape: f32[1,64], index: 2, kind: input, shape index: {}]
  %s3 = inlined_call_operand.vmem [shape: bf16[8,64], index: 3, kind: output, shape index: {}]
  %s4 = sld [smem:[#allocation0]]
  $region22: #{forward.48} parent=0
    _
  %s6 = ssub.s32 1, %s4
  %s7 = scalar_select 0, %s6, %s4
  // Predicated region
  $region2: #{forward.48} parent=0 // pred_check
    _
  $region3: #{forward.48} parent=0 // pred_check_branch
    %9 = sbr.rel (0) target = $region5
  $region4: #{forward.48} parent=0 // pred_region
    _
  $region5: #{forward.48} parent=0 // pred_fallthru
    _
  // Predicated region
  $region6: #{forward.48} parent=0 // pred_check
    _
  $region7: #{forward.48} parent=0 // pred_check_branch
    %11 = sbr.rel (0) target = $region9
  $region8: #{forward.48} parent=0 // pred_region
    _
  $region9: #{forward.48} parent=0 // pred_fallthru
    _
  // Predicated region
  $region10: #{forward.48} parent=0 // pred_check
    _
  $region11: #{forward.48} parent=0 // pred_check_branch
    %13 = sbr.rel (0) target = $region13
  $region12: #{forward.48} parent=0 // pred_region
    _
  $region13: #{forward.48} parent=0 // pred_fallthru
    _
  %v15 = vld [vmem:[%s0] sm:$0xff]
  %v16 = vld [vmem:[%s0 + $0x8] sm:$0xff]
  %v17 = vld [vmem:[%s0 + $0x10] sm:$0xf]
  %v18 = vld [vmem:[%s1] sm:$0xf]
  %v19 = vld [vmem:[%s1 + $0x4] sm:$0xf]
  %v20 = vld [vmem:[%s1 + $0x8] sm:$0xf]
  %v21 = vld [vmem:[%s1 + $0xc] sm:$0xf]
  %v22 = vld [vmem:[%s1 + $0x10] sm:$0xf]
  %v23 = vld [vmem:[%s1 + $0x14] sm:$0xf]
  %v24 = vld [vmem:[%s1 + $0x18] sm:$0xf]
  %v25 = vld [vmem:[%s1 + $0x1c] sm:$0xf]
  %v26 = vld [vmem:[%s1 + $0x20] sm:$0xf]
  %v27 = vld [vmem:[%s1 + $0x24] sm:$0xf]
  %v28 = vld [vmem:[%s1 + $0x28] sm:$0xf]
  %v29 = vld [vmem:[%s1 + $0x2c] sm:$0xf]
  %v30 = vld [vmem:[%s1 + $0x30] sm:$0xf]
  %v31 = vld [vmem:[%s1 + $0x34] sm:$0xf]
  %v32 = vld [vmem:[%s1 + $0x38] sm:$0xf]
  %v33 = vld [vmem:[%s1 + $0x3c] sm:$0xf]
  %v34 = vld [vmem:[%s1 + $0x40] sm:$0xf]
  %v35 = vld [vmem:[%s1 + $0x44] sm:$0xf]
  %v36 = vld [vmem:[%s1 + $0x48] sm:$0xf]
  %v37 = vld [vmem:[%s1 + $0x4c] sm:$0xf]
  %v38 = vld [vmem:[%s1 + $0x50] sm:$0xf]
  %v39 = vld [vmem:[%s1 + $0x54] sm:$0xf]
  %v40 = vld [vmem:[%s1 + $0x58] sm:$0xf]
  %v41 = vld [vmem:[%s1 + $0x5c] sm:$0xf]
  %v42 = vld [vmem:[%s1 + $0x60] sm:$0xf]
  %v43 = vld [vmem:[%s1 + $0x64] sm:$0xf]
  %v44 = vld [vmem:[%s1 + $0x68] sm:$0xf]
  %v45 = vld [vmem:[%s1 + $0x6c] sm:$0xf]
  %v46 = vld [vmem:[%s1 + $0x70] sm:$0xf]
  %v47 = vld [vmem:[%s1 + $0x74] sm:$0xf]
  %v48 = vld [vmem:[%s1 + $0x78] sm:$0xf]
  %v49 = vld [vmem:[%s1 + $0x7c] sm:$0xf]
  %v50 = vld [vmem:[%s1 + $0x80] sm:$0xf]
  %v51 = vld [vmem:[%s1 + $0x84] sm:$0xf]
  %v52 = vld [vmem:[%s1 + $0x88] sm:$0xf]
  %v53 = vld [vmem:[%s1 + $0x8c] sm:$0xf]
  %v54 = vld [vmem:[%s1 + $0x90] sm:$0xf]
  %v55 = vld [vmem:[%s1 + $0x94] sm:$0xf]
  %v56 = vld [vmem:[%s1 + $0x98] sm:$0xf]
  %v57 = vld [vmem:[%s1 + $0x9c] sm:$0xf]
  %v58 = vld [vmem:[%s1 + $0xa0] sm:$0xf]
  %v59 = vld [vmem:[%s1 + $0xa4] sm:$0xf]
  %v60 = vld [vmem:[%s1 + $0xa8] sm:$0xf]
  %v61 = vld [vmem:[%s1 + $0xac] sm:$0xf]
  %v62 = vld [vmem:[%s1 + $0xb0] sm:$0xf]
  %v63 = vld [vmem:[%s1 + $0xb4] sm:$0xf]
  %v64 = vld [vmem:[%s1 + $0xb8] sm:$0xf]
  %v65 = vld [vmem:[%s1 + $0xbc] sm:$0xf]
  %v66 = vld [vmem:[%s1 + $0xc0] sm:$0xf]
  %v67 = vld [vmem:[%s1 + $0xc4] sm:$0xf]
  %v68 = vld [vmem:[%s1 + $0xc8] sm:$0xf]
  %v69 = vld [vmem:[%s1 + $0xcc] sm:$0xf]
  %v70 = vld [vmem:[%s1 + $0xd0] sm:$0xf]
  %v71 = vld [vmem:[%s1 + $0xd4] sm:$0xf]
  %v72 = vld [vmem:[%s1 + $0xd8] sm:$0xf]
  %v73 = vld [vmem:[%s1 + $0xdc] sm:$0xf]
  %v74 = vld [vmem:[%s1 + $0xe0] sm:$0xf]
  %v75 = vld [vmem:[%s1 + $0xe4] sm:$0xf]
  %v76 = vld [vmem:[%s1 + $0xe8] sm:$0xf]
  %v77 = vld [vmem:[%s1 + $0xec] sm:$0xf]
  %v78 = vld [vmem:[%s1 + $0xf0] sm:$0xf]
  %v79 = vld [vmem:[%s1 + $0xf4] sm:$0xf]
  %v80 = vld [vmem:[%s1 + $0xf8] sm:$0xf]
  %v81 = vld [vmem:[%s1 + $0xfc] sm:$0xf]
  %v82 = vld [vmem:[%s1 + $0x100] sm:$0xf]
  %v83 = vld [vmem:[%s1 + $0x104] sm:$0xf]
  %v84 = vld [vmem:[%s1 + $0x108] sm:$0xf]
  %v85 = vld [vmem:[%s1 + $0x10c] sm:$0xf]
  %v86 = vld [vmem:[%s1 + $0x110] sm:$0xf]
  %v87 = vld [vmem:[%s1 + $0x114] sm:$0xf]
  %v88 = vld [vmem:[%s1 + $0x118] sm:$0xf]
  %v89 = vld [vmem:[%s1 + $0x11c] sm:$0xf]
  %v90 = vld [vmem:[%s2] sm:$0x1]
  %v92 = vperm.slane %v90, 0
  %v97 = vunpack.c.l.b16 %v15
  %v98 = vunpack.c.h.b16 %v15
  %v99 = vunpack.c.l.b16 %v16
  %v100 = vunpack.c.h.b16 %v16
  %v101 = vunpack.c.l.b16 %v17
  %v102 = vpack.c.b16 %v97, %v97
  %v103 = vpack.c.b16 %v98, %v98
  %v104 = vpack.c.b16 %v99, %v99
  %v105 = vpack.c.b16 %v100, %v100
  %v106 = vpack.c.b16 %v101, %v101
  %v183 = vunpack.c.l.b16 %v18
  %v184 = vunpack.c.l.b16 %v19
  %v185 = vunpack.c.l.b16 %v20
  %v186 = vunpack.c.l.b16 %v21
  %v187 = vunpack.c.l.b16 %v22
  %v188 = vunpack.c.l.b16 %v23
  %v189 = vunpack.c.l.b16 %v24
  %v190 = vunpack.c.l.b16 %v25
  %v191 = vunpack.c.l.b16 %v26
  %v192 = vunpack.c.l.b16 %v27
  %v193 = vunpack.c.l.b16 %v28
  %v194 = vunpack.c.l.b16 %v29
  %v195 = vunpack.c.l.b16 %v30
  %v196 = vunpack.c.l.b16 %v31
  %v197 = vunpack.c.l.b16 %v32
  %v198 = vunpack.c.l.b16 %v33
  %v199 = vunpack.c.l.b16 %v34
  %v200 = vunpack.c.l.b16 %v35
  %v201 = vunpack.c.l.b16 %v36
  %v202 = vunpack.c.l.b16 %v37
  %v203 = vunpack.c.l.b16 %v38
  %v204 = vunpack.c.l.b16 %v39
  %v205 = vunpack.c.l.b16 %v40
  %v206 = vunpack.c.l.b16 %v41
  %v207 = vunpack.c.l.b16 %v42
  %v208 = vunpack.c.l.b16 %v43
  %v209 = vunpack.c.l.b16 %v44
  %v210 = vunpack.c.l.b16 %v45
  %v211 = vunpack.c.l.b16 %v46
  %v212 = vunpack.c.l.b16 %v47
  %v213 = vunpack.c.l.b16 %v48
  %v214 = vunpack.c.l.b16 %v49
  %v215 = vunpack.c.l.b16 %v50
  %v216 = vunpack.c.l.b16 %v51
  %v217 = vunpack.c.l.b16 %v52
  %v218 = vunpack.c.l.b16 %v53
  %v219 = vunpack.c.l.b16 %v54
  %v220 = vunpack.c.l.b16 %v55
  %v221 = vunpack.c.l.b16 %v56
  %v222 = vunpack.c.l.b16 %v57
  %v223 = vunpack.c.l.b16 %v58
  %v224 = vunpack.c.l.b16 %v59
  %v225 = vunpack.c.l.b16 %v60
  %v226 = vunpack.c.l.b16 %v61
  %v227 = vunpack.c.l.b16 %v62
  %v228 = vunpack.c.l.b16 %v63
  %v229 = vunpack.c.l.b16 %v64
  %v230 = vunpack.c.l.b16 %v65
  %v231 = vunpack.c.l.b16 %v66
  %v232 = vunpack.c.l.b16 %v67
  %v233 = vunpack.c.l.b16 %v68
  %v234 = vunpack.c.l.b16 %v69
  %v235 = vunpack.c.l.b16 %v70
  %v236 = vunpack.c.l.b16 %v71
  %v237 = vunpack.c.l.b16 %v72
  %v238 = vunpack.c.l.b16 %v73
  %v239 = vunpack.c.l.b16 %v74
  %v240 = vunpack.c.l.b16 %v75
  %v241 = vunpack.c.l.b16 %v76
  %v242 = vunpack.c.l.b16 %v77
  %v243 = vunpack.c.l.b16 %v78
  %v244 = vunpack.c.l.b16 %v79
  %v245 = vunpack.c.l.b16 %v80
  %v246 = vunpack.c.l.b16 %v81
  %v247 = vunpack.c.l.b16 %v82
  %v248 = vunpack.c.l.b16 %v83
  %v249 = vunpack.c.l.b16 %v84
  %v250 = vunpack.c.l.b16 %v85
  %v251 = vunpack.c.l.b16 %v86
  %v252 = vunpack.c.l.b16 %v87
  %v253 = vunpack.c.l.b16 %v88
  %v254 = vunpack.c.l.b16 %v89
  %v255 = vpack.c.b16 %v184, %v183
  %v256 = vpack.c.b16 %v186, %v185
  %v257 = vpack.c.b16 %v188, %v187
  %v258 = vpack.c.b16 %v190, %v189
  %v259 = vpack.c.b16 %v192, %v191
  %v260 = vpack.c.b16 %v194, %v193
  %v261 = vpack.c.b16 %v196, %v195
  %v262 = vpack.c.b16 %v198, %v197
  %v263 = vpack.c.b16 %v200, %v199
  %v264 = vpack.c.b16 %v202, %v201
  %v265 = vpack.c.b16 %v204, %v203
  %v266 = vpack.c.b16 %v206, %v205
  %v267 = vpack.c.b16 %v208, %v207
  %v268 = vpack.c.b16 %v210, %v209
  %v269 = vpack.c.b16 %v212, %v211
  %v270 = vpack.c.b16 %v214, %v213
  %v271 = vpack.c.b16 %v216, %v215
  %v272 = vpack.c.b16 %v218, %v217
  %v273 = vpack.c.b16 %v220, %v219
  %v274 = vpack.c.b16 %v222, %v221
  %v275 = vpack.c.b16 %v224, %v223
  %v276 = vpack.c.b16 %v226, %v225
  %v277 = vpack.c.b16 %v228, %v227
  %v278 = vpack.c.b16 %v230, %v229
  %v279 = vpack.c.b16 %v232, %v231
  %v280 = vpack.c.b16 %v234, %v233
  %v281 = vpack.c.b16 %v236, %v235
  %v282 = vpack.c.b16 %v238, %v237
  %v283 = vpack.c.b16 %v240, %v239
  %v284 = vpack.c.b16 %v242, %v241
  %v285 = vpack.c.b16 %v244, %v243
  %v286 = vpack.c.b16 %v246, %v245
  %v287 = vpack.c.b16 %v248, %v247
  %v288 = vpack.c.b16 %v250, %v249
  %v289 = vpack.c.b16 %v252, %v251
  %v290 = vpack.c.b16 %v254, %v253
  %vm327 = vcmask 523264
  %v329 = vsel %vm327, %v106, 0
  %331 = vmatpush.bf16.msra.mxu0 %v262
  %332 = vmatpush.bf16.msra.mxu0 %v261
  %333 = vmatpush.bf16.msra.mxu0 %v260
  %334 = vmatpush.bf16.msra.mxu0 %v259
  %335 = vmatpush.bf16.msra.mxu0 %v258
  %336 = vmatpush.bf16.msra.mxu0 %v257
  %337 = vmatpush.bf16.msra.mxu0 %v256
  %338 = vmatpush.bf16.msra.mxu0 %v255
  %339 = vmatmul.bf16.gmra.mxu0 %v102
  %v340 = vpop.f32.mrf.mxu0
  %v341 = vadd.f32 %v92, %v340
  %v342 = vpop.f32.mrf.mxu0
  %343 = vdwg.mxu0
  %344 = vmatpush.bf16.msra.mxu0 %v270
  %345 = vmatpush.bf16.msra.mxu0 %v269
  %346 = vmatpush.bf16.msra.mxu0 %v268
  %347 = vmatpush.bf16.msra.mxu0 %v267
  %348 = vmatpush.bf16.msra.mxu0 %v266
  %349 = vmatpush.bf16.msra.mxu0 %v265
  %350 = vmatpush.bf16.msra.mxu0 %v264
  %351 = vmatpush.bf16.msra.mxu0 %v263
  %352 = vmatmul.bf16.gmra.mxu0 %v103
  %v353 = vpop.f32.mrf.mxu0
  %v354 = vadd.f32 %v341, %v353
  %v355 = vpop.f32.mrf.mxu0
  %356 = vdwg.mxu0
  %357 = vmatpush.bf16.msra.mxu0 %v278
  %358 = vmatpush.bf16.msra.mxu0 %v277
  %359 = vmatpush.bf16.msra.mxu0 %v276
  %360 = vmatpush.bf16.msra.mxu0 %v275
  %361 = vmatpush.bf16.msra.mxu0 %v274
  %362 = vmatpush.bf16.msra.mxu0 %v273
  %363 = vmatpush.bf16.msra.mxu0 %v272
  %364 = vmatpush.bf16.msra.mxu0 %v271
  %365 = vmatmul.bf16.gmra.mxu0 %v104
  %v366 = vpop.f32.mrf.mxu0
  %v367 = vadd.f32 %v354, %v366
  %v368 = vpop.f32.mrf.mxu0
  %369 = vdwg.mxu0
  %370 = vmatpush.bf16.msra.mxu0 %v286
  %371 = vmatpush.bf16.msra.mxu0 %v285
  %372 = vmatpush.bf16.msra.mxu0 %v284
  %373 = vmatpush.bf16.msra.mxu0 %v283
  %374 = vmatpush.bf16.msra.mxu0 %v282
  %375 = vmatpush.bf16.msra.mxu0 %v281
  %376 = vmatpush.bf16.msra.mxu0 %v280
  %377 = vmatpush.bf16.msra.mxu0 %v279
  %378 = vmatmul.bf16.gmra.mxu0 %v105
  %v379 = vpop.f32.mrf.mxu0
  %v380 = vadd.f32 %v367, %v379
  %v381 = vpop.f32.mrf.mxu0
  %382 = vdwg.mxu0
  %383 = vmatpush.bf16.msra.mxu0 0
  %384 = vmatpush.bf16.msra.mxu0 0
  %385 = vmatpush.bf16.msra.mxu0 0
  %386 = vmatpush.bf16.msra.mxu0 0
  %387 = vmatpush.bf16.msra.mxu0 %v290
  %388 = vmatpush.bf16.msra.mxu0 %v289
  %389 = vmatpush.bf16.msra.mxu0 %v288
  %390 = vmatpush.bf16.msra.mxu0 %v287
  %391 = vmatmul.bf16.gmra.mxu0 %v329
  %v392 = vpop.f32.mrf.mxu0
  %v393 = vadd.f32 %v380, %v392
  %v394 = vpop.f32.mrf.mxu0
  %395 = vdwg.mxu0
  %v396 = vmax.f32 %v393, 0.0
  %v397 = vpack.c.bf16 %v396, %v396
  %vm398 = vcmask 519168
  %399 = vst.msk [vmem:[%s3] sm:$0xf] %vm398, %v397
  // Predicated region
  $region14: #{forward.48} parent=0 // pred_check
    _
  $region15: #{forward.48} parent=0 // pred_check_branch
    %401 = sbr.rel (0) target = $region17
  $region16: #{forward.48} parent=0 // pred_region
    _
  $region17: #{forward.48} parent=0 // pred_fallthru
    _
  // Predicated region
  $region18: #{forward.48} parent=0 // pred_check
    _
  $region19: #{forward.48} parent=0 // pred_check_branch
    %403 = sbr.rel (0) target = $region21
  $region20: #{forward.48} parent=0 // pred_region
    _
  $region21: #{forward.48} parent=0 // pred_fallthru
    _

// kernel: forward.51
$region0: #{forward.51}
  #allocation0 [shape = 'u32[]', space=smem, size = 0x4, offset = 0x4, fixed_abs, tag = 'smem constant byte address 0x4 - core index']
  #allocation1 [shape = 'u32[72,128]{1,0:T(1,128)}', space=vmem, size = 0x9000, scoped, tag = 'internal scratch']
  %s0 = inlined_call_operand.vmem [shape: bf16[128,18], index: 0, kind: input, shape index: {}]
  %s1 = inlined_call_operand.vmem [shape: bf16[18,10], index: 1, kind: input, shape index: {}]
  %s2 = inlined_call_operand.vmem [shape: f32[1,10], index: 2, kind: input, shape index: {}]
  %s3 = inlined_call_operand.vmem [shape: bf16[128,10], index: 3, kind: output, shape index: {}]
  %s4 = sld [smem:[#allocation0]]
  $region22: #{forward.51} parent=0
    _
  %s6 = ssub.s32 1, %s4
  %s7 = scalar_select 0, %s6, %s4
  // Predicated region
  $region2: #{forward.51} parent=0 // pred_check
    _
  $region3: #{forward.51} parent=0 // pred_check_branch
    %9 = sbr.rel (0) target = $region5
  $region4: #{forward.51} parent=0 // pred_region
    _
  $region5: #{forward.51} parent=0 // pred_fallthru
    _
  // Predicated region
  $region6: #{forward.51} parent=0 // pred_check
    _
  $region7: #{forward.51} parent=0 // pred_check_branch
    %11 = sbr.rel (0) target = $region9
  $region8: #{forward.51} parent=0 // pred_region
    _
  $region9: #{forward.51} parent=0 // pred_fallthru
    _
  // Predicated region
  $region10: #{forward.51} parent=0 // pred_check
    _
  $region11: #{forward.51} parent=0 // pred_check_branch
    %13 = sbr.rel (0) target = $region13
  $region12: #{forward.51} parent=0 // pred_region
    _
  $region13: #{forward.51} parent=0 // pred_fallthru
    _
  %v15 = vld [vmem:[%s0] sm:$0xf]
  %v16 = vld [vmem:[%s0 + $0x4] sm:$0xf]
  %v17 = vld [vmem:[%s0 + $0x8] sm:$0xf]
  %v18 = vld [vmem:[%s0 + $0xc] sm:$0xf]
  %v19 = vld [vmem:[%s0 + $0x10] sm:$0xf]
  %v20 = vld [vmem:[%s0 + $0x14] sm:$0xf]
  %v21 = vld [vmem:[%s0 + $0x18] sm:$0xf]
  %v22 = vld [vmem:[%s0 + $0x1c] sm:$0xf]
  %v23 = vld [vmem:[%s0 + $0x20] sm:$0xf]
  %v24 = vld [vmem:[%s0 + $0x24] sm:$0xf]
  %v25 = vld [vmem:[%s0 + $0x28] sm:$0xf]
  %v26 = vld [vmem:[%s0 + $0x2c] sm:$0xf]
  %v27 = vld [vmem:[%s0 + $0x30] sm:$0xf]
  %v28 = vld [vmem:[%s0 + $0x34] sm:$0xf]
  %v29 = vld [vmem:[%s0 + $0x38] sm:$0xf]
  %v30 = vld [vmem:[%s0 + $0x3c] sm:$0xf]
  %v31 = vld [vmem:[%s1] sm:$0xf]
  %v32 = vld [vmem:[%s1 + $0x4] sm:$0xf]
  %v33 = vld [vmem:[%s1 + $0x8] sm:$0x1]
  %v34 = vld [vmem:[%s2] sm:$0x1]
  %v36 = vperm.slane %v34, 0
  %v54 = vunpack.c.l.b16 %v15
  %v55 = vunpack.c.l.b16 %v16
  %v56 = vunpack.c.l.b16 %v17
  %v57 = vunpack.c.l.b16 %v18
  %v58 = vunpack.c.l.b16 %v19
  %v59 = vunpack.c.l.b16 %v20
  %v60 = vunpack.c.l.b16 %v21
  %v61 = vunpack.c.l.b16 %v22
  %v62 = vunpack.c.l.b16 %v23
  %v63 = vunpack.c.l.b16 %v24
  %v64 = vunpack.c.l.b16 %v25
  %v65 = vunpack.c.l.b16 %v26
  %v66 = vunpack.c.l.b16 %v27
  %v67 = vunpack.c.l.b16 %v28
  %v68 = vunpack.c.l.b16 %v29
  %v69 = vunpack.c.l.b16 %v30
  %v70 = vpack.c.b16 %v55, %v54
  %v71 = vpack.c.b16 %v57, %v56
  %v72 = vpack.c.b16 %v59, %v58
  %v73 = vpack.c.b16 %v61, %v60
  %v74 = vpack.c.b16 %v63, %v62
  %v75 = vpack.c.b16 %v65, %v64
  %v76 = vpack.c.b16 %v67, %v66
  %v77 = vpack.c.b16 %v69, %v68
  %v81 = vunpack.c.l.b16 %v31
  %v82 = vunpack.c.l.b16 %v32
  %v83 = vunpack.c.l.b16 %v33
  %v84 = vpack.c.b16 %v82, %v81
  %v85 = vpack.c.b16 %v83, %v83
  %vm87 = vcmask 146432
  %v89 = vsel %vm87, %v70, 0
  %v92 = vsel %vm87, %v71, 0
  %v95 = vsel %vm87, %v72, 0
  %v98 = vsel %vm87, %v73, 0
  %v101 = vsel %vm87, %v74, 0
  %v104 = vsel %vm87, %v75, 0
  %v107 = vsel %vm87, %v76, 0
  %v110 = vsel %vm87, %v77, 0
  %vm112 = vcmask 1040384
  %v114 = vsel %vm112, %v85, 0
  %116 = vmatpush.bf16.msra.mxu0 0
  %117 = vmatpush.bf16.msra.mxu0 0
  %118 = vmatpush.bf16.msra.mxu0 0
  %119 = vmatpush.bf16.msra.mxu0 0
  %120 = vmatpush.bf16.msra.mxu0 0
  %121 = vmatpush.bf16.msra.mxu0 0
  %122 = vmatpush.bf16.msra.mxu0 %v114
  %123 = vmatpush.bf16.msra.mxu0 %v84
  %124 = vmatmul.bf16.gmra.mxu0 %v89
  %v125 = vpop.f32.mrf.mxu0
  %v126 = vadd.f32 %v36, %v125
  %v127 = vpop.f32.mrf.mxu0
  %v128 = vadd.f32 %v36, %v127
  %129 = vmatmul.bf16.gmra.mxu0 %v92
  %v130 = vpop.f32.mrf.mxu0
  %v131 = vadd.f32 %v36, %v130
  %v132 = vpop.f32.mrf.mxu0
  %v133 = vadd.f32 %v36, %v132
  %134 = vmatmul.bf16.gmra.mxu0 %v95
  %v135 = vpop.f32.mrf.mxu0
  %v136 = vadd.f32 %v36, %v135
  %v137 = vpop.f32.mrf.mxu0
  %v138 = vadd.f32 %v36, %v137
  %139 = vmatmul.bf16.gmra.mxu0 %v98
  %v140 = vpop.f32.mrf.mxu0
  %v141 = vadd.f32 %v36, %v140
  %v142 = vpop.f32.mrf.mxu0
  %v143 = vadd.f32 %v36, %v142
  %144 = vmatmul.bf16.gmra.mxu0 %v101
  %v145 = vpop.f32.mrf.mxu0
  %v146 = vadd.f32 %v36, %v145
  %v147 = vpop.f32.mrf.mxu0
  %v148 = vadd.f32 %v36, %v147
  %149 = vmatmul.bf16.gmra.mxu0 %v104
  %v150 = vpop.f32.mrf.mxu0
  %v151 = vadd.f32 %v36, %v150
  %v152 = vpop.f32.mrf.mxu0
  %v153 = vadd.f32 %v36, %v152
  %154 = vmatmul.bf16.gmra.mxu0 %v107
  %v155 = vpop.f32.mrf.mxu0
  %v156 = vadd.f32 %v36, %v155
  %v157 = vpop.f32.mrf.mxu0
  %v158 = vadd.f32 %v36, %v157
  %159 = vmatmul.bf16.gmra.mxu0 %v110
  %v160 = vpop.f32.mrf.mxu0
  %v161 = vadd.f32 %v36, %v160
  %v162 = vpop.f32.mrf.mxu0
  %v163 = vadd.f32 %v36, %v162
  %164 = vdwg.mxu0
  %v165 = vmax.f32 %v126, 0.0
  %v166 = vmax.f32 %v128, 0.0
  %v167 = vmax.f32 %v131, 0.0
  %v168 = vmax.f32 %v133, 0.0
  %v169 = vmax.f32 %v136, 0.0
  %v170 = vmax.f32 %v138, 0.0
  %v171 = vmax.f32 %v141, 0.0
  %v172 = vmax.f32 %v143, 0.0
  %v173 = vmax.f32 %v146, 0.0
  %v174 = vmax.f32 %v148, 0.0
  %v175 = vmax.f32 %v151, 0.0
  %v176 = vmax.f32 %v153, 0.0
  %v177 = vmax.f32 %v156, 0.0
  %v178 = vmax.f32 %v158, 0.0
  %v179 = vmax.f32 %v161, 0.0
  %v180 = vmax.f32 %v163, 0.0
  %v181 = vpack.c.bf16 %v165, %v165
  %v182 = vpack.c.bf16 %v166, %v166
  %v183 = vpack.c.bf16 %v167, %v167
  %v184 = vpack.c.bf16 %v168, %v168
  %v185 = vpack.c.bf16 %v169, %v169
  %v186 = vpack.c.bf16 %v170, %v170
  %v187 = vpack.c.bf16 %v171, %v171
  %v188 = vpack.c.bf16 %v172, %v172
  %v189 = vpack.c.bf16 %v173, %v173
  %v190 = vpack.c.bf16 %v174, %v174
  %v191 = vpack.c.bf16 %v175, %v175
  %v192 = vpack.c.bf16 %v176, %v176
  %v193 = vpack.c.bf16 %v177, %v177
  %v194 = vpack.c.bf16 %v178, %v178
  %v195 = vpack.c.bf16 %v179, %v179
  %v196 = vpack.c.bf16 %v180, %v180
  %vm197 = vcmask 76800
  %198 = vst.msk [vmem:[%s3] sm:$0xf] %vm197, %v181
  %199 = vst.msk [vmem:[%s3 + $0x4] sm:$0xf] %vm197, %v182
  %200 = vst.msk [vmem:[%s3 + $0x8] sm:$0xf] %vm197, %v183
  %201 = vst.msk [vmem:[%s3 + $0xc] sm:$0xf] %vm197, %v184
  %202 = vst.msk [vmem:[%s3 + $0x10] sm:$0xf] %vm197, %v185
  %203 = vst.msk [vmem:[%s3 + $0x14] sm:$0xf] %vm197, %v186
  %204 = vst.msk [vmem:[%s3 + $0x18] sm:$0xf] %vm197, %v187
  %205 = vst.msk [vmem:[%s3 + $0x1c] sm:$0xf] %vm197, %v188
  %206 = vst.msk [vmem:[%s3 + $0x20] sm:$0xf] %vm197, %v189
  %207 = vst.msk [vmem:[%s3 + $0x24] sm:$0xf] %vm197, %v190
  %208 = vst.msk [vmem:[%s3 + $0x28] sm:$0xf] %vm197, %v191
  %209 = vst.msk [vmem:[%s3 + $0x2c] sm:$0xf] %vm197, %v192
  %210 = vst.msk [vmem:[%s3 + $0x30] sm:$0xf] %vm197, %v193
  %211 = vst.msk [vmem:[%s3 + $0x34] sm:$0xf] %vm197, %v194
  %212 = vst.msk [vmem:[%s3 + $0x38] sm:$0xf] %vm197, %v195
  %213 = vst.msk [vmem:[%s3 + $0x3c] sm:$0xf] %vm197, %v196
  // Predicated region
  $region14: #{forward.51} parent=0 // pred_check
    _
  $region15: #{forward.51} parent=0 // pred_check_branch
    %215 = sbr.rel (0) target = $region17
  $region16: #{forward.51} parent=0 // pred_region
    _
  $region17: #{forward.51} parent=0 // pred_fallthru
    _
  // Predicated region
  $region18: #{forward.51} parent=0 // pred_check
    _
  $region19: #{forward.51} parent=0 // pred_check_branch
    %217 = sbr.rel (0) target = $region21
  $region20: #{forward.51} parent=0 // pred_region
    _
  $region21: #{forward.51} parent=0 // pred_fallthru
    _

// kernel: forward.52
$region0: #{forward.52}
  #allocation0 [shape = 'u32[]', space=smem, size = 0x4, offset = 0x4, fixed_abs, tag = 'smem constant byte address 0x4 - core index']
  #allocation1 [shape = 'u32[72,128]{1,0:T(1,128)}', space=vmem, size = 0x9000, scoped, tag = 'internal scratch']
  %s0 = inlined_call_operand.vmem [shape: bf16[128,90], index: 0, kind: input, shape index: {}]
  %s1 = inlined_call_operand.vmem [shape: bf16[90,10], index: 1, kind: input, shape index: {}]
  %s2 = inlined_call_operand.vmem [shape: f32[1,10], index: 2, kind: input, shape index: {}]
  %s3 = inlined_call_operand.vmem [shape: bf16[128,10], index: 3, kind: output, shape index: {}]
  %s4 = sld [smem:[#allocation0]]
  $region22: #{forward.52} parent=0
    _
  %s6 = ssub.s32 1, %s4
  %s7 = scalar_select 0, %s6, %s4
  // Predicated region
  $region2: #{forward.52} parent=0 // pred_check
    _
  $region3: #{forward.52} parent=0 // pred_check_branch
    %9 = sbr.rel (0) target = $region5
  $region4: #{forward.52} parent=0 // pred_region
    _
  $region5: #{forward.52} parent=0 // pred_fallthru
    _
  // Predicated region
  $region6: #{forward.52} parent=0 // pred_check
    _
  $region7: #{forward.52} parent=0 // pred_check_branch
    %11 = sbr.rel (0) target = $region9
  $region8: #{forward.52} parent=0 // pred_region
    _
  $region9: #{forward.52} parent=0 // pred_fallthru
    _
  // Predicated region
  $region10: #{forward.52} parent=0 // pred_check
    _
  $region11: #{forward.52} parent=0 // pred_check_branch
    %13 = sbr.rel (0) target = $region13
  $region12: #{forward.52} parent=0 // pred_region
    _
  $region13: #{forward.52} parent=0 // pred_fallthru
    _
  %v15 = vld [vmem:[%s0] sm:$0xf]
  %v16 = vld [vmem:[%s0 + $0x4] sm:$0xf]
  %v17 = vld [vmem:[%s0 + $0x8] sm:$0xf]
  %v18 = vld [vmem:[%s0 + $0xc] sm:$0xf]
  %v19 = vld [vmem:[%s0 + $0x10] sm:$0xf]
  %v20 = vld [vmem:[%s0 + $0x14] sm:$0xf]
  %v21 = vld [vmem:[%s0 + $0x18] sm:$0xf]
  %v22 = vld [vmem:[%s0 + $0x1c] sm:$0xf]
  %v23 = vld [vmem:[%s0 + $0x20] sm:$0xf]
  %v24 = vld [vmem:[%s0 + $0x24] sm:$0xf]
  %v25 = vld [vmem:[%s0 + $0x28] sm:$0xf]
  %v26 = vld [vmem:[%s0 + $0x2c] sm:$0xf]
  %v27 = vld [vmem:[%s0 + $0x30] sm:$0xf]
  %v28 = vld [vmem:[%s0 + $0x34] sm:$0xf]
  %v29 = vld [vmem:[%s0 + $0x38] sm:$0xf]
  %v30 = vld [vmem:[%s0 + $0x3c] sm:$0xf]
  %v31 = vld [vmem:[%s1] sm:$0xf]
  %v32 = vld [vmem:[%s1 + $0x4] sm:$0xf]
  %v33 = vld [vmem:[%s1 + $0x8] sm:$0xf]
  %v34 = vld [vmem:[%s1 + $0xc] sm:$0xf]
  %v35 = vld [vmem:[%s1 + $0x10] sm:$0xf]
  %v36 = vld [vmem:[%s1 + $0x14] sm:$0xf]
  %v37 = vld [vmem:[%s1 + $0x18] sm:$0xf]
  %v38 = vld [vmem:[%s1 + $0x1c] sm:$0xf]
  %v39 = vld [vmem:[%s1 + $0x20] sm:$0xf]
  %v40 = vld [vmem:[%s1 + $0x24] sm:$0xf]
  %v41 = vld [vmem:[%s1 + $0x28] sm:$0xf]
  %v42 = vld [vmem:[%s1 + $0x2c] sm:$0x1]
  %v43 = vld [vmem:[%s2] sm:$0x1]
  %v45 = vperm.slane %v43, 0
  %v63 = vunpack.c.l.b16 %v15
  %v64 = vunpack.c.l.b16 %v16
  %v65 = vunpack.c.l.b16 %v17
  %v66 = vunpack.c.l.b16 %v18
  %v67 = vunpack.c.l.b16 %v19
  %v68 = vunpack.c.l.b16 %v20
  %v69 = vunpack.c.l.b16 %v21
  %v70 = vunpack.c.l.b16 %v22
  %v71 = vunpack.c.l.b16 %v23
  %v72 = vunpack.c.l.b16 %v24
  %v73 = vunpack.c.l.b16 %v25
  %v74 = vunpack.c.l.b16 %v26
  %v75 = vunpack.c.l.b16 %v27
  %v76 = vunpack.c.l.b16 %v28
  %v77 = vunpack.c.l.b16 %v29
  %v78 = vunpack.c.l.b16 %v30
  %v79 = vpack.c.b16 %v64, %v63
  %v80 = vpack.c.b16 %v66, %v65
  %v81 = vpack.c.b16 %v68, %v67
  %v82 = vpack.c.b16 %v70, %v69
  %v83 = vpack.c.b16 %v72, %v71
  %v84 = vpack.c.b16 %v74, %v73
  %v85 = vpack.c.b16 %v76, %v75
  %v86 = vpack.c.b16 %v78, %v77
  %v99 = vunpack.c.l.b16 %v31
  %v100 = vunpack.c.l.b16 %v32
  %v101 = vunpack.c.l.b16 %v33
  %v102 = vunpack.c.l.b16 %v34
  %v103 = vunpack.c.l.b16 %v35
  %v104 = vunpack.c.l.b16 %v36
  %v105 = vunpack.c.l.b16 %v37
  %v106 = vunpack.c.l.b16 %v38
  %v107 = vunpack.c.l.b16 %v39
  %v108 = vunpack.c.l.b16 %v40
  %v109 = vunpack.c.l.b16 %v41
  %v110 = vunpack.c.l.b16 %v42
  %v111 = vpack.c.b16 %v100, %v99
  %v112 = vpack.c.b16 %v102, %v101
  %v113 = vpack.c.b16 %v104, %v103
  %v114 = vpack.c.b16 %v106, %v105
  %v115 = vpack.c.b16 %v108, %v107
  %v116 = vpack.c.b16 %v110, %v109
  %vm122 = vcmask 736256
  %v124 = vsel %vm122, %v79, 0
  %v127 = vsel %vm122, %v80, 0
  %v130 = vsel %vm122, %v81, 0
  %v133 = vsel %vm122, %v82, 0
  %v136 = vsel %vm122, %v83, 0
  %v139 = vsel %vm122, %v84, 0
  %v142 = vsel %vm122, %v85, 0
  %v145 = vsel %vm122, %v86, 0
  %vm147 = vcmask 1044480
  %v149 = vsel %vm147, %v116, 0
  %151 = vmatpush.bf16.msra.mxu0 0
  %152 = vmatpush.bf16.msra.mxu0 0
  %153 = vmatpush.bf16.msra.mxu0 %v149
  %154 = vmatpush.bf16.msra.mxu0 %v115
  %155 = vmatpush.bf16.msra.mxu0 %v114
  %156 = vmatpush.bf16.msra.mxu0 %v113
  %157 = vmatpush.bf16.msra.mxu0 %v112
  %158 = vmatpush.bf16.msra.mxu0 %v111
  %159 = vmatmul.bf16.gmra.mxu0 %v124
  %v160 = vpop.f32.mrf.mxu0
  %v161 = vadd.f32 %v45, %v160
  %v162 = vpop.f32.mrf.mxu0
  %v163 = vadd.f32 %v45, %v162
  %164 = vmatmul.bf16.gmra.mxu0 %v127
  %v165 = vpop.f32.mrf.mxu0
  %v166 = vadd.f32 %v45, %v165
  %v167 = vpop.f32.mrf.mxu0
  %v168 = vadd.f32 %v45, %v167
  %169 = vmatmul.bf16.gmra.mxu0 %v130
  %v170 = vpop.f32.mrf.mxu0
  %v171 = vadd.f32 %v45, %v170
  %v172 = vpop.f32.mrf.mxu0
  %v173 = vadd.f32 %v45, %v172
  %174 = vmatmul.bf16.gmra.mxu0 %v133
  %v175 = vpop.f32.mrf.mxu0
  %v176 = vadd.f32 %v45, %v175
  %v177 = vpop.f32.mrf.mxu0
  %v178 = vadd.f32 %v45, %v177
  %179 = vmatmul.bf16.gmra.mxu0 %v136
  %v180 = vpop.f32.mrf.mxu0
  %v181 = vadd.f32 %v45, %v180
  %v182 = vpop.f32.mrf.mxu0
  %v183 = vadd.f32 %v45, %v182
  %184 = vmatmul.bf16.gmra.mxu0 %v139
  %v185 = vpop.f32.mrf.mxu0
  %v186 = vadd.f32 %v45, %v185
  %v187 = vpop.f32.mrf.mxu0
  %v188 = vadd.f32 %v45, %v187
  %189 = vmatmul.bf16.gmra.mxu0 %v142
  %v190 = vpop.f32.mrf.mxu0
  %v191 = vadd.f32 %v45, %v190
  %v192 = vpop.f32.mrf.mxu0
  %v193 = vadd.f32 %v45, %v192
  %194 = vmatmul.bf16.gmra.mxu0 %v145
  %v195 = vpop.f32.mrf.mxu0
  %v196 = vadd.f32 %v45, %v195
  %v197 = vpop.f32.mrf.mxu0
  %v198 = vadd.f32 %v45, %v197
  %199 = vdwg.mxu0
  %v200 = vmax.f32 %v161, 0.0
  %v201 = vmax.f32 %v163, 0.0
  %v202 = vmax.f32 %v166, 0.0
  %v203 = vmax.f32 %v168, 0.0
  %v204 = vmax.f32 %v171, 0.0
  %v205 = vmax.f32 %v173, 0.0
  %v206 = vmax.f32 %v176, 0.0
  %v207 = vmax.f32 %v178, 0.0
  %v208 = vmax.f32 %v181, 0.0
  %v209 = vmax.f32 %v183, 0.0
  %v210 = vmax.f32 %v186, 0.0
  %v211 = vmax.f32 %v188, 0.0
  %v212 = vmax.f32 %v191, 0.0
  %v213 = vmax.f32 %v193, 0.0
  %v214 = vmax.f32 %v196, 0.0
  %v215 = vmax.f32 %v198, 0.0
  %v216 = vpack.c.bf16 %v200, %v200
  %v217 = vpack.c.bf16 %v201, %v201
  %v218 = vpack.c.bf16 %v202, %v202
  %v219 = vpack.c.bf16 %v203, %v203
  %v220 = vpack.c.bf16 %v204, %v204
  %v221 = vpack.c.bf16 %v205, %v205
  %v222 = vpack.c.bf16 %v206, %v206
  %v223 = vpack.c.bf16 %v207, %v207
  %v224 = vpack.c.bf16 %v208, %v208
  %v225 = vpack.c.bf16 %v209, %v209
  %v226 = vpack.c.bf16 %v210, %v210
  %v227 = vpack.c.bf16 %v211, %v211
  %v228 = vpack.c.bf16 %v212, %v212
  %v229 = vpack.c.bf16 %v213, %v213
  %v230 = vpack.c.bf16 %v214, %v214
  %v231 = vpack.c.bf16 %v215, %v215
  %vm232 = vcmask 76800
  %233 = vst.msk [vmem:[%s3] sm:$0xf] %vm232, %v216
  %234 = vst.msk [vmem:[%s3 + $0x4] sm:$0xf] %vm232, %v217
  %235 = vst.msk [vmem:[%s3 + $0x8] sm:$0xf] %vm232, %v218
  %236 = vst.msk [vmem:[%s3 + $0xc] sm:$0xf] %vm232, %v219
  %237 = vst.msk [vmem:[%s3 + $0x10] sm:$0xf] %vm232, %v220
  %238 = vst.msk [vmem:[%s3 + $0x14] sm:$0xf] %vm232, %v221
  %239 = vst.msk [vmem:[%s3 + $0x18] sm:$0xf] %vm232, %v222
  %240 = vst.msk [vmem:[%s3 + $0x1c] sm:$0xf] %vm232, %v223
  %241 = vst.msk [vmem:[%s3 + $0x20] sm:$0xf] %vm232, %v224
  %242 = vst.msk [vmem:[%s3 + $0x24] sm:$0xf] %vm232, %v225
  %243 = vst.msk [vmem:[%s3 + $0x28] sm:$0xf] %vm232, %v226
  %244 = vst.msk [vmem:[%s3 + $0x2c] sm:$0xf] %vm232, %v227
  %245 = vst.msk [vmem:[%s3 + $0x30] sm:$0xf] %vm232, %v228
  %246 = vst.msk [vmem:[%s3 + $0x34] sm:$0xf] %vm232, %v229
  %247 = vst.msk [vmem:[%s3 + $0x38] sm:$0xf] %vm232, %v230
  %248 = vst.msk [vmem:[%s3 + $0x3c] sm:$0xf] %vm232, %v231
  // Predicated region
  $region14: #{forward.52} parent=0 // pred_check
    _
  $region15: #{forward.52} parent=0 // pred_check_branch
    %250 = sbr.rel (0) target = $region17
  $region16: #{forward.52} parent=0 // pred_region
    _
  $region17: #{forward.52} parent=0 // pred_fallthru
    _
  // Predicated region
  $region18: #{forward.52} parent=0 // pred_check
    _
  $region19: #{forward.52} parent=0 // pred_check_branch
    %252 = sbr.rel (0) target = $region21
  $region20: #{forward.52} parent=0 // pred_region
    _
  $region21: #{forward.52} parent=0 // pred_fallthru
    _

// kernel: forward.55
$region0: #{forward.55}
  #allocation0 [shape = 'u32[]', space=smem, size = 0x4, offset = 0x4, fixed_abs, tag = 'smem constant byte address 0x4 - core index']
  #allocation1 [shape = 'u32[72,128]{1,0:T(1,128)}', space=vmem, size = 0x9000, scoped, tag = 'internal scratch']
  %s0 = inlined_call_operand.vmem [shape: f32[20,64], index: 0, kind: input, shape index: {}]
  %s1 = inlined_call_operand.vmem [shape: f32[64,512], index: 1, kind: input, shape index: {}]
  %s2 = inlined_call_operand.vmem [shape: f32[1,512], index: 2, kind: input, shape index: {}]
  %s3 = inlined_call_operand.vmem [shape: f32[20,512], index: 3, kind: output, shape index: {}]
  %s4 = sld [smem:[#allocation0]]
  $region22: #{forward.55} parent=0
    _
  %s6 = ssub.s32 1, %s4
  %s7 = scalar_select 0, %s6, %s4
  // Predicated region
  $region2: #{forward.55} parent=0 // pred_check
    _
  $region3: #{forward.55} parent=0 // pred_check_branch
    %9 = sbr.rel (0) target = $region5
  $region4: #{forward.55} parent=0 // pred_region
    _
  $region5: #{forward.55} parent=0 // pred_fallthru
    _
  // Predicated region
  $region6: #{forward.55} parent=0 // pred_check
    _
  $region7: #{forward.55} parent=0 // pred_check_branch
    %11 = sbr.rel (0) target = $region9
  $region8: #{forward.55} parent=0 // pred_region
    _
  $region9: #{forward.55} parent=0 // pred_fallthru
    _
  // Predicated region
  $region10: #{forward.55} parent=0 // pred_check
    _
  $region11: #{forward.55} parent=0 // pred_check_branch
    %13 = sbr.rel (0) target = $region13
  $region12: #{forward.55} parent=0 // pred_region
    _
  $region13: #{forward.55} parent=0 // pred_fallthru
    _
  %v14 = vld [vmem:[%s0] sm:$0xff]
  %v15 = vld [vmem:[%s0 + $0x8] sm:$0xff]
  %v16 = vld [vmem:[%s0 + $0x10] sm:$0xf]
  %v17 = vld [vmem:[%s1] sm:$0xff]
  %v18 = vld [vmem:[%s1 + $0x8] sm:$0xff]
  %v19 = vld [vmem:[%s1 + $0x10] sm:$0xff]
  %v20 = vld [vmem:[%s1 + $0x18] sm:$0xff]
  %v21 = vld [vmem:[%s1 + $0x20] sm:$0xff]
  %v22 = vld [vmem:[%s1 + $0x28] sm:$0xff]
  %v23 = vld [vmem:[%s1 + $0x30] sm:$0xff]
  %v24 = vld [vmem:[%s1 + $0x38] sm:$0xff]
  %v25 = vld [vmem:[%s1 + $0x40] sm:$0xff]
  %v26 = vld [vmem:[%s1 + $0x48] sm:$0xff]
  %v27 = vld [vmem:[%s1 + $0x50] sm:$0xff]
  %v28 = vld [vmem:[%s1 + $0x58] sm:$0xff]
  %v29 = vld [vmem:[%s1 + $0x60] sm:$0xff]
  %v30 = vld [vmem:[%s1 + $0x68] sm:$0xff]
  %v31 = vld [vmem:[%s1 + $0x70] sm:$0xff]
  %v32 = vld [vmem:[%s1 + $0x78] sm:$0xff]
  %v33 = vld [vmem:[%s1 + $0x80] sm:$0xff]
  %v34 = vld [vmem:[%s1 + $0x88] sm:$0xff]
  %v35 = vld [vmem:[%s1 + $0x90] sm:$0xff]
  %v36 = vld [vmem:[%s1 + $0x98] sm:$0xff]
  %v37 = vld [vmem:[%s1 + $0xa0] sm:$0xff]
  %v38 = vld [vmem:[%s1 + $0xa8] sm:$0xff]
  %v39 = vld [vmem:[%s1 + $0xb0] sm:$0xff]
  %v40 = vld [vmem:[%s1 + $0xb8] sm:$0xff]
  %v41 = vld [vmem:[%s1 + $0xc0] sm:$0xff]
  %v42 = vld [vmem:[%s1 + $0xc8] sm:$0xff]
  %v43 = vld [vmem:[%s1 + $0xd0] sm:$0xff]
  %v44 = vld [vmem:[%s1 + $0xd8] sm:$0xff]
  %v45 = vld [vmem:[%s1 + $0xe0] sm:$0xff]
  %v46 = vld [vmem:[%s1 + $0xe8] sm:$0xff]
  %v47 = vld [vmem:[%s1 + $0xf0] sm:$0xff]
  %v48 = vld [vmem:[%s1 + $0xf8] sm:$0xff]
  %v49 = vld [vmem:[%s2] sm:$0xf]
  %v51 = vperm.slane %v49, 0
  %v52 = vperm.slane %v49, 1
  %v53 = vperm.slane %v49, 2
  %v54 = vperm.slane %v49, 3
  %vm59 = vcmask 523264
  %v61 = vsel %vm59, %v14, 0
  %v64 = vsel %vm59, %v15, 0
  %v67 = vsel %vm59, %v16, 0
  %69 = vmatpush.msra.mxu0 0.0
  %70 = vmatpush.msra.mxu0 0.0
  %71 = vmatpush.msra.mxu0 0.0
  %72 = vmatpush.msra.mxu0 0.0
  %73 = vmatpush.msra.mxu0 0.0
  %74 = vmatpush.msra.mxu0 0.0
  %75 = vmatpush.msra.mxu0 0.0
  %76 = vmatpush.msra.mxu0 0.0
  %77 = vmatpush.msra.mxu0 %v45
  %78 = vmatpush.msra.mxu0 %v41
  %79 = vmatpush.msra.mxu0 %v37
  %80 = vmatpush.msra.mxu0 %v33
  %81 = vmatpush.msra.mxu0 %v29
  %82 = vmatpush.msra.mxu0 %v25
  %83 = vmatpush.msra.mxu0 %v21
  %84 = vmatpush.msra.mxu0 %v17
  %85 = vmatmul.f32.gmra.mxu0 %v61
  %v86 = vpop.f32.mrf.mxu0
  %v87 = vadd.f32 %v51, %v86
  %88 = vmatmul.f32.gmra.mxu0 %v64
  %v89 = vpop.f32.mrf.mxu0
  %v90 = vadd.f32 %v51, %v89
  %91 = vmatmul.f32.gmra.mxu0 %v67
  %v92 = vpop.f32.mrf.mxu0
  %v93 = vadd.f32 %v51, %v92
  %94 = vdwg.mxu0
  %95 = vmatpush.msra.mxu0 0.0
  %96 = vmatpush.msra.mxu0 0.0
  %97 = vmatpush.msra.mxu0 0.0
  %98 = vmatpush.msra.mxu0 0.0
  %99 = vmatpush.msra.mxu0 0.0
  %100 = vmatpush.msra.mxu0 0.0
  %101 = vmatpush.msra.mxu0 0.0
  %102 = vmatpush.msra.mxu0 0.0
  %103 = vmatpush.msra.mxu0 %v46
  %104 = vmatpush.msra.mxu0 %v42
  %105 = vmatpush.msra.mxu0 %v38
  %106 = vmatpush.msra.mxu0 %v34
  %107 = vmatpush.msra.mxu0 %v30
  %108 = vmatpush.msra.mxu0 %v26
  %109 = vmatpush.msra.mxu0 %v22
  %110 = vmatpush.msra.mxu0 %v18
  %111 = vmatmul.f32.gmra.mxu0 %v61
  %v112 = vpop.f32.mrf.mxu0
  %v113 = vadd.f32 %v52, %v112
  %114 = vmatmul.f32.gmra.mxu0 %v64
  %v115 = vpop.f32.mrf.mxu0
  %v116 = vadd.f32 %v52, %v115
  %117 = vmatmul.f32.gmra.mxu0 %v67
  %v118 = vpop.f32.mrf.mxu0
  %v119 = vadd.f32 %v52, %v118
  %120 = vdwg.mxu0
  %121 = vmatpush.msra.mxu0 0.0
  %122 = vmatpush.msra.mxu0 0.0
  %123 = vmatpush.msra.mxu0 0.0
  %124 = vmatpush.msra.mxu0 0.0
  %125 = vmatpush.msra.mxu0 0.0
  %126 = vmatpush.msra.mxu0 0.0
  %127 = vmatpush.msra.mxu0 0.0
  %128 = vmatpush.msra.mxu0 0.0
  %129 = vmatpush.msra.mxu0 %v47
  %130 = vmatpush.msra.mxu0 %v43
  %131 = vmatpush.msra.mxu0 %v39
  %132 = vmatpush.msra.mxu0 %v35
  %133 = vmatpush.msra.mxu0 %v31
  %134 = vmatpush.msra.mxu0 %v27
  %135 = vmatpush.msra.mxu0 %v23
  %136 = vmatpush.msra.mxu0 %v19
  %137 = vmatmul.f32.gmra.mxu0 %v61
  %v138 = vpop.f32.mrf.mxu0
  %v139 = vadd.f32 %v53, %v138
  %140 = vmatmul.f32.gmra.mxu0 %v64
  %v141 = vpop.f32.mrf.mxu0
  %v142 = vadd.f32 %v53, %v141
  %143 = vmatmul.f32.gmra.mxu0 %v67
  %v144 = vpop.f32.mrf.mxu0
  %v145 = vadd.f32 %v53, %v144
  %146 = vdwg.mxu0
  %147 = vmatpush.msra.mxu0 0.0
  %148 = vmatpush.msra.mxu0 0.0
  %149 = vmatpush.msra.mxu0 0.0
  %150 = vmatpush.msra.mxu0 0.0
  %151 = vmatpush.msra.mxu0 0.0
  %152 = vmatpush.msra.mxu0 0.0
  %153 = vmatpush.msra.mxu0 0.0
  %154 = vmatpush.msra.mxu0 0.0
  %155 = vmatpush.msra.mxu0 %v48
  %156 = vmatpush.msra.mxu0 %v44
  %157 = vmatpush.msra.mxu0 %v40
  %158 = vmatpush.msra.mxu0 %v36
  %159 = vmatpush.msra.mxu0 %v32
  %160 = vmatpush.msra.mxu0 %v28
  %161 = vmatpush.msra.mxu0 %v24
  %162 = vmatpush.msra.mxu0 %v20
  %163 = vmatmul.f32.gmra.mxu0 %v61
  %v164 = vpop.f32.mrf.mxu0
  %v165 = vadd.f32 %v54, %v164
  %166 = vmatmul.f32.gmra.mxu0 %v64
  %v167 = vpop.f32.mrf.mxu0
  %v168 = vadd.f32 %v54, %v167
  %169 = vmatmul.f32.gmra.mxu0 %v67
  %v170 = vpop.f32.mrf.mxu0
  %v171 = vadd.f32 %v54, %v170
  %172 = vdwg.mxu0
  %173 = vst [vmem:[%s3] sm:$0xff] %v87
  %174 = vst [vmem:[%s3 + $0x8] sm:$0xff] %v113
  %175 = vst [vmem:[%s3 + $0x10] sm:$0xff] %v139
  %176 = vst [vmem:[%s3 + $0x18] sm:$0xff] %v165
  %177 = vst [vmem:[%s3 + $0x20] sm:$0xff] %v90
  %178 = vst [vmem:[%s3 + $0x28] sm:$0xff] %v116
  %179 = vst [vmem:[%s3 + $0x30] sm:$0xff] %v142
  %180 = vst [vmem:[%s3 + $0x38] sm:$0xff] %v168
  %181 = vst [vmem:[%s3 + $0x40] sm:$0xf] %v93
  %182 = vst [vmem:[%s3 + $0x48] sm:$0xf] %v119
  %183 = vst [vmem:[%s3 + $0x50] sm:$0xf] %v145
  %184 = vst [vmem:[%s3 + $0x58] sm:$0xf] %v171
  // Predicated region
  $region14: #{forward.55} parent=0 // pred_check
    _
  $region15: #{forward.55} parent=0 // pred_check_branch
    %186 = sbr.rel (0) target = $region17
  $region16: #{forward.55} parent=0 // pred_region
    _
  $region17: #{forward.55} parent=0 // pred_fallthru
    _
  // Predicated region
  $region18: #{forward.55} parent=0 // pred_check
    _
  $region19: #{forward.55} parent=0 // pred_check_branch
    %188 = sbr.rel (0) target = $region21
  $region20: #{forward.55} parent=0 // pred_region
    _
  $region21: #{forward.55} parent=0 // pred_fallthru
    _

// kernel: forward.56
$region0: #{forward.56}
  #allocation0 [shape = 'u32[]', space=smem, size = 0x4, offset = 0x4, fixed_abs, tag = 'smem constant byte address 0x4 - core index']
  #allocation1 [shape = 'u32[72,128]{1,0:T(1,128)}', space=vmem, size = 0x9000, scoped, tag = 'internal scratch']
  #allocation2 [shape = 'f32[2,64]{1,0:T(2,128)}', space=vmem, size = 0x400, scoped, tag = 'scratch operand']
  #allocation3 [shape = 'f32[2,64]{1,0:T(2,128)}', space=vmem, size = 0x400, scoped, tag = 'scratch operand']
  %s0 = inlined_call_operand.vmem [shape: f32[2,10,2,256], index: 0, kind: input, shape index: {}]
  %s1 = inlined_call_operand.vmem [shape: f32[2,64,256], index: 1, kind: input, shape index: {}]
  %s2 = inlined_call_operand.vmem [shape: f32[2,10,2,64], index: 2, kind: output, shape index: {}]
  %s3 = sld [smem:[#allocation0]]
  $region45: #{forward.56} parent=0
    _
  %s5 = ssub.s32 1, %s3
  %s6 = scalar_select 0, %s5, %s3
  loop: start=0, step=1, limit=22
  $region2: #{forward.56} parent=0 // loop_pre_header
    _
  $region3: #{forward.56} parent=0 // loop_header
    %s8 = sphi 0, %s12
    %p9 = scmp.ge.s32.totalorder %s8, 22
    %s15 = sphi 0, %s27
    %s16 = sphi 0, %s23
    %s17 = sphi 0, %s15
    %s18 = sphi 0, %s16
    %s19 = sphi 0, %s17
    %s20 = sphi 0, %s18
    %s42 = sphi 0, %s44
    %s45 = sphi 0, %s42
    %s46 = sphi 0, %s45
    %s62 = sphi 0, %s46
    %s68 = sphi 0, %s70
    %s71 = sphi 0, %s68
    %s72 = sphi 0, %s71
    %s88 = sphi 0, %s72
    %s106 = sphi 0, %s108
    %s109 = sphi 0, %s106
    %s110 = sphi 0, %s109
    %s126 = sphi 0, %s110
  $region4: #{forward.56} parent=0 // loop_header_branch
    %11 = sbr.rel (%p9) target = $region8
  $region5: #{forward.56} parent=0 // loop_body
    %s13 = ssub.s32 %s8, 1
    %s14 = ssub.s32 %s8, 2
    %s21 = sadd.s32 1, %s16
    %p22 = scmp.ge.s32.totalorder %s21, 10
    %s23 = scalar_select %p22, 0, %s21
    %s24 = sadd.s32 1, %s15
    %s25 = scalar_select %p22, %s24, %s15
    %p26 = scmp.ge.s32.totalorder %s25, 2
    %s27 = scalar_select %p26, 0, %s25
    %s28 = ssub.s32 1, %s15
    %s29 = smul.u32 %s28, %s16
    %s30 = ssub.s32 9, %s16
    %s31 = smul.u32 %s15, %s30
    %s32 = sadd.s32 %s29, %s31
    %s33 = ssub.s32 1, %s27
    %s34 = smul.u32 %s33, %s23
    %s35 = ssub.s32 9, %s23
    %s36 = smul.u32 %s27, %s35
    %s37 = sadd.s32 %s34, %s36
    %s38 = ssub.s32 %s15, %s27
    %s39 = ssub.s32 %s32, %s37
    %s40 = sor.u32 %s38, %s39
    %p41 = scmp.eq.s32.totalorder %s40, 0
    %s43 = sadd.s32 %s42, 1
    %s44 = scalar_select %p41, %s42, %s43
    %p47 = pneg %p41
    %p48 = scmp.eq.s32.totalorder %s8, 19
    %p49 = por %p47, %p48
    %p50 = scmp.ne.s32.totalorder %s42, %s45
    %p51 = scmp.eq.s32.totalorder %s8, 0
    %p52 = por %p50, %p51
    %p53 = scmp.ne.s32.totalorder %s42, %s45
    %p54 = scmp.eq.s32.totalorder %s13, 19
    %p55 = por %p53, %p54
    %p56 = scmp.ne.s32.totalorder %s45, %s46
    %p57 = scmp.eq.s32.totalorder %s13, 0
    %p58 = por %p56, %p57
    %p59 = scmp.ne.s32.totalorder %s45, %s46
    %p60 = scmp.eq.s32.totalorder %s14, 19
    %p61 = por %p59, %p60
    %p63 = scmp.ne.s32.totalorder %s46, %s62
    %p64 = scmp.eq.s32.totalorder %s14, 0
    %p65 = por %p63, %p64
    %s66 = ssub.s32 %s15, %s27
    %p67 = scmp.eq.s32.totalorder %s66, 0
    %s69 = sadd.s32 %s68, 1
    %s70 = scalar_select %p67, %s68, %s69
    %p73 = pneg %p67
    %p74 = scmp.eq.s32.totalorder %s8, 19
    %p75 = por %p73, %p74
    %p76 = scmp.ne.s32.totalorder %s68, %s71
    %p77 = scmp.eq.s32.totalorder %s8, 0
    %p78 = por %p76, %p77
    %p79 = scmp.ne.s32.totalorder %s68, %s71
    %p80 = scmp.eq.s32.totalorder %s13, 19
    %p81 = por %p79, %p80
    %p82 = scmp.ne.s32.totalorder %s71, %s72
    %p83 = scmp.eq.s32.totalorder %s13, 0
    %p84 = por %p82, %p83
    %p85 = scmp.ne.s32.totalorder %s71, %s72
    %p86 = scmp.eq.s32.totalorder %s14, 19
    %p87 = por %p85, %p86
    %p89 = scmp.ne.s32.totalorder %s72, %s88
    %p90 = scmp.eq.s32.totalorder %s14, 0
    %p91 = por %p89, %p90
    %s92 = ssub.s32 1, %s15
    %s93 = smul.u32 %s92, %s16
    %s94 = ssub.s32 9, %s16
    %s95 = smul.u32 %s15, %s94
    %s96 = sadd.s32 %s93, %s95
    %s97 = ssub.s32 1, %s27
    %s98 = smul.u32 %s97, %s23
    %s99 = ssub.s32 9, %s23
    %s100 = smul.u32 %s27, %s99
    %s101 = sadd.s32 %s98, %s100
    %s102 = ssub.s32 %s15, %s27
    %s103 = ssub.s32 %s96, %s101
    %s104 = sor.u32 %s102, %s103
    %p105 = scmp.eq.s32.totalorder %s104, 0
    %s107 = sadd.s32 %s106, 1
    %s108 = scalar_select %p105, %s106, %s107
    %p111 = pneg %p105
    %p112 = scmp.eq.s32.totalorder %s8, 19
    %p113 = por %p111, %p112
    %p114 = scmp.ne.s32.totalorder %s106, %s109
    %p115 = scmp.eq.s32.totalorder %s8, 0
    %p116 = por %p114, %p115
    %p117 = scmp.ne.s32.totalorder %s106, %s109
    %p118 = scmp.eq.s32.totalorder %s13, 19
    %p119 = por %p117, %p118
    %p120 = scmp.ne.s32.totalorder %s109, %s110
    %p121 = scmp.eq.s32.totalorder %s13, 0
    %p122 = por %p120, %p121
    %p123 = scmp.ne.s32.totalorder %s109, %s110
    %p124 = scmp.eq.s32.totalorder %s14, 19
    %p125 = por %p123, %p124
    %p127 = scmp.ne.s32.totalorder %s110, %s126
    %p128 = scmp.eq.s32.totalorder %s14, 0
    %p129 = por %p127, %p128
    %p130 = scmp.le.s32.totalorder 1, %s8
    %p131 = scmp.lt.s32.totalorder %s8, 21
    %p132 = pnand %p130, %p131
    %p133 = pneg %p132
    // Predicated region
    $region9: #{forward.56} parent=5 // pred_check
      _
    $region10: #{forward.56} parent=5 // pred_check_branch
      %135 = sbr.rel (%p132) target = $region12
    $region11: #{forward.56} parent=5 // pred_region
      %s136 = ssub.s32 %s8, 1
    $region12: #{forward.56} parent=5 // pred_fallthru
      _
    %p137 = scmp.lt.s32.totalorder %s8, 20
    // Predicated region
    $region13: #{forward.56} parent=5 // pred_check
      %p138 = pneg %p137
    $region14: #{forward.56} parent=5 // pred_check_branch
      %140 = sbr.rel (%p138) target = $region16
    $region15: #{forward.56} parent=5 // pred_region
      // Predicated region
      $region17: #{forward.56} parent=15 // pred_check
        %p141 = pneg %p52
      $region18: #{forward.56} parent=15 // pred_check_branch
        %143 = sbr.rel (%p141) target = $region20
      $region19: #{forward.56} parent=15 // pred_region
        %s144 = ssub.s32 1, %s15
        %s145 = smul.u32 %s144, %s16
        %s146 = ssub.s32 9, %s16
        %s147 = smul.u32 %s15, %s146
        %s148 = sadd.s32 %s145, %s147
        %p149 = scmp.lt.s32.totalorder %s15, 1
        %s150 = scalar_select %p149, %s15, 1
        %p151 = scmp.lt.s32.totalorder %s148, 9
        %s152 = scalar_select %p151, %s148, 9
        %s153 = smul.addr %s152, 2
        %s154 = smul.addr %s150, 20
        %s155 = sadd.s32 %s153, %s154
        %s156 = smul.addr %s155, 2
        %s157 = scalar_lea.vmem %s0, %s156
        %s158 = ssub.s32 1, %s15
        %s159 = smul.u32 %s158, %s16
        %s160 = ssub.s32 9, %s16
        %s161 = smul.u32 %s15, %s160
        %s162 = sadd.s32 %s159, %s161
      $region20: #{forward.56} parent=15 // pred_fallthru
        _
      // Predicated region
      $region21: #{forward.56} parent=15 // pred_check
        %p163 = pneg %p78
      $region22: #{forward.56} parent=15 // pred_check_branch
        %165 = sbr.rel (%p163) target = $region24
      $region23: #{forward.56} parent=15 // pred_region
        %p166 = scmp.lt.s32.totalorder %s15, 1
        %s167 = scalar_select %p166, %s15, 1
        %s168 = smul.addr %s167, 16
        %s169 = smul.addr %s168, 8
        %s170 = scalar_lea.vmem %s1, %s169
      $region24: #{forward.56} parent=15 // pred_fallthru
        _
    $region16: #{forward.56} parent=5 // pred_fallthru
      _
    %p171 = scmp.le.s32.totalorder 1, %s8
    %p172 = scmp.lt.s32.totalorder %s8, 21
    %p173 = pnand %p171, %p172
    %p174 = pneg %p173
    // Predicated region
    $region25: #{forward.56} parent=5 // pred_check
      _
    $region26: #{forward.56} parent=5 // pred_check_branch
      %176 = sbr.rel (%p173) target = $region28
    $region27: #{forward.56} parent=5 // pred_region
      %s177 = ssub.s32 %s8, 1
      %s178 = ssub.s32 1, %s17
      %s179 = smul.u32 %s178, %s18
      %s180 = ssub.s32 9, %s18
      %s181 = smul.u32 %s17, %s180
      %s182 = sadd.s32 %s179, %s181
      %p183 = scmp.lt.s32.totalorder %s17, 1
      %s184 = scalar_select %p183, %s17, 1
      %p185 = scmp.lt.s32.totalorder %s182, 9
      %s186 = scalar_select %p185, %s182, 9
      %s187 = smul.addr %s186, 2
      %s188 = smul.addr %s184, 20
      %s189 = sadd.s32 %s187, %s188
      %s190 = smul.addr %s189, 2
      %s191 = scalar_lea.vmem %s0, %s190
      %p192 = pneg %p58
      %p193 = pneg %p55
      %p194 = scmp.lt.s32.totalorder %s17, 1
      %s195 = scalar_select %p194, %s17, 1
      %s196 = smul.addr %s195, 16
      %s197 = smul.addr %s196, 8
      %s198 = scalar_lea.vmem %s1, %s197
      %p199 = pneg %p84
      %p200 = pneg %p81
      %p201 = pneg %p122
      %p202 = pneg %p119
      %s203 = ssub.s32 1, %s17
      %s204 = smul.u32 %s203, %s18
      %s205 = ssub.s32 9, %s18
      %s206 = smul.u32 %s17, %s205
      %s207 = sadd.s32 %s204, %s206
      %p208 = scmp.lt.s32.totalorder %s17, 1
      %s209 = scalar_select %p208, %s17, 1
      %p210 = scmp.lt.s32.totalorder %s207, 9
      %s211 = scalar_select %p210, %s207, 9
      %s212 = smul.addr %s209, 10
      %s213 = sadd.s32 %s211, %s212
      %s214 = smul.addr %s213, 2
      %s215 = scalar_lea.vmem %s2, %s214
      %s216 = ssub.s32 1, %s17
      %s217 = smul.u32 %s216, %s18
      %s218 = ssub.s32 9, %s18
      %s219 = smul.u32 %s17, %s218
      %s220 = sadd.s32 %s217, %s219
      %p221 = scmp.lt.s32.totalorder %s17, 1
      %s222 = scalar_select %p221, %s17, 1
      %p223 = scmp.lt.s32.totalorder %s220, 9
      %s224 = scalar_select %p223, %s220, 9
      %s225 = smul.addr %s224, 2
      %s226 = smul.addr %s222, 20
      %s227 = sadd.s32 %s225, %s226
      %s228 = smul.addr %s227, 2
      %s229 = scalar_lea.vmem %s0, %s228
      %s230 = ssub.s32 1, %s17
      %s231 = smul.u32 %s230, %s18
      %s232 = ssub.s32 9, %s18
      %s233 = smul.u32 %s17, %s232
      %s234 = sadd.s32 %s231, %s233
      %p235 = scmp.lt.s32.totalorder %s17, 1
      %s236 = scalar_select %p235, %s17, 1
      %s237 = smul.addr %s236, 16
      %s238 = smul.addr %s237, 8
      %s239 = scalar_lea.vmem %s1, %s238
      %s240 = ssub.s32 1, %s17
      %s241 = smul.u32 %s240, %s18
      %s242 = ssub.s32 9, %s18
      %s243 = smul.u32 %s17, %s242
      %s244 = sadd.s32 %s241, %s243
      %p245 = scmp.lt.s32.totalorder %s17, 1
      %s246 = scalar_select %p245, %s17, 1
      %p247 = scmp.lt.s32.totalorder %s244, 9
      %s248 = scalar_select %p247, %s244, 9
      %s249 = smul.addr %s246, 10
      %s250 = sadd.s32 %s248, %s249
      %s251 = smul.addr %s250, 2
      %s252 = scalar_lea.vmem %s2, %s251
      %s253 = ssub.s32 1, %s17
      %s254 = smul.u32 %s253, %s18
      %s255 = ssub.s32 9, %s18
      %s256 = smul.u32 %s17, %s255
      %s257 = sadd.s32 %s254, %s256
      %p258 = scmp.eq.s32.totalorder %s18, 0
      // Predicated region
      $region29: #{forward.56} parent=27 // pred_check
        %p259 = pneg %p258
      $region30: #{forward.56} parent=27 // pred_check_branch
        %261 = sbr.rel (%p259) target = $region32
      $region31: #{forward.56} parent=27 // pred_region
        %vm262 = vcmask 517120
        %263 = vst.msk [vmem:[#allocation2] sm:$0x3] %vm262, 0.0
        %264 = vst.msk [vmem:[#allocation3] sm:$0x3] %vm262, 0.0
      $region32: #{forward.56} parent=27 // pred_fallthru
        _
      %v265 = vld [vmem:[%s229] sm:$0xf]
      %v266 = vld [vmem:[#allocation2] sm:$0x3]
      %v267 = vld [vmem:[%s239] sm:$0xff]
      %v268 = vld [vmem:[%s239 + $0x8] sm:$0xff]
      %v269 = vld [vmem:[%s239 + $0x10] sm:$0xff]
      %v270 = vld [vmem:[%s239 + $0x18] sm:$0xff]
      %v271 = vld [vmem:[%s239 + $0x20] sm:$0xff]
      %v272 = vld [vmem:[%s239 + $0x28] sm:$0xff]
      %v273 = vld [vmem:[%s239 + $0x30] sm:$0xff]
      %v274 = vld [vmem:[%s239 + $0x38] sm:$0xff]
      %v275 = vld [vmem:[%s239 + $0x40] sm:$0xff]
      %v276 = vld [vmem:[%s239 + $0x48] sm:$0xff]
      %v277 = vld [vmem:[%s239 + $0x50] sm:$0xff]
      %v278 = vld [vmem:[%s239 + $0x58] sm:$0xff]
      %v279 = vld [vmem:[%s239 + $0x60] sm:$0xff]
      %v280 = vld [vmem:[%s239 + $0x68] sm:$0xff]
      %v281 = vld [vmem:[%s239 + $0x70] sm:$0xff]
      %v282 = vld [vmem:[%s239 + $0x78] sm:$0xff]
      %vm283 = vcmask 523264
      %v285 = vsel %vm283, %v266, 0
      %287 = vmatpush.msra.mxu0 0.0
      %288 = vmatpush.msra.mxu0 0.0
      %289 = vmatpush.msra.mxu0 0.0
      %290 = vmatpush.msra.mxu0 0.0
      %291 = vmatpush.msra.mxu0 0.0
      %292 = vmatpush.msra.mxu0 0.0
      %293 = vmatpush.msra.mxu0 0.0
      %294 = vmatpush.msra.mxu0 0.0
      %295 = vmatpush.msra.mxu0 %v281
      %296 = vmatpush.msra.mxu0 %v279
      %297 = vmatpush.msra.mxu0 %v277
      %298 = vmatpush.msra.mxu0 %v275
      %299 = vmatpush.msra.mxu0 %v273
      %300 = vmatpush.msra.mxu0 %v271
      %301 = vmatpush.msra.mxu0 %v269
      %302 = vmatpush.msra.mxu0 %v267
      %303 = vmatmul.f32.gmra.mxu0 %v285
      %v304 = vpop.f32.mrf.mxu0
      %v305 = vadd.f32 0.0, %v304
      %306 = vdwg.mxu0
      %307 = vmatpush.msra.mxu0 0.0
      %308 = vmatpush.msra.mxu0 0.0
      %309 = vmatpush.msra.mxu0 0.0
      %310 = vmatpush.msra.mxu0 0.0
      %311 = vmatpush.msra.mxu0 0.0
      %312 = vmatpush.msra.mxu0 0.0
      %313 = vmatpush.msra.mxu0 0.0
      %314 = vmatpush.msra.mxu0 0.0
      %315 = vmatpush.msra.mxu0 %v282
      %316 = vmatpush.msra.mxu0 %v280
      %317 = vmatpush.msra.mxu0 %v278
      %318 = vmatpush.msra.mxu0 %v276
      %319 = vmatpush.msra.mxu0 %v274
      %320 = vmatpush.msra.mxu0 %v272
      %321 = vmatpush.msra.mxu0 %v270
      %322 = vmatpush.msra.mxu0 %v268
      %323 = vmatmul.f32.gmra.mxu0 %v285
      %v324 = vpop.f32.mrf.mxu0
      %v325 = vadd.f32 0.0, %v324
      %326 = vdwg.mxu0
      %v329 = vrot.slane %v325, 6
      %vm330 = vcmask 1041408
      %v331 = vsel %vm330, %v305, %v329
      %v333 = vadd.f32 %v265, %v331
      %v334 = vxor.u32 %v333, 2147483648
      %v335 = vmul.f32 %v334, 1.442695
      %v336 = vpow.pop %v335
      %v337 = vadd.f32 %v336, 1.0
      %v338 = vrcp.pop %v337
      %v339 = vmul.f32 %v337, %v338
      %v340 = vsub.f32 1.0, %v339
      %v341 = vmul.f32 %v338, %v340
      %v342 = vadd.f32 %v338, %v341
      %vm343 = vweird.f32 %v337
      %vm344 = vweird.f32 %v338
      %vm345 = vmor %vm343, %vm344
      %v346 = vsel %vm345, %v338, %v342
      %v347 = vand.u32 2147483647, %v337
      %vm348 = vcmp.eq.f32.partialorder %v347, 8.507059e+37
      %v349 = vand.u32 %v337, 2147483648
      %v350 = vor.u32 1.1754944e-38, %v349
      %v351 = vsel %vm348, %v350, %v346
      %v352 = vmul.f32 1.0, %v351
      %v354 = vrot.slane %v333, 2
      %v356 = vtanh.pop %v354
      %357 = vrot.lane.b32.xlu0 %v333, 64
      %v358 = vpop.permute.xlu0 %357
      %v359 = vrot.slane %v358, 2
      %v361 = vxor.u32 %v359, 2147483648
      %v362 = vmul.f32 %v361, 1.442695
      %v363 = vpow.pop %v362
      %v364 = vadd.f32 %v363, 1.0
      %v365 = vrcp.pop %v364
      %v366 = vmul.f32 %v364, %v365
      %v367 = vsub.f32 1.0, %v366
      %v368 = vmul.f32 %v365, %v367
      %v369 = vadd.f32 %v365, %v368
      %vm370 = vweird.f32 %v364
      %vm371 = vweird.f32 %v365
      %vm372 = vmor %vm370, %vm371
      %v373 = vsel %vm372, %v365, %v369
      %v374 = vand.u32 2147483647, %v364
      %vm375 = vcmp.eq.f32.partialorder %v374, 8.507059e+37
      %v376 = vand.u32 %v364, 2147483648
      %v377 = vor.u32 1.1754944e-38, %v376
      %v378 = vsel %vm375, %v377, %v373
      %v379 = vmul.f32 1.0, %v378
      %v380 = vld [vmem:[#allocation3] sm:$0x3]
      %382 = vrot.lane.b32.xlu0 %v380, 64
      %v383 = vpop.permute.xlu0 %382
      %v385 = vmul.f32 %v352, %v383
      %v386 = vmul.f32 %v352, %v356
      %388 = vrot.lane.b32.xlu0 %v386, 64
      %v389 = vpop.permute.xlu0 %388
      %v391 = vadd.f32 %v385, %v389
      %v392 = vtanh.pop %v391
      %394 = vrot.lane.b32.xlu0 %v392, 64
      %v395 = vpop.permute.xlu0 %394
      %v397 = vmul.f32 %v379, %v395
      %vm398 = vcmask 517120
      %399 = vst.msk [vmem:[#allocation2] sm:$0x3] %vm398, %v397
      %401 = vst [vmem:[#allocation1] ss:$4 sm:$0xff] %v391
      %v402 = vld.sshfl [vmem:[#allocation1] sm:$0xff pattern:$0x73625140]
      %403 = vrot.lane.b32.xlu0 %v402, 64
      %v404 = vpop.permute.xlu0 %403
      %406 = vst.msk [vmem:[#allocation3] sm:$0x3] %vm398, %v404
      %407 = vst.msk [vmem:[%s252] sm:$0x3] %vm398, %v397
      %s408 = ssub.s32 1, %s17
      %s409 = smul.u32 %s408, %s18
      %s410 = ssub.s32 9, %s18
      %s411 = smul.u32 %s17, %s410
      %s412 = sadd.s32 %s409, %s411
      %p413 = scmp.lt.s32.totalorder %s17, 1
      %s414 = scalar_select %p413, %s17, 1
      %p415 = scmp.lt.s32.totalorder %s412, 9
      %s416 = scalar_select %p415, %s412, 9
      %s417 = smul.addr %s414, 10
      %s418 = sadd.s32 %s416, %s417
      %s419 = smul.addr %s418, 2
      %s420 = scalar_lea.vmem %s2, %s419
      // Predicated region
      $region33: #{forward.56} parent=27 // pred_check
        %p421 = pneg %p119
      $region34: #{forward.56} parent=27 // pred_check_branch
        %423 = sbr.rel (%p421) target = $region36
      $region35: #{forward.56} parent=27 // pred_region
        %s424 = ssub.s32 1, %s17
        %s425 = smul.u32 %s424, %s18
        %s426 = ssub.s32 9, %s18
        %s427 = smul.u32 %s17, %s426
        %s428 = sadd.s32 %s425, %s427
      $region36: #{forward.56} parent=27 // pred_fallthru
        _
    $region28: #{forward.56} parent=5 // pred_fallthru
      _
    %p429 = scmp.le.s32.totalorder 2, %s8
    // Predicated region
    $region37: #{forward.56} parent=5 // pred_check
      %p430 = pneg %p429
    $region38: #{forward.56} parent=5 // pred_check_branch
      %432 = sbr.rel (%p430) target = $region40
    $region39: #{forward.56} parent=5 // pred_region
      %s433 = ssub.s32 %s8, 2
      // Predicated region
      $region41: #{forward.56} parent=39 // pred_check
        %p434 = pneg %p125
      $region42: #{forward.56} parent=39 // pred_check_branch
        %436 = sbr.rel (%p434) target = $region44
      $region43: #{forward.56} parent=39 // pred_region
        %s437 = ssub.s32 1, %s19
        %s438 = smul.u32 %s437, %s20
        %s439 = ssub.s32 9, %s20
        %s440 = smul.u32 %s19, %s439
        %s441 = sadd.s32 %s438, %s440
        %p442 = scmp.lt.s32.totalorder %s19, 1
        %s443 = scalar_select %p442, %s19, 1
        %p444 = scmp.lt.s32.totalorder %s441, 9
        %s445 = scalar_select %p444, %s441, 9
        %s446 = smul.addr %s443, 10
        %s447 = sadd.s32 %s445, %s446
        %s448 = smul.addr %s447, 2
        %s449 = scalar_lea.vmem %s2, %s448
      $region44: #{forward.56} parent=39 // pred_fallthru
        _
    $region40: #{forward.56} parent=5 // pred_fallthru
      _
  $region6: #{forward.56} parent=0 // loop_footer
    %s12 = sadd.s32 1, %s8
  $region7: #{forward.56} parent=0 // loop_footer_branch
    %7 = sbr.rel target = $region3
  $region8: #{forward.56} parent=0 // loop_exit
    _

// kernel: forward.57
$region0: #{forward.57}
  #allocation0 [shape = 'u32[]', space=smem, size = 0x4, offset = 0x4, fixed_abs, tag = 'smem constant byte address 0x4 - core index']
  #allocation1 [shape = 'u32[72,128]{1,0:T(1,128)}', space=vmem, size = 0x9000, scoped, tag = 'internal scratch']
  %s0 = inlined_call_operand.vmem [shape: f32[20,128], index: 0, kind: input, shape index: {}]
  %s1 = inlined_call_operand.vmem [shape: f32[128,512], index: 1, kind: input, shape index: {}]
  %s2 = inlined_call_operand.vmem [shape: f32[1,512], index: 2, kind: input, shape index: {}]
  %s3 = inlined_call_operand.vmem [shape: f32[20,512], index: 3, kind: output, shape index: {}]
  %s4 = sld [smem:[#allocation0]]
  $region22: #{forward.57} parent=0
    _
  %s6 = ssub.s32 1, %s4
  %s7 = scalar_select 0, %s6, %s4
  // Predicated region
  $region2: #{forward.57} parent=0 // pred_check
    _
  $region3: #{forward.57} parent=0 // pred_check_branch
    %9 = sbr.rel (0) target = $region5
  $region4: #{forward.57} parent=0 // pred_region
    _
  $region5: #{forward.57} parent=0 // pred_fallthru
    _
  // Predicated region
  $region6: #{forward.57} parent=0 // pred_check
    _
  $region7: #{forward.57} parent=0 // pred_check_branch
    %11 = sbr.rel (0) target = $region9
  $region8: #{forward.57} parent=0 // pred_region
    _
  $region9: #{forward.57} parent=0 // pred_fallthru
    _
  // Predicated region
  $region10: #{forward.57} parent=0 // pred_check
    _
  $region11: #{forward.57} parent=0 // pred_check_branch
    %13 = sbr.rel (0) target = $region13
  $region12: #{forward.57} parent=0 // pred_region
    _
  $region13: #{forward.57} parent=0 // pred_fallthru
    _
  %v14 = vld [vmem:[%s0] sm:$0xff]
  %v15 = vld [vmem:[%s0 + $0x8] sm:$0xff]
  %v16 = vld [vmem:[%s0 + $0x10] sm:$0xf]
  %v17 = vld [vmem:[%s1] sm:$0xff]
  %v18 = vld [vmem:[%s1 + $0x8] sm:$0xff]
  %v19 = vld [vmem:[%s1 + $0x10] sm:$0xff]
  %v20 = vld [vmem:[%s1 + $0x18] sm:$0xff]
  %v21 = vld [vmem:[%s1 + $0x20] sm:$0xff]
  %v22 = vld [vmem:[%s1 + $0x28] sm:$0xff]
  %v23 = vld [vmem:[%s1 + $0x30] sm:$0xff]
  %v24 = vld [vmem:[%s1 + $0x38] sm:$0xff]
  %v25 = vld [vmem:[%s1 + $0x40] sm:$0xff]
  %v26 = vld [vmem:[%s1 + $0x48] sm:$0xff]
  %v27 = vld [vmem:[%s1 + $0x50] sm:$0xff]
  %v28 = vld [vmem:[%s1 + $0x58] sm:$0xff]
  %v29 = vld [vmem:[%s1 + $0x60] sm:$0xff]
  %v30 = vld [vmem:[%s1 + $0x68] sm:$0xff]
  %v31 = vld [vmem:[%s1 + $0x70] sm:$0xff]
  %v32 = vld [vmem:[%s1 + $0x78] sm:$0xff]
  %v33 = vld [vmem:[%s1 + $0x80] sm:$0xff]
  %v34 = vld [vmem:[%s1 + $0x88] sm:$0xff]
  %v35 = vld [vmem:[%s1 + $0x90] sm:$0xff]
  %v36 = vld [vmem:[%s1 + $0x98] sm:$0xff]
  %v37 = vld [vmem:[%s1 + $0xa0] sm:$0xff]
  %v38 = vld [vmem:[%s1 + $0xa8] sm:$0xff]
  %v39 = vld [vmem:[%s1 + $0xb0] sm:$0xff]
  %v40 = vld [vmem:[%s1 + $0xb8] sm:$0xff]
  %v41 = vld [vmem:[%s1 + $0xc0] sm:$0xff]
  %v42 = vld [vmem:[%s1 + $0xc8] sm:$0xff]
  %v43 = vld [vmem:[%s1 + $0xd0] sm:$0xff]
  %v44 = vld [vmem:[%s1 + $0xd8] sm:$0xff]
  %v45 = vld [vmem:[%s1 + $0xe0] sm:$0xff]
  %v46 = vld [vmem:[%s1 + $0xe8] sm:$0xff]
  %v47 = vld [vmem:[%s1 + $0xf0] sm:$0xff]
  %v48 = vld [vmem:[%s1 + $0xf8] sm:$0xff]
  %v49 = vld [vmem:[%s1 + $0x100] sm:$0xff]
  %v50 = vld [vmem:[%s1 + $0x108] sm:$0xff]
  %v51 = vld [vmem:[%s1 + $0x110] sm:$0xff]
  %v52 = vld [vmem:[%s1 + $0x118] sm:$0xff]
  %v53 = vld [vmem:[%s1 + $0x120] sm:$0xff]
  %v54 = vld [vmem:[%s1 + $0x128] sm:$0xff]
  %v55 = vld [vmem:[%s1 + $0x130] sm:$0xff]
  %v56 = vld [vmem:[%s1 + $0x138] sm:$0xff]
  %v57 = vld [vmem:[%s1 + $0x140] sm:$0xff]
  %v58 = vld [vmem:[%s1 + $0x148] sm:$0xff]
  %v59 = vld [vmem:[%s1 + $0x150] sm:$0xff]
  %v60 = vld [vmem:[%s1 + $0x158] sm:$0xff]
  %v61 = vld [vmem:[%s1 + $0x160] sm:$0xff]
  %v62 = vld [vmem:[%s1 + $0x168] sm:$0xff]
  %v63 = vld [vmem:[%s1 + $0x170] sm:$0xff]
  %v64 = vld [vmem:[%s1 + $0x178] sm:$0xff]
  %v65 = vld [vmem:[%s1 + $0x180] sm:$0xff]
  %v66 = vld [vmem:[%s1 + $0x188] sm:$0xff]
  %v67 = vld [vmem:[%s1 + $0x190] sm:$0xff]
  %v68 = vld [vmem:[%s1 + $0x198] sm:$0xff]
  %v69 = vld [vmem:[%s1 + $0x1a0] sm:$0xff]
  %v70 = vld [vmem:[%s1 + $0x1a8] sm:$0xff]
  %v71 = vld [vmem:[%s1 + $0x1b0] sm:$0xff]
  %v72 = vld [vmem:[%s1 + $0x1b8] sm:$0xff]
  %v73 = vld [vmem:[%s1 + $0x1c0] sm:$0xff]
  %v74 = vld [vmem:[%s1 + $0x1c8] sm:$0xff]
  %v75 = vld [vmem:[%s1 + $0x1d0] sm:$0xff]
  %v76 = vld [vmem:[%s1 + $0x1d8] sm:$0xff]
  %v77 = vld [vmem:[%s1 + $0x1e0] sm:$0xff]
  %v78 = vld [vmem:[%s1 + $0x1e8] sm:$0xff]
  %v79 = vld [vmem:[%s1 + $0x1f0] sm:$0xff]
  %v80 = vld [vmem:[%s1 + $0x1f8] sm:$0xff]
  %v81 = vld [vmem:[%s2] sm:$0xf]
  %v83 = vperm.slane %v81, 0
  %v84 = vperm.slane %v81, 1
  %v85 = vperm.slane %v81, 2
  %v86 = vperm.slane %v81, 3
  %91 = vmatpush.msra.mxu0 %v77
  %92 = vmatpush.msra.mxu0 %v73
  %93 = vmatpush.msra.mxu0 %v69
  %94 = vmatpush.msra.mxu0 %v65
  %95 = vmatpush.msra.mxu0 %v61
  %96 = vmatpush.msra.mxu0 %v57
  %97 = vmatpush.msra.mxu0 %v53
  %98 = vmatpush.msra.mxu0 %v49
  %99 = vmatpush.msra.mxu0 %v45
  %100 = vmatpush.msra.mxu0 %v41
  %101 = vmatpush.msra.mxu0 %v37
  %102 = vmatpush.msra.mxu0 %v33
  %103 = vmatpush.msra.mxu0 %v29
  %104 = vmatpush.msra.mxu0 %v25
  %105 = vmatpush.msra.mxu0 %v21
  %106 = vmatpush.msra.mxu0 %v17
  %107 = vmatmul.f32.gmra.mxu0 %v14
  %v108 = vpop.f32.mrf.mxu0
  %v109 = vadd.f32 %v83, %v108
  %110 = vmatmul.f32.gmra.mxu0 %v15
  %v111 = vpop.f32.mrf.mxu0
  %v112 = vadd.f32 %v83, %v111
  %113 = vmatmul.f32.gmra.mxu0 %v16
  %v114 = vpop.f32.mrf.mxu0
  %v115 = vadd.f32 %v83, %v114
  %116 = vdwg.mxu0
  %117 = vmatpush.msra.mxu0 %v78
  %118 = vmatpush.msra.mxu0 %v74
  %119 = vmatpush.msra.mxu0 %v70
  %120 = vmatpush.msra.mxu0 %v66
  %121 = vmatpush.msra.mxu0 %v62
  %122 = vmatpush.msra.mxu0 %v58
  %123 = vmatpush.msra.mxu0 %v54
  %124 = vmatpush.msra.mxu0 %v50
  %125 = vmatpush.msra.mxu0 %v46
  %126 = vmatpush.msra.mxu0 %v42
  %127 = vmatpush.msra.mxu0 %v38
  %128 = vmatpush.msra.mxu0 %v34
  %129 = vmatpush.msra.mxu0 %v30
  %130 = vmatpush.msra.mxu0 %v26
  %131 = vmatpush.msra.mxu0 %v22
  %132 = vmatpush.msra.mxu0 %v18
  %133 = vmatmul.f32.gmra.mxu0 %v14
  %v134 = vpop.f32.mrf.mxu0
  %v135 = vadd.f32 %v84, %v134
  %136 = vmatmul.f32.gmra.mxu0 %v15
  %v137 = vpop.f32.mrf.mxu0
  %v138 = vadd.f32 %v84, %v137
  %139 = vmatmul.f32.gmra.mxu0 %v16
  %v140 = vpop.f32.mrf.mxu0
  %v141 = vadd.f32 %v84, %v140
  %142 = vdwg.mxu0
  %143 = vmatpush.msra.mxu0 %v79
  %144 = vmatpush.msra.mxu0 %v75
  %145 = vmatpush.msra.mxu0 %v71
  %146 = vmatpush.msra.mxu0 %v67
  %147 = vmatpush.msra.mxu0 %v63
  %148 = vmatpush.msra.mxu0 %v59
  %149 = vmatpush.msra.mxu0 %v55
  %150 = vmatpush.msra.mxu0 %v51
  %151 = vmatpush.msra.mxu0 %v47
  %152 = vmatpush.msra.mxu0 %v43
  %153 = vmatpush.msra.mxu0 %v39
  %154 = vmatpush.msra.mxu0 %v35
  %155 = vmatpush.msra.mxu0 %v31
  %156 = vmatpush.msra.mxu0 %v27
  %157 = vmatpush.msra.mxu0 %v23
  %158 = vmatpush.msra.mxu0 %v19
  %159 = vmatmul.f32.gmra.mxu0 %v14
  %v160 = vpop.f32.mrf.mxu0
  %v161 = vadd.f32 %v85, %v160
  %162 = vmatmul.f32.gmra.mxu0 %v15
  %v163 = vpop.f32.mrf.mxu0
  %v164 = vadd.f32 %v85, %v163
  %165 = vmatmul.f32.gmra.mxu0 %v16
  %v166 = vpop.f32.mrf.mxu0
  %v167 = vadd.f32 %v85, %v166
  %168 = vdwg.mxu0
  %169 = vmatpush.msra.mxu0 %v80
  %170 = vmatpush.msra.mxu0 %v76
  %171 = vmatpush.msra.mxu0 %v72
  %172 = vmatpush.msra.mxu0 %v68
  %173 = vmatpush.msra.mxu0 %v64
  %174 = vmatpush.msra.mxu0 %v60
  %175 = vmatpush.msra.mxu0 %v56
  %176 = vmatpush.msra.mxu0 %v52
  %177 = vmatpush.msra.mxu0 %v48
  %178 = vmatpush.msra.mxu0 %v44
  %179 = vmatpush.msra.mxu0 %v40
  %180 = vmatpush.msra.mxu0 %v36
  %181 = vmatpush.msra.mxu0 %v32
  %182 = vmatpush.msra.mxu0 %v28
  %183 = vmatpush.msra.mxu0 %v24
  %184 = vmatpush.msra.mxu0 %v20
  %185 = vmatmul.f32.gmra.mxu0 %v14
  %v186 = vpop.f32.mrf.mxu0
  %v187 = vadd.f32 %v86, %v186
  %188 = vmatmul.f32.gmra.mxu0 %v15
  %v189 = vpop.f32.mrf.mxu0
  %v190 = vadd.f32 %v86, %v189
  %191 = vmatmul.f32.gmra.mxu0 %v16
  %v192 = vpop.f32.mrf.mxu0
  %v193 = vadd.f32 %v86, %v192
  %194 = vdwg.mxu0
  %195 = vst [vmem:[%s3] sm:$0xff] %v109
  %196 = vst [vmem:[%s3 + $0x8] sm:$0xff] %v135
  %197 = vst [vmem:[%s3 + $0x10] sm:$0xff] %v161
  %198 = vst [vmem:[%s3 + $0x18] sm:$0xff] %v187
  %199 = vst [vmem:[%s3 + $0x20] sm:$0xff] %v112
  %200 = vst [vmem:[%s3 + $0x28] sm:$0xff] %v138
  %201 = vst [vmem:[%s3 + $0x30] sm:$0xff] %v164
  %202 = vst [vmem:[%s3 + $0x38] sm:$0xff] %v190
  %203 = vst [vmem:[%s3 + $0x40] sm:$0xf] %v115
  %204 = vst [vmem:[%s3 + $0x48] sm:$0xf] %v141
  %205 = vst [vmem:[%s3 + $0x50] sm:$0xf] %v167
  %206 = vst [vmem:[%s3 + $0x58] sm:$0xf] %v193
  // Predicated region
  $region14: #{forward.57} parent=0 // pred_check
    _
  $region15: #{forward.57} parent=0 // pred_check_branch
    %208 = sbr.rel (0) target = $region17
  $region16: #{forward.57} parent=0 // pred_region
    _
  $region17: #{forward.57} parent=0 // pred_fallthru
    _
  // Predicated region
  $region18: #{forward.57} parent=0 // pred_check
    _
  $region19: #{forward.57} parent=0 // pred_check_branch
    %210 = sbr.rel (0) target = $region21
  $region20: #{forward.57} parent=0 // pred_region
    _
  $region21: #{forward.57} parent=0 // pred_fallthru
    _

// kernel: forward.59
$region0: #{forward.59}
  #allocation0 [shape = 'u32[]', space=smem, size = 0x4, offset = 0x4, fixed_abs, tag = 'smem constant byte address 0x4 - core index']
  #allocation1 [shape = 'u32[72,128]{1,0:T(1,128)}', space=vmem, size = 0x9000, scoped, tag = 'internal scratch']
  %s0 = inlined_call_operand.vmem [shape: f32[20,128], index: 0, kind: input, shape index: {}]
  %s1 = inlined_call_operand.vmem [shape: f32[128,40], index: 1, kind: input, shape index: {}]
  %s2 = inlined_call_operand.vmem [shape: f32[1,40], index: 2, kind: input, shape index: {}]
  %s3 = inlined_call_operand.vmem [shape: f32[20,40], index: 3, kind: output, shape index: {}]
  %s4 = sld [smem:[#allocation0]]
  $region22: #{forward.59} parent=0
    _
  %s6 = ssub.s32 1, %s4
  %s7 = scalar_select 0, %s6, %s4
  // Predicated region
  $region2: #{forward.59} parent=0 // pred_check
    _
  $region3: #{forward.59} parent=0 // pred_check_branch
    %9 = sbr.rel (0) target = $region5
  $region4: #{forward.59} parent=0 // pred_region
    _
  $region5: #{forward.59} parent=0 // pred_fallthru
    _
  // Predicated region
  $region6: #{forward.59} parent=0 // pred_check
    _
  $region7: #{forward.59} parent=0 // pred_check_branch
    %11 = sbr.rel (0) target = $region9
  $region8: #{forward.59} parent=0 // pred_region
    _
  $region9: #{forward.59} parent=0 // pred_fallthru
    _
  // Predicated region
  $region10: #{forward.59} parent=0 // pred_check
    _
  $region11: #{forward.59} parent=0 // pred_check_branch
    %13 = sbr.rel (0) target = $region13
  $region12: #{forward.59} parent=0 // pred_region
    _
  $region13: #{forward.59} parent=0 // pred_fallthru
    _
  %v14 = vld [vmem:[%s0] sm:$0xff]
  %v15 = vld [vmem:[%s0 + $0x8] sm:$0xff]
  %v16 = vld [vmem:[%s0 + $0x10] sm:$0xf]
  %v17 = vld [vmem:[%s1] sm:$0xff]
  %v18 = vld [vmem:[%s1 + $0x8] sm:$0xff]
  %v19 = vld [vmem:[%s1 + $0x10] sm:$0xff]
  %v20 = vld [vmem:[%s1 + $0x18] sm:$0xff]
  %v21 = vld [vmem:[%s1 + $0x20] sm:$0xff]
  %v22 = vld [vmem:[%s1 + $0x28] sm:$0xff]
  %v23 = vld [vmem:[%s1 + $0x30] sm:$0xff]
  %v24 = vld [vmem:[%s1 + $0x38] sm:$0xff]
  %v25 = vld [vmem:[%s1 + $0x40] sm:$0xff]
  %v26 = vld [vmem:[%s1 + $0x48] sm:$0xff]
  %v27 = vld [vmem:[%s1 + $0x50] sm:$0xff]
  %v28 = vld [vmem:[%s1 + $0x58] sm:$0xff]
  %v29 = vld [vmem:[%s1 + $0x60] sm:$0xff]
  %v30 = vld [vmem:[%s1 + $0x68] sm:$0xff]
  %v31 = vld [vmem:[%s1 + $0x70] sm:$0xff]
  %v32 = vld [vmem:[%s1 + $0x78] sm:$0xff]
  %v33 = vld [vmem:[%s2] sm:$0x1]
  %v35 = vperm.slane %v33, 0
  %37 = vmatpush.msra.mxu0 %v32
  %38 = vmatpush.msra.mxu0 %v31
  %39 = vmatpush.msra.mxu0 %v30
  %40 = vmatpush.msra.mxu0 %v29
  %41 = vmatpush.msra.mxu0 %v28
  %42 = vmatpush.msra.mxu0 %v27
  %43 = vmatpush.msra.mxu0 %v26
  %44 = vmatpush.msra.mxu0 %v25
  %45 = vmatpush.msra.mxu0 %v24
  %46 = vmatpush.msra.mxu0 %v23
  %47 = vmatpush.msra.mxu0 %v22
  %48 = vmatpush.msra.mxu0 %v21
  %49 = vmatpush.msra.mxu0 %v20
  %50 = vmatpush.msra.mxu0 %v19
  %51 = vmatpush.msra.mxu0 %v18
  %52 = vmatpush.msra.mxu0 %v17
  %53 = vmatmul.f32.gmra.mxu0 %v14
  %v54 = vpop.f32.mrf.mxu0
  %v55 = vadd.f32 %v35, %v54
  %56 = vmatmul.f32.gmra.mxu0 %v15
  %v57 = vpop.f32.mrf.mxu0
  %v58 = vadd.f32 %v35, %v57
  %59 = vmatmul.f32.gmra.mxu0 %v16
  %v60 = vpop.f32.mrf.mxu0
  %v61 = vadd.f32 %v35, %v60
  %62 = vdwg.mxu0
  %vm63 = vcmask 326656
  %v64 = vsel %vm63, %v55, -inf
  %65 = vmax.xlane.f32.xlu0 %v64
  %v66 = vpop.xlane.xlu0 %65
  %v67 = vsel %vm63, %v58, -inf
  %68 = vmax.xlane.f32.xlu0 %v67
  %v69 = vpop.xlane.xlu0 %68
  %vm70 = vcmask 322560
  %v71 = vsel %vm70, %v61, -inf
  %72 = vmax.xlane.f32.xlu0 %v71
  %v73 = vpop.xlane.xlu0 %72
  %v74 = vsub.f32 %v55, %v66
  %v75 = vsub.f32 %v58, %v69
  %v76 = vsub.f32 %v61, %v73
  %v77 = vmul.f32 %v74, 1.442695
  %v78 = vpow.pop %v77
  %v79 = vmul.f32 %v75, 1.442695
  %v80 = vpow.pop %v79
  %v81 = vmul.f32 %v76, 1.442695
  %v82 = vpow.pop %v81
  %v83 = vsel %vm63, %v78, 0.0
  %84 = vadd.xlane.f32.xlu0 %v83
  %v85 = vpop.xlane.xlu0 %84
  %v86 = vsel %vm63, %v80, 0.0
  %87 = vadd.xlane.f32.xlu0 %v86
  %v88 = vpop.xlane.xlu0 %87
  %v89 = vsel %vm70, %v82, 0.0
  %90 = vadd.xlane.f32.xlu0 %v89
  %v91 = vpop.xlane.xlu0 %90
  %v92 = vlog2.pop %v85
  %v93 = vmul.f32 %v92, 0.6931472
  %v94 = vlog2.pop %v88
  %v95 = vmul.f32 %v94, 0.6931472
  %v96 = vlog2.pop %v91
  %v97 = vmul.f32 %v96, 0.6931472
  %v98 = vsub.f32 %v74, %v93
  %v99 = vsub.f32 %v75, %v95
  %v100 = vsub.f32 %v76, %v97
  %101 = vst.msk [vmem:[%s3] sm:$0xff] %vm63, %v98
  %102 = vst.msk [vmem:[%s3 + $0x8] sm:$0xff] %vm63, %v99
  %103 = vst.msk [vmem:[%s3 + $0x10] sm:$0xf] %vm70, %v100
  // Predicated region
  $region14: #{forward.59} parent=0 // pred_check
    _
  $region15: #{forward.59} parent=0 // pred_check_branch
    %105 = sbr.rel (0) target = $region17
  $region16: #{forward.59} parent=0 // pred_region
    _
  $region17: #{forward.59} parent=0 // pred_fallthru
    _
  // Predicated region
  $region18: #{forward.59} parent=0 // pred_check
    _
  $region19: #{forward.59} parent=0 // pred_check_branch
    %107 = sbr.rel (0) target = $region21
  $region20: #{forward.59} parent=0 // pred_region
    _
  $region21: #{forward.59} parent=0 // pred_fallthru
    _

</llo_original>
